<compile_context>
chip_gen: v6e
topology: v6e:2x2x1
jax: 0.10.0
libtpu: 0.0.40
codegen_flags: <defaults>
</compile_context>

<pallas_src>
import functools

import numpy as np
import jax
import jax.numpy as jnp
from jax import lax
from jax.experimental import pallas as pl
from jax.experimental.pallas import tpu as pltpu


# --------------------------- fused Pallas kernel ----------------------------


def _conv3x3_mxu(X, w_ref, b_ref, m_ref, W, L, leaky):
    """3x3 'same' conv on a lane-dense slab, channel mix on the MXU.

    X      : (Cin, L) activations, column index = b*H*W + y*W + x.
    w_ref  : (9, Cout, Cin) VMEM ref, tap-major weights (k = ky*3 + kx).
    b_ref  : (Cout, 1) VMEM ref.
    m_ref  : (9, 1, L) VMEM ref of 0/1 tap-validity masks for this resolution.
    """
    cout = w_ref.shape[1]
    acc = jnp.zeros((cout, L), jnp.float32)
    k = 0
    for dy in (-1, 0, 1):
        for dx in (-1, 0, 1):
            delta = dy * W + dx
            if delta == 0:
                tap = X                       # centre tap: no shift, no mask
            else:
                # tap[:, j] = X[:, j + delta] (zero outside the image):
                # circular lane roll (XLU) + 0/1 validity mask.  The mask also
                # kills the positions where the circular roll crosses a batch
                # (or array) boundary, so the wrap-around is exact.
                tap = pltpu.roll(X, shift=(-delta) % L, axis=1) * m_ref[k]
            acc = acc + jnp.dot(w_ref[k], tap,
                                preferred_element_type=jnp.float32)
            k += 1
    acc = acc + b_ref[...]
    if leaky:
        acc = jnp.where(acc >= 0.0, acc, 0.2 * acc)        # LeakyReLU(0.2)
    return acc


def _df_kernel(*refs, cfg):
    n_conv = cfg["n_conv"]
    n_res = len(cfg["resolutions"])
    n_up = cfg["n_up"]

    it = iter(refs)
    x_ref, wfc_ref, bfc_ref = next(it), next(it), next(it)
    w_refs = [next(it) for _ in range(n_conv)]
    b_refs = [next(it) for _ in range(n_conv)]
    m_refs = [next(it) for _ in range(n_res)]
    u_refs = [next(it) for _ in range(n_up)]
    o_ref = next(it)
    xr_ref = next(it)

    B, C = cfg["batch"], cfg["num_chnl"]
    H, W = cfg["H0"], cfg["W0"]
    HW = H * W
    res_index = {hw: i for i, hw in enumerate(cfg["resolutions"])}

    # ---- fc: (B, Din) @ (Din, C*H0*W0) + b ; rearrange to (C, B*HW) slab ----
    fcout = (jnp.dot(x_ref[...], wfc_ref[...],
                     preferred_element_type=jnp.float32) + bfc_ref[...])
    for c in range(C):                         # tiny one-off relayout (8 slices)
        for b in range(B):
            xr_ref[c:c + 1, b * HW:(b + 1) * HW] = \
                fcout[b:b + 1, c * HW:(c + 1) * HW]
    X = xr_ref[...]

    # ---- ResModel blocks ----
    conv_i, up_i = 0, 0
    for factor in cfg["factors"]:
        res_in = X
        for _ in range(cfg["num_conv"]):
            X = _conv3x3_mxu(X, w_refs[conv_i], b_refs[conv_i],
                             m_refs[res_index[(H, W)]], W, B * HW, leaky=True)
            conv_i += 1
        X = X + res_in                                     # residual add
        if factor != 1:                                    # 2x nearest upsample
            # one matmul for ALL channels against a block-diag 0/1 gather matrix
            X = jnp.dot(X, u_refs[up_i][...],
                        preferred_element_type=jnp.float32)
            up_i += 1
            H, W = H * factor, W * factor
            HW = H * W

    # ---- final conv (no activation) + lane-aligned stores ----
    Y = _conv3x3_mxu(X, w_refs[conv_i], b_refs[conv_i],
                     m_refs[res_index[(H, W)]], W, B * HW, leaky=False)
    for b in range(B):
        o_ref[b] = Y[:, b * HW:(b + 1) * HW]


# ----------------------------- host-side helpers ----------------------------


def _tap_masks_np(H, W, B):
    """(9, 1, B*H*W) 0/1 masks: tap (dy,dx) valid iff (y+dy, x+dx) in-bounds."""
    y = np.arange(H * W) // W
    x = np.arange(H * W) % W
    masks = np.zeros((9, 1, B * H * W), np.float32)
    k = 0
    for dy in (-1, 0, 1):
        for dx in (-1, 0, 1):
            valid = ((y + dy >= 0) & (y + dy < H) &
                     (x + dx >= 0) & (x + dx < W)).astype(np.float32)
            masks[k, 0] = np.tile(valid, B)
            k += 1
    return masks


def _upsample_matrix_np(H, W, factor, B):
    """Block-diag 0/1 matrix U: (slab @ U) == per-batch 2D nearest upsample."""
    H2, W2 = H * factor, W * factor
    U = np.zeros((H * W, H2 * W2), np.float32)
    for j in range(H2 * W2):
        y2, x2 = j // W2, j % W2
        U[(y2 // factor) * W + (x2 // factor), j] = 1.0
    return np.kron(np.eye(B, dtype=np.float32), U)     # (B*HW, B*H2*W2)


def df_forward(params, x0):
    B = x0.shape[0]
    C, H0, W0 = params["first_shape"]
    factors = params["factors"]
    num_conv = params["num_conv"]
    cout_final = params["conv_w"][-1].shape[0]
    n_conv = len(params["conv_w"])

    # Tap-major (9, Cout, Cin) weight stacks and (Cout, 1) biases (MXU operands).
    w_stk = [jnp.transpose(w, (2, 3, 0, 1)).reshape(9, w.shape[0], w.shape[1])
             for w in params["conv_w"]]
    b_stk = [b.reshape(-1, 1) for b in params["conv_b"]]

    # Resolutions, per-resolution tap masks, nearest-upsample gather matrices.
    resolutions, u_mats = [], []
    H, W = H0, W0
    for factor in factors:
        if (H, W) not in resolutions:
            resolutions.append((H, W))
        if factor != 1:
            u_mats.append(jnp.asarray(_upsample_matrix_np(H, W, factor, B)))
            H, W = H * factor, W * factor
    if (H, W) not in resolutions:
        resolutions.append((H, W))
    Hf, Wf = H, W
    masks = [jnp.asarray(_tap_masks_np(h, w, B)) for (h, w) in resolutions]

    cfg = dict(batch=B, num_chnl=C, H0=H0, W0=W0, num_conv=num_conv,
               factors=tuple(factors), n_conv=n_conv,
               resolutions=tuple(resolutions), n_up=len(u_mats))

    vmem = pl.BlockSpec(memory_space=pltpu.MemorySpace.VMEM)
    n_in = 3 + 2 * n_conv + len(masks) + len(u_mats)

    out_flat = pl.pallas_call(
        functools.partial(_df_kernel, cfg=cfg),
        out_shape=jax.ShapeDtypeStruct((B, cout_final, Hf * Wf), jnp.float32),
        in_specs=[vmem] * n_in,
        out_specs=vmem,
        scratch_shapes=[pltpu.VMEM((C, B * H0 * W0), jnp.float32)],
    )(x0, params["fc_w"], params["fc_b"].reshape(1, -1),
      *w_stk, *b_stk, *masks, *u_mats)

    # Free, contiguous reshape to NCHW (matches PyTorch output layout).
    return out_flat.reshape(B, cout_final, Hf, Wf)


# ------------------------- parameter construction ---------------------------


def _init_conv(key, cin, cout, k=3):
    k1, k2 = jax.random.split(key)
    bound = 1.0 / np.sqrt(cin * k * k)
    w = jax.random.uniform(k1, (cout, cin, k, k), jnp.float32, -bound, bound)
    b = jax.random.uniform(k2, (cout,), jnp.float32, -bound, bound)
    return w, b


def build_df_model(key, input_shape, num_chnl, num_conv, output_shape):
    layer_num = int(np.log2(np.max(output_shape[:-1]))) - 2
    first_shape = [num_chnl] + [int(i / np.power(2, layer_num - 1))
                                for i in output_shape[:-1]]
    params = {"first_shape": first_shape, "num_conv": num_conv}

    key, k = jax.random.split(key)
    k1, k2 = jax.random.split(k)
    dfc = int(np.prod(first_shape))
    bound = 1.0 / np.sqrt(input_shape)
    params["fc_w"] = jax.random.uniform(k1, (input_shape, dfc), jnp.float32,
                                        -bound, bound)
    params["fc_b"] = jax.random.uniform(k2, (dfc,), jnp.float32, -bound, bound)

    conv_w, conv_b, factors = [], [], []
    for i in range(layer_num):
        for _ in range(num_conv):
            key, k = jax.random.split(key)
            w, b = _init_conv(k, num_chnl, num_chnl)
            conv_w.append(w)
            conv_b.append(b)
        factors.append(2 if i < layer_num - 1 else 1)
    key, k = jax.random.split(key)
    w, b = _init_conv(k, num_chnl, output_shape[-1])
    conv_w.append(w)
    conv_b.append(b)

    params["conv_w"] = conv_w
    params["conv_b"] = conv_b
    params["factors"] = factors
    return params


# --------------------------- pure-JAX reference ------------------------------


def _ref_forward(params, x0):
    C, H0, W0 = params["first_shape"]
    x = (x0 @ params["fc_w"] + params["fc_b"]).reshape(-1, C, H0, W0)
    dn = ("NCHW", "OIHW", "NCHW")

    def conv(x, w, b):
        y = lax.conv_general_dilated(x, w, (1, 1), "SAME",
                                     dimension_numbers=dn)
        return y + b.reshape(1, -1, 1, 1)

    idx = 0
    for factor in params["factors"]:
        res_in = x
        for _ in range(params["num_conv"]):
            x = conv(x, params["conv_w"][idx], params["conv_b"][idx])
            idx += 1
            x = jnp.where(x >= 0, x, 0.2 * x)
        x = x + res_in
        if factor != 1:
            x = jnp.repeat(jnp.repeat(x, factor, axis=2), factor, axis=3)
    x = conv(x, params["conv_w"][idx], params["conv_b"][idx])
    return x


# ----------------------------------- main ------------------------------------

if __name__ == "__main__":
    # DFModel(input_shape=8, num_chnl=4, num_conv=2, output_shape=(16, 16, 3))
    #   -> layer_num=2, first_shape=[4, 8, 8], fc: 8 -> 256
    #   -> output (batch, 3, 16, 16) NCHW, matching PyTorch.
    key = jax.random.PRNGKey(0)
    key, pkey, xkey = jax.random.split(key, 3)

    input_shape, num_chnl, num_conv = 8, 4, 2
    output_shape = (16, 16, 3)
    batch = 2

    params = build_df_model(pkey, input_shape, num_chnl, num_conv, output_shape)
    x0 = jax.random.normal(xkey, (batch, input_shape), jnp.float32)

    out = jax.block_until_ready(df_forward(params, x0))
    assert out.shape == (batch, output_shape[-1], output_shape[0],
                         output_shape[1])

    ref = jax.block_until_ready(_ref_forward(params, x0))
    assert np.allclose(np.asarray(out), np.asarray(ref), atol=1e-3, rtol=1e-3)

    print("KERNEL_OK")
</pallas_src>

<mosaic_0001>
module attributes {stable_mosaic.version = 11 : i64} {
  func.func @_df_kernel(%arg0: memref<2x8xf32, #tpu.memory_space<vmem>>, %arg1: memref<8x256xf32, #tpu.memory_space<vmem>>, %arg2: memref<1x256xf32, #tpu.memory_space<vmem>>, %arg3: memref<9x4x4xf32, #tpu.memory_space<vmem>>, %arg4: memref<9x4x4xf32, #tpu.memory_space<vmem>>, %arg5: memref<9x4x4xf32, #tpu.memory_space<vmem>>, %arg6: memref<9x4x4xf32, #tpu.memory_space<vmem>>, %arg7: memref<9x3x4xf32, #tpu.memory_space<vmem>>, %arg8: memref<4x1xf32, #tpu.memory_space<vmem>>, %arg9: memref<4x1xf32, #tpu.memory_space<vmem>>, %arg10: memref<4x1xf32, #tpu.memory_space<vmem>>, %arg11: memref<4x1xf32, #tpu.memory_space<vmem>>, %arg12: memref<3x1xf32, #tpu.memory_space<vmem>>, %arg13: memref<9x1x128xf32, #tpu.memory_space<vmem>>, %arg14: memref<9x1x512xf32, #tpu.memory_space<vmem>>, %arg15: memref<128x512xf32, #tpu.memory_space<vmem>>, %arg16: memref<2x3x256xf32, #tpu.memory_space<vmem>>, %arg17: memref<4x128xf32, #tpu.memory_space<vmem>>) attributes {dimension_semantics = [], scalar_prefetch = 0 : i64, scratch_operands = 1 : i64, tpu.core_type = #tpu.core_type<tc>} {
    %c0 = arith.constant 0 : index
    %c0_0 = arith.constant 0 : index
    %0 = vector.load %arg0[%c0, %c0_0] : memref<2x8xf32, #tpu.memory_space<vmem>>, vector<2x8xf32>
    %c0_1 = arith.constant 0 : index
    %c0_2 = arith.constant 0 : index
    %1 = vector.load %arg1[%c0_1, %c0_2] : memref<8x256xf32, #tpu.memory_space<vmem>>, vector<8x256xf32>
    %cst = arith.constant dense<0.000000e+00> : vector<2x256xf32>
    %2 = tpu.matmul %0, %1, %cst {dimension_numbers = #tpu.dot_dimension_numbers<[1], [0], [0], [1], [0, 0, 1, 1], [], []>} : vector<2x8xf32>, vector<8x256xf32>, vector<2x256xf32> -> vector<2x256xf32>
    %c0_3 = arith.constant 0 : index
    %c0_4 = arith.constant 0 : index
    %3 = vector.load %arg2[%c0_3, %c0_4] : memref<1x256xf32, #tpu.memory_space<vmem>>, vector<1x256xf32>
    %4 = vector.broadcast %3 : vector<1x256xf32> to vector<2x256xf32>
    %5 = arith.addf %2, %4 : vector<2x256xf32>
    %6 = vector.extract_strided_slice %5 {offsets = [0, 0], sizes = [1, 64], strides = [1, 1]} : vector<2x256xf32> to vector<1x64xf32>
    %c0_5 = arith.constant 0 : index
    %c0_6 = arith.constant 0 : index
    %7 = vector.load %arg17[%c0_5, %c0_6] : memref<4x128xf32, #tpu.memory_space<vmem>>, vector<1x64xf32>
    tpu.vector_store %arg17[%c0_5, %c0_6], %6 {strides = array<i32>} : memref<4x128xf32, #tpu.memory_space<vmem>>, vector<1x64xf32>,
    %8 = vector.extract_strided_slice %5 {offsets = [1, 0], sizes = [1, 64], strides = [1, 1]} : vector<2x256xf32> to vector<1x64xf32>
    %c0_7 = arith.constant 0 : index
    %c64 = arith.constant 64 : index
    %9 = vector.load %arg17[%c0_7, %c64] : memref<4x128xf32, #tpu.memory_space<vmem>>, vector<1x64xf32>
    tpu.vector_store %arg17[%c0_7, %c64], %8 {strides = array<i32>} : memref<4x128xf32, #tpu.memory_space<vmem>>, vector<1x64xf32>,
    %10 = vector.extract_strided_slice %5 {offsets = [0, 64], sizes = [1, 64], strides = [1, 1]} : vector<2x256xf32> to vector<1x64xf32>
    %c1 = arith.constant 1 : index
    %c0_8 = arith.constant 0 : index
    %11 = vector.load %arg17[%c1, %c0_8] : memref<4x128xf32, #tpu.memory_space<vmem>>, vector<1x64xf32>
    tpu.vector_store %arg17[%c1, %c0_8], %10 {strides = array<i32>} : memref<4x128xf32, #tpu.memory_space<vmem>>, vector<1x64xf32>,
    %12 = vector.extract_strided_slice %5 {offsets = [1, 64], sizes = [1, 64], strides = [1, 1]} : vector<2x256xf32> to vector<1x64xf32>
    %c1_9 = arith.constant 1 : index
    %c64_10 = arith.constant 64 : index
    %13 = vector.load %arg17[%c1_9, %c64_10] : memref<4x128xf32, #tpu.memory_space<vmem>>, vector<1x64xf32>
    tpu.vector_store %arg17[%c1_9, %c64_10], %12 {strides = array<i32>} : memref<4x128xf32, #tpu.memory_space<vmem>>, vector<1x64xf32>,
    %14 = vector.extract_strided_slice %5 {offsets = [0, 128], sizes = [1, 64], strides = [1, 1]} : vector<2x256xf32> to vector<1x64xf32>
    %c2 = arith.constant 2 : index
    %c0_11 = arith.constant 0 : index
    %15 = vector.load %arg17[%c2, %c0_11] : memref<4x128xf32, #tpu.memory_space<vmem>>, vector<1x64xf32>
    tpu.vector_store %arg17[%c2, %c0_11], %14 {strides = array<i32>} : memref<4x128xf32, #tpu.memory_space<vmem>>, vector<1x64xf32>,
    %16 = vector.extract_strided_slice %5 {offsets = [1, 128], sizes = [1, 64], strides = [1, 1]} : vector<2x256xf32> to vector<1x64xf32>
    %c2_12 = arith.constant 2 : index
    %c64_13 = arith.constant 64 : index
    %17 = vector.load %arg17[%c2_12, %c64_13] : memref<4x128xf32, #tpu.memory_space<vmem>>, vector<1x64xf32>
    tpu.vector_store %arg17[%c2_12, %c64_13], %16 {strides = array<i32>} : memref<4x128xf32, #tpu.memory_space<vmem>>, vector<1x64xf32>,
    %18 = vector.extract_strided_slice %5 {offsets = [0, 192], sizes = [1, 64], strides = [1, 1]} : vector<2x256xf32> to vector<1x64xf32>
    %c3 = arith.constant 3 : index
    %c0_14 = arith.constant 0 : index
    %19 = vector.load %arg17[%c3, %c0_14] : memref<4x128xf32, #tpu.memory_space<vmem>>, vector<1x64xf32>
    tpu.vector_store %arg17[%c3, %c0_14], %18 {strides = array<i32>} : memref<4x128xf32, #tpu.memory_space<vmem>>, vector<1x64xf32>,
    %20 = vector.extract_strided_slice %5 {offsets = [1, 192], sizes = [1, 64], strides = [1, 1]} : vector<2x256xf32> to vector<1x64xf32>
    %c3_15 = arith.constant 3 : index
    %c64_16 = arith.constant 64 : index
    %21 = vector.load %arg17[%c3_15, %c64_16] : memref<4x128xf32, #tpu.memory_space<vmem>>, vector<1x64xf32>
    tpu.vector_store %arg17[%c3_15, %c64_16], %20 {strides = array<i32>} : memref<4x128xf32, #tpu.memory_space<vmem>>, vector<1x64xf32>,
    %c0_17 = arith.constant 0 : index
    %c0_18 = arith.constant 0 : index
    %22 = vector.load %arg17[%c0_17, %c0_18] : memref<4x128xf32, #tpu.memory_space<vmem>>, vector<4x128xf32>
    %cst_19 = arith.constant 0.000000e+00 : f32
    %23 = vector.broadcast %cst_19 : f32 to vector<4x128xf32>
    %c9_i32 = arith.constant 9 : i32
    %24 = tpu.dynamic_rotate %22 by %c9_i32 dim 1 : vector<4x128xf32>, i32 -> vector<4x128xf32>
    %c0_20 = arith.constant 0 : index
    %c0_21 = arith.constant 0 : index
    %c0_22 = arith.constant 0 : index
    %25 = vector.load %arg13[%c0_20, %c0_21, %c0_22] : memref<9x1x128xf32, #tpu.memory_space<vmem>>, vector<1x1x128xf32>
    %26 = vector.shape_cast %25 : vector<1x1x128xf32> to vector<1x128xf32>
    %27 = vector.broadcast %26 : vector<1x128xf32> to vector<4x128xf32>
    %28 = arith.mulf %24, %27 : vector<4x128xf32>
    %c0_23 = arith.constant 0 : index
    %c0_24 = arith.constant 0 : index
    %c0_25 = arith.constant 0 : index
    %29 = vector.load %arg3[%c0_23, %c0_24, %c0_25] : memref<9x4x4xf32, #tpu.memory_space<vmem>>, vector<1x4x4xf32>
    %30 = vector.shape_cast %29 : vector<1x4x4xf32> to vector<4x4xf32>
    %cst_26 = arith.constant dense<0.000000e+00> : vector<4x128xf32>
    %31 = tpu.matmul %30, %28, %cst_26 {dimension_numbers = #tpu.dot_dimension_numbers<[1], [0], [0], [1], [0, 0, 1, 1], [], []>} : vector<4x4xf32>, vector<4x128xf32>, vector<4x128xf32> -> vector<4x128xf32>
    %32 = arith.addf %23, %31 : vector<4x128xf32>
    %c8_i32 = arith.constant 8 : i32
    %33 = tpu.dynamic_rotate %22 by %c8_i32 dim 1 : vector<4x128xf32>, i32 -> vector<4x128xf32>
    %c1_27 = arith.constant 1 : index
    %c0_28 = arith.constant 0 : index
    %c0_29 = arith.constant 0 : index
    %34 = vector.load %arg13[%c1_27, %c0_28, %c0_29] : memref<9x1x128xf32, #tpu.memory_space<vmem>>, vector<1x1x128xf32>
    %35 = vector.shape_cast %34 : vector<1x1x128xf32> to vector<1x128xf32>
    %36 = vector.broadcast %35 : vector<1x128xf32> to vector<4x128xf32>
    %37 = arith.mulf %33, %36 : vector<4x128xf32>
    %c1_30 = arith.constant 1 : index
    %c0_31 = arith.constant 0 : index
    %c0_32 = arith.constant 0 : index
    %38 = vector.load %arg3[%c1_30, %c0_31, %c0_32] : memref<9x4x4xf32, #tpu.memory_space<vmem>>, vector<1x4x4xf32>
    %39 = vector.shape_cast %38 : vector<1x4x4xf32> to vector<4x4xf32>
    %cst_33 = arith.constant dense<0.000000e+00> : vector<4x128xf32>
    %40 = tpu.matmul %39, %37, %cst_33 {dimension_numbers = #tpu.dot_dimension_numbers<[1], [0], [0], [1], [0, 0, 1, 1], [], []>} : vector<4x4xf32>, vector<4x128xf32>, vector<4x128xf32> -> vector<4x128xf32>
    %41 = arith.addf %32, %40 : vector<4x128xf32>
    %c7_i32 = arith.constant 7 : i32
    %42 = tpu.dynamic_rotate %22 by %c7_i32 dim 1 : vector<4x128xf32>, i32 -> vector<4x128xf32>
    %c2_34 = arith.constant 2 : index
    %c0_35 = arith.constant 0 : index
    %c0_36 = arith.constant 0 : index
    %43 = vector.load %arg13[%c2_34, %c0_35, %c0_36] : memref<9x1x128xf32, #tpu.memory_space<vmem>>, vector<1x1x128xf32>
    %44 = vector.shape_cast %43 : vector<1x1x128xf32> to vector<1x128xf32>
    %45 = vector.broadcast %44 : vector<1x128xf32> to vector<4x128xf32>
    %46 = arith.mulf %42, %45 : vector<4x128xf32>
    %c2_37 = arith.constant 2 : index
    %c0_38 = arith.constant 0 : index
    %c0_39 = arith.constant 0 : index
    %47 = vector.load %arg3[%c2_37, %c0_38, %c0_39] : memref<9x4x4xf32, #tpu.memory_space<vmem>>, vector<1x4x4xf32>
    %48 = vector.shape_cast %47 : vector<1x4x4xf32> to vector<4x4xf32>
    %cst_40 = arith.constant dense<0.000000e+00> : vector<4x128xf32>
    %49 = tpu.matmul %48, %46, %cst_40 {dimension_numbers = #tpu.dot_dimension_numbers<[1], [0], [0], [1], [0, 0, 1, 1], [], []>} : vector<4x4xf32>, vector<4x128xf32>, vector<4x128xf32> -> vector<4x128xf32>
    %50 = arith.addf %41, %49 : vector<4x128xf32>
    %c1_i32 = arith.constant 1 : i32
    %51 = tpu.dynamic_rotate %22 by %c1_i32 dim 1 : vector<4x128xf32>, i32 -> vector<4x128xf32>
    %c3_41 = arith.constant 3 : index
    %c0_42 = arith.constant 0 : index
    %c0_43 = arith.constant 0 : index
    %52 = vector.load %arg13[%c3_41, %c0_42, %c0_43] : memref<9x1x128xf32, #tpu.memory_space<vmem>>, vector<1x1x128xf32>
    %53 = vector.shape_cast %52 : vector<1x1x128xf32> to vector<1x128xf32>
    %54 = vector.broadcast %53 : vector<1x128xf32> to vector<4x128xf32>
    %55 = arith.mulf %51, %54 : vector<4x128xf32>
    %c3_44 = arith.constant 3 : index
    %c0_45 = arith.constant 0 : index
    %c0_46 = arith.constant 0 : index
    %56 = vector.load %arg3[%c3_44, %c0_45, %c0_46] : memref<9x4x4xf32, #tpu.memory_space<vmem>>, vector<1x4x4xf32>
    %57 = vector.shape_cast %56 : vector<1x4x4xf32> to vector<4x4xf32>
    %cst_47 = arith.constant dense<0.000000e+00> : vector<4x128xf32>
    %58 = tpu.matmul %57, %55, %cst_47 {dimension_numbers = #tpu.dot_dimension_numbers<[1], [0], [0], [1], [0, 0, 1, 1], [], []>} : vector<4x4xf32>, vector<4x128xf32>, vector<4x128xf32> -> vector<4x128xf32>
    %59 = arith.addf %50, %58 : vector<4x128xf32>
    %c4 = arith.constant 4 : index
    %c0_48 = arith.constant 0 : index
    %c0_49 = arith.constant 0 : index
    %60 = vector.load %arg3[%c4, %c0_48, %c0_49] : memref<9x4x4xf32, #tpu.memory_space<vmem>>, vector<1x4x4xf32>
    %61 = vector.shape_cast %60 : vector<1x4x4xf32> to vector<4x4xf32>
    %cst_50 = arith.constant dense<0.000000e+00> : vector<4x128xf32>
    %62 = tpu.matmul %61, %22, %cst_50 {dimension_numbers = #tpu.dot_dimension_numbers<[1], [0], [0], [1], [0, 0, 1, 1], [], []>} : vector<4x4xf32>, vector<4x128xf32>, vector<4x128xf32> -> vector<4x128xf32>
    %63 = arith.addf %59, %62 : vector<4x128xf32>
    %c127_i32 = arith.constant 127 : i32
    %64 = tpu.dynamic_rotate %22 by %c127_i32 dim 1 : vector<4x128xf32>, i32 -> vector<4x128xf32>
    %c5 = arith.constant 5 : index
    %c0_51 = arith.constant 0 : index
    %c0_52 = arith.constant 0 : index
    %65 = vector.load %arg13[%c5, %c0_51, %c0_52] : memref<9x1x128xf32, #tpu.memory_space<vmem>>, vector<1x1x128xf32>
    %66 = vector.shape_cast %65 : vector<1x1x128xf32> to vector<1x128xf32>
    %67 = vector.broadcast %66 : vector<1x128xf32> to vector<4x128xf32>
    %68 = arith.mulf %64, %67 : vector<4x128xf32>
    %c5_53 = arith.constant 5 : index
    %c0_54 = arith.constant 0 : index
    %c0_55 = arith.constant 0 : index
    %69 = vector.load %arg3[%c5_53, %c0_54, %c0_55] : memref<9x4x4xf32, #tpu.memory_space<vmem>>, vector<1x4x4xf32>
    %70 = vector.shape_cast %69 : vector<1x4x4xf32> to vector<4x4xf32>
    %cst_56 = arith.constant dense<0.000000e+00> : vector<4x128xf32>
    %71 = tpu.matmul %70, %68, %cst_56 {dimension_numbers = #tpu.dot_dimension_numbers<[1], [0], [0], [1], [0, 0, 1, 1], [], []>} : vector<4x4xf32>, vector<4x128xf32>, vector<4x128xf32> -> vector<4x128xf32>
    %72 = arith.addf %63, %71 : vector<4x128xf32>
    %c121_i32 = arith.constant 121 : i32
    %73 = tpu.dynamic_rotate %22 by %c121_i32 dim 1 : vector<4x128xf32>, i32 -> vector<4x128xf32>
    %c6 = arith.constant 6 : index
    %c0_57 = arith.constant 0 : index
    %c0_58 = arith.constant 0 : index
    %74 = vector.load %arg13[%c6, %c0_57, %c0_58] : memref<9x1x128xf32, #tpu.memory_space<vmem>>, vector<1x1x128xf32>
    %75 = vector.shape_cast %74 : vector<1x1x128xf32> to vector<1x128xf32>
    %76 = vector.broadcast %75 : vector<1x128xf32> to vector<4x128xf32>
    %77 = arith.mulf %73, %76 : vector<4x128xf32>
    %c6_59 = arith.constant 6 : index
    %c0_60 = arith.constant 0 : index
    %c0_61 = arith.constant 0 : index
    %78 = vector.load %arg3[%c6_59, %c0_60, %c0_61] : memref<9x4x4xf32, #tpu.memory_space<vmem>>, vector<1x4x4xf32>
    %79 = vector.shape_cast %78 : vector<1x4x4xf32> to vector<4x4xf32>
    %cst_62 = arith.constant dense<0.000000e+00> : vector<4x128xf32>
    %80 = tpu.matmul %79, %77, %cst_62 {dimension_numbers = #tpu.dot_dimension_numbers<[1], [0], [0], [1], [0, 0, 1, 1], [], []>} : vector<4x4xf32>, vector<4x128xf32>, vector<4x128xf32> -> vector<4x128xf32>
    %81 = arith.addf %72, %80 : vector<4x128xf32>
    %c120_i32 = arith.constant 120 : i32
    %82 = tpu.dynamic_rotate %22 by %c120_i32 dim 1 : vector<4x128xf32>, i32 -> vector<4x128xf32>
    %c7 = arith.constant 7 : index
    %c0_63 = arith.constant 0 : index
    %c0_64 = arith.constant 0 : index
    %83 = vector.load %arg13[%c7, %c0_63, %c0_64] : memref<9x1x128xf32, #tpu.memory_space<vmem>>, vector<1x1x128xf32>
    %84 = vector.shape_cast %83 : vector<1x1x128xf32> to vector<1x128xf32>
    %85 = vector.broadcast %84 : vector<1x128xf32> to vector<4x128xf32>
    %86 = arith.mulf %82, %85 : vector<4x128xf32>
    %c7_65 = arith.constant 7 : index
    %c0_66 = arith.constant 0 : index
    %c0_67 = arith.constant 0 : index
    %87 = vector.load %arg3[%c7_65, %c0_66, %c0_67] : memref<9x4x4xf32, #tpu.memory_space<vmem>>, vector<1x4x4xf32>
    %88 = vector.shape_cast %87 : vector<1x4x4xf32> to vector<4x4xf32>
    %cst_68 = arith.constant dense<0.000000e+00> : vector<4x128xf32>
    %89 = tpu.matmul %88, %86, %cst_68 {dimension_numbers = #tpu.dot_dimension_numbers<[1], [0], [0], [1], [0, 0, 1, 1], [], []>} : vector<4x4xf32>, vector<4x128xf32>, vector<4x128xf32> -> vector<4x128xf32>
    %90 = arith.addf %81, %89 : vector<4x128xf32>
    %c119_i32 = arith.constant 119 : i32
    %91 = tpu.dynamic_rotate %22 by %c119_i32 dim 1 : vector<4x128xf32>, i32 -> vector<4x128xf32>
    %c8 = arith.constant 8 : index
    %c0_69 = arith.constant 0 : index
    %c0_70 = arith.constant 0 : index
    %92 = vector.load %arg13[%c8, %c0_69, %c0_70] : memref<9x1x128xf32, #tpu.memory_space<vmem>>, vector<1x1x128xf32>
    %93 = vector.shape_cast %92 : vector<1x1x128xf32> to vector<1x128xf32>
    %94 = vector.broadcast %93 : vector<1x128xf32> to vector<4x128xf32>
    %95 = arith.mulf %91, %94 : vector<4x128xf32>
    %c8_71 = arith.constant 8 : index
    %c0_72 = arith.constant 0 : index
    %c0_73 = arith.constant 0 : index
    %96 = vector.load %arg3[%c8_71, %c0_72, %c0_73] : memref<9x4x4xf32, #tpu.memory_space<vmem>>, vector<1x4x4xf32>
    %97 = vector.shape_cast %96 : vector<1x4x4xf32> to vector<4x4xf32>
    %cst_74 = arith.constant dense<0.000000e+00> : vector<4x128xf32>
    %98 = tpu.matmul %97, %95, %cst_74 {dimension_numbers = #tpu.dot_dimension_numbers<[1], [0], [0], [1], [0, 0, 1, 1], [], []>} : vector<4x4xf32>, vector<4x128xf32>, vector<4x128xf32> -> vector<4x128xf32>
    %99 = arith.addf %90, %98 : vector<4x128xf32>
    %c0_75 = arith.constant 0 : index
    %c0_76 = arith.constant 0 : index
    %100 = vector.load %arg8[%c0_75, %c0_76] : memref<4x1xf32, #tpu.memory_space<vmem>>, vector<4x1xf32>
    %101 = vector.broadcast %100 : vector<4x1xf32> to vector<4x128xf32>
    %102 = arith.addf %99, %101 : vector<4x128xf32>
    %cst_77 = arith.constant 0.000000e+00 : f32
    %103 = vector.broadcast %cst_77 : f32 to vector<4x128xf32>
    %104 = arith.cmpf oge, %102, %103 : vector<4x128xf32>
    %cst_78 = arith.constant 2.000000e-01 : f32
    %105 = vector.broadcast %cst_78 : f32 to vector<4x128xf32>
    %106 = arith.mulf %105, %102 : vector<4x128xf32>
    %107 = arith.select %104, %102, %106 : vector<4x128xi1>, vector<4x128xf32>
    %cst_79 = arith.constant 0.000000e+00 : f32
    %108 = vector.broadcast %cst_79 : f32 to vector<4x128xf32>
    %c9_i32_80 = arith.constant 9 : i32
    %109 = tpu.dynamic_rotate %107 by %c9_i32_80 dim 1 : vector<4x128xf32>, i32 -> vector<4x128xf32>
    %c0_81 = arith.constant 0 : index
    %c0_82 = arith.constant 0 : index
    %c0_83 = arith.constant 0 : index
    %110 = vector.load %arg13[%c0_81, %c0_82, %c0_83] : memref<9x1x128xf32, #tpu.memory_space<vmem>>, vector<1x1x128xf32>
    %111 = vector.shape_cast %110 : vector<1x1x128xf32> to vector<1x128xf32>
    %112 = vector.broadcast %111 : vector<1x128xf32> to vector<4x128xf32>
    %113 = arith.mulf %109, %112 : vector<4x128xf32>
    %c0_84 = arith.constant 0 : index
    %c0_85 = arith.constant 0 : index
    %c0_86 = arith.constant 0 : index
    %114 = vector.load %arg4[%c0_84, %c0_85, %c0_86] : memref<9x4x4xf32, #tpu.memory_space<vmem>>, vector<1x4x4xf32>
    %115 = vector.shape_cast %114 : vector<1x4x4xf32> to vector<4x4xf32>
    %cst_87 = arith.constant dense<0.000000e+00> : vector<4x128xf32>
    %116 = tpu.matmul %115, %113, %cst_87 {dimension_numbers = #tpu.dot_dimension_numbers<[1], [0], [0], [1], [0, 0, 1, 1], [], []>} : vector<4x4xf32>, vector<4x128xf32>, vector<4x128xf32> -> vector<4x128xf32>
    %117 = arith.addf %108, %116 : vector<4x128xf32>
    %c8_i32_88 = arith.constant 8 : i32
    %118 = tpu.dynamic_rotate %107 by %c8_i32_88 dim 1 : vector<4x128xf32>, i32 -> vector<4x128xf32>
    %c1_89 = arith.constant 1 : index
    %c0_90 = arith.constant 0 : index
    %c0_91 = arith.constant 0 : index
    %119 = vector.load %arg13[%c1_89, %c0_90, %c0_91] : memref<9x1x128xf32, #tpu.memory_space<vmem>>, vector<1x1x128xf32>
    %120 = vector.shape_cast %119 : vector<1x1x128xf32> to vector<1x128xf32>
    %121 = vector.broadcast %120 : vector<1x128xf32> to vector<4x128xf32>
    %122 = arith.mulf %118, %121 : vector<4x128xf32>
    %c1_92 = arith.constant 1 : index
    %c0_93 = arith.constant 0 : index
    %c0_94 = arith.constant 0 : index
    %123 = vector.load %arg4[%c1_92, %c0_93, %c0_94] : memref<9x4x4xf32, #tpu.memory_space<vmem>>, vector<1x4x4xf32>
    %124 = vector.shape_cast %123 : vector<1x4x4xf32> to vector<4x4xf32>
    %cst_95 = arith.constant dense<0.000000e+00> : vector<4x128xf32>
    %125 = tpu.matmul %124, %122, %cst_95 {dimension_numbers = #tpu.dot_dimension_numbers<[1], [0], [0], [1], [0, 0, 1, 1], [], []>} : vector<4x4xf32>, vector<4x128xf32>, vector<4x128xf32> -> vector<4x128xf32>
    %126 = arith.addf %117, %125 : vector<4x128xf32>
    %c7_i32_96 = arith.constant 7 : i32
    %127 = tpu.dynamic_rotate %107 by %c7_i32_96 dim 1 : vector<4x128xf32>, i32 -> vector<4x128xf32>
    %c2_97 = arith.constant 2 : index
    %c0_98 = arith.constant 0 : index
    %c0_99 = arith.constant 0 : index
    %128 = vector.load %arg13[%c2_97, %c0_98, %c0_99] : memref<9x1x128xf32, #tpu.memory_space<vmem>>, vector<1x1x128xf32>
    %129 = vector.shape_cast %128 : vector<1x1x128xf32> to vector<1x128xf32>
    %130 = vector.broadcast %129 : vector<1x128xf32> to vector<4x128xf32>
    %131 = arith.mulf %127, %130 : vector<4x128xf32>
    %c2_100 = arith.constant 2 : index
    %c0_101 = arith.constant 0 : index
    %c0_102 = arith.constant 0 : index
    %132 = vector.load %arg4[%c2_100, %c0_101, %c0_102] : memref<9x4x4xf32, #tpu.memory_space<vmem>>, vector<1x4x4xf32>
    %133 = vector.shape_cast %132 : vector<1x4x4xf32> to vector<4x4xf32>
    %cst_103 = arith.constant dense<0.000000e+00> : vector<4x128xf32>
    %134 = tpu.matmul %133, %131, %cst_103 {dimension_numbers = #tpu.dot_dimension_numbers<[1], [0], [0], [1], [0, 0, 1, 1], [], []>} : vector<4x4xf32>, vector<4x128xf32>, vector<4x128xf32> -> vector<4x128xf32>
    %135 = arith.addf %126, %134 : vector<4x128xf32>
    %c1_i32_104 = arith.constant 1 : i32
    %136 = tpu.dynamic_rotate %107 by %c1_i32_104 dim 1 : vector<4x128xf32>, i32 -> vector<4x128xf32>
    %c3_105 = arith.constant 3 : index
    %c0_106 = arith.constant 0 : index
    %c0_107 = arith.constant 0 : index
    %137 = vector.load %arg13[%c3_105, %c0_106, %c0_107] : memref<9x1x128xf32, #tpu.memory_space<vmem>>, vector<1x1x128xf32>
    %138 = vector.shape_cast %137 : vector<1x1x128xf32> to vector<1x128xf32>
    %139 = vector.broadcast %138 : vector<1x128xf32> to vector<4x128xf32>
    %140 = arith.mulf %136, %139 : vector<4x128xf32>
    %c3_108 = arith.constant 3 : index
    %c0_109 = arith.constant 0 : index
    %c0_110 = arith.constant 0 : index
    %141 = vector.load %arg4[%c3_108, %c0_109, %c0_110] : memref<9x4x4xf32, #tpu.memory_space<vmem>>, vector<1x4x4xf32>
    %142 = vector.shape_cast %141 : vector<1x4x4xf32> to vector<4x4xf32>
    %cst_111 = arith.constant dense<0.000000e+00> : vector<4x128xf32>
    %143 = tpu.matmul %142, %140, %cst_111 {dimension_numbers = #tpu.dot_dimension_numbers<[1], [0], [0], [1], [0, 0, 1, 1], [], []>} : vector<4x4xf32>, vector<4x128xf32>, vector<4x128xf32> -> vector<4x128xf32>
    %144 = arith.addf %135, %143 : vector<4x128xf32>
    %c4_112 = arith.constant 4 : index
    %c0_113 = arith.constant 0 : index
    %c0_114 = arith.constant 0 : index
    %145 = vector.load %arg4[%c4_112, %c0_113, %c0_114] : memref<9x4x4xf32, #tpu.memory_space<vmem>>, vector<1x4x4xf32>
    %146 = vector.shape_cast %145 : vector<1x4x4xf32> to vector<4x4xf32>
    %cst_115 = arith.constant dense<0.000000e+00> : vector<4x128xf32>
    %147 = tpu.matmul %146, %107, %cst_115 {dimension_numbers = #tpu.dot_dimension_numbers<[1], [0], [0], [1], [0, 0, 1, 1], [], []>} : vector<4x4xf32>, vector<4x128xf32>, vector<4x128xf32> -> vector<4x128xf32>
    %148 = arith.addf %144, %147 : vector<4x128xf32>
    %c127_i32_116 = arith.constant 127 : i32
    %149 = tpu.dynamic_rotate %107 by %c127_i32_116 dim 1 : vector<4x128xf32>, i32 -> vector<4x128xf32>
    %c5_117 = arith.constant 5 : index
    %c0_118 = arith.constant 0 : index
    %c0_119 = arith.constant 0 : index
    %150 = vector.load %arg13[%c5_117, %c0_118, %c0_119] : memref<9x1x128xf32, #tpu.memory_space<vmem>>, vector<1x1x128xf32>
    %151 = vector.shape_cast %150 : vector<1x1x128xf32> to vector<1x128xf32>
    %152 = vector.broadcast %151 : vector<1x128xf32> to vector<4x128xf32>
    %153 = arith.mulf %149, %152 : vector<4x128xf32>
    %c5_120 = arith.constant 5 : index
    %c0_121 = arith.constant 0 : index
    %c0_122 = arith.constant 0 : index
    %154 = vector.load %arg4[%c5_120, %c0_121, %c0_122] : memref<9x4x4xf32, #tpu.memory_space<vmem>>, vector<1x4x4xf32>
    %155 = vector.shape_cast %154 : vector<1x4x4xf32> to vector<4x4xf32>
    %cst_123 = arith.constant dense<0.000000e+00> : vector<4x128xf32>
    %156 = tpu.matmul %155, %153, %cst_123 {dimension_numbers = #tpu.dot_dimension_numbers<[1], [0], [0], [1], [0, 0, 1, 1], [], []>} : vector<4x4xf32>, vector<4x128xf32>, vector<4x128xf32> -> vector<4x128xf32>
    %157 = arith.addf %148, %156 : vector<4x128xf32>
    %c121_i32_124 = arith.constant 121 : i32
    %158 = tpu.dynamic_rotate %107 by %c121_i32_124 dim 1 : vector<4x128xf32>, i32 -> vector<4x128xf32>
    %c6_125 = arith.constant 6 : index
    %c0_126 = arith.constant 0 : index
    %c0_127 = arith.constant 0 : index
    %159 = vector.load %arg13[%c6_125, %c0_126, %c0_127] : memref<9x1x128xf32, #tpu.memory_space<vmem>>, vector<1x1x128xf32>
    %160 = vector.shape_cast %159 : vector<1x1x128xf32> to vector<1x128xf32>
    %161 = vector.broadcast %160 : vector<1x128xf32> to vector<4x128xf32>
    %162 = arith.mulf %158, %161 : vector<4x128xf32>
    %c6_128 = arith.constant 6 : index
    %c0_129 = arith.constant 0 : index
    %c0_130 = arith.constant 0 : index
    %163 = vector.load %arg4[%c6_128, %c0_129, %c0_130] : memref<9x4x4xf32, #tpu.memory_space<vmem>>, vector<1x4x4xf32>
    %164 = vector.shape_cast %163 : vector<1x4x4xf32> to vector<4x4xf32>
    %cst_131 = arith.constant dense<0.000000e+00> : vector<4x128xf32>
    %165 = tpu.matmul %164, %162, %cst_131 {dimension_numbers = #tpu.dot_dimension_numbers<[1], [0], [0], [1], [0, 0, 1, 1], [], []>} : vector<4x4xf32>, vector<4x128xf32>, vector<4x128xf32> -> vector<4x128xf32>
    %166 = arith.addf %157, %165 : vector<4x128xf32>
    %c120_i32_132 = arith.constant 120 : i32
    %167 = tpu.dynamic_rotate %107 by %c120_i32_132 dim 1 : vector<4x128xf32>, i32 -> vector<4x128xf32>
    %c7_133 = arith.constant 7 : index
    %c0_134 = arith.constant 0 : index
    %c0_135 = arith.constant 0 : index
    %168 = vector.load %arg13[%c7_133, %c0_134, %c0_135] : memref<9x1x128xf32, #tpu.memory_space<vmem>>, vector<1x1x128xf32>
    %169 = vector.shape_cast %168 : vector<1x1x128xf32> to vector<1x128xf32>
    %170 = vector.broadcast %169 : vector<1x128xf32> to vector<4x128xf32>
    %171 = arith.mulf %167, %170 : vector<4x128xf32>
    %c7_136 = arith.constant 7 : index
    %c0_137 = arith.constant 0 : index
    %c0_138 = arith.constant 0 : index
    %172 = vector.load %arg4[%c7_136, %c0_137, %c0_138] : memref<9x4x4xf32, #tpu.memory_space<vmem>>, vector<1x4x4xf32>
    %173 = vector.shape_cast %172 : vector<1x4x4xf32> to vector<4x4xf32>
    %cst_139 = arith.constant dense<0.000000e+00> : vector<4x128xf32>
    %174 = tpu.matmul %173, %171, %cst_139 {dimension_numbers = #tpu.dot_dimension_numbers<[1], [0], [0], [1], [0, 0, 1, 1], [], []>} : vector<4x4xf32>, vector<4x128xf32>, vector<4x128xf32> -> vector<4x128xf32>
    %175 = arith.addf %166, %174 : vector<4x128xf32>
    %c119_i32_140 = arith.constant 119 : i32
    %176 = tpu.dynamic_rotate %107 by %c119_i32_140 dim 1 : vector<4x128xf32>, i32 -> vector<4x128xf32>
    %c8_141 = arith.constant 8 : index
    %c0_142 = arith.constant 0 : index
    %c0_143 = arith.constant 0 : index
    %177 = vector.load %arg13[%c8_141, %c0_142, %c0_143] : memref<9x1x128xf32, #tpu.memory_space<vmem>>, vector<1x1x128xf32>
    %178 = vector.shape_cast %177 : vector<1x1x128xf32> to vector<1x128xf32>
    %179 = vector.broadcast %178 : vector<1x128xf32> to vector<4x128xf32>
    %180 = arith.mulf %176, %179 : vector<4x128xf32>
    %c8_144 = arith.constant 8 : index
    %c0_145 = arith.constant 0 : index
    %c0_146 = arith.constant 0 : index
    %181 = vector.load %arg4[%c8_144, %c0_145, %c0_146] : memref<9x4x4xf32, #tpu.memory_space<vmem>>, vector<1x4x4xf32>
    %182 = vector.shape_cast %181 : vector<1x4x4xf32> to vector<4x4xf32>
    %cst_147 = arith.constant dense<0.000000e+00> : vector<4x128xf32>
    %183 = tpu.matmul %182, %180, %cst_147 {dimension_numbers = #tpu.dot_dimension_numbers<[1], [0], [0], [1], [0, 0, 1, 1], [], []>} : vector<4x4xf32>, vector<4x128xf32>, vector<4x128xf32> -> vector<4x128xf32>
    %184 = arith.addf %175, %183 : vector<4x128xf32>
    %c0_148 = arith.constant 0 : index
    %c0_149 = arith.constant 0 : index
    %185 = vector.load %arg9[%c0_148, %c0_149] : memref<4x1xf32, #tpu.memory_space<vmem>>, vector<4x1xf32>
    %186 = vector.broadcast %185 : vector<4x1xf32> to vector<4x128xf32>
    %187 = arith.addf %184, %186 : vector<4x128xf32>
    %cst_150 = arith.constant 0.000000e+00 : f32
    %188 = vector.broadcast %cst_150 : f32 to vector<4x128xf32>
    %189 = arith.cmpf oge, %187, %188 : vector<4x128xf32>
    %cst_151 = arith.constant 2.000000e-01 : f32
    %190 = vector.broadcast %cst_151 : f32 to vector<4x128xf32>
    %191 = arith.mulf %190, %187 : vector<4x128xf32>
    %192 = arith.select %189, %187, %191 : vector<4x128xi1>, vector<4x128xf32>
    %193 = arith.addf %192, %22 : vector<4x128xf32>
    %c0_152 = arith.constant 0 : index
    %c0_153 = arith.constant 0 : index
    %194 = vector.load %arg15[%c0_152, %c0_153] : memref<128x512xf32, #tpu.memory_space<vmem>>, vector<128x512xf32>
    %cst_154 = arith.constant dense<0.000000e+00> : vector<4x512xf32>
    %195 = tpu.matmul %193, %194, %cst_154 {dimension_numbers = #tpu.dot_dimension_numbers<[1], [0], [0], [1], [0, 0, 1, 1], [], []>} : vector<4x128xf32>, vector<128x512xf32>, vector<4x512xf32> -> vector<4x512xf32>
    %cst_155 = arith.constant 0.000000e+00 : f32
    %196 = vector.broadcast %cst_155 : f32 to vector<4x512xf32>
    %c17_i32 = arith.constant 17 : i32
    %197 = tpu.dynamic_rotate %195 by %c17_i32 dim 1 : vector<4x512xf32>, i32 -> vector<4x512xf32>
    %c0_156 = arith.constant 0 : index
    %c0_157 = arith.constant 0 : index
    %c0_158 = arith.constant 0 : index
    %198 = vector.load %arg14[%c0_156, %c0_157, %c0_158] : memref<9x1x512xf32, #tpu.memory_space<vmem>>, vector<1x1x512xf32>
    %199 = vector.shape_cast %198 : vector<1x1x512xf32> to vector<1x512xf32>
    %200 = vector.broadcast %199 : vector<1x512xf32> to vector<4x512xf32>
    %201 = arith.mulf %197, %200 : vector<4x512xf32>
    %c0_159 = arith.constant 0 : index
    %c0_160 = arith.constant 0 : index
    %c0_161 = arith.constant 0 : index
    %202 = vector.load %arg5[%c0_159, %c0_160, %c0_161] : memref<9x4x4xf32, #tpu.memory_space<vmem>>, vector<1x4x4xf32>
    %203 = vector.shape_cast %202 : vector<1x4x4xf32> to vector<4x4xf32>
    %cst_162 = arith.constant dense<0.000000e+00> : vector<4x512xf32>
    %204 = tpu.matmul %203, %201, %cst_162 {dimension_numbers = #tpu.dot_dimension_numbers<[1], [0], [0], [1], [0, 0, 1, 1], [], []>} : vector<4x4xf32>, vector<4x512xf32>, vector<4x512xf32> -> vector<4x512xf32>
    %205 = arith.addf %196, %204 : vector<4x512xf32>
    %c16_i32 = arith.constant 16 : i32
    %206 = tpu.dynamic_rotate %195 by %c16_i32 dim 1 : vector<4x512xf32>, i32 -> vector<4x512xf32>
    %c1_163 = arith.constant 1 : index
    %c0_164 = arith.constant 0 : index
    %c0_165 = arith.constant 0 : index
    %207 = vector.load %arg14[%c1_163, %c0_164, %c0_165] : memref<9x1x512xf32, #tpu.memory_space<vmem>>, vector<1x1x512xf32>
    %208 = vector.shape_cast %207 : vector<1x1x512xf32> to vector<1x512xf32>
    %209 = vector.broadcast %208 : vector<1x512xf32> to vector<4x512xf32>
    %210 = arith.mulf %206, %209 : vector<4x512xf32>
    %c1_166 = arith.constant 1 : index
    %c0_167 = arith.constant 0 : index
    %c0_168 = arith.constant 0 : index
    %211 = vector.load %arg5[%c1_166, %c0_167, %c0_168] : memref<9x4x4xf32, #tpu.memory_space<vmem>>, vector<1x4x4xf32>
    %212 = vector.shape_cast %211 : vector<1x4x4xf32> to vector<4x4xf32>
    %cst_169 = arith.constant dense<0.000000e+00> : vector<4x512xf32>
    %213 = tpu.matmul %212, %210, %cst_169 {dimension_numbers = #tpu.dot_dimension_numbers<[1], [0], [0], [1], [0, 0, 1, 1], [], []>} : vector<4x4xf32>, vector<4x512xf32>, vector<4x512xf32> -> vector<4x512xf32>
    %214 = arith.addf %205, %213 : vector<4x512xf32>
    %c15_i32 = arith.constant 15 : i32
    %215 = tpu.dynamic_rotate %195 by %c15_i32 dim 1 : vector<4x512xf32>, i32 -> vector<4x512xf32>
    %c2_170 = arith.constant 2 : index
    %c0_171 = arith.constant 0 : index
    %c0_172 = arith.constant 0 : index
    %216 = vector.load %arg14[%c2_170, %c0_171, %c0_172] : memref<9x1x512xf32, #tpu.memory_space<vmem>>, vector<1x1x512xf32>
    %217 = vector.shape_cast %216 : vector<1x1x512xf32> to vector<1x512xf32>
    %218 = vector.broadcast %217 : vector<1x512xf32> to vector<4x512xf32>
    %219 = arith.mulf %215, %218 : vector<4x512xf32>
    %c2_173 = arith.constant 2 : index
    %c0_174 = arith.constant 0 : index
    %c0_175 = arith.constant 0 : index
    %220 = vector.load %arg5[%c2_173, %c0_174, %c0_175] : memref<9x4x4xf32, #tpu.memory_space<vmem>>, vector<1x4x4xf32>
    %221 = vector.shape_cast %220 : vector<1x4x4xf32> to vector<4x4xf32>
    %cst_176 = arith.constant dense<0.000000e+00> : vector<4x512xf32>
    %222 = tpu.matmul %221, %219, %cst_176 {dimension_numbers = #tpu.dot_dimension_numbers<[1], [0], [0], [1], [0, 0, 1, 1], [], []>} : vector<4x4xf32>, vector<4x512xf32>, vector<4x512xf32> -> vector<4x512xf32>
    %223 = arith.addf %214, %222 : vector<4x512xf32>
    %c1_i32_177 = arith.constant 1 : i32
    %224 = tpu.dynamic_rotate %195 by %c1_i32_177 dim 1 : vector<4x512xf32>, i32 -> vector<4x512xf32>
    %c3_178 = arith.constant 3 : index
    %c0_179 = arith.constant 0 : index
    %c0_180 = arith.constant 0 : index
    %225 = vector.load %arg14[%c3_178, %c0_179, %c0_180] : memref<9x1x512xf32, #tpu.memory_space<vmem>>, vector<1x1x512xf32>
    %226 = vector.shape_cast %225 : vector<1x1x512xf32> to vector<1x512xf32>
    %227 = vector.broadcast %226 : vector<1x512xf32> to vector<4x512xf32>
    %228 = arith.mulf %224, %227 : vector<4x512xf32>
    %c3_181 = arith.constant 3 : index
    %c0_182 = arith.constant 0 : index
    %c0_183 = arith.constant 0 : index
    %229 = vector.load %arg5[%c3_181, %c0_182, %c0_183] : memref<9x4x4xf32, #tpu.memory_space<vmem>>, vector<1x4x4xf32>
    %230 = vector.shape_cast %229 : vector<1x4x4xf32> to vector<4x4xf32>
    %cst_184 = arith.constant dense<0.000000e+00> : vector<4x512xf32>
    %231 = tpu.matmul %230, %228, %cst_184 {dimension_numbers = #tpu.dot_dimension_numbers<[1], [0], [0], [1], [0, 0, 1, 1], [], []>} : vector<4x4xf32>, vector<4x512xf32>, vector<4x512xf32> -> vector<4x512xf32>
    %232 = arith.addf %223, %231 : vector<4x512xf32>
    %c4_185 = arith.constant 4 : index
    %c0_186 = arith.constant 0 : index
    %c0_187 = arith.constant 0 : index
    %233 = vector.load %arg5[%c4_185, %c0_186, %c0_187] : memref<9x4x4xf32, #tpu.memory_space<vmem>>, vector<1x4x4xf32>
    %234 = vector.shape_cast %233 : vector<1x4x4xf32> to vector<4x4xf32>
    %cst_188 = arith.constant dense<0.000000e+00> : vector<4x512xf32>
    %235 = tpu.matmul %234, %195, %cst_188 {dimension_numbers = #tpu.dot_dimension_numbers<[1], [0], [0], [1], [0, 0, 1, 1], [], []>} : vector<4x4xf32>, vector<4x512xf32>, vector<4x512xf32> -> vector<4x512xf32>
    %236 = arith.addf %232, %235 : vector<4x512xf32>
    %c511_i32 = arith.constant 511 : i32
    %237 = tpu.dynamic_rotate %195 by %c511_i32 dim 1 : vector<4x512xf32>, i32 -> vector<4x512xf32>
    %c5_189 = arith.constant 5 : index
    %c0_190 = arith.constant 0 : index
    %c0_191 = arith.constant 0 : index
    %238 = vector.load %arg14[%c5_189, %c0_190, %c0_191] : memref<9x1x512xf32, #tpu.memory_space<vmem>>, vector<1x1x512xf32>
    %239 = vector.shape_cast %238 : vector<1x1x512xf32> to vector<1x512xf32>
    %240 = vector.broadcast %239 : vector<1x512xf32> to vector<4x512xf32>
    %241 = arith.mulf %237, %240 : vector<4x512xf32>
    %c5_192 = arith.constant 5 : index
    %c0_193 = arith.constant 0 : index
    %c0_194 = arith.constant 0 : index
    %242 = vector.load %arg5[%c5_192, %c0_193, %c0_194] : memref<9x4x4xf32, #tpu.memory_space<vmem>>, vector<1x4x4xf32>
    %243 = vector.shape_cast %242 : vector<1x4x4xf32> to vector<4x4xf32>
    %cst_195 = arith.constant dense<0.000000e+00> : vector<4x512xf32>
    %244 = tpu.matmul %243, %241, %cst_195 {dimension_numbers = #tpu.dot_dimension_numbers<[1], [0], [0], [1], [0, 0, 1, 1], [], []>} : vector<4x4xf32>, vector<4x512xf32>, vector<4x512xf32> -> vector<4x512xf32>
    %245 = arith.addf %236, %244 : vector<4x512xf32>
    %c497_i32 = arith.constant 497 : i32
    %246 = tpu.dynamic_rotate %195 by %c497_i32 dim 1 : vector<4x512xf32>, i32 -> vector<4x512xf32>
    %c6_196 = arith.constant 6 : index
    %c0_197 = arith.constant 0 : index
    %c0_198 = arith.constant 0 : index
    %247 = vector.load %arg14[%c6_196, %c0_197, %c0_198] : memref<9x1x512xf32, #tpu.memory_space<vmem>>, vector<1x1x512xf32>
    %248 = vector.shape_cast %247 : vector<1x1x512xf32> to vector<1x512xf32>
    %249 = vector.broadcast %248 : vector<1x512xf32> to vector<4x512xf32>
    %250 = arith.mulf %246, %249 : vector<4x512xf32>
    %c6_199 = arith.constant 6 : index
    %c0_200 = arith.constant 0 : index
    %c0_201 = arith.constant 0 : index
    %251 = vector.load %arg5[%c6_199, %c0_200, %c0_201] : memref<9x4x4xf32, #tpu.memory_space<vmem>>, vector<1x4x4xf32>
    %252 = vector.shape_cast %251 : vector<1x4x4xf32> to vector<4x4xf32>
    %cst_202 = arith.constant dense<0.000000e+00> : vector<4x512xf32>
    %253 = tpu.matmul %252, %250, %cst_202 {dimension_numbers = #tpu.dot_dimension_numbers<[1], [0], [0], [1], [0, 0, 1, 1], [], []>} : vector<4x4xf32>, vector<4x512xf32>, vector<4x512xf32> -> vector<4x512xf32>
    %254 = arith.addf %245, %253 : vector<4x512xf32>
    %c496_i32 = arith.constant 496 : i32
    %255 = tpu.dynamic_rotate %195 by %c496_i32 dim 1 : vector<4x512xf32>, i32 -> vector<4x512xf32>
    %c7_203 = arith.constant 7 : index
    %c0_204 = arith.constant 0 : index
    %c0_205 = arith.constant 0 : index
    %256 = vector.load %arg14[%c7_203, %c0_204, %c0_205] : memref<9x1x512xf32, #tpu.memory_space<vmem>>, vector<1x1x512xf32>
    %257 = vector.shape_cast %256 : vector<1x1x512xf32> to vector<1x512xf32>
    %258 = vector.broadcast %257 : vector<1x512xf32> to vector<4x512xf32>
    %259 = arith.mulf %255, %258 : vector<4x512xf32>
    %c7_206 = arith.constant 7 : index
    %c0_207 = arith.constant 0 : index
    %c0_208 = arith.constant 0 : index
    %260 = vector.load %arg5[%c7_206, %c0_207, %c0_208] : memref<9x4x4xf32, #tpu.memory_space<vmem>>, vector<1x4x4xf32>
    %261 = vector.shape_cast %260 : vector<1x4x4xf32> to vector<4x4xf32>
    %cst_209 = arith.constant dense<0.000000e+00> : vector<4x512xf32>
    %262 = tpu.matmul %261, %259, %cst_209 {dimension_numbers = #tpu.dot_dimension_numbers<[1], [0], [0], [1], [0, 0, 1, 1], [], []>} : vector<4x4xf32>, vector<4x512xf32>, vector<4x512xf32> -> vector<4x512xf32>
    %263 = arith.addf %254, %262 : vector<4x512xf32>
    %c495_i32 = arith.constant 495 : i32
    %264 = tpu.dynamic_rotate %195 by %c495_i32 dim 1 : vector<4x512xf32>, i32 -> vector<4x512xf32>
    %c8_210 = arith.constant 8 : index
    %c0_211 = arith.constant 0 : index
    %c0_212 = arith.constant 0 : index
    %265 = vector.load %arg14[%c8_210, %c0_211, %c0_212] : memref<9x1x512xf32, #tpu.memory_space<vmem>>, vector<1x1x512xf32>
    %266 = vector.shape_cast %265 : vector<1x1x512xf32> to vector<1x512xf32>
    %267 = vector.broadcast %266 : vector<1x512xf32> to vector<4x512xf32>
    %268 = arith.mulf %264, %267 : vector<4x512xf32>
    %c8_213 = arith.constant 8 : index
    %c0_214 = arith.constant 0 : index
    %c0_215 = arith.constant 0 : index
    %269 = vector.load %arg5[%c8_213, %c0_214, %c0_215] : memref<9x4x4xf32, #tpu.memory_space<vmem>>, vector<1x4x4xf32>
    %270 = vector.shape_cast %269 : vector<1x4x4xf32> to vector<4x4xf32>
    %cst_216 = arith.constant dense<0.000000e+00> : vector<4x512xf32>
    %271 = tpu.matmul %270, %268, %cst_216 {dimension_numbers = #tpu.dot_dimension_numbers<[1], [0], [0], [1], [0, 0, 1, 1], [], []>} : vector<4x4xf32>, vector<4x512xf32>, vector<4x512xf32> -> vector<4x512xf32>
    %272 = arith.addf %263, %271 : vector<4x512xf32>
    %c0_217 = arith.constant 0 : index
    %c0_218 = arith.constant 0 : index
    %273 = vector.load %arg10[%c0_217, %c0_218] : memref<4x1xf32, #tpu.memory_space<vmem>>, vector<4x1xf32>
    %274 = vector.broadcast %273 : vector<4x1xf32> to vector<4x512xf32>
    %275 = arith.addf %272, %274 : vector<4x512xf32>
    %cst_219 = arith.constant 0.000000e+00 : f32
    %276 = vector.broadcast %cst_219 : f32 to vector<4x512xf32>
    %277 = arith.cmpf oge, %275, %276 : vector<4x512xf32>
    %cst_220 = arith.constant 2.000000e-01 : f32
    %278 = vector.broadcast %cst_220 : f32 to vector<4x512xf32>
    %279 = arith.mulf %278, %275 : vector<4x512xf32>
    %280 = arith.select %277, %275, %279 : vector<4x512xi1>, vector<4x512xf32>
    %cst_221 = arith.constant 0.000000e+00 : f32
    %281 = vector.broadcast %cst_221 : f32 to vector<4x512xf32>
    %c17_i32_222 = arith.constant 17 : i32
    %282 = tpu.dynamic_rotate %280 by %c17_i32_222 dim 1 : vector<4x512xf32>, i32 -> vector<4x512xf32>
    %c0_223 = arith.constant 0 : index
    %c0_224 = arith.constant 0 : index
    %c0_225 = arith.constant 0 : index
    %283 = vector.load %arg14[%c0_223, %c0_224, %c0_225] : memref<9x1x512xf32, #tpu.memory_space<vmem>>, vector<1x1x512xf32>
    %284 = vector.shape_cast %283 : vector<1x1x512xf32> to vector<1x512xf32>
    %285 = vector.broadcast %284 : vector<1x512xf32> to vector<4x512xf32>
    %286 = arith.mulf %282, %285 : vector<4x512xf32>
    %c0_226 = arith.constant 0 : index
    %c0_227 = arith.constant 0 : index
    %c0_228 = arith.constant 0 : index
    %287 = vector.load %arg6[%c0_226, %c0_227, %c0_228] : memref<9x4x4xf32, #tpu.memory_space<vmem>>, vector<1x4x4xf32>
    %288 = vector.shape_cast %287 : vector<1x4x4xf32> to vector<4x4xf32>
    %cst_229 = arith.constant dense<0.000000e+00> : vector<4x512xf32>
    %289 = tpu.matmul %288, %286, %cst_229 {dimension_numbers = #tpu.dot_dimension_numbers<[1], [0], [0], [1], [0, 0, 1, 1], [], []>} : vector<4x4xf32>, vector<4x512xf32>, vector<4x512xf32> -> vector<4x512xf32>
    %290 = arith.addf %281, %289 : vector<4x512xf32>
    %c16_i32_230 = arith.constant 16 : i32
    %291 = tpu.dynamic_rotate %280 by %c16_i32_230 dim 1 : vector<4x512xf32>, i32 -> vector<4x512xf32>
    %c1_231 = arith.constant 1 : index
    %c0_232 = arith.constant 0 : index
    %c0_233 = arith.constant 0 : index
    %292 = vector.load %arg14[%c1_231, %c0_232, %c0_233] : memref<9x1x512xf32, #tpu.memory_space<vmem>>, vector<1x1x512xf32>
    %293 = vector.shape_cast %292 : vector<1x1x512xf32> to vector<1x512xf32>
    %294 = vector.broadcast %293 : vector<1x512xf32> to vector<4x512xf32>
    %295 = arith.mulf %291, %294 : vector<4x512xf32>
    %c1_234 = arith.constant 1 : index
    %c0_235 = arith.constant 0 : index
    %c0_236 = arith.constant 0 : index
    %296 = vector.load %arg6[%c1_234, %c0_235, %c0_236] : memref<9x4x4xf32, #tpu.memory_space<vmem>>, vector<1x4x4xf32>
    %297 = vector.shape_cast %296 : vector<1x4x4xf32> to vector<4x4xf32>
    %cst_237 = arith.constant dense<0.000000e+00> : vector<4x512xf32>
    %298 = tpu.matmul %297, %295, %cst_237 {dimension_numbers = #tpu.dot_dimension_numbers<[1], [0], [0], [1], [0, 0, 1, 1], [], []>} : vector<4x4xf32>, vector<4x512xf32>, vector<4x512xf32> -> vector<4x512xf32>
    %299 = arith.addf %290, %298 : vector<4x512xf32>
    %c15_i32_238 = arith.constant 15 : i32
    %300 = tpu.dynamic_rotate %280 by %c15_i32_238 dim 1 : vector<4x512xf32>, i32 -> vector<4x512xf32>
    %c2_239 = arith.constant 2 : index
    %c0_240 = arith.constant 0 : index
    %c0_241 = arith.constant 0 : index
    %301 = vector.load %arg14[%c2_239, %c0_240, %c0_241] : memref<9x1x512xf32, #tpu.memory_space<vmem>>, vector<1x1x512xf32>
    %302 = vector.shape_cast %301 : vector<1x1x512xf32> to vector<1x512xf32>
    %303 = vector.broadcast %302 : vector<1x512xf32> to vector<4x512xf32>
    %304 = arith.mulf %300, %303 : vector<4x512xf32>
    %c2_242 = arith.constant 2 : index
    %c0_243 = arith.constant 0 : index
    %c0_244 = arith.constant 0 : index
    %305 = vector.load %arg6[%c2_242, %c0_243, %c0_244] : memref<9x4x4xf32, #tpu.memory_space<vmem>>, vector<1x4x4xf32>
    %306 = vector.shape_cast %305 : vector<1x4x4xf32> to vector<4x4xf32>
    %cst_245 = arith.constant dense<0.000000e+00> : vector<4x512xf32>
    %307 = tpu.matmul %306, %304, %cst_245 {dimension_numbers = #tpu.dot_dimension_numbers<[1], [0], [0], [1], [0, 0, 1, 1], [], []>} : vector<4x4xf32>, vector<4x512xf32>, vector<4x512xf32> -> vector<4x512xf32>
    %308 = arith.addf %299, %307 : vector<4x512xf32>
    %c1_i32_246 = arith.constant 1 : i32
    %309 = tpu.dynamic_rotate %280 by %c1_i32_246 dim 1 : vector<4x512xf32>, i32 -> vector<4x512xf32>
    %c3_247 = arith.constant 3 : index
    %c0_248 = arith.constant 0 : index
    %c0_249 = arith.constant 0 : index
    %310 = vector.load %arg14[%c3_247, %c0_248, %c0_249] : memref<9x1x512xf32, #tpu.memory_space<vmem>>, vector<1x1x512xf32>
    %311 = vector.shape_cast %310 : vector<1x1x512xf32> to vector<1x512xf32>
    %312 = vector.broadcast %311 : vector<1x512xf32> to vector<4x512xf32>
    %313 = arith.mulf %309, %312 : vector<4x512xf32>
    %c3_250 = arith.constant 3 : index
    %c0_251 = arith.constant 0 : index
    %c0_252 = arith.constant 0 : index
    %314 = vector.load %arg6[%c3_250, %c0_251, %c0_252] : memref<9x4x4xf32, #tpu.memory_space<vmem>>, vector<1x4x4xf32>
    %315 = vector.shape_cast %314 : vector<1x4x4xf32> to vector<4x4xf32>
    %cst_253 = arith.constant dense<0.000000e+00> : vector<4x512xf32>
    %316 = tpu.matmul %315, %313, %cst_253 {dimension_numbers = #tpu.dot_dimension_numbers<[1], [0], [0], [1], [0, 0, 1, 1], [], []>} : vector<4x4xf32>, vector<4x512xf32>, vector<4x512xf32> -> vector<4x512xf32>
    %317 = arith.addf %308, %316 : vector<4x512xf32>
    %c4_254 = arith.constant 4 : index
    %c0_255 = arith.constant 0 : index
    %c0_256 = arith.constant 0 : index
    %318 = vector.load %arg6[%c4_254, %c0_255, %c0_256] : memref<9x4x4xf32, #tpu.memory_space<vmem>>, vector<1x4x4xf32>
    %319 = vector.shape_cast %318 : vector<1x4x4xf32> to vector<4x4xf32>
    %cst_257 = arith.constant dense<0.000000e+00> : vector<4x512xf32>
    %320 = tpu.matmul %319, %280, %cst_257 {dimension_numbers = #tpu.dot_dimension_numbers<[1], [0], [0], [1], [0, 0, 1, 1], [], []>} : vector<4x4xf32>, vector<4x512xf32>, vector<4x512xf32> -> vector<4x512xf32>
    %321 = arith.addf %317, %320 : vector<4x512xf32>
    %c511_i32_258 = arith.constant 511 : i32
    %322 = tpu.dynamic_rotate %280 by %c511_i32_258 dim 1 : vector<4x512xf32>, i32 -> vector<4x512xf32>
    %c5_259 = arith.constant 5 : index
    %c0_260 = arith.constant 0 : index
    %c0_261 = arith.constant 0 : index
    %323 = vector.load %arg14[%c5_259, %c0_260, %c0_261] : memref<9x1x512xf32, #tpu.memory_space<vmem>>, vector<1x1x512xf32>
    %324 = vector.shape_cast %323 : vector<1x1x512xf32> to vector<1x512xf32>
    %325 = vector.broadcast %324 : vector<1x512xf32> to vector<4x512xf32>
    %326 = arith.mulf %322, %325 : vector<4x512xf32>
    %c5_262 = arith.constant 5 : index
    %c0_263 = arith.constant 0 : index
    %c0_264 = arith.constant 0 : index
    %327 = vector.load %arg6[%c5_262, %c0_263, %c0_264] : memref<9x4x4xf32, #tpu.memory_space<vmem>>, vector<1x4x4xf32>
    %328 = vector.shape_cast %327 : vector<1x4x4xf32> to vector<4x4xf32>
    %cst_265 = arith.constant dense<0.000000e+00> : vector<4x512xf32>
    %329 = tpu.matmul %328, %326, %cst_265 {dimension_numbers = #tpu.dot_dimension_numbers<[1], [0], [0], [1], [0, 0, 1, 1], [], []>} : vector<4x4xf32>, vector<4x512xf32>, vector<4x512xf32> -> vector<4x512xf32>
    %330 = arith.addf %321, %329 : vector<4x512xf32>
    %c497_i32_266 = arith.constant 497 : i32
    %331 = tpu.dynamic_rotate %280 by %c497_i32_266 dim 1 : vector<4x512xf32>, i32 -> vector<4x512xf32>
    %c6_267 = arith.constant 6 : index
    %c0_268 = arith.constant 0 : index
    %c0_269 = arith.constant 0 : index
    %332 = vector.load %arg14[%c6_267, %c0_268, %c0_269] : memref<9x1x512xf32, #tpu.memory_space<vmem>>, vector<1x1x512xf32>
    %333 = vector.shape_cast %332 : vector<1x1x512xf32> to vector<1x512xf32>
    %334 = vector.broadcast %333 : vector<1x512xf32> to vector<4x512xf32>
    %335 = arith.mulf %331, %334 : vector<4x512xf32>
    %c6_270 = arith.constant 6 : index
    %c0_271 = arith.constant 0 : index
    %c0_272 = arith.constant 0 : index
    %336 = vector.load %arg6[%c6_270, %c0_271, %c0_272] : memref<9x4x4xf32, #tpu.memory_space<vmem>>, vector<1x4x4xf32>
    %337 = vector.shape_cast %336 : vector<1x4x4xf32> to vector<4x4xf32>
    %cst_273 = arith.constant dense<0.000000e+00> : vector<4x512xf32>
    %338 = tpu.matmul %337, %335, %cst_273 {dimension_numbers = #tpu.dot_dimension_numbers<[1], [0], [0], [1], [0, 0, 1, 1], [], []>} : vector<4x4xf32>, vector<4x512xf32>, vector<4x512xf32> -> vector<4x512xf32>
    %339 = arith.addf %330, %338 : vector<4x512xf32>
    %c496_i32_274 = arith.constant 496 : i32
    %340 = tpu.dynamic_rotate %280 by %c496_i32_274 dim 1 : vector<4x512xf32>, i32 -> vector<4x512xf32>
    %c7_275 = arith.constant 7 : index
    %c0_276 = arith.constant 0 : index
    %c0_277 = arith.constant 0 : index
    %341 = vector.load %arg14[%c7_275, %c0_276, %c0_277] : memref<9x1x512xf32, #tpu.memory_space<vmem>>, vector<1x1x512xf32>
    %342 = vector.shape_cast %341 : vector<1x1x512xf32> to vector<1x512xf32>
    %343 = vector.broadcast %342 : vector<1x512xf32> to vector<4x512xf32>
    %344 = arith.mulf %340, %343 : vector<4x512xf32>
    %c7_278 = arith.constant 7 : index
    %c0_279 = arith.constant 0 : index
    %c0_280 = arith.constant 0 : index
    %345 = vector.load %arg6[%c7_278, %c0_279, %c0_280] : memref<9x4x4xf32, #tpu.memory_space<vmem>>, vector<1x4x4xf32>
    %346 = vector.shape_cast %345 : vector<1x4x4xf32> to vector<4x4xf32>
    %cst_281 = arith.constant dense<0.000000e+00> : vector<4x512xf32>
    %347 = tpu.matmul %346, %344, %cst_281 {dimension_numbers = #tpu.dot_dimension_numbers<[1], [0], [0], [1], [0, 0, 1, 1], [], []>} : vector<4x4xf32>, vector<4x512xf32>, vector<4x512xf32> -> vector<4x512xf32>
    %348 = arith.addf %339, %347 : vector<4x512xf32>
    %c495_i32_282 = arith.constant 495 : i32
    %349 = tpu.dynamic_rotate %280 by %c495_i32_282 dim 1 : vector<4x512xf32>, i32 -> vector<4x512xf32>
    %c8_283 = arith.constant 8 : index
    %c0_284 = arith.constant 0 : index
    %c0_285 = arith.constant 0 : index
    %350 = vector.load %arg14[%c8_283, %c0_284, %c0_285] : memref<9x1x512xf32, #tpu.memory_space<vmem>>, vector<1x1x512xf32>
    %351 = vector.shape_cast %350 : vector<1x1x512xf32> to vector<1x512xf32>
    %352 = vector.broadcast %351 : vector<1x512xf32> to vector<4x512xf32>
    %353 = arith.mulf %349, %352 : vector<4x512xf32>
    %c8_286 = arith.constant 8 : index
    %c0_287 = arith.constant 0 : index
    %c0_288 = arith.constant 0 : index
    %354 = vector.load %arg6[%c8_286, %c0_287, %c0_288] : memref<9x4x4xf32, #tpu.memory_space<vmem>>, vector<1x4x4xf32>
    %355 = vector.shape_cast %354 : vector<1x4x4xf32> to vector<4x4xf32>
    %cst_289 = arith.constant dense<0.000000e+00> : vector<4x512xf32>
    %356 = tpu.matmul %355, %353, %cst_289 {dimension_numbers = #tpu.dot_dimension_numbers<[1], [0], [0], [1], [0, 0, 1, 1], [], []>} : vector<4x4xf32>, vector<4x512xf32>, vector<4x512xf32> -> vector<4x512xf32>
    %357 = arith.addf %348, %356 : vector<4x512xf32>
    %c0_290 = arith.constant 0 : index
    %c0_291 = arith.constant 0 : index
    %358 = vector.load %arg11[%c0_290, %c0_291] : memref<4x1xf32, #tpu.memory_space<vmem>>, vector<4x1xf32>
    %359 = vector.broadcast %358 : vector<4x1xf32> to vector<4x512xf32>
    %360 = arith.addf %357, %359 : vector<4x512xf32>
    %cst_292 = arith.constant 0.000000e+00 : f32
    %361 = vector.broadcast %cst_292 : f32 to vector<4x512xf32>
    %362 = arith.cmpf oge, %360, %361 : vector<4x512xf32>
    %cst_293 = arith.constant 2.000000e-01 : f32
    %363 = vector.broadcast %cst_293 : f32 to vector<4x512xf32>
    %364 = arith.mulf %363, %360 : vector<4x512xf32>
    %365 = arith.select %362, %360, %364 : vector<4x512xi1>, vector<4x512xf32>
    %366 = arith.addf %365, %195 : vector<4x512xf32>
    %cst_294 = arith.constant 0.000000e+00 : f32
    %367 = vector.broadcast %cst_294 : f32 to vector<3x512xf32>
    %c17_i32_295 = arith.constant 17 : i32
    %368 = tpu.dynamic_rotate %366 by %c17_i32_295 dim 1 : vector<4x512xf32>, i32 -> vector<4x512xf32>
    %c0_296 = arith.constant 0 : index
    %c0_297 = arith.constant 0 : index
    %c0_298 = arith.constant 0 : index
    %369 = vector.load %arg14[%c0_296, %c0_297, %c0_298] : memref<9x1x512xf32, #tpu.memory_space<vmem>>, vector<1x1x512xf32>
    %370 = vector.shape_cast %369 : vector<1x1x512xf32> to vector<1x512xf32>
    %371 = vector.broadcast %370 : vector<1x512xf32> to vector<4x512xf32>
    %372 = arith.mulf %368, %371 : vector<4x512xf32>
    %c0_299 = arith.constant 0 : index
    %c0_300 = arith.constant 0 : index
    %c0_301 = arith.constant 0 : index
    %373 = vector.load %arg7[%c0_299, %c0_300, %c0_301] : memref<9x3x4xf32, #tpu.memory_space<vmem>>, vector<1x3x4xf32>
    %374 = vector.shape_cast %373 : vector<1x3x4xf32> to vector<3x4xf32>
    %cst_302 = arith.constant dense<0.000000e+00> : vector<3x512xf32>
    %375 = tpu.matmul %374, %372, %cst_302 {dimension_numbers = #tpu.dot_dimension_numbers<[1], [0], [0], [1], [0, 0, 1, 1], [], []>} : vector<3x4xf32>, vector<4x512xf32>, vector<3x512xf32> -> vector<3x512xf32>
    %376 = arith.addf %367, %375 : vector<3x512xf32>
    %c16_i32_303 = arith.constant 16 : i32
    %377 = tpu.dynamic_rotate %366 by %c16_i32_303 dim 1 : vector<4x512xf32>, i32 -> vector<4x512xf32>
    %c1_304 = arith.constant 1 : index
    %c0_305 = arith.constant 0 : index
    %c0_306 = arith.constant 0 : index
    %378 = vector.load %arg14[%c1_304, %c0_305, %c0_306] : memref<9x1x512xf32, #tpu.memory_space<vmem>>, vector<1x1x512xf32>
    %379 = vector.shape_cast %378 : vector<1x1x512xf32> to vector<1x512xf32>
    %380 = vector.broadcast %379 : vector<1x512xf32> to vector<4x512xf32>
    %381 = arith.mulf %377, %380 : vector<4x512xf32>
    %c1_307 = arith.constant 1 : index
    %c0_308 = arith.constant 0 : index
    %c0_309 = arith.constant 0 : index
    %382 = vector.load %arg7[%c1_307, %c0_308, %c0_309] : memref<9x3x4xf32, #tpu.memory_space<vmem>>, vector<1x3x4xf32>
    %383 = vector.shape_cast %382 : vector<1x3x4xf32> to vector<3x4xf32>
    %cst_310 = arith.constant dense<0.000000e+00> : vector<3x512xf32>
    %384 = tpu.matmul %383, %381, %cst_310 {dimension_numbers = #tpu.dot_dimension_numbers<[1], [0], [0], [1], [0, 0, 1, 1], [], []>} : vector<3x4xf32>, vector<4x512xf32>, vector<3x512xf32> -> vector<3x512xf32>
    %385 = arith.addf %376, %384 : vector<3x512xf32>
    %c15_i32_311 = arith.constant 15 : i32
    %386 = tpu.dynamic_rotate %366 by %c15_i32_311 dim 1 : vector<4x512xf32>, i32 -> vector<4x512xf32>
    %c2_312 = arith.constant 2 : index
    %c0_313 = arith.constant 0 : index
    %c0_314 = arith.constant 0 : index
    %387 = vector.load %arg14[%c2_312, %c0_313, %c0_314] : memref<9x1x512xf32, #tpu.memory_space<vmem>>, vector<1x1x512xf32>
    %388 = vector.shape_cast %387 : vector<1x1x512xf32> to vector<1x512xf32>
    %389 = vector.broadcast %388 : vector<1x512xf32> to vector<4x512xf32>
    %390 = arith.mulf %386, %389 : vector<4x512xf32>
    %c2_315 = arith.constant 2 : index
    %c0_316 = arith.constant 0 : index
    %c0_317 = arith.constant 0 : index
    %391 = vector.load %arg7[%c2_315, %c0_316, %c0_317] : memref<9x3x4xf32, #tpu.memory_space<vmem>>, vector<1x3x4xf32>
    %392 = vector.shape_cast %391 : vector<1x3x4xf32> to vector<3x4xf32>
    %cst_318 = arith.constant dense<0.000000e+00> : vector<3x512xf32>
    %393 = tpu.matmul %392, %390, %cst_318 {dimension_numbers = #tpu.dot_dimension_numbers<[1], [0], [0], [1], [0, 0, 1, 1], [], []>} : vector<3x4xf32>, vector<4x512xf32>, vector<3x512xf32> -> vector<3x512xf32>
    %394 = arith.addf %385, %393 : vector<3x512xf32>
    %c1_i32_319 = arith.constant 1 : i32
    %395 = tpu.dynamic_rotate %366 by %c1_i32_319 dim 1 : vector<4x512xf32>, i32 -> vector<4x512xf32>
    %c3_320 = arith.constant 3 : index
    %c0_321 = arith.constant 0 : index
    %c0_322 = arith.constant 0 : index
    %396 = vector.load %arg14[%c3_320, %c0_321, %c0_322] : memref<9x1x512xf32, #tpu.memory_space<vmem>>, vector<1x1x512xf32>
    %397 = vector.shape_cast %396 : vector<1x1x512xf32> to vector<1x512xf32>
    %398 = vector.broadcast %397 : vector<1x512xf32> to vector<4x512xf32>
    %399 = arith.mulf %395, %398 : vector<4x512xf32>
    %c3_323 = arith.constant 3 : index
    %c0_324 = arith.constant 0 : index
    %c0_325 = arith.constant 0 : index
    %400 = vector.load %arg7[%c3_323, %c0_324, %c0_325] : memref<9x3x4xf32, #tpu.memory_space<vmem>>, vector<1x3x4xf32>
    %401 = vector.shape_cast %400 : vector<1x3x4xf32> to vector<3x4xf32>
    %cst_326 = arith.constant dense<0.000000e+00> : vector<3x512xf32>
    %402 = tpu.matmul %401, %399, %cst_326 {dimension_numbers = #tpu.dot_dimension_numbers<[1], [0], [0], [1], [0, 0, 1, 1], [], []>} : vector<3x4xf32>, vector<4x512xf32>, vector<3x512xf32> -> vector<3x512xf32>
    %403 = arith.addf %394, %402 : vector<3x512xf32>
    %c4_327 = arith.constant 4 : index
    %c0_328 = arith.constant 0 : index
    %c0_329 = arith.constant 0 : index
    %404 = vector.load %arg7[%c4_327, %c0_328, %c0_329] : memref<9x3x4xf32, #tpu.memory_space<vmem>>, vector<1x3x4xf32>
    %405 = vector.shape_cast %404 : vector<1x3x4xf32> to vector<3x4xf32>
    %cst_330 = arith.constant dense<0.000000e+00> : vector<3x512xf32>
    %406 = tpu.matmul %405, %366, %cst_330 {dimension_numbers = #tpu.dot_dimension_numbers<[1], [0], [0], [1], [0, 0, 1, 1], [], []>} : vector<3x4xf32>, vector<4x512xf32>, vector<3x512xf32> -> vector<3x512xf32>
    %407 = arith.addf %403, %406 : vector<3x512xf32>
    %c511_i32_331 = arith.constant 511 : i32
    %408 = tpu.dynamic_rotate %366 by %c511_i32_331 dim 1 : vector<4x512xf32>, i32 -> vector<4x512xf32>
    %c5_332 = arith.constant 5 : index
    %c0_333 = arith.constant 0 : index
    %c0_334 = arith.constant 0 : index
    %409 = vector.load %arg14[%c5_332, %c0_333, %c0_334] : memref<9x1x512xf32, #tpu.memory_space<vmem>>, vector<1x1x512xf32>
    %410 = vector.shape_cast %409 : vector<1x1x512xf32> to vector<1x512xf32>
    %411 = vector.broadcast %410 : vector<1x512xf32> to vector<4x512xf32>
    %412 = arith.mulf %408, %411 : vector<4x512xf32>
    %c5_335 = arith.constant 5 : index
    %c0_336 = arith.constant 0 : index
    %c0_337 = arith.constant 0 : index
    %413 = vector.load %arg7[%c5_335, %c0_336, %c0_337] : memref<9x3x4xf32, #tpu.memory_space<vmem>>, vector<1x3x4xf32>
    %414 = vector.shape_cast %413 : vector<1x3x4xf32> to vector<3x4xf32>
    %cst_338 = arith.constant dense<0.000000e+00> : vector<3x512xf32>
    %415 = tpu.matmul %414, %412, %cst_338 {dimension_numbers = #tpu.dot_dimension_numbers<[1], [0], [0], [1], [0, 0, 1, 1], [], []>} : vector<3x4xf32>, vector<4x512xf32>, vector<3x512xf32> -> vector<3x512xf32>
    %416 = arith.addf %407, %415 : vector<3x512xf32>
    %c497_i32_339 = arith.constant 497 : i32
    %417 = tpu.dynamic_rotate %366 by %c497_i32_339 dim 1 : vector<4x512xf32>, i32 -> vector<4x512xf32>
    %c6_340 = arith.constant 6 : index
    %c0_341 = arith.constant 0 : index
    %c0_342 = arith.constant 0 : index
    %418 = vector.load %arg14[%c6_340, %c0_341, %c0_342] : memref<9x1x512xf32, #tpu.memory_space<vmem>>, vector<1x1x512xf32>
    %419 = vector.shape_cast %418 : vector<1x1x512xf32> to vector<1x512xf32>
    %420 = vector.broadcast %419 : vector<1x512xf32> to vector<4x512xf32>
    %421 = arith.mulf %417, %420 : vector<4x512xf32>
    %c6_343 = arith.constant 6 : index
    %c0_344 = arith.constant 0 : index
    %c0_345 = arith.constant 0 : index
    %422 = vector.load %arg7[%c6_343, %c0_344, %c0_345] : memref<9x3x4xf32, #tpu.memory_space<vmem>>, vector<1x3x4xf32>
    %423 = vector.shape_cast %422 : vector<1x3x4xf32> to vector<3x4xf32>
    %cst_346 = arith.constant dense<0.000000e+00> : vector<3x512xf32>
    %424 = tpu.matmul %423, %421, %cst_346 {dimension_numbers = #tpu.dot_dimension_numbers<[1], [0], [0], [1], [0, 0, 1, 1], [], []>} : vector<3x4xf32>, vector<4x512xf32>, vector<3x512xf32> -> vector<3x512xf32>
    %425 = arith.addf %416, %424 : vector<3x512xf32>
    %c496_i32_347 = arith.constant 496 : i32
    %426 = tpu.dynamic_rotate %366 by %c496_i32_347 dim 1 : vector<4x512xf32>, i32 -> vector<4x512xf32>
    %c7_348 = arith.constant 7 : index
    %c0_349 = arith.constant 0 : index
    %c0_350 = arith.constant 0 : index
    %427 = vector.load %arg14[%c7_348, %c0_349, %c0_350] : memref<9x1x512xf32, #tpu.memory_space<vmem>>, vector<1x1x512xf32>
    %428 = vector.shape_cast %427 : vector<1x1x512xf32> to vector<1x512xf32>
    %429 = vector.broadcast %428 : vector<1x512xf32> to vector<4x512xf32>
    %430 = arith.mulf %426, %429 : vector<4x512xf32>
    %c7_351 = arith.constant 7 : index
    %c0_352 = arith.constant 0 : index
    %c0_353 = arith.constant 0 : index
    %431 = vector.load %arg7[%c7_351, %c0_352, %c0_353] : memref<9x3x4xf32, #tpu.memory_space<vmem>>, vector<1x3x4xf32>
    %432 = vector.shape_cast %431 : vector<1x3x4xf32> to vector<3x4xf32>
    %cst_354 = arith.constant dense<0.000000e+00> : vector<3x512xf32>
    %433 = tpu.matmul %432, %430, %cst_354 {dimension_numbers = #tpu.dot_dimension_numbers<[1], [0], [0], [1], [0, 0, 1, 1], [], []>} : vector<3x4xf32>, vector<4x512xf32>, vector<3x512xf32> -> vector<3x512xf32>
    %434 = arith.addf %425, %433 : vector<3x512xf32>
    %c495_i32_355 = arith.constant 495 : i32
    %435 = tpu.dynamic_rotate %366 by %c495_i32_355 dim 1 : vector<4x512xf32>, i32 -> vector<4x512xf32>
    %c8_356 = arith.constant 8 : index
    %c0_357 = arith.constant 0 : index
    %c0_358 = arith.constant 0 : index
    %436 = vector.load %arg14[%c8_356, %c0_357, %c0_358] : memref<9x1x512xf32, #tpu.memory_space<vmem>>, vector<1x1x512xf32>
    %437 = vector.shape_cast %436 : vector<1x1x512xf32> to vector<1x512xf32>
    %438 = vector.broadcast %437 : vector<1x512xf32> to vector<4x512xf32>
    %439 = arith.mulf %435, %438 : vector<4x512xf32>
    %c8_359 = arith.constant 8 : index
    %c0_360 = arith.constant 0 : index
    %c0_361 = arith.constant 0 : index
    %440 = vector.load %arg7[%c8_359, %c0_360, %c0_361] : memref<9x3x4xf32, #tpu.memory_space<vmem>>, vector<1x3x4xf32>
    %441 = vector.shape_cast %440 : vector<1x3x4xf32> to vector<3x4xf32>
    %cst_362 = arith.constant dense<0.000000e+00> : vector<3x512xf32>
    %442 = tpu.matmul %441, %439, %cst_362 {dimension_numbers = #tpu.dot_dimension_numbers<[1], [0], [0], [1], [0, 0, 1, 1], [], []>} : vector<3x4xf32>, vector<4x512xf32>, vector<3x512xf32> -> vector<3x512xf32>
    %443 = arith.addf %434, %442 : vector<3x512xf32>
    %c0_363 = arith.constant 0 : index
    %c0_364 = arith.constant 0 : index
    %444 = vector.load %arg12[%c0_363, %c0_364] : memref<3x1xf32, #tpu.memory_space<vmem>>, vector<3x1xf32>
    %445 = vector.broadcast %444 : vector<3x1xf32> to vector<3x512xf32>
    %446 = arith.addf %443, %445 : vector<3x512xf32>
    %447 = vector.extract_strided_slice %446 {offsets = [0, 0], sizes = [3, 256], strides = [1, 1]} : vector<3x512xf32> to vector<3x256xf32>
    %c0_365 = arith.constant 0 : index
    %c0_366 = arith.constant 0 : index
    %c0_367 = arith.constant 0 : index
    %448 = vector.load %arg16[%c0_365, %c0_366, %c0_367] : memref<2x3x256xf32, #tpu.memory_space<vmem>>, vector<1x3x256xf32>
    %449 = vector.shape_cast %448 : vector<1x3x256xf32> to vector<3x256xf32>
    %450 = vector.shape_cast %447 : vector<3x256xf32> to vector<1x3x256xf32>
    tpu.vector_store %arg16[%c0_365, %c0_366, %c0_367], %450 {strides = array<i32>} : memref<2x3x256xf32, #tpu.memory_space<vmem>>, vector<1x3x256xf32>,
    %451 = vector.extract_strided_slice %446 {offsets = [0, 256], sizes = [3, 256], strides = [1, 1]} : vector<3x512xf32> to vector<3x256xf32>
    %c1_368 = arith.constant 1 : index
    %c0_369 = arith.constant 0 : index
    %c0_370 = arith.constant 0 : index
    %452 = vector.load %arg16[%c1_368, %c0_369, %c0_370] : memref<2x3x256xf32, #tpu.memory_space<vmem>>, vector<1x3x256xf32>
    %453 = vector.shape_cast %452 : vector<1x3x256xf32> to vector<3x256xf32>
    %454 = vector.shape_cast %451 : vector<3x256xf32> to vector<1x3x256xf32>
    tpu.vector_store %arg16[%c1_368, %c0_369, %c0_370], %454 {strides = array<i32>} : memref<2x3x256xf32, #tpu.memory_space<vmem>>, vector<1x3x256xf32>,
    return
  }
}

</mosaic_0001>

<llo_original>
// kernel: tpu_custom_call.1
$region0: #{tpu_custom_call.1}
  #allocation0 [shape = 'u32[]', space=smem, size = 0x4, offset = 0x4, fixed_abs, tag = 'smem constant byte address 0x4 - core index']
  #allocation1 [shape = 'u32[144,128]{1,0:T(1,128)}', space=vmem, size = 0x12000, scoped, tag = 'internal scratch']
  #allocation2 [shape = 'f32[4,128]{1,0:T(4,128)}', space=vmem, size = 0x800, scoped, tag = 'scratch operand']
  %s0 = inlined_call_operand.vmem [shape: f32[2,8], index: 0, kind: input, shape index: {}]
  %s1 = inlined_call_operand.vmem [shape: f32[8,256], index: 1, kind: input, shape index: {}]
  %s2 = inlined_call_operand.vmem [shape: f32[1,256], index: 2, kind: input, shape index: {}]
  %s3 = inlined_call_operand.vmem [shape: f32[9,4,4], index: 3, kind: input, shape index: {}]
  %s4 = inlined_call_operand.vmem [shape: f32[9,4,4], index: 4, kind: input, shape index: {}]
  %s5 = inlined_call_operand.vmem [shape: f32[9,4,4], index: 5, kind: input, shape index: {}]
  %s6 = inlined_call_operand.vmem [shape: f32[9,4,4], index: 6, kind: input, shape index: {}]
  %s7 = inlined_call_operand.vmem [shape: f32[9,3,4], index: 7, kind: input, shape index: {}]
  %s8 = inlined_call_operand.vmem [shape: f32[4,1], index: 8, kind: input, shape index: {}]
  %s9 = inlined_call_operand.vmem [shape: f32[4,1], index: 9, kind: input, shape index: {}]
  %s10 = inlined_call_operand.vmem [shape: f32[4,1], index: 10, kind: input, shape index: {}]
  %s11 = inlined_call_operand.vmem [shape: f32[4,1], index: 11, kind: input, shape index: {}]
  %s12 = inlined_call_operand.vmem [shape: f32[3,1], index: 12, kind: input, shape index: {}]
  %s13 = inlined_call_operand.vmem [shape: f32[9,1,128], index: 13, kind: input, shape index: {}]
  %s14 = inlined_call_operand.vmem [shape: f32[9,1,512], index: 14, kind: input, shape index: {}]
  %s15 = inlined_call_operand.hbm [shape: f32[128,512], index: 15, kind: input, shape index: {}]
  %s16 = inlined_call_operand.vmem [shape: f32[2,3,256], index: 16, kind: output, shape index: {}]
  %s17 = sld [smem:[#allocation0]]
  $region78: #{tpu_custom_call.1} parent=0
    _
  %s19 = ssub.s32 1, %s17
  %s20 = scalar_select 0, %s19, %s17
  $region1: #{tpu_custom_call.1} parent=0
    #allocation3 [shape = 'u8[262144]{0}', space=vmem, size = 0x40000, scoped, tag = 'input window, operand 15, single buffered']
    #allocation4 [shape = 's32[1]{0}', space=sflag, size = 0x4, scoped, tag = 'scoped memory for tpu_custom_call.1']
    %21 = vsyncpa [#allocation4], 0
    // Predicated region
    $region2: #{tpu_custom_call.1} parent=1 // pred_check
      _
    $region3: #{tpu_custom_call.1} parent=1 // pred_check_branch
      %23 = sbr.rel (0) target = $region5
    $region4: #{tpu_custom_call.1} parent=1 // pred_region
      _
    $region5: #{tpu_custom_call.1} parent=1 // pred_fallthru
      _
    // Predicated region
    $region6: #{tpu_custom_call.1} parent=1 // pred_check
      _
    $region7: #{tpu_custom_call.1} parent=1 // pred_check_branch
      %25 = sbr.rel (0) target = $region9
    $region8: #{tpu_custom_call.1} parent=1 // pred_region
      _
    $region9: #{tpu_custom_call.1} parent=1 // pred_fallthru
      _
    // Predicated region
    $region10: #{tpu_custom_call.1} parent=1 // pred_check
      _
    $region11: #{tpu_custom_call.1} parent=1 // pred_check_branch
      %27 = sbr.rel (0) target = $region13
    $region12: #{tpu_custom_call.1} parent=1 // pred_region
      _
    $region13: #{tpu_custom_call.1} parent=1 // pred_fallthru
      _
    // Predicated region
    $region14: #{tpu_custom_call.1} parent=1 // pred_check
      _
    $region15: #{tpu_custom_call.1} parent=1 // pred_check_branch
      %29 = sbr.rel (0) target = $region17
    $region16: #{tpu_custom_call.1} parent=1 // pred_region
      _
    $region17: #{tpu_custom_call.1} parent=1 // pred_fallthru
      _
    // Predicated region
    $region18: #{tpu_custom_call.1} parent=1 // pred_check
      _
    $region19: #{tpu_custom_call.1} parent=1 // pred_check_branch
      %31 = sbr.rel (0) target = $region21
    $region20: #{tpu_custom_call.1} parent=1 // pred_region
      _
    $region21: #{tpu_custom_call.1} parent=1 // pred_fallthru
      _
    // Predicated region
    $region22: #{tpu_custom_call.1} parent=1 // pred_check
      _
    $region23: #{tpu_custom_call.1} parent=1 // pred_check_branch
      %33 = sbr.rel (0) target = $region25
    $region24: #{tpu_custom_call.1} parent=1 // pred_region
      _
    $region25: #{tpu_custom_call.1} parent=1 // pred_fallthru
      _
    // Predicated region
    $region26: #{tpu_custom_call.1} parent=1 // pred_check
      _
    $region27: #{tpu_custom_call.1} parent=1 // pred_check_branch
      %35 = sbr.rel (0) target = $region29
    $region28: #{tpu_custom_call.1} parent=1 // pred_region
      _
    $region29: #{tpu_custom_call.1} parent=1 // pred_fallthru
      _
    // Predicated region
    $region30: #{tpu_custom_call.1} parent=1 // pred_check
      _
    $region31: #{tpu_custom_call.1} parent=1 // pred_check_branch
      %37 = sbr.rel (0) target = $region33
    $region32: #{tpu_custom_call.1} parent=1 // pred_region
      _
    $region33: #{tpu_custom_call.1} parent=1 // pred_fallthru
      _
    // Predicated region
    $region34: #{tpu_custom_call.1} parent=1 // pred_check
      _
    $region35: #{tpu_custom_call.1} parent=1 // pred_check_branch
      %39 = sbr.rel (0) target = $region37
    $region36: #{tpu_custom_call.1} parent=1 // pred_region
      _
    $region37: #{tpu_custom_call.1} parent=1 // pred_fallthru
      _
    // Predicated region
    $region38: #{tpu_custom_call.1} parent=1 // pred_check
      _
    $region39: #{tpu_custom_call.1} parent=1 // pred_check_branch
      %41 = sbr.rel (0) target = $region41
    $region40: #{tpu_custom_call.1} parent=1 // pred_region
      _
    $region41: #{tpu_custom_call.1} parent=1 // pred_fallthru
      _
    // Predicated region
    $region42: #{tpu_custom_call.1} parent=1 // pred_check
      _
    $region43: #{tpu_custom_call.1} parent=1 // pred_check_branch
      %43 = sbr.rel (0) target = $region45
    $region44: #{tpu_custom_call.1} parent=1 // pred_region
      _
    $region45: #{tpu_custom_call.1} parent=1 // pred_fallthru
      _
    // Predicated region
    $region46: #{tpu_custom_call.1} parent=1 // pred_check
      _
    $region47: #{tpu_custom_call.1} parent=1 // pred_check_branch
      %45 = sbr.rel (0) target = $region49
    $region48: #{tpu_custom_call.1} parent=1 // pred_region
      _
    $region49: #{tpu_custom_call.1} parent=1 // pred_fallthru
      _
    // Predicated region
    $region50: #{tpu_custom_call.1} parent=1 // pred_check
      _
    $region51: #{tpu_custom_call.1} parent=1 // pred_check_branch
      %47 = sbr.rel (0) target = $region53
    $region52: #{tpu_custom_call.1} parent=1 // pred_region
      _
    $region53: #{tpu_custom_call.1} parent=1 // pred_fallthru
      _
    // Predicated region
    $region54: #{tpu_custom_call.1} parent=1 // pred_check
      _
    $region55: #{tpu_custom_call.1} parent=1 // pred_check_branch
      %49 = sbr.rel (0) target = $region57
    $region56: #{tpu_custom_call.1} parent=1 // pred_region
      _
    $region57: #{tpu_custom_call.1} parent=1 // pred_fallthru
      _
    // Predicated region
    $region58: #{tpu_custom_call.1} parent=1 // pred_check
      _
    $region59: #{tpu_custom_call.1} parent=1 // pred_check_branch
      %51 = sbr.rel (0) target = $region61
    $region60: #{tpu_custom_call.1} parent=1 // pred_region
      _
    $region61: #{tpu_custom_call.1} parent=1 // pred_fallthru
      _
    // Predicated region
    $region62: #{tpu_custom_call.1} parent=1 // pred_check
      _
    $region63: #{tpu_custom_call.1} parent=1 // pred_check_branch
      %53 = sbr.rel (0) target = $region65
    $region64: #{tpu_custom_call.1} parent=1 // pred_region
      %s55 = ssub.s32 8192, 8192
      %56 = vsyncadd [#allocation4], %s55
      %s57 = sshll.u32 [#allocation3], 4
      %s58 = int_to_ptr.vmem [resolvable:$true] %s57
      %63 = dma.hbm_to_vmem [thread:$0]  %s15, 8192, %s58, [#allocation4], 512, 512, 32
    $region65: #{tpu_custom_call.1} parent=1 // pred_fallthru
      _
    // Predicated region
    $region66: #{tpu_custom_call.1} parent=1 // pred_check
      _
    $region67: #{tpu_custom_call.1} parent=1 // pred_check_branch
      %65 = sbr.rel (0) target = $region69
    $region68: #{tpu_custom_call.1} parent=1 // pred_region
      %66 = dma.done [#allocation4], 8192
    $region69: #{tpu_custom_call.1} parent=1 // pred_fallthru
      _
    %v67 = vld [vmem:[%s0] sm:$0x3]
    %v68 = vld [vmem:[%s1] sm:$0xff]
    %v69 = vld [vmem:[%s1 + $0x8] sm:$0xff]
    %v70 = vld [vmem:[%s2] sm:$0x3]
    %v72 = vlaneseq
    %v73 = vshrl.u32 %v72, 7
    %v74 = vsub.s32 0, %v73
    %v75 = vrot.slane %v70, %v74
    %v76 = vlaneseq
    %v77 = vshrl.u32 %v76, 7
    %v78 = vsub.s32 1, %v77
    %v79 = vrot.slane %v70, %v78
    %vm82 = vcmask 64512
    %v84 = vsel %vm82, %v67, 0
    %86 = vmatprep.subr.mxu0 0.0
    %87 = vmatpush1.msra.mxu0 0.0
    %88 = vmatprep.subr.mxu0 0.0
    %89 = vmatpush1.msra.mxu0 0.0
    %90 = vmatprep.subr.mxu0 0.0
    %91 = vmatpush1.msra.mxu0 0.0
    %92 = vmatprep.subr.mxu0 0.0
    %93 = vmatpush1.msra.mxu0 0.0
    %94 = vmatprep.subr.mxu0 0.0
    %95 = vmatpush1.msra.mxu0 0.0
    %96 = vmatprep.subr.mxu0 0.0
    %97 = vmatpush1.msra.mxu0 0.0
    %98 = vmatprep.subr.mxu0 0.0
    %99 = vmatpush1.msra.mxu0 0.0
    %100 = vmatprep.subr.mxu0 0.0
    %101 = vmatpush1.msra.mxu0 0.0
    %102 = vmatprep.subr.mxu0 0.0
    %103 = vmatpush1.msra.mxu0 0.0
    %104 = vmatprep.subr.mxu0 0.0
    %105 = vmatpush1.msra.mxu0 0.0
    %106 = vmatprep.subr.mxu0 0.0
    %107 = vmatpush1.msra.mxu0 0.0
    %108 = vmatprep.subr.mxu0 0.0
    %109 = vmatpush1.msra.mxu0 0.0
    %110 = vmatprep.subr.mxu0 0.0
    %111 = vmatpush1.msra.mxu0 0.0
    %112 = vmatprep.subr.mxu0 0.0
    %113 = vmatpush1.msra.mxu0 0.0
    %114 = vmatprep.subr.mxu0 0.0
    %115 = vmatpush1.msra.mxu0 0.0
    %116 = vmatprep.subr.mxu0 %v69
    %117 = vmatpush1.msra.mxu0 %v68
    %118 = vmatprep.subr.mxu0 0.0
    %119 = vmatpush2.msra.mxu0 0.0
    %120 = vmatprep.subr.mxu0 0.0
    %121 = vmatpush2.msra.mxu0 0.0
    %122 = vmatprep.subr.mxu0 0.0
    %123 = vmatpush2.msra.mxu0 0.0
    %124 = vmatprep.subr.mxu0 0.0
    %125 = vmatpush2.msra.mxu0 0.0
    %126 = vmatprep.subr.mxu0 0.0
    %127 = vmatpush2.msra.mxu0 0.0
    %128 = vmatprep.subr.mxu0 0.0
    %129 = vmatpush2.msra.mxu0 0.0
    %130 = vmatprep.subr.mxu0 0.0
    %131 = vmatpush2.msra.mxu0 0.0
    %132 = vmatprep.subr.mxu0 0.0
    %133 = vmatpush2.msra.mxu0 0.0
    %134 = vmatprep.subr.mxu0 0.0
    %135 = vmatpush2.msra.mxu0 0.0
    %136 = vmatprep.subr.mxu0 0.0
    %137 = vmatpush2.msra.mxu0 0.0
    %138 = vmatprep.subr.mxu0 0.0
    %139 = vmatpush2.msra.mxu0 0.0
    %140 = vmatprep.subr.mxu0 0.0
    %141 = vmatpush2.msra.mxu0 0.0
    %142 = vmatprep.subr.mxu0 0.0
    %143 = vmatpush2.msra.mxu0 0.0
    %144 = vmatprep.subr.mxu0 0.0
    %145 = vmatpush2.msra.mxu0 0.0
    %146 = vmatprep.subr.mxu0 0.0
    %147 = vmatpush2.msra.mxu0 0.0
    %148 = vmatprep.subr.mxu0 0.0
    %149 = vmatpush2.msra.mxu0 0.0
    %150 = vmatprep.mubr.f32.mxu0 0.0
    %151 = vmatmul.mubr.f32.gmra.mxu0 %v84
    %v152 = vpop.f32.mrf.mxu0
    %v153 = vadd.f32 %v75, %v152
    %v154 = vpop.f32.mrf.mxu0
    %v155 = vadd.f32 %v79, %v154
    %156 = vdwg.mxu0
    %vm157 = vcmask 516096
    %158 = vst.msk [vmem:[#allocation2] sm:$0x1] %vm157, %v153
    %160 = vrot.lane.b32.xlu0 %v153, 64
    %v161 = vpop.permute.xlu0 %160
    %vm163 = vcmask 1041921
    %164 = vst.msk [vmem:[#allocation2 - $0x1] sm:$0x2] %vm163, %v161
    %165 = vst.msk [vmem:[#allocation2 + $0x1] sm:$0x1] %vm157, %v161
    %166 = vst.msk [vmem:[#allocation2] sm:$0x2] %vm163, %v153
    %167 = vst.msk [vmem:[#allocation2 + $0x2] sm:$0x1] %vm157, %v155
    %169 = vrot.lane.b32.xlu0 %v155, 64
    %v170 = vpop.permute.xlu0 %169
    %172 = vst.msk [vmem:[#allocation2 + $0x1] sm:$0x2] %vm163, %v170
    %173 = vst.msk [vmem:[#allocation2 + $0x3] sm:$0x1] %vm157, %v170
    %174 = vst.msk [vmem:[#allocation2 + $0x2] sm:$0x2] %vm163, %v155
    %v175 = vld [vmem:[#allocation2] sm:$0xf]
    %176 = vrot.lane.b32.xlu0 %v175, 9
    %v177 = vpop.permute.xlu0 %176
    %v178 = vld [vmem:[%s13] sm:$0x1]
    %v180 = vlaneseq
    %v181 = vshrl.u32 %v180, 7
    %v182 = vsub.s32 0, %v181
    %v183 = vrot.slane %v178, %v182
    %v185 = vmul.f32 %v177, %v183
    %v186 = vld [vmem:[%s3] sm:$0xf]
    %187 = vrot.lane.b32.xlu0 %v175, 8
    %v188 = vpop.permute.xlu0 %187
    %s189 = scalar_lea.vmem %s13, 1
    %v190 = vld [vmem:[%s189] sm:$0x1]
    %v192 = vlaneseq
    %v193 = vshrl.u32 %v192, 7
    %v194 = vsub.s32 0, %v193
    %v195 = vrot.slane %v190, %v194
    %v197 = vmul.f32 %v188, %v195
    %s198 = scalar_lea.vmem %s3, 4
    %v199 = vld [vmem:[%s198] sm:$0xf]
    %vm200 = vcmask 31744
    %v202 = vsel %vm200, %v199, 0
    %vm204 = vcmask 1043456
    %v206 = vsel %vm204, %v197, 0
    %208 = vmatprep.subr.mxu0 0.0
    %209 = vmatpush1.msra.mxu0 0.0
    %210 = vmatprep.subr.mxu0 0.0
    %211 = vmatpush1.msra.mxu0 0.0
    %212 = vmatprep.subr.mxu0 0.0
    %213 = vmatpush1.msra.mxu0 0.0
    %214 = vmatprep.subr.mxu0 0.0
    %215 = vmatpush1.msra.mxu0 0.0
    %216 = vmatprep.subr.mxu0 0.0
    %217 = vmatpush1.msra.mxu0 0.0
    %218 = vmatprep.subr.mxu0 0.0
    %219 = vmatpush1.msra.mxu0 0.0
    %220 = vmatprep.subr.mxu0 0.0
    %221 = vmatpush1.msra.mxu0 0.0
    %222 = vmatprep.subr.mxu0 0.0
    %223 = vmatpush1.msra.mxu0 0.0
    %224 = vmatprep.subr.mxu0 0.0
    %225 = vmatpush1.msra.mxu0 0.0
    %226 = vmatprep.subr.mxu0 0.0
    %227 = vmatpush1.msra.mxu0 0.0
    %228 = vmatprep.subr.mxu0 0.0
    %229 = vmatpush1.msra.mxu0 0.0
    %230 = vmatprep.subr.mxu0 0.0
    %231 = vmatpush1.msra.mxu0 0.0
    %232 = vmatprep.subr.mxu0 0.0
    %233 = vmatpush1.msra.mxu0 0.0
    %234 = vmatprep.subr.mxu0 0.0
    %235 = vmatpush1.msra.mxu0 0.0
    %236 = vmatprep.subr.mxu0 0.0
    %237 = vmatpush1.msra.mxu0 0.0
    %238 = vmatprep.subr.mxu0 0.0
    %239 = vmatpush1.msra.mxu0 %v206
    %240 = vmatprep.subr.mxu0 0.0
    %241 = vmatpush2.msra.mxu0 0.0
    %242 = vmatprep.subr.mxu0 0.0
    %243 = vmatpush2.msra.mxu0 0.0
    %244 = vmatprep.subr.mxu0 0.0
    %245 = vmatpush2.msra.mxu0 0.0
    %246 = vmatprep.subr.mxu0 0.0
    %247 = vmatpush2.msra.mxu0 0.0
    %248 = vmatprep.subr.mxu0 0.0
    %249 = vmatpush2.msra.mxu0 0.0
    %250 = vmatprep.subr.mxu0 0.0
    %251 = vmatpush2.msra.mxu0 0.0
    %252 = vmatprep.subr.mxu0 0.0
    %253 = vmatpush2.msra.mxu0 0.0
    %254 = vmatprep.subr.mxu0 0.0
    %255 = vmatpush2.msra.mxu0 0.0
    %256 = vmatprep.subr.mxu0 0.0
    %257 = vmatpush2.msra.mxu0 0.0
    %258 = vmatprep.subr.mxu0 0.0
    %259 = vmatpush2.msra.mxu0 0.0
    %260 = vmatprep.subr.mxu0 0.0
    %261 = vmatpush2.msra.mxu0 0.0
    %262 = vmatprep.subr.mxu0 0.0
    %263 = vmatpush2.msra.mxu0 0.0
    %264 = vmatprep.subr.mxu0 0.0
    %265 = vmatpush2.msra.mxu0 0.0
    %266 = vmatprep.subr.mxu0 0.0
    %267 = vmatpush2.msra.mxu0 0.0
    %268 = vmatprep.subr.mxu0 0.0
    %269 = vmatpush2.msra.mxu0 0.0
    %270 = vmatprep.subr.mxu0 0.0
    %271 = vmatpush2.msra.mxu0 0.0
    %272 = vmatprep.mubr.f32.mxu0 0.0
    %273 = vmatmul.mubr.f32.gmra.mxu0 %v202
    %v274 = vpop.f32.mrf.mxu0
    %v275 = vadd.f32 0.0, %v274
    %v276 = vpop.f32.mrf.mxu0
    %277 = vdwg.mxu0
    %v279 = vsel %vm200, %v186, 0
    %v282 = vsel %vm204, %v185, 0
    %284 = vmatprep.subr.mxu0 0.0
    %285 = vmatpush1.msra.mxu0 0.0
    %286 = vmatprep.subr.mxu0 0.0
    %287 = vmatpush1.msra.mxu0 0.0
    %288 = vmatprep.subr.mxu0 0.0
    %289 = vmatpush1.msra.mxu0 0.0
    %290 = vmatprep.subr.mxu0 0.0
    %291 = vmatpush1.msra.mxu0 0.0
    %292 = vmatprep.subr.mxu0 0.0
    %293 = vmatpush1.msra.mxu0 0.0
    %294 = vmatprep.subr.mxu0 0.0
    %295 = vmatpush1.msra.mxu0 0.0
    %296 = vmatprep.subr.mxu0 0.0
    %297 = vmatpush1.msra.mxu0 0.0
    %298 = vmatprep.subr.mxu0 0.0
    %299 = vmatpush1.msra.mxu0 0.0
    %300 = vmatprep.subr.mxu0 0.0
    %301 = vmatpush1.msra.mxu0 0.0
    %302 = vmatprep.subr.mxu0 0.0
    %303 = vmatpush1.msra.mxu0 0.0
    %304 = vmatprep.subr.mxu0 0.0
    %305 = vmatpush1.msra.mxu0 0.0
    %306 = vmatprep.subr.mxu0 0.0
    %307 = vmatpush1.msra.mxu0 0.0
    %308 = vmatprep.subr.mxu0 0.0
    %309 = vmatpush1.msra.mxu0 0.0
    %310 = vmatprep.subr.mxu0 0.0
    %311 = vmatpush1.msra.mxu0 0.0
    %312 = vmatprep.subr.mxu0 0.0
    %313 = vmatpush1.msra.mxu0 0.0
    %314 = vmatprep.subr.mxu0 0.0
    %315 = vmatpush1.msra.mxu0 %v282
    %316 = vmatprep.subr.mxu0 0.0
    %317 = vmatpush2.msra.mxu0 0.0
    %318 = vmatprep.subr.mxu0 0.0
    %319 = vmatpush2.msra.mxu0 0.0
    %320 = vmatprep.subr.mxu0 0.0
    %321 = vmatpush2.msra.mxu0 0.0
    %322 = vmatprep.subr.mxu0 0.0
    %323 = vmatpush2.msra.mxu0 0.0
    %324 = vmatprep.subr.mxu0 0.0
    %325 = vmatpush2.msra.mxu0 0.0
    %326 = vmatprep.subr.mxu0 0.0
    %327 = vmatpush2.msra.mxu0 0.0
    %328 = vmatprep.subr.mxu0 0.0
    %329 = vmatpush2.msra.mxu0 0.0
    %330 = vmatprep.subr.mxu0 0.0
    %331 = vmatpush2.msra.mxu0 0.0
    %332 = vmatprep.subr.mxu0 0.0
    %333 = vmatpush2.msra.mxu0 0.0
    %334 = vmatprep.subr.mxu0 0.0
    %335 = vmatpush2.msra.mxu0 0.0
    %336 = vmatprep.subr.mxu0 0.0
    %337 = vmatpush2.msra.mxu0 0.0
    %338 = vmatprep.subr.mxu0 0.0
    %339 = vmatpush2.msra.mxu0 0.0
    %340 = vmatprep.subr.mxu0 0.0
    %341 = vmatpush2.msra.mxu0 0.0
    %342 = vmatprep.subr.mxu0 0.0
    %343 = vmatpush2.msra.mxu0 0.0
    %344 = vmatprep.subr.mxu0 0.0
    %345 = vmatpush2.msra.mxu0 0.0
    %346 = vmatprep.subr.mxu0 0.0
    %347 = vmatpush2.msra.mxu0 0.0
    %348 = vmatprep.mubr.f32.mxu0 0.0
    %349 = vmatmul.mubr.f32.gmra.mxu0 %v279
    %v350 = vpop.f32.mrf.mxu0
    %v351 = vadd.f32 %v275, %v350
    %v352 = vpop.f32.mrf.mxu0
    %353 = vdwg.mxu0
    %354 = vrot.lane.b32.xlu0 %v175, 7
    %v355 = vpop.permute.xlu0 %354
    %s356 = scalar_lea.vmem %s13, 2
    %v357 = vld [vmem:[%s356] sm:$0x1]
    %v359 = vlaneseq
    %v360 = vshrl.u32 %v359, 7
    %v361 = vsub.s32 0, %v360
    %v362 = vrot.slane %v357, %v361
    %v364 = vmul.f32 %v355, %v362
    %s365 = scalar_lea.vmem %s3, 8
    %v366 = vld [vmem:[%s365] sm:$0xf]
    %v368 = vsel %vm200, %v366, 0
    %v371 = vsel %vm204, %v364, 0
    %373 = vmatprep.subr.mxu0 0.0
    %374 = vmatpush1.msra.mxu0 0.0
    %375 = vmatprep.subr.mxu0 0.0
    %376 = vmatpush1.msra.mxu0 0.0
    %377 = vmatprep.subr.mxu0 0.0
    %378 = vmatpush1.msra.mxu0 0.0
    %379 = vmatprep.subr.mxu0 0.0
    %380 = vmatpush1.msra.mxu0 0.0
    %381 = vmatprep.subr.mxu0 0.0
    %382 = vmatpush1.msra.mxu0 0.0
    %383 = vmatprep.subr.mxu0 0.0
    %384 = vmatpush1.msra.mxu0 0.0
    %385 = vmatprep.subr.mxu0 0.0
    %386 = vmatpush1.msra.mxu0 0.0
    %387 = vmatprep.subr.mxu0 0.0
    %388 = vmatpush1.msra.mxu0 0.0
    %389 = vmatprep.subr.mxu0 0.0
    %390 = vmatpush1.msra.mxu0 0.0
    %391 = vmatprep.subr.mxu0 0.0
    %392 = vmatpush1.msra.mxu0 0.0
    %393 = vmatprep.subr.mxu0 0.0
    %394 = vmatpush1.msra.mxu0 0.0
    %395 = vmatprep.subr.mxu0 0.0
    %396 = vmatpush1.msra.mxu0 0.0
    %397 = vmatprep.subr.mxu0 0.0
    %398 = vmatpush1.msra.mxu0 0.0
    %399 = vmatprep.subr.mxu0 0.0
    %400 = vmatpush1.msra.mxu0 0.0
    %401 = vmatprep.subr.mxu0 0.0
    %402 = vmatpush1.msra.mxu0 0.0
    %403 = vmatprep.subr.mxu0 0.0
    %404 = vmatpush1.msra.mxu0 %v371
    %405 = vmatprep.subr.mxu0 0.0
    %406 = vmatpush2.msra.mxu0 0.0
    %407 = vmatprep.subr.mxu0 0.0
    %408 = vmatpush2.msra.mxu0 0.0
    %409 = vmatprep.subr.mxu0 0.0
    %410 = vmatpush2.msra.mxu0 0.0
    %411 = vmatprep.subr.mxu0 0.0
    %412 = vmatpush2.msra.mxu0 0.0
    %413 = vmatprep.subr.mxu0 0.0
    %414 = vmatpush2.msra.mxu0 0.0
    %415 = vmatprep.subr.mxu0 0.0
    %416 = vmatpush2.msra.mxu0 0.0
    %417 = vmatprep.subr.mxu0 0.0
    %418 = vmatpush2.msra.mxu0 0.0
    %419 = vmatprep.subr.mxu0 0.0
    %420 = vmatpush2.msra.mxu0 0.0
    %421 = vmatprep.subr.mxu0 0.0
    %422 = vmatpush2.msra.mxu0 0.0
    %423 = vmatprep.subr.mxu0 0.0
    %424 = vmatpush2.msra.mxu0 0.0
    %425 = vmatprep.subr.mxu0 0.0
    %426 = vmatpush2.msra.mxu0 0.0
    %427 = vmatprep.subr.mxu0 0.0
    %428 = vmatpush2.msra.mxu0 0.0
    %429 = vmatprep.subr.mxu0 0.0
    %430 = vmatpush2.msra.mxu0 0.0
    %431 = vmatprep.subr.mxu0 0.0
    %432 = vmatpush2.msra.mxu0 0.0
    %433 = vmatprep.subr.mxu0 0.0
    %434 = vmatpush2.msra.mxu0 0.0
    %435 = vmatprep.subr.mxu0 0.0
    %436 = vmatpush2.msra.mxu0 0.0
    %437 = vmatprep.mubr.f32.mxu0 0.0
    %438 = vmatmul.mubr.f32.gmra.mxu0 %v368
    %v439 = vpop.f32.mrf.mxu0
    %v440 = vadd.f32 0.0, %v439
    %v441 = vpop.f32.mrf.mxu0
    %442 = vdwg.mxu0
    %v443 = vadd.f32 %v351, %v440
    %444 = vrot.lane.b32.xlu0 %v175, 1
    %v445 = vpop.permute.xlu0 %444
    %s446 = scalar_lea.vmem %s13, 3
    %v447 = vld [vmem:[%s446] sm:$0x1]
    %v449 = vlaneseq
    %v450 = vshrl.u32 %v449, 7
    %v451 = vsub.s32 0, %v450
    %v452 = vrot.slane %v447, %v451
    %v454 = vmul.f32 %v445, %v452
    %s455 = scalar_lea.vmem %s3, 12
    %v456 = vld [vmem:[%s455] sm:$0xf]
    %v458 = vsel %vm200, %v456, 0
    %v461 = vsel %vm204, %v454, 0
    %463 = vmatprep.subr.mxu0 0.0
    %464 = vmatpush1.msra.mxu0 0.0
    %465 = vmatprep.subr.mxu0 0.0
    %466 = vmatpush1.msra.mxu0 0.0
    %467 = vmatprep.subr.mxu0 0.0
    %468 = vmatpush1.msra.mxu0 0.0
    %469 = vmatprep.subr.mxu0 0.0
    %470 = vmatpush1.msra.mxu0 0.0
    %471 = vmatprep.subr.mxu0 0.0
    %472 = vmatpush1.msra.mxu0 0.0
    %473 = vmatprep.subr.mxu0 0.0
    %474 = vmatpush1.msra.mxu0 0.0
    %475 = vmatprep.subr.mxu0 0.0
    %476 = vmatpush1.msra.mxu0 0.0
    %477 = vmatprep.subr.mxu0 0.0
    %478 = vmatpush1.msra.mxu0 0.0
    %479 = vmatprep.subr.mxu0 0.0
    %480 = vmatpush1.msra.mxu0 0.0
    %481 = vmatprep.subr.mxu0 0.0
    %482 = vmatpush1.msra.mxu0 0.0
    %483 = vmatprep.subr.mxu0 0.0
    %484 = vmatpush1.msra.mxu0 0.0
    %485 = vmatprep.subr.mxu0 0.0
    %486 = vmatpush1.msra.mxu0 0.0
    %487 = vmatprep.subr.mxu0 0.0
    %488 = vmatpush1.msra.mxu0 0.0
    %489 = vmatprep.subr.mxu0 0.0
    %490 = vmatpush1.msra.mxu0 0.0
    %491 = vmatprep.subr.mxu0 0.0
    %492 = vmatpush1.msra.mxu0 0.0
    %493 = vmatprep.subr.mxu0 0.0
    %494 = vmatpush1.msra.mxu0 %v461
    %495 = vmatprep.subr.mxu0 0.0
    %496 = vmatpush2.msra.mxu0 0.0
    %497 = vmatprep.subr.mxu0 0.0
    %498 = vmatpush2.msra.mxu0 0.0
    %499 = vmatprep.subr.mxu0 0.0
    %500 = vmatpush2.msra.mxu0 0.0
    %501 = vmatprep.subr.mxu0 0.0
    %502 = vmatpush2.msra.mxu0 0.0
    %503 = vmatprep.subr.mxu0 0.0
    %504 = vmatpush2.msra.mxu0 0.0
    %505 = vmatprep.subr.mxu0 0.0
    %506 = vmatpush2.msra.mxu0 0.0
    %507 = vmatprep.subr.mxu0 0.0
    %508 = vmatpush2.msra.mxu0 0.0
    %509 = vmatprep.subr.mxu0 0.0
    %510 = vmatpush2.msra.mxu0 0.0
    %511 = vmatprep.subr.mxu0 0.0
    %512 = vmatpush2.msra.mxu0 0.0
    %513 = vmatprep.subr.mxu0 0.0
    %514 = vmatpush2.msra.mxu0 0.0
    %515 = vmatprep.subr.mxu0 0.0
    %516 = vmatpush2.msra.mxu0 0.0
    %517 = vmatprep.subr.mxu0 0.0
    %518 = vmatpush2.msra.mxu0 0.0
    %519 = vmatprep.subr.mxu0 0.0
    %520 = vmatpush2.msra.mxu0 0.0
    %521 = vmatprep.subr.mxu0 0.0
    %522 = vmatpush2.msra.mxu0 0.0
    %523 = vmatprep.subr.mxu0 0.0
    %524 = vmatpush2.msra.mxu0 0.0
    %525 = vmatprep.subr.mxu0 0.0
    %526 = vmatpush2.msra.mxu0 0.0
    %527 = vmatprep.mubr.f32.mxu0 0.0
    %528 = vmatmul.mubr.f32.gmra.mxu0 %v458
    %v529 = vpop.f32.mrf.mxu0
    %v530 = vadd.f32 0.0, %v529
    %v531 = vpop.f32.mrf.mxu0
    %532 = vdwg.mxu0
    %v533 = vadd.f32 %v443, %v530
    %s534 = scalar_lea.vmem %s3, 16
    %v535 = vld [vmem:[%s534] sm:$0xf]
    %v537 = vsel %vm200, %v535, 0
    %v540 = vsel %vm204, %v175, 0
    %542 = vmatprep.subr.mxu0 0.0
    %543 = vmatpush1.msra.mxu0 0.0
    %544 = vmatprep.subr.mxu0 0.0
    %545 = vmatpush1.msra.mxu0 0.0
    %546 = vmatprep.subr.mxu0 0.0
    %547 = vmatpush1.msra.mxu0 0.0
    %548 = vmatprep.subr.mxu0 0.0
    %549 = vmatpush1.msra.mxu0 0.0
    %550 = vmatprep.subr.mxu0 0.0
    %551 = vmatpush1.msra.mxu0 0.0
    %552 = vmatprep.subr.mxu0 0.0
    %553 = vmatpush1.msra.mxu0 0.0
    %554 = vmatprep.subr.mxu0 0.0
    %555 = vmatpush1.msra.mxu0 0.0
    %556 = vmatprep.subr.mxu0 0.0
    %557 = vmatpush1.msra.mxu0 0.0
    %558 = vmatprep.subr.mxu0 0.0
    %559 = vmatpush1.msra.mxu0 0.0
    %560 = vmatprep.subr.mxu0 0.0
    %561 = vmatpush1.msra.mxu0 0.0
    %562 = vmatprep.subr.mxu0 0.0
    %563 = vmatpush1.msra.mxu0 0.0
    %564 = vmatprep.subr.mxu0 0.0
    %565 = vmatpush1.msra.mxu0 0.0
    %566 = vmatprep.subr.mxu0 0.0
    %567 = vmatpush1.msra.mxu0 0.0
    %568 = vmatprep.subr.mxu0 0.0
    %569 = vmatpush1.msra.mxu0 0.0
    %570 = vmatprep.subr.mxu0 0.0
    %571 = vmatpush1.msra.mxu0 0.0
    %572 = vmatprep.subr.mxu0 0.0
    %573 = vmatpush1.msra.mxu0 %v540
    %574 = vmatprep.subr.mxu0 0.0
    %575 = vmatpush2.msra.mxu0 0.0
    %576 = vmatprep.subr.mxu0 0.0
    %577 = vmatpush2.msra.mxu0 0.0
    %578 = vmatprep.subr.mxu0 0.0
    %579 = vmatpush2.msra.mxu0 0.0
    %580 = vmatprep.subr.mxu0 0.0
    %581 = vmatpush2.msra.mxu0 0.0
    %582 = vmatprep.subr.mxu0 0.0
    %583 = vmatpush2.msra.mxu0 0.0
    %584 = vmatprep.subr.mxu0 0.0
    %585 = vmatpush2.msra.mxu0 0.0
    %586 = vmatprep.subr.mxu0 0.0
    %587 = vmatpush2.msra.mxu0 0.0
    %588 = vmatprep.subr.mxu0 0.0
    %589 = vmatpush2.msra.mxu0 0.0
    %590 = vmatprep.subr.mxu0 0.0
    %591 = vmatpush2.msra.mxu0 0.0
    %592 = vmatprep.subr.mxu0 0.0
    %593 = vmatpush2.msra.mxu0 0.0
    %594 = vmatprep.subr.mxu0 0.0
    %595 = vmatpush2.msra.mxu0 0.0
    %596 = vmatprep.subr.mxu0 0.0
    %597 = vmatpush2.msra.mxu0 0.0
    %598 = vmatprep.subr.mxu0 0.0
    %599 = vmatpush2.msra.mxu0 0.0
    %600 = vmatprep.subr.mxu0 0.0
    %601 = vmatpush2.msra.mxu0 0.0
    %602 = vmatprep.subr.mxu0 0.0
    %603 = vmatpush2.msra.mxu0 0.0
    %604 = vmatprep.subr.mxu0 0.0
    %605 = vmatpush2.msra.mxu0 0.0
    %606 = vmatprep.mubr.f32.mxu0 0.0
    %607 = vmatmul.mubr.f32.gmra.mxu0 %v537
    %v608 = vpop.f32.mrf.mxu0
    %v609 = vadd.f32 0.0, %v608
    %v610 = vpop.f32.mrf.mxu0
    %611 = vdwg.mxu0
    %v612 = vadd.f32 %v533, %v609
    %613 = vrot.lane.b32.xlu0 %v175, 127
    %v614 = vpop.permute.xlu0 %613
    %s615 = scalar_lea.vmem %s13, 5
    %v616 = vld [vmem:[%s615] sm:$0x1]
    %v618 = vlaneseq
    %v619 = vshrl.u32 %v618, 7
    %v620 = vsub.s32 0, %v619
    %v621 = vrot.slane %v616, %v620
    %v623 = vmul.f32 %v614, %v621
    %s624 = scalar_lea.vmem %s3, 20
    %v625 = vld [vmem:[%s624] sm:$0xf]
    %v627 = vsel %vm200, %v625, 0
    %v630 = vsel %vm204, %v623, 0
    %632 = vmatprep.subr.mxu0 0.0
    %633 = vmatpush1.msra.mxu0 0.0
    %634 = vmatprep.subr.mxu0 0.0
    %635 = vmatpush1.msra.mxu0 0.0
    %636 = vmatprep.subr.mxu0 0.0
    %637 = vmatpush1.msra.mxu0 0.0
    %638 = vmatprep.subr.mxu0 0.0
    %639 = vmatpush1.msra.mxu0 0.0
    %640 = vmatprep.subr.mxu0 0.0
    %641 = vmatpush1.msra.mxu0 0.0
    %642 = vmatprep.subr.mxu0 0.0
    %643 = vmatpush1.msra.mxu0 0.0
    %644 = vmatprep.subr.mxu0 0.0
    %645 = vmatpush1.msra.mxu0 0.0
    %646 = vmatprep.subr.mxu0 0.0
    %647 = vmatpush1.msra.mxu0 0.0
    %648 = vmatprep.subr.mxu0 0.0
    %649 = vmatpush1.msra.mxu0 0.0
    %650 = vmatprep.subr.mxu0 0.0
    %651 = vmatpush1.msra.mxu0 0.0
    %652 = vmatprep.subr.mxu0 0.0
    %653 = vmatpush1.msra.mxu0 0.0
    %654 = vmatprep.subr.mxu0 0.0
    %655 = vmatpush1.msra.mxu0 0.0
    %656 = vmatprep.subr.mxu0 0.0
    %657 = vmatpush1.msra.mxu0 0.0
    %658 = vmatprep.subr.mxu0 0.0
    %659 = vmatpush1.msra.mxu0 0.0
    %660 = vmatprep.subr.mxu0 0.0
    %661 = vmatpush1.msra.mxu0 0.0
    %662 = vmatprep.subr.mxu0 0.0
    %663 = vmatpush1.msra.mxu0 %v630
    %664 = vmatprep.subr.mxu0 0.0
    %665 = vmatpush2.msra.mxu0 0.0
    %666 = vmatprep.subr.mxu0 0.0
    %667 = vmatpush2.msra.mxu0 0.0
    %668 = vmatprep.subr.mxu0 0.0
    %669 = vmatpush2.msra.mxu0 0.0
    %670 = vmatprep.subr.mxu0 0.0
    %671 = vmatpush2.msra.mxu0 0.0
    %672 = vmatprep.subr.mxu0 0.0
    %673 = vmatpush2.msra.mxu0 0.0
    %674 = vmatprep.subr.mxu0 0.0
    %675 = vmatpush2.msra.mxu0 0.0
    %676 = vmatprep.subr.mxu0 0.0
    %677 = vmatpush2.msra.mxu0 0.0
    %678 = vmatprep.subr.mxu0 0.0
    %679 = vmatpush2.msra.mxu0 0.0
    %680 = vmatprep.subr.mxu0 0.0
    %681 = vmatpush2.msra.mxu0 0.0
    %682 = vmatprep.subr.mxu0 0.0
    %683 = vmatpush2.msra.mxu0 0.0
    %684 = vmatprep.subr.mxu0 0.0
    %685 = vmatpush2.msra.mxu0 0.0
    %686 = vmatprep.subr.mxu0 0.0
    %687 = vmatpush2.msra.mxu0 0.0
    %688 = vmatprep.subr.mxu0 0.0
    %689 = vmatpush2.msra.mxu0 0.0
    %690 = vmatprep.subr.mxu0 0.0
    %691 = vmatpush2.msra.mxu0 0.0
    %692 = vmatprep.subr.mxu0 0.0
    %693 = vmatpush2.msra.mxu0 0.0
    %694 = vmatprep.subr.mxu0 0.0
    %695 = vmatpush2.msra.mxu0 0.0
    %696 = vmatprep.mubr.f32.mxu0 0.0
    %697 = vmatmul.mubr.f32.gmra.mxu0 %v627
    %v698 = vpop.f32.mrf.mxu0
    %v699 = vadd.f32 0.0, %v698
    %v700 = vpop.f32.mrf.mxu0
    %701 = vdwg.mxu0
    %v702 = vadd.f32 %v612, %v699
    %703 = vrot.lane.b32.xlu0 %v175, 121
    %v704 = vpop.permute.xlu0 %703
    %s705 = scalar_lea.vmem %s13, 6
    %v706 = vld [vmem:[%s705] sm:$0x1]
    %v708 = vlaneseq
    %v709 = vshrl.u32 %v708, 7
    %v710 = vsub.s32 0, %v709
    %v711 = vrot.slane %v706, %v710
    %v713 = vmul.f32 %v704, %v711
    %s714 = scalar_lea.vmem %s3, 24
    %v715 = vld [vmem:[%s714] sm:$0xf]
    %v717 = vsel %vm200, %v715, 0
    %v720 = vsel %vm204, %v713, 0
    %722 = vmatprep.subr.mxu0 0.0
    %723 = vmatpush1.msra.mxu0 0.0
    %724 = vmatprep.subr.mxu0 0.0
    %725 = vmatpush1.msra.mxu0 0.0
    %726 = vmatprep.subr.mxu0 0.0
    %727 = vmatpush1.msra.mxu0 0.0
    %728 = vmatprep.subr.mxu0 0.0
    %729 = vmatpush1.msra.mxu0 0.0
    %730 = vmatprep.subr.mxu0 0.0
    %731 = vmatpush1.msra.mxu0 0.0
    %732 = vmatprep.subr.mxu0 0.0
    %733 = vmatpush1.msra.mxu0 0.0
    %734 = vmatprep.subr.mxu0 0.0
    %735 = vmatpush1.msra.mxu0 0.0
    %736 = vmatprep.subr.mxu0 0.0
    %737 = vmatpush1.msra.mxu0 0.0
    %738 = vmatprep.subr.mxu0 0.0
    %739 = vmatpush1.msra.mxu0 0.0
    %740 = vmatprep.subr.mxu0 0.0
    %741 = vmatpush1.msra.mxu0 0.0
    %742 = vmatprep.subr.mxu0 0.0
    %743 = vmatpush1.msra.mxu0 0.0
    %744 = vmatprep.subr.mxu0 0.0
    %745 = vmatpush1.msra.mxu0 0.0
    %746 = vmatprep.subr.mxu0 0.0
    %747 = vmatpush1.msra.mxu0 0.0
    %748 = vmatprep.subr.mxu0 0.0
    %749 = vmatpush1.msra.mxu0 0.0
    %750 = vmatprep.subr.mxu0 0.0
    %751 = vmatpush1.msra.mxu0 0.0
    %752 = vmatprep.subr.mxu0 0.0
    %753 = vmatpush1.msra.mxu0 %v720
    %754 = vmatprep.subr.mxu0 0.0
    %755 = vmatpush2.msra.mxu0 0.0
    %756 = vmatprep.subr.mxu0 0.0
    %757 = vmatpush2.msra.mxu0 0.0
    %758 = vmatprep.subr.mxu0 0.0
    %759 = vmatpush2.msra.mxu0 0.0
    %760 = vmatprep.subr.mxu0 0.0
    %761 = vmatpush2.msra.mxu0 0.0
    %762 = vmatprep.subr.mxu0 0.0
    %763 = vmatpush2.msra.mxu0 0.0
    %764 = vmatprep.subr.mxu0 0.0
    %765 = vmatpush2.msra.mxu0 0.0
    %766 = vmatprep.subr.mxu0 0.0
    %767 = vmatpush2.msra.mxu0 0.0
    %768 = vmatprep.subr.mxu0 0.0
    %769 = vmatpush2.msra.mxu0 0.0
    %770 = vmatprep.subr.mxu0 0.0
    %771 = vmatpush2.msra.mxu0 0.0
    %772 = vmatprep.subr.mxu0 0.0
    %773 = vmatpush2.msra.mxu0 0.0
    %774 = vmatprep.subr.mxu0 0.0
    %775 = vmatpush2.msra.mxu0 0.0
    %776 = vmatprep.subr.mxu0 0.0
    %777 = vmatpush2.msra.mxu0 0.0
    %778 = vmatprep.subr.mxu0 0.0
    %779 = vmatpush2.msra.mxu0 0.0
    %780 = vmatprep.subr.mxu0 0.0
    %781 = vmatpush2.msra.mxu0 0.0
    %782 = vmatprep.subr.mxu0 0.0
    %783 = vmatpush2.msra.mxu0 0.0
    %784 = vmatprep.subr.mxu0 0.0
    %785 = vmatpush2.msra.mxu0 0.0
    %786 = vmatprep.mubr.f32.mxu0 0.0
    %787 = vmatmul.mubr.f32.gmra.mxu0 %v717
    %v788 = vpop.f32.mrf.mxu0
    %v789 = vadd.f32 0.0, %v788
    %v790 = vpop.f32.mrf.mxu0
    %791 = vdwg.mxu0
    %v792 = vadd.f32 %v702, %v789
    %793 = vrot.lane.b32.xlu0 %v175, 120
    %v794 = vpop.permute.xlu0 %793
    %s795 = scalar_lea.vmem %s13, 7
    %v796 = vld [vmem:[%s795] sm:$0x1]
    %v798 = vlaneseq
    %v799 = vshrl.u32 %v798, 7
    %v800 = vsub.s32 0, %v799
    %v801 = vrot.slane %v796, %v800
    %v803 = vmul.f32 %v794, %v801
    %s804 = scalar_lea.vmem %s3, 28
    %v805 = vld [vmem:[%s804] sm:$0xf]
    %v807 = vsel %vm200, %v805, 0
    %v810 = vsel %vm204, %v803, 0
    %812 = vmatprep.subr.mxu0 0.0
    %813 = vmatpush1.msra.mxu0 0.0
    %814 = vmatprep.subr.mxu0 0.0
    %815 = vmatpush1.msra.mxu0 0.0
    %816 = vmatprep.subr.mxu0 0.0
    %817 = vmatpush1.msra.mxu0 0.0
    %818 = vmatprep.subr.mxu0 0.0
    %819 = vmatpush1.msra.mxu0 0.0
    %820 = vmatprep.subr.mxu0 0.0
    %821 = vmatpush1.msra.mxu0 0.0
    %822 = vmatprep.subr.mxu0 0.0
    %823 = vmatpush1.msra.mxu0 0.0
    %824 = vmatprep.subr.mxu0 0.0
    %825 = vmatpush1.msra.mxu0 0.0
    %826 = vmatprep.subr.mxu0 0.0
    %827 = vmatpush1.msra.mxu0 0.0
    %828 = vmatprep.subr.mxu0 0.0
    %829 = vmatpush1.msra.mxu0 0.0
    %830 = vmatprep.subr.mxu0 0.0
    %831 = vmatpush1.msra.mxu0 0.0
    %832 = vmatprep.subr.mxu0 0.0
    %833 = vmatpush1.msra.mxu0 0.0
    %834 = vmatprep.subr.mxu0 0.0
    %835 = vmatpush1.msra.mxu0 0.0
    %836 = vmatprep.subr.mxu0 0.0
    %837 = vmatpush1.msra.mxu0 0.0
    %838 = vmatprep.subr.mxu0 0.0
    %839 = vmatpush1.msra.mxu0 0.0
    %840 = vmatprep.subr.mxu0 0.0
    %841 = vmatpush1.msra.mxu0 0.0
    %842 = vmatprep.subr.mxu0 0.0
    %843 = vmatpush1.msra.mxu0 %v810
    %844 = vmatprep.subr.mxu0 0.0
    %845 = vmatpush2.msra.mxu0 0.0
    %846 = vmatprep.subr.mxu0 0.0
    %847 = vmatpush2.msra.mxu0 0.0
    %848 = vmatprep.subr.mxu0 0.0
    %849 = vmatpush2.msra.mxu0 0.0
    %850 = vmatprep.subr.mxu0 0.0
    %851 = vmatpush2.msra.mxu0 0.0
    %852 = vmatprep.subr.mxu0 0.0
    %853 = vmatpush2.msra.mxu0 0.0
    %854 = vmatprep.subr.mxu0 0.0
    %855 = vmatpush2.msra.mxu0 0.0
    %856 = vmatprep.subr.mxu0 0.0
    %857 = vmatpush2.msra.mxu0 0.0
    %858 = vmatprep.subr.mxu0 0.0
    %859 = vmatpush2.msra.mxu0 0.0
    %860 = vmatprep.subr.mxu0 0.0
    %861 = vmatpush2.msra.mxu0 0.0
    %862 = vmatprep.subr.mxu0 0.0
    %863 = vmatpush2.msra.mxu0 0.0
    %864 = vmatprep.subr.mxu0 0.0
    %865 = vmatpush2.msra.mxu0 0.0
    %866 = vmatprep.subr.mxu0 0.0
    %867 = vmatpush2.msra.mxu0 0.0
    %868 = vmatprep.subr.mxu0 0.0
    %869 = vmatpush2.msra.mxu0 0.0
    %870 = vmatprep.subr.mxu0 0.0
    %871 = vmatpush2.msra.mxu0 0.0
    %872 = vmatprep.subr.mxu0 0.0
    %873 = vmatpush2.msra.mxu0 0.0
    %874 = vmatprep.subr.mxu0 0.0
    %875 = vmatpush2.msra.mxu0 0.0
    %876 = vmatprep.mubr.f32.mxu0 0.0
    %877 = vmatmul.mubr.f32.gmra.mxu0 %v807
    %v878 = vpop.f32.mrf.mxu0
    %v879 = vadd.f32 0.0, %v878
    %v880 = vpop.f32.mrf.mxu0
    %881 = vdwg.mxu0
    %v882 = vadd.f32 %v792, %v879
    %883 = vrot.lane.b32.xlu0 %v175, 119
    %v884 = vpop.permute.xlu0 %883
    %s885 = scalar_lea.vmem %s13, 8
    %v886 = vld [vmem:[%s885] sm:$0x1]
    %v888 = vlaneseq
    %v889 = vshrl.u32 %v888, 7
    %v890 = vsub.s32 0, %v889
    %v891 = vrot.slane %v886, %v890
    %v893 = vmul.f32 %v884, %v891
    %s894 = scalar_lea.vmem %s3, 32
    %v895 = vld [vmem:[%s894] sm:$0xf]
    %v897 = vsel %vm200, %v895, 0
    %v900 = vsel %vm204, %v893, 0
    %902 = vmatprep.subr.mxu0 0.0
    %903 = vmatpush1.msra.mxu0 0.0
    %904 = vmatprep.subr.mxu0 0.0
    %905 = vmatpush1.msra.mxu0 0.0
    %906 = vmatprep.subr.mxu0 0.0
    %907 = vmatpush1.msra.mxu0 0.0
    %908 = vmatprep.subr.mxu0 0.0
    %909 = vmatpush1.msra.mxu0 0.0
    %910 = vmatprep.subr.mxu0 0.0
    %911 = vmatpush1.msra.mxu0 0.0
    %912 = vmatprep.subr.mxu0 0.0
    %913 = vmatpush1.msra.mxu0 0.0
    %914 = vmatprep.subr.mxu0 0.0
    %915 = vmatpush1.msra.mxu0 0.0
    %916 = vmatprep.subr.mxu0 0.0
    %917 = vmatpush1.msra.mxu0 0.0
    %918 = vmatprep.subr.mxu0 0.0
    %919 = vmatpush1.msra.mxu0 0.0
    %920 = vmatprep.subr.mxu0 0.0
    %921 = vmatpush1.msra.mxu0 0.0
    %922 = vmatprep.subr.mxu0 0.0
    %923 = vmatpush1.msra.mxu0 0.0
    %924 = vmatprep.subr.mxu0 0.0
    %925 = vmatpush1.msra.mxu0 0.0
    %926 = vmatprep.subr.mxu0 0.0
    %927 = vmatpush1.msra.mxu0 0.0
    %928 = vmatprep.subr.mxu0 0.0
    %929 = vmatpush1.msra.mxu0 0.0
    %930 = vmatprep.subr.mxu0 0.0
    %931 = vmatpush1.msra.mxu0 0.0
    %932 = vmatprep.subr.mxu0 0.0
    %933 = vmatpush1.msra.mxu0 %v900
    %934 = vmatprep.subr.mxu0 0.0
    %935 = vmatpush2.msra.mxu0 0.0
    %936 = vmatprep.subr.mxu0 0.0
    %937 = vmatpush2.msra.mxu0 0.0
    %938 = vmatprep.subr.mxu0 0.0
    %939 = vmatpush2.msra.mxu0 0.0
    %940 = vmatprep.subr.mxu0 0.0
    %941 = vmatpush2.msra.mxu0 0.0
    %942 = vmatprep.subr.mxu0 0.0
    %943 = vmatpush2.msra.mxu0 0.0
    %944 = vmatprep.subr.mxu0 0.0
    %945 = vmatpush2.msra.mxu0 0.0
    %946 = vmatprep.subr.mxu0 0.0
    %947 = vmatpush2.msra.mxu0 0.0
    %948 = vmatprep.subr.mxu0 0.0
    %949 = vmatpush2.msra.mxu0 0.0
    %950 = vmatprep.subr.mxu0 0.0
    %951 = vmatpush2.msra.mxu0 0.0
    %952 = vmatprep.subr.mxu0 0.0
    %953 = vmatpush2.msra.mxu0 0.0
    %954 = vmatprep.subr.mxu0 0.0
    %955 = vmatpush2.msra.mxu0 0.0
    %956 = vmatprep.subr.mxu0 0.0
    %957 = vmatpush2.msra.mxu0 0.0
    %958 = vmatprep.subr.mxu0 0.0
    %959 = vmatpush2.msra.mxu0 0.0
    %960 = vmatprep.subr.mxu0 0.0
    %961 = vmatpush2.msra.mxu0 0.0
    %962 = vmatprep.subr.mxu0 0.0
    %963 = vmatpush2.msra.mxu0 0.0
    %964 = vmatprep.subr.mxu0 0.0
    %965 = vmatpush2.msra.mxu0 0.0
    %966 = vmatprep.mubr.f32.mxu0 0.0
    %967 = vmatmul.mubr.f32.gmra.mxu0 %v897
    %v968 = vpop.f32.mrf.mxu0
    %v969 = vadd.f32 0.0, %v968
    %v970 = vpop.f32.mrf.mxu0
    %971 = vdwg.mxu0
    %v972 = vadd.f32 %v882, %v969
    %v973 = vld [vmem:[%s8] sm:$0xf]
    %975 = vset.pattern.permute.xlu0 0
    %976 = vperm.xlu0 %975, %v973
    %v977 = vpop.permute.xlu0 %976
    %v979 = vadd.f32 %v972, %v977
    %vm980 = vcmp.ge.f32.partialorder %v979, 0.0
    %v981 = vmul.f32 %v979, 0.2
    %v982 = vsel %vm980, %v979, %v981
    %983 = vrot.lane.b32.xlu0 %v982, 9
    %v984 = vpop.permute.xlu0 %983
    %v985 = vmul.f32 %v984, %v183
    %v986 = vld [vmem:[%s4] sm:$0xf]
    %987 = vrot.lane.b32.xlu0 %v982, 8
    %v988 = vpop.permute.xlu0 %987
    %v989 = vmul.f32 %v988, %v195
    %s990 = scalar_lea.vmem %s4, 4
    %v991 = vld [vmem:[%s990] sm:$0xf]
    %v993 = vsel %vm200, %v991, 0
    %v996 = vsel %vm204, %v989, 0
    %998 = vmatprep.subr.mxu0 0.0
    %999 = vmatpush1.msra.mxu0 0.0
    %1000 = vmatprep.subr.mxu0 0.0
    %1001 = vmatpush1.msra.mxu0 0.0
    %1002 = vmatprep.subr.mxu0 0.0
    %1003 = vmatpush1.msra.mxu0 0.0
    %1004 = vmatprep.subr.mxu0 0.0
    %1005 = vmatpush1.msra.mxu0 0.0
    %1006 = vmatprep.subr.mxu0 0.0
    %1007 = vmatpush1.msra.mxu0 0.0
    %1008 = vmatprep.subr.mxu0 0.0
    %1009 = vmatpush1.msra.mxu0 0.0
    %1010 = vmatprep.subr.mxu0 0.0
    %1011 = vmatpush1.msra.mxu0 0.0
    %1012 = vmatprep.subr.mxu0 0.0
    %1013 = vmatpush1.msra.mxu0 0.0
    %1014 = vmatprep.subr.mxu0 0.0
    %1015 = vmatpush1.msra.mxu0 0.0
    %1016 = vmatprep.subr.mxu0 0.0
    %1017 = vmatpush1.msra.mxu0 0.0
    %1018 = vmatprep.subr.mxu0 0.0
    %1019 = vmatpush1.msra.mxu0 0.0
    %1020 = vmatprep.subr.mxu0 0.0
    %1021 = vmatpush1.msra.mxu0 0.0
    %1022 = vmatprep.subr.mxu0 0.0
    %1023 = vmatpush1.msra.mxu0 0.0
    %1024 = vmatprep.subr.mxu0 0.0
    %1025 = vmatpush1.msra.mxu0 0.0
    %1026 = vmatprep.subr.mxu0 0.0
    %1027 = vmatpush1.msra.mxu0 0.0
    %1028 = vmatprep.subr.mxu0 0.0
    %1029 = vmatpush1.msra.mxu0 %v996
    %1030 = vmatprep.subr.mxu0 0.0
    %1031 = vmatpush2.msra.mxu0 0.0
    %1032 = vmatprep.subr.mxu0 0.0
    %1033 = vmatpush2.msra.mxu0 0.0
    %1034 = vmatprep.subr.mxu0 0.0
    %1035 = vmatpush2.msra.mxu0 0.0
    %1036 = vmatprep.subr.mxu0 0.0
    %1037 = vmatpush2.msra.mxu0 0.0
    %1038 = vmatprep.subr.mxu0 0.0
    %1039 = vmatpush2.msra.mxu0 0.0
    %1040 = vmatprep.subr.mxu0 0.0
    %1041 = vmatpush2.msra.mxu0 0.0
    %1042 = vmatprep.subr.mxu0 0.0
    %1043 = vmatpush2.msra.mxu0 0.0
    %1044 = vmatprep.subr.mxu0 0.0
    %1045 = vmatpush2.msra.mxu0 0.0
    %1046 = vmatprep.subr.mxu0 0.0
    %1047 = vmatpush2.msra.mxu0 0.0
    %1048 = vmatprep.subr.mxu0 0.0
    %1049 = vmatpush2.msra.mxu0 0.0
    %1050 = vmatprep.subr.mxu0 0.0
    %1051 = vmatpush2.msra.mxu0 0.0
    %1052 = vmatprep.subr.mxu0 0.0
    %1053 = vmatpush2.msra.mxu0 0.0
    %1054 = vmatprep.subr.mxu0 0.0
    %1055 = vmatpush2.msra.mxu0 0.0
    %1056 = vmatprep.subr.mxu0 0.0
    %1057 = vmatpush2.msra.mxu0 0.0
    %1058 = vmatprep.subr.mxu0 0.0
    %1059 = vmatpush2.msra.mxu0 0.0
    %1060 = vmatprep.subr.mxu0 0.0
    %1061 = vmatpush2.msra.mxu0 0.0
    %1062 = vmatprep.mubr.f32.mxu0 0.0
    %1063 = vmatmul.mubr.f32.gmra.mxu0 %v993
    %v1064 = vpop.f32.mrf.mxu0
    %v1065 = vadd.f32 0.0, %v1064
    %v1066 = vpop.f32.mrf.mxu0
    %1067 = vdwg.mxu0
    %v1069 = vsel %vm200, %v986, 0
    %v1072 = vsel %vm204, %v985, 0
    %1074 = vmatprep.subr.mxu0 0.0
    %1075 = vmatpush1.msra.mxu0 0.0
    %1076 = vmatprep.subr.mxu0 0.0
    %1077 = vmatpush1.msra.mxu0 0.0
    %1078 = vmatprep.subr.mxu0 0.0
    %1079 = vmatpush1.msra.mxu0 0.0
    %1080 = vmatprep.subr.mxu0 0.0
    %1081 = vmatpush1.msra.mxu0 0.0
    %1082 = vmatprep.subr.mxu0 0.0
    %1083 = vmatpush1.msra.mxu0 0.0
    %1084 = vmatprep.subr.mxu0 0.0
    %1085 = vmatpush1.msra.mxu0 0.0
    %1086 = vmatprep.subr.mxu0 0.0
    %1087 = vmatpush1.msra.mxu0 0.0
    %1088 = vmatprep.subr.mxu0 0.0
    %1089 = vmatpush1.msra.mxu0 0.0
    %1090 = vmatprep.subr.mxu0 0.0
    %1091 = vmatpush1.msra.mxu0 0.0
    %1092 = vmatprep.subr.mxu0 0.0
    %1093 = vmatpush1.msra.mxu0 0.0
    %1094 = vmatprep.subr.mxu0 0.0
    %1095 = vmatpush1.msra.mxu0 0.0
    %1096 = vmatprep.subr.mxu0 0.0
    %1097 = vmatpush1.msra.mxu0 0.0
    %1098 = vmatprep.subr.mxu0 0.0
    %1099 = vmatpush1.msra.mxu0 0.0
    %1100 = vmatprep.subr.mxu0 0.0
    %1101 = vmatpush1.msra.mxu0 0.0
    %1102 = vmatprep.subr.mxu0 0.0
    %1103 = vmatpush1.msra.mxu0 0.0
    %1104 = vmatprep.subr.mxu0 0.0
    %1105 = vmatpush1.msra.mxu0 %v1072
    %1106 = vmatprep.subr.mxu0 0.0
    %1107 = vmatpush2.msra.mxu0 0.0
    %1108 = vmatprep.subr.mxu0 0.0
    %1109 = vmatpush2.msra.mxu0 0.0
    %1110 = vmatprep.subr.mxu0 0.0
    %1111 = vmatpush2.msra.mxu0 0.0
    %1112 = vmatprep.subr.mxu0 0.0
    %1113 = vmatpush2.msra.mxu0 0.0
    %1114 = vmatprep.subr.mxu0 0.0
    %1115 = vmatpush2.msra.mxu0 0.0
    %1116 = vmatprep.subr.mxu0 0.0
    %1117 = vmatpush2.msra.mxu0 0.0
    %1118 = vmatprep.subr.mxu0 0.0
    %1119 = vmatpush2.msra.mxu0 0.0
    %1120 = vmatprep.subr.mxu0 0.0
    %1121 = vmatpush2.msra.mxu0 0.0
    %1122 = vmatprep.subr.mxu0 0.0
    %1123 = vmatpush2.msra.mxu0 0.0
    %1124 = vmatprep.subr.mxu0 0.0
    %1125 = vmatpush2.msra.mxu0 0.0
    %1126 = vmatprep.subr.mxu0 0.0
    %1127 = vmatpush2.msra.mxu0 0.0
    %1128 = vmatprep.subr.mxu0 0.0
    %1129 = vmatpush2.msra.mxu0 0.0
    %1130 = vmatprep.subr.mxu0 0.0
    %1131 = vmatpush2.msra.mxu0 0.0
    %1132 = vmatprep.subr.mxu0 0.0
    %1133 = vmatpush2.msra.mxu0 0.0
    %1134 = vmatprep.subr.mxu0 0.0
    %1135 = vmatpush2.msra.mxu0 0.0
    %1136 = vmatprep.subr.mxu0 0.0
    %1137 = vmatpush2.msra.mxu0 0.0
    %1138 = vmatprep.mubr.f32.mxu0 0.0
    %1139 = vmatmul.mubr.f32.gmra.mxu0 %v1069
    %v1140 = vpop.f32.mrf.mxu0
    %v1141 = vadd.f32 %v1065, %v1140
    %v1142 = vpop.f32.mrf.mxu0
    %1143 = vdwg.mxu0
    %1144 = vrot.lane.b32.xlu0 %v982, 7
    %v1145 = vpop.permute.xlu0 %1144
    %v1146 = vmul.f32 %v1145, %v362
    %s1147 = scalar_lea.vmem %s4, 8
    %v1148 = vld [vmem:[%s1147] sm:$0xf]
    %v1150 = vsel %vm200, %v1148, 0
    %v1153 = vsel %vm204, %v1146, 0
    %1155 = vmatprep.subr.mxu0 0.0
    %1156 = vmatpush1.msra.mxu0 0.0
    %1157 = vmatprep.subr.mxu0 0.0
    %1158 = vmatpush1.msra.mxu0 0.0
    %1159 = vmatprep.subr.mxu0 0.0
    %1160 = vmatpush1.msra.mxu0 0.0
    %1161 = vmatprep.subr.mxu0 0.0
    %1162 = vmatpush1.msra.mxu0 0.0
    %1163 = vmatprep.subr.mxu0 0.0
    %1164 = vmatpush1.msra.mxu0 0.0
    %1165 = vmatprep.subr.mxu0 0.0
    %1166 = vmatpush1.msra.mxu0 0.0
    %1167 = vmatprep.subr.mxu0 0.0
    %1168 = vmatpush1.msra.mxu0 0.0
    %1169 = vmatprep.subr.mxu0 0.0
    %1170 = vmatpush1.msra.mxu0 0.0
    %1171 = vmatprep.subr.mxu0 0.0
    %1172 = vmatpush1.msra.mxu0 0.0
    %1173 = vmatprep.subr.mxu0 0.0
    %1174 = vmatpush1.msra.mxu0 0.0
    %1175 = vmatprep.subr.mxu0 0.0
    %1176 = vmatpush1.msra.mxu0 0.0
    %1177 = vmatprep.subr.mxu0 0.0
    %1178 = vmatpush1.msra.mxu0 0.0
    %1179 = vmatprep.subr.mxu0 0.0
    %1180 = vmatpush1.msra.mxu0 0.0
    %1181 = vmatprep.subr.mxu0 0.0
    %1182 = vmatpush1.msra.mxu0 0.0
    %1183 = vmatprep.subr.mxu0 0.0
    %1184 = vmatpush1.msra.mxu0 0.0
    %1185 = vmatprep.subr.mxu0 0.0
    %1186 = vmatpush1.msra.mxu0 %v1153
    %1187 = vmatprep.subr.mxu0 0.0
    %1188 = vmatpush2.msra.mxu0 0.0
    %1189 = vmatprep.subr.mxu0 0.0
    %1190 = vmatpush2.msra.mxu0 0.0
    %1191 = vmatprep.subr.mxu0 0.0
    %1192 = vmatpush2.msra.mxu0 0.0
    %1193 = vmatprep.subr.mxu0 0.0
    %1194 = vmatpush2.msra.mxu0 0.0
    %1195 = vmatprep.subr.mxu0 0.0
    %1196 = vmatpush2.msra.mxu0 0.0
    %1197 = vmatprep.subr.mxu0 0.0
    %1198 = vmatpush2.msra.mxu0 0.0
    %1199 = vmatprep.subr.mxu0 0.0
    %1200 = vmatpush2.msra.mxu0 0.0
    %1201 = vmatprep.subr.mxu0 0.0
    %1202 = vmatpush2.msra.mxu0 0.0
    %1203 = vmatprep.subr.mxu0 0.0
    %1204 = vmatpush2.msra.mxu0 0.0
    %1205 = vmatprep.subr.mxu0 0.0
    %1206 = vmatpush2.msra.mxu0 0.0
    %1207 = vmatprep.subr.mxu0 0.0
    %1208 = vmatpush2.msra.mxu0 0.0
    %1209 = vmatprep.subr.mxu0 0.0
    %1210 = vmatpush2.msra.mxu0 0.0
    %1211 = vmatprep.subr.mxu0 0.0
    %1212 = vmatpush2.msra.mxu0 0.0
    %1213 = vmatprep.subr.mxu0 0.0
    %1214 = vmatpush2.msra.mxu0 0.0
    %1215 = vmatprep.subr.mxu0 0.0
    %1216 = vmatpush2.msra.mxu0 0.0
    %1217 = vmatprep.subr.mxu0 0.0
    %1218 = vmatpush2.msra.mxu0 0.0
    %1219 = vmatprep.mubr.f32.mxu0 0.0
    %1220 = vmatmul.mubr.f32.gmra.mxu0 %v1150
    %v1221 = vpop.f32.mrf.mxu0
    %v1222 = vadd.f32 0.0, %v1221
    %v1223 = vpop.f32.mrf.mxu0
    %1224 = vdwg.mxu0
    %v1225 = vadd.f32 %v1141, %v1222
    %1226 = vrot.lane.b32.xlu0 %v982, 1
    %v1227 = vpop.permute.xlu0 %1226
    %v1228 = vmul.f32 %v1227, %v452
    %s1229 = scalar_lea.vmem %s4, 12
    %v1230 = vld [vmem:[%s1229] sm:$0xf]
    %v1232 = vsel %vm200, %v1230, 0
    %v1235 = vsel %vm204, %v1228, 0
    %1237 = vmatprep.subr.mxu0 0.0
    %1238 = vmatpush1.msra.mxu0 0.0
    %1239 = vmatprep.subr.mxu0 0.0
    %1240 = vmatpush1.msra.mxu0 0.0
    %1241 = vmatprep.subr.mxu0 0.0
    %1242 = vmatpush1.msra.mxu0 0.0
    %1243 = vmatprep.subr.mxu0 0.0
    %1244 = vmatpush1.msra.mxu0 0.0
    %1245 = vmatprep.subr.mxu0 0.0
    %1246 = vmatpush1.msra.mxu0 0.0
    %1247 = vmatprep.subr.mxu0 0.0
    %1248 = vmatpush1.msra.mxu0 0.0
    %1249 = vmatprep.subr.mxu0 0.0
    %1250 = vmatpush1.msra.mxu0 0.0
    %1251 = vmatprep.subr.mxu0 0.0
    %1252 = vmatpush1.msra.mxu0 0.0
    %1253 = vmatprep.subr.mxu0 0.0
    %1254 = vmatpush1.msra.mxu0 0.0
    %1255 = vmatprep.subr.mxu0 0.0
    %1256 = vmatpush1.msra.mxu0 0.0
    %1257 = vmatprep.subr.mxu0 0.0
    %1258 = vmatpush1.msra.mxu0 0.0
    %1259 = vmatprep.subr.mxu0 0.0
    %1260 = vmatpush1.msra.mxu0 0.0
    %1261 = vmatprep.subr.mxu0 0.0
    %1262 = vmatpush1.msra.mxu0 0.0
    %1263 = vmatprep.subr.mxu0 0.0
    %1264 = vmatpush1.msra.mxu0 0.0
    %1265 = vmatprep.subr.mxu0 0.0
    %1266 = vmatpush1.msra.mxu0 0.0
    %1267 = vmatprep.subr.mxu0 0.0
    %1268 = vmatpush1.msra.mxu0 %v1235
    %1269 = vmatprep.subr.mxu0 0.0
    %1270 = vmatpush2.msra.mxu0 0.0
    %1271 = vmatprep.subr.mxu0 0.0
    %1272 = vmatpush2.msra.mxu0 0.0
    %1273 = vmatprep.subr.mxu0 0.0
    %1274 = vmatpush2.msra.mxu0 0.0
    %1275 = vmatprep.subr.mxu0 0.0
    %1276 = vmatpush2.msra.mxu0 0.0
    %1277 = vmatprep.subr.mxu0 0.0
    %1278 = vmatpush2.msra.mxu0 0.0
    %1279 = vmatprep.subr.mxu0 0.0
    %1280 = vmatpush2.msra.mxu0 0.0
    %1281 = vmatprep.subr.mxu0 0.0
    %1282 = vmatpush2.msra.mxu0 0.0
    %1283 = vmatprep.subr.mxu0 0.0
    %1284 = vmatpush2.msra.mxu0 0.0
    %1285 = vmatprep.subr.mxu0 0.0
    %1286 = vmatpush2.msra.mxu0 0.0
    %1287 = vmatprep.subr.mxu0 0.0
    %1288 = vmatpush2.msra.mxu0 0.0
    %1289 = vmatprep.subr.mxu0 0.0
    %1290 = vmatpush2.msra.mxu0 0.0
    %1291 = vmatprep.subr.mxu0 0.0
    %1292 = vmatpush2.msra.mxu0 0.0
    %1293 = vmatprep.subr.mxu0 0.0
    %1294 = vmatpush2.msra.mxu0 0.0
    %1295 = vmatprep.subr.mxu0 0.0
    %1296 = vmatpush2.msra.mxu0 0.0
    %1297 = vmatprep.subr.mxu0 0.0
    %1298 = vmatpush2.msra.mxu0 0.0
    %1299 = vmatprep.subr.mxu0 0.0
    %1300 = vmatpush2.msra.mxu0 0.0
    %1301 = vmatprep.mubr.f32.mxu0 0.0
    %1302 = vmatmul.mubr.f32.gmra.mxu0 %v1232
    %v1303 = vpop.f32.mrf.mxu0
    %v1304 = vadd.f32 0.0, %v1303
    %v1305 = vpop.f32.mrf.mxu0
    %1306 = vdwg.mxu0
    %v1307 = vadd.f32 %v1225, %v1304
    %s1308 = scalar_lea.vmem %s4, 16
    %v1309 = vld [vmem:[%s1308] sm:$0xf]
    %v1311 = vsel %vm200, %v1309, 0
    %v1314 = vsel %vm204, %v982, 0
    %1316 = vmatprep.subr.mxu0 0.0
    %1317 = vmatpush1.msra.mxu0 0.0
    %1318 = vmatprep.subr.mxu0 0.0
    %1319 = vmatpush1.msra.mxu0 0.0
    %1320 = vmatprep.subr.mxu0 0.0
    %1321 = vmatpush1.msra.mxu0 0.0
    %1322 = vmatprep.subr.mxu0 0.0
    %1323 = vmatpush1.msra.mxu0 0.0
    %1324 = vmatprep.subr.mxu0 0.0
    %1325 = vmatpush1.msra.mxu0 0.0
    %1326 = vmatprep.subr.mxu0 0.0
    %1327 = vmatpush1.msra.mxu0 0.0
    %1328 = vmatprep.subr.mxu0 0.0
    %1329 = vmatpush1.msra.mxu0 0.0
    %1330 = vmatprep.subr.mxu0 0.0
    %1331 = vmatpush1.msra.mxu0 0.0
    %1332 = vmatprep.subr.mxu0 0.0
    %1333 = vmatpush1.msra.mxu0 0.0
    %1334 = vmatprep.subr.mxu0 0.0
    %1335 = vmatpush1.msra.mxu0 0.0
    %1336 = vmatprep.subr.mxu0 0.0
    %1337 = vmatpush1.msra.mxu0 0.0
    %1338 = vmatprep.subr.mxu0 0.0
    %1339 = vmatpush1.msra.mxu0 0.0
    %1340 = vmatprep.subr.mxu0 0.0
    %1341 = vmatpush1.msra.mxu0 0.0
    %1342 = vmatprep.subr.mxu0 0.0
    %1343 = vmatpush1.msra.mxu0 0.0
    %1344 = vmatprep.subr.mxu0 0.0
    %1345 = vmatpush1.msra.mxu0 0.0
    %1346 = vmatprep.subr.mxu0 0.0
    %1347 = vmatpush1.msra.mxu0 %v1314
    %1348 = vmatprep.subr.mxu0 0.0
    %1349 = vmatpush2.msra.mxu0 0.0
    %1350 = vmatprep.subr.mxu0 0.0
    %1351 = vmatpush2.msra.mxu0 0.0
    %1352 = vmatprep.subr.mxu0 0.0
    %1353 = vmatpush2.msra.mxu0 0.0
    %1354 = vmatprep.subr.mxu0 0.0
    %1355 = vmatpush2.msra.mxu0 0.0
    %1356 = vmatprep.subr.mxu0 0.0
    %1357 = vmatpush2.msra.mxu0 0.0
    %1358 = vmatprep.subr.mxu0 0.0
    %1359 = vmatpush2.msra.mxu0 0.0
    %1360 = vmatprep.subr.mxu0 0.0
    %1361 = vmatpush2.msra.mxu0 0.0
    %1362 = vmatprep.subr.mxu0 0.0
    %1363 = vmatpush2.msra.mxu0 0.0
    %1364 = vmatprep.subr.mxu0 0.0
    %1365 = vmatpush2.msra.mxu0 0.0
    %1366 = vmatprep.subr.mxu0 0.0
    %1367 = vmatpush2.msra.mxu0 0.0
    %1368 = vmatprep.subr.mxu0 0.0
    %1369 = vmatpush2.msra.mxu0 0.0
    %1370 = vmatprep.subr.mxu0 0.0
    %1371 = vmatpush2.msra.mxu0 0.0
    %1372 = vmatprep.subr.mxu0 0.0
    %1373 = vmatpush2.msra.mxu0 0.0
    %1374 = vmatprep.subr.mxu0 0.0
    %1375 = vmatpush2.msra.mxu0 0.0
    %1376 = vmatprep.subr.mxu0 0.0
    %1377 = vmatpush2.msra.mxu0 0.0
    %1378 = vmatprep.subr.mxu0 0.0
    %1379 = vmatpush2.msra.mxu0 0.0
    %1380 = vmatprep.mubr.f32.mxu0 0.0
    %1381 = vmatmul.mubr.f32.gmra.mxu0 %v1311
    %v1382 = vpop.f32.mrf.mxu0
    %v1383 = vadd.f32 0.0, %v1382
    %v1384 = vpop.f32.mrf.mxu0
    %1385 = vdwg.mxu0
    %v1386 = vadd.f32 %v1307, %v1383
    %1387 = vrot.lane.b32.xlu0 %v982, 127
    %v1388 = vpop.permute.xlu0 %1387
    %v1389 = vmul.f32 %v1388, %v621
    %s1390 = scalar_lea.vmem %s4, 20
    %v1391 = vld [vmem:[%s1390] sm:$0xf]
    %v1393 = vsel %vm200, %v1391, 0
    %v1396 = vsel %vm204, %v1389, 0
    %1398 = vmatprep.subr.mxu0 0.0
    %1399 = vmatpush1.msra.mxu0 0.0
    %1400 = vmatprep.subr.mxu0 0.0
    %1401 = vmatpush1.msra.mxu0 0.0
    %1402 = vmatprep.subr.mxu0 0.0
    %1403 = vmatpush1.msra.mxu0 0.0
    %1404 = vmatprep.subr.mxu0 0.0
    %1405 = vmatpush1.msra.mxu0 0.0
    %1406 = vmatprep.subr.mxu0 0.0
    %1407 = vmatpush1.msra.mxu0 0.0
    %1408 = vmatprep.subr.mxu0 0.0
    %1409 = vmatpush1.msra.mxu0 0.0
    %1410 = vmatprep.subr.mxu0 0.0
    %1411 = vmatpush1.msra.mxu0 0.0
    %1412 = vmatprep.subr.mxu0 0.0
    %1413 = vmatpush1.msra.mxu0 0.0
    %1414 = vmatprep.subr.mxu0 0.0
    %1415 = vmatpush1.msra.mxu0 0.0
    %1416 = vmatprep.subr.mxu0 0.0
    %1417 = vmatpush1.msra.mxu0 0.0
    %1418 = vmatprep.subr.mxu0 0.0
    %1419 = vmatpush1.msra.mxu0 0.0
    %1420 = vmatprep.subr.mxu0 0.0
    %1421 = vmatpush1.msra.mxu0 0.0
    %1422 = vmatprep.subr.mxu0 0.0
    %1423 = vmatpush1.msra.mxu0 0.0
    %1424 = vmatprep.subr.mxu0 0.0
    %1425 = vmatpush1.msra.mxu0 0.0
    %1426 = vmatprep.subr.mxu0 0.0
    %1427 = vmatpush1.msra.mxu0 0.0
    %1428 = vmatprep.subr.mxu0 0.0
    %1429 = vmatpush1.msra.mxu0 %v1396
    %1430 = vmatprep.subr.mxu0 0.0
    %1431 = vmatpush2.msra.mxu0 0.0
    %1432 = vmatprep.subr.mxu0 0.0
    %1433 = vmatpush2.msra.mxu0 0.0
    %1434 = vmatprep.subr.mxu0 0.0
    %1435 = vmatpush2.msra.mxu0 0.0
    %1436 = vmatprep.subr.mxu0 0.0
    %1437 = vmatpush2.msra.mxu0 0.0
    %1438 = vmatprep.subr.mxu0 0.0
    %1439 = vmatpush2.msra.mxu0 0.0
    %1440 = vmatprep.subr.mxu0 0.0
    %1441 = vmatpush2.msra.mxu0 0.0
    %1442 = vmatprep.subr.mxu0 0.0
    %1443 = vmatpush2.msra.mxu0 0.0
    %1444 = vmatprep.subr.mxu0 0.0
    %1445 = vmatpush2.msra.mxu0 0.0
    %1446 = vmatprep.subr.mxu0 0.0
    %1447 = vmatpush2.msra.mxu0 0.0
    %1448 = vmatprep.subr.mxu0 0.0
    %1449 = vmatpush2.msra.mxu0 0.0
    %1450 = vmatprep.subr.mxu0 0.0
    %1451 = vmatpush2.msra.mxu0 0.0
    %1452 = vmatprep.subr.mxu0 0.0
    %1453 = vmatpush2.msra.mxu0 0.0
    %1454 = vmatprep.subr.mxu0 0.0
    %1455 = vmatpush2.msra.mxu0 0.0
    %1456 = vmatprep.subr.mxu0 0.0
    %1457 = vmatpush2.msra.mxu0 0.0
    %1458 = vmatprep.subr.mxu0 0.0
    %1459 = vmatpush2.msra.mxu0 0.0
    %1460 = vmatprep.subr.mxu0 0.0
    %1461 = vmatpush2.msra.mxu0 0.0
    %1462 = vmatprep.mubr.f32.mxu0 0.0
    %1463 = vmatmul.mubr.f32.gmra.mxu0 %v1393
    %v1464 = vpop.f32.mrf.mxu0
    %v1465 = vadd.f32 0.0, %v1464
    %v1466 = vpop.f32.mrf.mxu0
    %1467 = vdwg.mxu0
    %v1468 = vadd.f32 %v1386, %v1465
    %1469 = vrot.lane.b32.xlu0 %v982, 121
    %v1470 = vpop.permute.xlu0 %1469
    %v1471 = vmul.f32 %v1470, %v711
    %s1472 = scalar_lea.vmem %s4, 24
    %v1473 = vld [vmem:[%s1472] sm:$0xf]
    %v1475 = vsel %vm200, %v1473, 0
    %v1478 = vsel %vm204, %v1471, 0
    %1480 = vmatprep.subr.mxu0 0.0
    %1481 = vmatpush1.msra.mxu0 0.0
    %1482 = vmatprep.subr.mxu0 0.0
    %1483 = vmatpush1.msra.mxu0 0.0
    %1484 = vmatprep.subr.mxu0 0.0
    %1485 = vmatpush1.msra.mxu0 0.0
    %1486 = vmatprep.subr.mxu0 0.0
    %1487 = vmatpush1.msra.mxu0 0.0
    %1488 = vmatprep.subr.mxu0 0.0
    %1489 = vmatpush1.msra.mxu0 0.0
    %1490 = vmatprep.subr.mxu0 0.0
    %1491 = vmatpush1.msra.mxu0 0.0
    %1492 = vmatprep.subr.mxu0 0.0
    %1493 = vmatpush1.msra.mxu0 0.0
    %1494 = vmatprep.subr.mxu0 0.0
    %1495 = vmatpush1.msra.mxu0 0.0
    %1496 = vmatprep.subr.mxu0 0.0
    %1497 = vmatpush1.msra.mxu0 0.0
    %1498 = vmatprep.subr.mxu0 0.0
    %1499 = vmatpush1.msra.mxu0 0.0
    %1500 = vmatprep.subr.mxu0 0.0
    %1501 = vmatpush1.msra.mxu0 0.0
    %1502 = vmatprep.subr.mxu0 0.0
    %1503 = vmatpush1.msra.mxu0 0.0
    %1504 = vmatprep.subr.mxu0 0.0
    %1505 = vmatpush1.msra.mxu0 0.0
    %1506 = vmatprep.subr.mxu0 0.0
    %1507 = vmatpush1.msra.mxu0 0.0
    %1508 = vmatprep.subr.mxu0 0.0
    %1509 = vmatpush1.msra.mxu0 0.0
    %1510 = vmatprep.subr.mxu0 0.0
    %1511 = vmatpush1.msra.mxu0 %v1478
    %1512 = vmatprep.subr.mxu0 0.0
    %1513 = vmatpush2.msra.mxu0 0.0
    %1514 = vmatprep.subr.mxu0 0.0
    %1515 = vmatpush2.msra.mxu0 0.0
    %1516 = vmatprep.subr.mxu0 0.0
    %1517 = vmatpush2.msra.mxu0 0.0
    %1518 = vmatprep.subr.mxu0 0.0
    %1519 = vmatpush2.msra.mxu0 0.0
    %1520 = vmatprep.subr.mxu0 0.0
    %1521 = vmatpush2.msra.mxu0 0.0
    %1522 = vmatprep.subr.mxu0 0.0
    %1523 = vmatpush2.msra.mxu0 0.0
    %1524 = vmatprep.subr.mxu0 0.0
    %1525 = vmatpush2.msra.mxu0 0.0
    %1526 = vmatprep.subr.mxu0 0.0
    %1527 = vmatpush2.msra.mxu0 0.0
    %1528 = vmatprep.subr.mxu0 0.0
    %1529 = vmatpush2.msra.mxu0 0.0
    %1530 = vmatprep.subr.mxu0 0.0
    %1531 = vmatpush2.msra.mxu0 0.0
    %1532 = vmatprep.subr.mxu0 0.0
    %1533 = vmatpush2.msra.mxu0 0.0
    %1534 = vmatprep.subr.mxu0 0.0
    %1535 = vmatpush2.msra.mxu0 0.0
    %1536 = vmatprep.subr.mxu0 0.0
    %1537 = vmatpush2.msra.mxu0 0.0
    %1538 = vmatprep.subr.mxu0 0.0
    %1539 = vmatpush2.msra.mxu0 0.0
    %1540 = vmatprep.subr.mxu0 0.0
    %1541 = vmatpush2.msra.mxu0 0.0
    %1542 = vmatprep.subr.mxu0 0.0
    %1543 = vmatpush2.msra.mxu0 0.0
    %1544 = vmatprep.mubr.f32.mxu0 0.0
    %1545 = vmatmul.mubr.f32.gmra.mxu0 %v1475
    %v1546 = vpop.f32.mrf.mxu0
    %v1547 = vadd.f32 0.0, %v1546
    %v1548 = vpop.f32.mrf.mxu0
    %1549 = vdwg.mxu0
    %v1550 = vadd.f32 %v1468, %v1547
    %1551 = vrot.lane.b32.xlu0 %v982, 120
    %v1552 = vpop.permute.xlu0 %1551
    %v1553 = vmul.f32 %v1552, %v801
    %s1554 = scalar_lea.vmem %s4, 28
    %v1555 = vld [vmem:[%s1554] sm:$0xf]
    %v1557 = vsel %vm200, %v1555, 0
    %v1560 = vsel %vm204, %v1553, 0
    %1562 = vmatprep.subr.mxu0 0.0
    %1563 = vmatpush1.msra.mxu0 0.0
    %1564 = vmatprep.subr.mxu0 0.0
    %1565 = vmatpush1.msra.mxu0 0.0
    %1566 = vmatprep.subr.mxu0 0.0
    %1567 = vmatpush1.msra.mxu0 0.0
    %1568 = vmatprep.subr.mxu0 0.0
    %1569 = vmatpush1.msra.mxu0 0.0
    %1570 = vmatprep.subr.mxu0 0.0
    %1571 = vmatpush1.msra.mxu0 0.0
    %1572 = vmatprep.subr.mxu0 0.0
    %1573 = vmatpush1.msra.mxu0 0.0
    %1574 = vmatprep.subr.mxu0 0.0
    %1575 = vmatpush1.msra.mxu0 0.0
    %1576 = vmatprep.subr.mxu0 0.0
    %1577 = vmatpush1.msra.mxu0 0.0
    %1578 = vmatprep.subr.mxu0 0.0
    %1579 = vmatpush1.msra.mxu0 0.0
    %1580 = vmatprep.subr.mxu0 0.0
    %1581 = vmatpush1.msra.mxu0 0.0
    %1582 = vmatprep.subr.mxu0 0.0
    %1583 = vmatpush1.msra.mxu0 0.0
    %1584 = vmatprep.subr.mxu0 0.0
    %1585 = vmatpush1.msra.mxu0 0.0
    %1586 = vmatprep.subr.mxu0 0.0
    %1587 = vmatpush1.msra.mxu0 0.0
    %1588 = vmatprep.subr.mxu0 0.0
    %1589 = vmatpush1.msra.mxu0 0.0
    %1590 = vmatprep.subr.mxu0 0.0
    %1591 = vmatpush1.msra.mxu0 0.0
    %1592 = vmatprep.subr.mxu0 0.0
    %1593 = vmatpush1.msra.mxu0 %v1560
    %1594 = vmatprep.subr.mxu0 0.0
    %1595 = vmatpush2.msra.mxu0 0.0
    %1596 = vmatprep.subr.mxu0 0.0
    %1597 = vmatpush2.msra.mxu0 0.0
    %1598 = vmatprep.subr.mxu0 0.0
    %1599 = vmatpush2.msra.mxu0 0.0
    %1600 = vmatprep.subr.mxu0 0.0
    %1601 = vmatpush2.msra.mxu0 0.0
    %1602 = vmatprep.subr.mxu0 0.0
    %1603 = vmatpush2.msra.mxu0 0.0
    %1604 = vmatprep.subr.mxu0 0.0
    %1605 = vmatpush2.msra.mxu0 0.0
    %1606 = vmatprep.subr.mxu0 0.0
    %1607 = vmatpush2.msra.mxu0 0.0
    %1608 = vmatprep.subr.mxu0 0.0
    %1609 = vmatpush2.msra.mxu0 0.0
    %1610 = vmatprep.subr.mxu0 0.0
    %1611 = vmatpush2.msra.mxu0 0.0
    %1612 = vmatprep.subr.mxu0 0.0
    %1613 = vmatpush2.msra.mxu0 0.0
    %1614 = vmatprep.subr.mxu0 0.0
    %1615 = vmatpush2.msra.mxu0 0.0
    %1616 = vmatprep.subr.mxu0 0.0
    %1617 = vmatpush2.msra.mxu0 0.0
    %1618 = vmatprep.subr.mxu0 0.0
    %1619 = vmatpush2.msra.mxu0 0.0
    %1620 = vmatprep.subr.mxu0 0.0
    %1621 = vmatpush2.msra.mxu0 0.0
    %1622 = vmatprep.subr.mxu0 0.0
    %1623 = vmatpush2.msra.mxu0 0.0
    %1624 = vmatprep.subr.mxu0 0.0
    %1625 = vmatpush2.msra.mxu0 0.0
    %1626 = vmatprep.mubr.f32.mxu0 0.0
    %1627 = vmatmul.mubr.f32.gmra.mxu0 %v1557
    %v1628 = vpop.f32.mrf.mxu0
    %v1629 = vadd.f32 0.0, %v1628
    %v1630 = vpop.f32.mrf.mxu0
    %1631 = vdwg.mxu0
    %v1632 = vadd.f32 %v1550, %v1629
    %1633 = vrot.lane.b32.xlu0 %v982, 119
    %v1634 = vpop.permute.xlu0 %1633
    %v1635 = vmul.f32 %v1634, %v891
    %s1636 = scalar_lea.vmem %s4, 32
    %v1637 = vld [vmem:[%s1636] sm:$0xf]
    %v1639 = vsel %vm200, %v1637, 0
    %v1642 = vsel %vm204, %v1635, 0
    %1644 = vmatprep.subr.mxu0 0.0
    %1645 = vmatpush1.msra.mxu0 0.0
    %1646 = vmatprep.subr.mxu0 0.0
    %1647 = vmatpush1.msra.mxu0 0.0
    %1648 = vmatprep.subr.mxu0 0.0
    %1649 = vmatpush1.msra.mxu0 0.0
    %1650 = vmatprep.subr.mxu0 0.0
    %1651 = vmatpush1.msra.mxu0 0.0
    %1652 = vmatprep.subr.mxu0 0.0
    %1653 = vmatpush1.msra.mxu0 0.0
    %1654 = vmatprep.subr.mxu0 0.0
    %1655 = vmatpush1.msra.mxu0 0.0
    %1656 = vmatprep.subr.mxu0 0.0
    %1657 = vmatpush1.msra.mxu0 0.0
    %1658 = vmatprep.subr.mxu0 0.0
    %1659 = vmatpush1.msra.mxu0 0.0
    %1660 = vmatprep.subr.mxu0 0.0
    %1661 = vmatpush1.msra.mxu0 0.0
    %1662 = vmatprep.subr.mxu0 0.0
    %1663 = vmatpush1.msra.mxu0 0.0
    %1664 = vmatprep.subr.mxu0 0.0
    %1665 = vmatpush1.msra.mxu0 0.0
    %1666 = vmatprep.subr.mxu0 0.0
    %1667 = vmatpush1.msra.mxu0 0.0
    %1668 = vmatprep.subr.mxu0 0.0
    %1669 = vmatpush1.msra.mxu0 0.0
    %1670 = vmatprep.subr.mxu0 0.0
    %1671 = vmatpush1.msra.mxu0 0.0
    %1672 = vmatprep.subr.mxu0 0.0
    %1673 = vmatpush1.msra.mxu0 0.0
    %1674 = vmatprep.subr.mxu0 0.0
    %1675 = vmatpush1.msra.mxu0 %v1642
    %1676 = vmatprep.subr.mxu0 0.0
    %1677 = vmatpush2.msra.mxu0 0.0
    %1678 = vmatprep.subr.mxu0 0.0
    %1679 = vmatpush2.msra.mxu0 0.0
    %1680 = vmatprep.subr.mxu0 0.0
    %1681 = vmatpush2.msra.mxu0 0.0
    %1682 = vmatprep.subr.mxu0 0.0
    %1683 = vmatpush2.msra.mxu0 0.0
    %1684 = vmatprep.subr.mxu0 0.0
    %1685 = vmatpush2.msra.mxu0 0.0
    %1686 = vmatprep.subr.mxu0 0.0
    %1687 = vmatpush2.msra.mxu0 0.0
    %1688 = vmatprep.subr.mxu0 0.0
    %1689 = vmatpush2.msra.mxu0 0.0
    %1690 = vmatprep.subr.mxu0 0.0
    %1691 = vmatpush2.msra.mxu0 0.0
    %1692 = vmatprep.subr.mxu0 0.0
    %1693 = vmatpush2.msra.mxu0 0.0
    %1694 = vmatprep.subr.mxu0 0.0
    %1695 = vmatpush2.msra.mxu0 0.0
    %1696 = vmatprep.subr.mxu0 0.0
    %1697 = vmatpush2.msra.mxu0 0.0
    %1698 = vmatprep.subr.mxu0 0.0
    %1699 = vmatpush2.msra.mxu0 0.0
    %1700 = vmatprep.subr.mxu0 0.0
    %1701 = vmatpush2.msra.mxu0 0.0
    %1702 = vmatprep.subr.mxu0 0.0
    %1703 = vmatpush2.msra.mxu0 0.0
    %1704 = vmatprep.subr.mxu0 0.0
    %1705 = vmatpush2.msra.mxu0 0.0
    %1706 = vmatprep.subr.mxu0 0.0
    %1707 = vmatpush2.msra.mxu0 0.0
    %1708 = vmatprep.mubr.f32.mxu0 0.0
    %1709 = vmatmul.mubr.f32.gmra.mxu0 %v1639
    %v1710 = vpop.f32.mrf.mxu0
    %v1711 = vadd.f32 0.0, %v1710
    %v1712 = vpop.f32.mrf.mxu0
    %1713 = vdwg.mxu0
    %v1714 = vadd.f32 %v1632, %v1711
    %v1715 = vld [vmem:[%s9] sm:$0xf]
    %1717 = vset.pattern.permute.xlu0 0
    %1718 = vperm.xlu0 %1717, %v1715
    %v1719 = vpop.permute.xlu0 %1718
    %v1721 = vadd.f32 %v1714, %v1719
    %vm1722 = vcmp.ge.f32.partialorder %v1721, 0.0
    %v1723 = vmul.f32 %v1721, 0.2
    %v1724 = vsel %vm1722, %v1721, %v1723
    %v1725 = vadd.f32 %v1724, %v175
    %v1726 = vld [vmem:[#allocation3] sm:$0xff]
    %v1727 = vld [vmem:[#allocation3 + $0x8] sm:$0xff]
    %v1728 = vld [vmem:[#allocation3 + $0x10] sm:$0xff]
    %v1729 = vld [vmem:[#allocation3 + $0x18] sm:$0xff]
    %v1730 = vld [vmem:[#allocation3 + $0x20] sm:$0xff]
    %v1731 = vld [vmem:[#allocation3 + $0x28] sm:$0xff]
    %v1732 = vld [vmem:[#allocation3 + $0x30] sm:$0xff]
    %v1733 = vld [vmem:[#allocation3 + $0x38] sm:$0xff]
    %v1734 = vld [vmem:[#allocation3 + $0x40] sm:$0xff]
    %v1735 = vld [vmem:[#allocation3 + $0x48] sm:$0xff]
    %v1736 = vld [vmem:[#allocation3 + $0x50] sm:$0xff]
    %v1737 = vld [vmem:[#allocation3 + $0x58] sm:$0xff]
    %v1738 = vld [vmem:[#allocation3 + $0x60] sm:$0xff]
    %v1739 = vld [vmem:[#allocation3 + $0x68] sm:$0xff]
    %v1740 = vld [vmem:[#allocation3 + $0x70] sm:$0xff]
    %v1741 = vld [vmem:[#allocation3 + $0x78] sm:$0xff]
    %v1742 = vld [vmem:[#allocation3 + $0x80] sm:$0xff]
    %v1743 = vld [vmem:[#allocation3 + $0x88] sm:$0xff]
    %v1744 = vld [vmem:[#allocation3 + $0x90] sm:$0xff]
    %v1745 = vld [vmem:[#allocation3 + $0x98] sm:$0xff]
    %v1746 = vld [vmem:[#allocation3 + $0xa0] sm:$0xff]
    %v1747 = vld [vmem:[#allocation3 + $0xa8] sm:$0xff]
    %v1748 = vld [vmem:[#allocation3 + $0xb0] sm:$0xff]
    %v1749 = vld [vmem:[#allocation3 + $0xb8] sm:$0xff]
    %v1750 = vld [vmem:[#allocation3 + $0xc0] sm:$0xff]
    %v1751 = vld [vmem:[#allocation3 + $0xc8] sm:$0xff]
    %v1752 = vld [vmem:[#allocation3 + $0xd0] sm:$0xff]
    %v1753 = vld [vmem:[#allocation3 + $0xd8] sm:$0xff]
    %v1754 = vld [vmem:[#allocation3 + $0xe0] sm:$0xff]
    %v1755 = vld [vmem:[#allocation3 + $0xe8] sm:$0xff]
    %v1756 = vld [vmem:[#allocation3 + $0xf0] sm:$0xff]
    %v1757 = vld [vmem:[#allocation3 + $0xf8] sm:$0xff]
    %v1758 = vld [vmem:[#allocation3 + $0x100] sm:$0xff]
    %v1759 = vld [vmem:[#allocation3 + $0x108] sm:$0xff]
    %v1760 = vld [vmem:[#allocation3 + $0x110] sm:$0xff]
    %v1761 = vld [vmem:[#allocation3 + $0x118] sm:$0xff]
    %v1762 = vld [vmem:[#allocation3 + $0x120] sm:$0xff]
    %v1763 = vld [vmem:[#allocation3 + $0x128] sm:$0xff]
    %v1764 = vld [vmem:[#allocation3 + $0x130] sm:$0xff]
    %v1765 = vld [vmem:[#allocation3 + $0x138] sm:$0xff]
    %v1766 = vld [vmem:[#allocation3 + $0x140] sm:$0xff]
    %v1767 = vld [vmem:[#allocation3 + $0x148] sm:$0xff]
    %v1768 = vld [vmem:[#allocation3 + $0x150] sm:$0xff]
    %v1769 = vld [vmem:[#allocation3 + $0x158] sm:$0xff]
    %v1770 = vld [vmem:[#allocation3 + $0x160] sm:$0xff]
    %v1771 = vld [vmem:[#allocation3 + $0x168] sm:$0xff]
    %v1772 = vld [vmem:[#allocation3 + $0x170] sm:$0xff]
    %v1773 = vld [vmem:[#allocation3 + $0x178] sm:$0xff]
    %v1774 = vld [vmem:[#allocation3 + $0x180] sm:$0xff]
    %v1775 = vld [vmem:[#allocation3 + $0x188] sm:$0xff]
    %v1776 = vld [vmem:[#allocation3 + $0x190] sm:$0xff]
    %v1777 = vld [vmem:[#allocation3 + $0x198] sm:$0xff]
    %v1778 = vld [vmem:[#allocation3 + $0x1a0] sm:$0xff]
    %v1779 = vld [vmem:[#allocation3 + $0x1a8] sm:$0xff]
    %v1780 = vld [vmem:[#allocation3 + $0x1b0] sm:$0xff]
    %v1781 = vld [vmem:[#allocation3 + $0x1b8] sm:$0xff]
    %v1782 = vld [vmem:[#allocation3 + $0x1c0] sm:$0xff]
    %v1783 = vld [vmem:[#allocation3 + $0x1c8] sm:$0xff]
    %v1784 = vld [vmem:[#allocation3 + $0x1d0] sm:$0xff]
    %v1785 = vld [vmem:[#allocation3 + $0x1d8] sm:$0xff]
    %v1786 = vld [vmem:[#allocation3 + $0x1e0] sm:$0xff]
    %v1787 = vld [vmem:[#allocation3 + $0x1e8] sm:$0xff]
    %v1788 = vld [vmem:[#allocation3 + $0x1f0] sm:$0xff]
    %v1789 = vld [vmem:[#allocation3 + $0x1f8] sm:$0xff]
    %1790 = vmatprep.subr.mxu0 %v1787
    %1791 = vmatpush1.msra.mxu0 %v1786
    %1792 = vmatprep.subr.mxu0 %v1783
    %1793 = vmatpush1.msra.mxu0 %v1782
    %1794 = vmatprep.subr.mxu0 %v1779
    %1795 = vmatpush1.msra.mxu0 %v1778
    %1796 = vmatprep.subr.mxu0 %v1775
    %1797 = vmatpush1.msra.mxu0 %v1774
    %1798 = vmatprep.subr.mxu0 %v1771
    %1799 = vmatpush1.msra.mxu0 %v1770
    %1800 = vmatprep.subr.mxu0 %v1767
    %1801 = vmatpush1.msra.mxu0 %v1766
    %1802 = vmatprep.subr.mxu0 %v1763
    %1803 = vmatpush1.msra.mxu0 %v1762
    %1804 = vmatprep.subr.mxu0 %v1759
    %1805 = vmatpush1.msra.mxu0 %v1758
    %1806 = vmatprep.subr.mxu0 %v1755
    %1807 = vmatpush1.msra.mxu0 %v1754
    %1808 = vmatprep.subr.mxu0 %v1751
    %1809 = vmatpush1.msra.mxu0 %v1750
    %1810 = vmatprep.subr.mxu0 %v1747
    %1811 = vmatpush1.msra.mxu0 %v1746
    %1812 = vmatprep.subr.mxu0 %v1743
    %1813 = vmatpush1.msra.mxu0 %v1742
    %1814 = vmatprep.subr.mxu0 %v1739
    %1815 = vmatpush1.msra.mxu0 %v1738
    %1816 = vmatprep.subr.mxu0 %v1735
    %1817 = vmatpush1.msra.mxu0 %v1734
    %1818 = vmatprep.subr.mxu0 %v1731
    %1819 = vmatpush1.msra.mxu0 %v1730
    %1820 = vmatprep.subr.mxu0 %v1727
    %1821 = vmatpush1.msra.mxu0 %v1726
    %1822 = vmatprep.subr.mxu0 0.0
    %1823 = vmatpush2.msra.mxu0 0.0
    %1824 = vmatprep.subr.mxu0 0.0
    %1825 = vmatpush2.msra.mxu0 0.0
    %1826 = vmatprep.subr.mxu0 0.0
    %1827 = vmatpush2.msra.mxu0 0.0
    %1828 = vmatprep.subr.mxu0 0.0
    %1829 = vmatpush2.msra.mxu0 0.0
    %1830 = vmatprep.subr.mxu0 0.0
    %1831 = vmatpush2.msra.mxu0 0.0
    %1832 = vmatprep.subr.mxu0 0.0
    %1833 = vmatpush2.msra.mxu0 0.0
    %1834 = vmatprep.subr.mxu0 0.0
    %1835 = vmatpush2.msra.mxu0 0.0
    %1836 = vmatprep.subr.mxu0 0.0
    %1837 = vmatpush2.msra.mxu0 0.0
    %1838 = vmatprep.subr.mxu0 0.0
    %1839 = vmatpush2.msra.mxu0 0.0
    %1840 = vmatprep.subr.mxu0 0.0
    %1841 = vmatpush2.msra.mxu0 0.0
    %1842 = vmatprep.subr.mxu0 0.0
    %1843 = vmatpush2.msra.mxu0 0.0
    %1844 = vmatprep.subr.mxu0 0.0
    %1845 = vmatpush2.msra.mxu0 0.0
    %1846 = vmatprep.subr.mxu0 0.0
    %1847 = vmatpush2.msra.mxu0 0.0
    %1848 = vmatprep.subr.mxu0 0.0
    %1849 = vmatpush2.msra.mxu0 0.0
    %1850 = vmatprep.subr.mxu0 0.0
    %1851 = vmatpush2.msra.mxu0 0.0
    %1852 = vmatprep.subr.mxu0 0.0
    %1853 = vmatpush2.msra.mxu0 0.0
    %1854 = vmatprep.mubr.f32.mxu0 0.0
    %1855 = vmatmul.mubr.f32.gmra.mxu0 %v1725
    %v1856 = vpop.f32.mrf.mxu0
    %v1857 = vadd.f32 0.0, %v1856
    %v1858 = vpop.f32.mrf.mxu0
    %v1859 = vadd.f32 0.0, %v1858
    %1860 = vdwg.mxu0
    %1861 = vmatprep.subr.mxu0 %v1789
    %1862 = vmatpush1.msra.mxu0 %v1788
    %1863 = vmatprep.subr.mxu0 %v1785
    %1864 = vmatpush1.msra.mxu0 %v1784
    %1865 = vmatprep.subr.mxu0 %v1781
    %1866 = vmatpush1.msra.mxu0 %v1780
    %1867 = vmatprep.subr.mxu0 %v1777
    %1868 = vmatpush1.msra.mxu0 %v1776
    %1869 = vmatprep.subr.mxu0 %v1773
    %1870 = vmatpush1.msra.mxu0 %v1772
    %1871 = vmatprep.subr.mxu0 %v1769
    %1872 = vmatpush1.msra.mxu0 %v1768
    %1873 = vmatprep.subr.mxu0 %v1765
    %1874 = vmatpush1.msra.mxu0 %v1764
    %1875 = vmatprep.subr.mxu0 %v1761
    %1876 = vmatpush1.msra.mxu0 %v1760
    %1877 = vmatprep.subr.mxu0 %v1757
    %1878 = vmatpush1.msra.mxu0 %v1756
    %1879 = vmatprep.subr.mxu0 %v1753
    %1880 = vmatpush1.msra.mxu0 %v1752
    %1881 = vmatprep.subr.mxu0 %v1749
    %1882 = vmatpush1.msra.mxu0 %v1748
    %1883 = vmatprep.subr.mxu0 %v1745
    %1884 = vmatpush1.msra.mxu0 %v1744
    %1885 = vmatprep.subr.mxu0 %v1741
    %1886 = vmatpush1.msra.mxu0 %v1740
    %1887 = vmatprep.subr.mxu0 %v1737
    %1888 = vmatpush1.msra.mxu0 %v1736
    %1889 = vmatprep.subr.mxu0 %v1733
    %1890 = vmatpush1.msra.mxu0 %v1732
    %1891 = vmatprep.subr.mxu0 %v1729
    %1892 = vmatpush1.msra.mxu0 %v1728
    %1893 = vmatprep.subr.mxu0 0.0
    %1894 = vmatpush2.msra.mxu0 0.0
    %1895 = vmatprep.subr.mxu0 0.0
    %1896 = vmatpush2.msra.mxu0 0.0
    %1897 = vmatprep.subr.mxu0 0.0
    %1898 = vmatpush2.msra.mxu0 0.0
    %1899 = vmatprep.subr.mxu0 0.0
    %1900 = vmatpush2.msra.mxu0 0.0
    %1901 = vmatprep.subr.mxu0 0.0
    %1902 = vmatpush2.msra.mxu0 0.0
    %1903 = vmatprep.subr.mxu0 0.0
    %1904 = vmatpush2.msra.mxu0 0.0
    %1905 = vmatprep.subr.mxu0 0.0
    %1906 = vmatpush2.msra.mxu0 0.0
    %1907 = vmatprep.subr.mxu0 0.0
    %1908 = vmatpush2.msra.mxu0 0.0
    %1909 = vmatprep.subr.mxu0 0.0
    %1910 = vmatpush2.msra.mxu0 0.0
    %1911 = vmatprep.subr.mxu0 0.0
    %1912 = vmatpush2.msra.mxu0 0.0
    %1913 = vmatprep.subr.mxu0 0.0
    %1914 = vmatpush2.msra.mxu0 0.0
    %1915 = vmatprep.subr.mxu0 0.0
    %1916 = vmatpush2.msra.mxu0 0.0
    %1917 = vmatprep.subr.mxu0 0.0
    %1918 = vmatpush2.msra.mxu0 0.0
    %1919 = vmatprep.subr.mxu0 0.0
    %1920 = vmatpush2.msra.mxu0 0.0
    %1921 = vmatprep.subr.mxu0 0.0
    %1922 = vmatpush2.msra.mxu0 0.0
    %1923 = vmatprep.subr.mxu0 0.0
    %1924 = vmatpush2.msra.mxu0 0.0
    %1925 = vmatprep.mubr.f32.mxu0 0.0
    %1926 = vmatmul.mubr.f32.gmra.mxu0 %v1725
    %v1927 = vpop.f32.mrf.mxu0
    %v1928 = vadd.f32 0.0, %v1927
    %v1929 = vpop.f32.mrf.mxu0
    %v1930 = vadd.f32 0.0, %v1929
    %1931 = vdwg.mxu0
    %1932 = vrot.lane.b32.xlu0 %v1857, 17
    %v1933 = vpop.permute.xlu0 %1932
    %1934 = vrot.lane.b32.xlu0 %v1859, 17
    %v1935 = vpop.permute.xlu0 %1934
    %1936 = vrot.lane.b32.xlu0 %v1928, 17
    %v1937 = vpop.permute.xlu0 %1936
    %1938 = vrot.lane.b32.xlu0 %v1930, 17
    %v1939 = vpop.permute.xlu0 %1938
    %v1940 = vlaneseq
    %v1941 = vand.u32 %v1940, 127
    %vm1942 = vcmp.lt.s32.totalorder %v1941, 17
    %v1943 = vsel %vm1942, %v1937, %v1939
    %v1944 = vsel %vm1942, %v1935, %v1937
    %v1945 = vsel %vm1942, %v1933, %v1935
    %v1946 = vsel %vm1942, %v1939, %v1933
    %v1947 = vld [vmem:[%s14] sm:$0xf]
    %v1949 = vlaneseq
    %v1950 = vshrl.u32 %v1949, 7
    %v1951 = vsub.s32 0, %v1950
    %v1952 = vrot.slane %v1947, %v1951
    %v1953 = vlaneseq
    %v1954 = vshrl.u32 %v1953, 7
    %v1955 = vsub.s32 1, %v1954
    %v1956 = vrot.slane %v1947, %v1955
    %v1957 = vlaneseq
    %v1958 = vshrl.u32 %v1957, 7
    %v1959 = vsub.s32 2, %v1958
    %v1960 = vrot.slane %v1947, %v1959
    %v1961 = vlaneseq
    %v1962 = vshrl.u32 %v1961, 7
    %v1963 = vsub.s32 3, %v1962
    %v1964 = vrot.slane %v1947, %v1963
    %v1969 = vmul.f32 %v1946, %v1952
    %v1970 = vmul.f32 %v1945, %v1956
    %v1971 = vmul.f32 %v1944, %v1960
    %v1972 = vmul.f32 %v1943, %v1964
    %v1973 = vld [vmem:[%s5] sm:$0xf]
    %1974 = vrot.lane.b32.xlu0 %v1857, 16
    %v1975 = vpop.permute.xlu0 %1974
    %1976 = vrot.lane.b32.xlu0 %v1859, 16
    %v1977 = vpop.permute.xlu0 %1976
    %1978 = vrot.lane.b32.xlu0 %v1928, 16
    %v1979 = vpop.permute.xlu0 %1978
    %1980 = vrot.lane.b32.xlu0 %v1930, 16
    %v1981 = vpop.permute.xlu0 %1980
    %vm1982 = vcmp.lt.s32.totalorder %v1941, 16
    %v1983 = vsel %vm1982, %v1979, %v1981
    %v1984 = vsel %vm1982, %v1977, %v1979
    %v1985 = vsel %vm1982, %v1975, %v1977
    %v1986 = vsel %vm1982, %v1981, %v1975
    %s1987 = scalar_lea.vmem %s14, 4
    %v1988 = vld [vmem:[%s1987] sm:$0xf]
    %v1990 = vlaneseq
    %v1991 = vshrl.u32 %v1990, 7
    %v1992 = vsub.s32 0, %v1991
    %v1993 = vrot.slane %v1988, %v1992
    %v1994 = vlaneseq
    %v1995 = vshrl.u32 %v1994, 7
    %v1996 = vsub.s32 1, %v1995
    %v1997 = vrot.slane %v1988, %v1996
    %v1998 = vlaneseq
    %v1999 = vshrl.u32 %v1998, 7
    %v2000 = vsub.s32 2, %v1999
    %v2001 = vrot.slane %v1988, %v2000
    %v2002 = vlaneseq
    %v2003 = vshrl.u32 %v2002, 7
    %v2004 = vsub.s32 3, %v2003
    %v2005 = vrot.slane %v1988, %v2004
    %v2010 = vmul.f32 %v1986, %v1993
    %v2011 = vmul.f32 %v1985, %v1997
    %v2012 = vmul.f32 %v1984, %v2001
    %v2013 = vmul.f32 %v1983, %v2005
    %s2014 = scalar_lea.vmem %s5, 4
    %v2015 = vld [vmem:[%s2014] sm:$0xf]
    %v2017 = vsel %vm200, %v2015, 0
    %v2020 = vsel %vm204, %v2010, 0
    %v2023 = vsel %vm204, %v2011, 0
    %v2026 = vsel %vm204, %v2012, 0
    %v2029 = vsel %vm204, %v2013, 0
    %2031 = vmatprep.subr.mxu0 0.0
    %2032 = vmatpush1.msra.mxu0 0.0
    %2033 = vmatprep.subr.mxu0 0.0
    %2034 = vmatpush1.msra.mxu0 0.0
    %2035 = vmatprep.subr.mxu0 0.0
    %2036 = vmatpush1.msra.mxu0 0.0
    %2037 = vmatprep.subr.mxu0 0.0
    %2038 = vmatpush1.msra.mxu0 0.0
    %2039 = vmatprep.subr.mxu0 0.0
    %2040 = vmatpush1.msra.mxu0 0.0
    %2041 = vmatprep.subr.mxu0 0.0
    %2042 = vmatpush1.msra.mxu0 0.0
    %2043 = vmatprep.subr.mxu0 0.0
    %2044 = vmatpush1.msra.mxu0 0.0
    %2045 = vmatprep.subr.mxu0 0.0
    %2046 = vmatpush1.msra.mxu0 0.0
    %2047 = vmatprep.subr.mxu0 0.0
    %2048 = vmatpush1.msra.mxu0 0.0
    %2049 = vmatprep.subr.mxu0 0.0
    %2050 = vmatpush1.msra.mxu0 0.0
    %2051 = vmatprep.subr.mxu0 0.0
    %2052 = vmatpush1.msra.mxu0 0.0
    %2053 = vmatprep.subr.mxu0 0.0
    %2054 = vmatpush1.msra.mxu0 0.0
    %2055 = vmatprep.subr.mxu0 0.0
    %2056 = vmatpush1.msra.mxu0 0.0
    %2057 = vmatprep.subr.mxu0 0.0
    %2058 = vmatpush1.msra.mxu0 0.0
    %2059 = vmatprep.subr.mxu0 0.0
    %2060 = vmatpush1.msra.mxu0 0.0
    %2061 = vmatprep.subr.mxu0 %v2023
    %2062 = vmatpush1.msra.mxu0 %v2020
    %2063 = vmatprep.subr.mxu0 0.0
    %2064 = vmatpush2.msra.mxu0 0.0
    %2065 = vmatprep.subr.mxu0 0.0
    %2066 = vmatpush2.msra.mxu0 0.0
    %2067 = vmatprep.subr.mxu0 0.0
    %2068 = vmatpush2.msra.mxu0 0.0
    %2069 = vmatprep.subr.mxu0 0.0
    %2070 = vmatpush2.msra.mxu0 0.0
    %2071 = vmatprep.subr.mxu0 0.0
    %2072 = vmatpush2.msra.mxu0 0.0
    %2073 = vmatprep.subr.mxu0 0.0
    %2074 = vmatpush2.msra.mxu0 0.0
    %2075 = vmatprep.subr.mxu0 0.0
    %2076 = vmatpush2.msra.mxu0 0.0
    %2077 = vmatprep.subr.mxu0 0.0
    %2078 = vmatpush2.msra.mxu0 0.0
    %2079 = vmatprep.subr.mxu0 0.0
    %2080 = vmatpush2.msra.mxu0 0.0
    %2081 = vmatprep.subr.mxu0 0.0
    %2082 = vmatpush2.msra.mxu0 0.0
    %2083 = vmatprep.subr.mxu0 0.0
    %2084 = vmatpush2.msra.mxu0 0.0
    %2085 = vmatprep.subr.mxu0 0.0
    %2086 = vmatpush2.msra.mxu0 0.0
    %2087 = vmatprep.subr.mxu0 0.0
    %2088 = vmatpush2.msra.mxu0 0.0
    %2089 = vmatprep.subr.mxu0 0.0
    %2090 = vmatpush2.msra.mxu0 0.0
    %2091 = vmatprep.subr.mxu0 0.0
    %2092 = vmatpush2.msra.mxu0 0.0
    %2093 = vmatprep.subr.mxu0 0.0
    %2094 = vmatpush2.msra.mxu0 0.0
    %2095 = vmatprep.mubr.f32.mxu0 0.0
    %2096 = vmatmul.mubr.f32.gmra.mxu0 %v2017
    %v2097 = vpop.f32.mrf.mxu0
    %v2098 = vadd.f32 0.0, %v2097
    %v2099 = vpop.f32.mrf.mxu0
    %v2100 = vadd.f32 0.0, %v2099
    %2101 = vdwg.mxu0
    %2102 = vmatprep.subr.mxu0 0.0
    %2103 = vmatpush1.msra.mxu0 0.0
    %2104 = vmatprep.subr.mxu0 0.0
    %2105 = vmatpush1.msra.mxu0 0.0
    %2106 = vmatprep.subr.mxu0 0.0
    %2107 = vmatpush1.msra.mxu0 0.0
    %2108 = vmatprep.subr.mxu0 0.0
    %2109 = vmatpush1.msra.mxu0 0.0
    %2110 = vmatprep.subr.mxu0 0.0
    %2111 = vmatpush1.msra.mxu0 0.0
    %2112 = vmatprep.subr.mxu0 0.0
    %2113 = vmatpush1.msra.mxu0 0.0
    %2114 = vmatprep.subr.mxu0 0.0
    %2115 = vmatpush1.msra.mxu0 0.0
    %2116 = vmatprep.subr.mxu0 0.0
    %2117 = vmatpush1.msra.mxu0 0.0
    %2118 = vmatprep.subr.mxu0 0.0
    %2119 = vmatpush1.msra.mxu0 0.0
    %2120 = vmatprep.subr.mxu0 0.0
    %2121 = vmatpush1.msra.mxu0 0.0
    %2122 = vmatprep.subr.mxu0 0.0
    %2123 = vmatpush1.msra.mxu0 0.0
    %2124 = vmatprep.subr.mxu0 0.0
    %2125 = vmatpush1.msra.mxu0 0.0
    %2126 = vmatprep.subr.mxu0 0.0
    %2127 = vmatpush1.msra.mxu0 0.0
    %2128 = vmatprep.subr.mxu0 0.0
    %2129 = vmatpush1.msra.mxu0 0.0
    %2130 = vmatprep.subr.mxu0 0.0
    %2131 = vmatpush1.msra.mxu0 0.0
    %2132 = vmatprep.subr.mxu0 %v2029
    %2133 = vmatpush1.msra.mxu0 %v2026
    %2134 = vmatprep.subr.mxu0 0.0
    %2135 = vmatpush2.msra.mxu0 0.0
    %2136 = vmatprep.subr.mxu0 0.0
    %2137 = vmatpush2.msra.mxu0 0.0
    %2138 = vmatprep.subr.mxu0 0.0
    %2139 = vmatpush2.msra.mxu0 0.0
    %2140 = vmatprep.subr.mxu0 0.0
    %2141 = vmatpush2.msra.mxu0 0.0
    %2142 = vmatprep.subr.mxu0 0.0
    %2143 = vmatpush2.msra.mxu0 0.0
    %2144 = vmatprep.subr.mxu0 0.0
    %2145 = vmatpush2.msra.mxu0 0.0
    %2146 = vmatprep.subr.mxu0 0.0
    %2147 = vmatpush2.msra.mxu0 0.0
    %2148 = vmatprep.subr.mxu0 0.0
    %2149 = vmatpush2.msra.mxu0 0.0
    %2150 = vmatprep.subr.mxu0 0.0
    %2151 = vmatpush2.msra.mxu0 0.0
    %2152 = vmatprep.subr.mxu0 0.0
    %2153 = vmatpush2.msra.mxu0 0.0
    %2154 = vmatprep.subr.mxu0 0.0
    %2155 = vmatpush2.msra.mxu0 0.0
    %2156 = vmatprep.subr.mxu0 0.0
    %2157 = vmatpush2.msra.mxu0 0.0
    %2158 = vmatprep.subr.mxu0 0.0
    %2159 = vmatpush2.msra.mxu0 0.0
    %2160 = vmatprep.subr.mxu0 0.0
    %2161 = vmatpush2.msra.mxu0 0.0
    %2162 = vmatprep.subr.mxu0 0.0
    %2163 = vmatpush2.msra.mxu0 0.0
    %2164 = vmatprep.subr.mxu0 0.0
    %2165 = vmatpush2.msra.mxu0 0.0
    %2166 = vmatprep.mubr.f32.mxu0 0.0
    %2167 = vmatmul.mubr.f32.gmra.mxu0 %v2017
    %v2168 = vpop.f32.mrf.mxu0
    %v2169 = vadd.f32 0.0, %v2168
    %v2170 = vpop.f32.mrf.mxu0
    %v2171 = vadd.f32 0.0, %v2170
    %2172 = vdwg.mxu0
    %v2174 = vsel %vm200, %v1973, 0
    %v2177 = vsel %vm204, %v1969, 0
    %v2180 = vsel %vm204, %v1970, 0
    %v2183 = vsel %vm204, %v1971, 0
    %v2186 = vsel %vm204, %v1972, 0
    %2188 = vmatprep.subr.mxu0 0.0
    %2189 = vmatpush1.msra.mxu0 0.0
    %2190 = vmatprep.subr.mxu0 0.0
    %2191 = vmatpush1.msra.mxu0 0.0
    %2192 = vmatprep.subr.mxu0 0.0
    %2193 = vmatpush1.msra.mxu0 0.0
    %2194 = vmatprep.subr.mxu0 0.0
    %2195 = vmatpush1.msra.mxu0 0.0
    %2196 = vmatprep.subr.mxu0 0.0
    %2197 = vmatpush1.msra.mxu0 0.0
    %2198 = vmatprep.subr.mxu0 0.0
    %2199 = vmatpush1.msra.mxu0 0.0
    %2200 = vmatprep.subr.mxu0 0.0
    %2201 = vmatpush1.msra.mxu0 0.0
    %2202 = vmatprep.subr.mxu0 0.0
    %2203 = vmatpush1.msra.mxu0 0.0
    %2204 = vmatprep.subr.mxu0 0.0
    %2205 = vmatpush1.msra.mxu0 0.0
    %2206 = vmatprep.subr.mxu0 0.0
    %2207 = vmatpush1.msra.mxu0 0.0
    %2208 = vmatprep.subr.mxu0 0.0
    %2209 = vmatpush1.msra.mxu0 0.0
    %2210 = vmatprep.subr.mxu0 0.0
    %2211 = vmatpush1.msra.mxu0 0.0
    %2212 = vmatprep.subr.mxu0 0.0
    %2213 = vmatpush1.msra.mxu0 0.0
    %2214 = vmatprep.subr.mxu0 0.0
    %2215 = vmatpush1.msra.mxu0 0.0
    %2216 = vmatprep.subr.mxu0 0.0
    %2217 = vmatpush1.msra.mxu0 0.0
    %2218 = vmatprep.subr.mxu0 %v2180
    %2219 = vmatpush1.msra.mxu0 %v2177
    %2220 = vmatprep.subr.mxu0 0.0
    %2221 = vmatpush2.msra.mxu0 0.0
    %2222 = vmatprep.subr.mxu0 0.0
    %2223 = vmatpush2.msra.mxu0 0.0
    %2224 = vmatprep.subr.mxu0 0.0
    %2225 = vmatpush2.msra.mxu0 0.0
    %2226 = vmatprep.subr.mxu0 0.0
    %2227 = vmatpush2.msra.mxu0 0.0
    %2228 = vmatprep.subr.mxu0 0.0
    %2229 = vmatpush2.msra.mxu0 0.0
    %2230 = vmatprep.subr.mxu0 0.0
    %2231 = vmatpush2.msra.mxu0 0.0
    %2232 = vmatprep.subr.mxu0 0.0
    %2233 = vmatpush2.msra.mxu0 0.0
    %2234 = vmatprep.subr.mxu0 0.0
    %2235 = vmatpush2.msra.mxu0 0.0
    %2236 = vmatprep.subr.mxu0 0.0
    %2237 = vmatpush2.msra.mxu0 0.0
    %2238 = vmatprep.subr.mxu0 0.0
    %2239 = vmatpush2.msra.mxu0 0.0
    %2240 = vmatprep.subr.mxu0 0.0
    %2241 = vmatpush2.msra.mxu0 0.0
    %2242 = vmatprep.subr.mxu0 0.0
    %2243 = vmatpush2.msra.mxu0 0.0
    %2244 = vmatprep.subr.mxu0 0.0
    %2245 = vmatpush2.msra.mxu0 0.0
    %2246 = vmatprep.subr.mxu0 0.0
    %2247 = vmatpush2.msra.mxu0 0.0
    %2248 = vmatprep.subr.mxu0 0.0
    %2249 = vmatpush2.msra.mxu0 0.0
    %2250 = vmatprep.subr.mxu0 0.0
    %2251 = vmatpush2.msra.mxu0 0.0
    %2252 = vmatprep.mubr.f32.mxu0 0.0
    %2253 = vmatmul.mubr.f32.gmra.mxu0 %v2174
    %v2254 = vpop.f32.mrf.mxu0
    %v2255 = vadd.f32 %v2098, %v2254
    %v2256 = vpop.f32.mrf.mxu0
    %v2257 = vadd.f32 %v2100, %v2256
    %2258 = vdwg.mxu0
    %2259 = vmatprep.subr.mxu0 0.0
    %2260 = vmatpush1.msra.mxu0 0.0
    %2261 = vmatprep.subr.mxu0 0.0
    %2262 = vmatpush1.msra.mxu0 0.0
    %2263 = vmatprep.subr.mxu0 0.0
    %2264 = vmatpush1.msra.mxu0 0.0
    %2265 = vmatprep.subr.mxu0 0.0
    %2266 = vmatpush1.msra.mxu0 0.0
    %2267 = vmatprep.subr.mxu0 0.0
    %2268 = vmatpush1.msra.mxu0 0.0
    %2269 = vmatprep.subr.mxu0 0.0
    %2270 = vmatpush1.msra.mxu0 0.0
    %2271 = vmatprep.subr.mxu0 0.0
    %2272 = vmatpush1.msra.mxu0 0.0
    %2273 = vmatprep.subr.mxu0 0.0
    %2274 = vmatpush1.msra.mxu0 0.0
    %2275 = vmatprep.subr.mxu0 0.0
    %2276 = vmatpush1.msra.mxu0 0.0
    %2277 = vmatprep.subr.mxu0 0.0
    %2278 = vmatpush1.msra.mxu0 0.0
    %2279 = vmatprep.subr.mxu0 0.0
    %2280 = vmatpush1.msra.mxu0 0.0
    %2281 = vmatprep.subr.mxu0 0.0
    %2282 = vmatpush1.msra.mxu0 0.0
    %2283 = vmatprep.subr.mxu0 0.0
    %2284 = vmatpush1.msra.mxu0 0.0
    %2285 = vmatprep.subr.mxu0 0.0
    %2286 = vmatpush1.msra.mxu0 0.0
    %2287 = vmatprep.subr.mxu0 0.0
    %2288 = vmatpush1.msra.mxu0 0.0
    %2289 = vmatprep.subr.mxu0 %v2186
    %2290 = vmatpush1.msra.mxu0 %v2183
    %2291 = vmatprep.subr.mxu0 0.0
    %2292 = vmatpush2.msra.mxu0 0.0
    %2293 = vmatprep.subr.mxu0 0.0
    %2294 = vmatpush2.msra.mxu0 0.0
    %2295 = vmatprep.subr.mxu0 0.0
    %2296 = vmatpush2.msra.mxu0 0.0
    %2297 = vmatprep.subr.mxu0 0.0
    %2298 = vmatpush2.msra.mxu0 0.0
    %2299 = vmatprep.subr.mxu0 0.0
    %2300 = vmatpush2.msra.mxu0 0.0
    %2301 = vmatprep.subr.mxu0 0.0
    %2302 = vmatpush2.msra.mxu0 0.0
    %2303 = vmatprep.subr.mxu0 0.0
    %2304 = vmatpush2.msra.mxu0 0.0
    %2305 = vmatprep.subr.mxu0 0.0
    %2306 = vmatpush2.msra.mxu0 0.0
    %2307 = vmatprep.subr.mxu0 0.0
    %2308 = vmatpush2.msra.mxu0 0.0
    %2309 = vmatprep.subr.mxu0 0.0
    %2310 = vmatpush2.msra.mxu0 0.0
    %2311 = vmatprep.subr.mxu0 0.0
    %2312 = vmatpush2.msra.mxu0 0.0
    %2313 = vmatprep.subr.mxu0 0.0
    %2314 = vmatpush2.msra.mxu0 0.0
    %2315 = vmatprep.subr.mxu0 0.0
    %2316 = vmatpush2.msra.mxu0 0.0
    %2317 = vmatprep.subr.mxu0 0.0
    %2318 = vmatpush2.msra.mxu0 0.0
    %2319 = vmatprep.subr.mxu0 0.0
    %2320 = vmatpush2.msra.mxu0 0.0
    %2321 = vmatprep.subr.mxu0 0.0
    %2322 = vmatpush2.msra.mxu0 0.0
    %2323 = vmatprep.mubr.f32.mxu0 0.0
    %2324 = vmatmul.mubr.f32.gmra.mxu0 %v2174
    %v2325 = vpop.f32.mrf.mxu0
    %v2326 = vadd.f32 %v2169, %v2325
    %v2327 = vpop.f32.mrf.mxu0
    %v2328 = vadd.f32 %v2171, %v2327
    %2329 = vdwg.mxu0
    %2330 = vrot.lane.b32.xlu0 %v1857, 15
    %v2331 = vpop.permute.xlu0 %2330
    %2332 = vrot.lane.b32.xlu0 %v1859, 15
    %v2333 = vpop.permute.xlu0 %2332
    %2334 = vrot.lane.b32.xlu0 %v1928, 15
    %v2335 = vpop.permute.xlu0 %2334
    %2336 = vrot.lane.b32.xlu0 %v1930, 15
    %v2337 = vpop.permute.xlu0 %2336
    %vm2338 = vcmp.lt.s32.totalorder %v1941, 15
    %v2339 = vsel %vm2338, %v2335, %v2337
    %v2340 = vsel %vm2338, %v2333, %v2335
    %v2341 = vsel %vm2338, %v2331, %v2333
    %v2342 = vsel %vm2338, %v2337, %v2331
    %s2343 = scalar_lea.vmem %s14, 8
    %v2344 = vld [vmem:[%s2343] sm:$0xf]
    %v2346 = vlaneseq
    %v2347 = vshrl.u32 %v2346, 7
    %v2348 = vsub.s32 0, %v2347
    %v2349 = vrot.slane %v2344, %v2348
    %v2350 = vlaneseq
    %v2351 = vshrl.u32 %v2350, 7
    %v2352 = vsub.s32 1, %v2351
    %v2353 = vrot.slane %v2344, %v2352
    %v2354 = vlaneseq
    %v2355 = vshrl.u32 %v2354, 7
    %v2356 = vsub.s32 2, %v2355
    %v2357 = vrot.slane %v2344, %v2356
    %v2358 = vlaneseq
    %v2359 = vshrl.u32 %v2358, 7
    %v2360 = vsub.s32 3, %v2359
    %v2361 = vrot.slane %v2344, %v2360
    %v2366 = vmul.f32 %v2342, %v2349
    %v2367 = vmul.f32 %v2341, %v2353
    %v2368 = vmul.f32 %v2340, %v2357
    %v2369 = vmul.f32 %v2339, %v2361
    %s2370 = scalar_lea.vmem %s5, 8
    %v2371 = vld [vmem:[%s2370] sm:$0xf]
    %v2373 = vsel %vm200, %v2371, 0
    %v2376 = vsel %vm204, %v2366, 0
    %v2379 = vsel %vm204, %v2367, 0
    %v2382 = vsel %vm204, %v2368, 0
    %v2385 = vsel %vm204, %v2369, 0
    %2387 = vmatprep.subr.mxu0 0.0
    %2388 = vmatpush1.msra.mxu0 0.0
    %2389 = vmatprep.subr.mxu0 0.0
    %2390 = vmatpush1.msra.mxu0 0.0
    %2391 = vmatprep.subr.mxu0 0.0
    %2392 = vmatpush1.msra.mxu0 0.0
    %2393 = vmatprep.subr.mxu0 0.0
    %2394 = vmatpush1.msra.mxu0 0.0
    %2395 = vmatprep.subr.mxu0 0.0
    %2396 = vmatpush1.msra.mxu0 0.0
    %2397 = vmatprep.subr.mxu0 0.0
    %2398 = vmatpush1.msra.mxu0 0.0
    %2399 = vmatprep.subr.mxu0 0.0
    %2400 = vmatpush1.msra.mxu0 0.0
    %2401 = vmatprep.subr.mxu0 0.0
    %2402 = vmatpush1.msra.mxu0 0.0
    %2403 = vmatprep.subr.mxu0 0.0
    %2404 = vmatpush1.msra.mxu0 0.0
    %2405 = vmatprep.subr.mxu0 0.0
    %2406 = vmatpush1.msra.mxu0 0.0
    %2407 = vmatprep.subr.mxu0 0.0
    %2408 = vmatpush1.msra.mxu0 0.0
    %2409 = vmatprep.subr.mxu0 0.0
    %2410 = vmatpush1.msra.mxu0 0.0
    %2411 = vmatprep.subr.mxu0 0.0
    %2412 = vmatpush1.msra.mxu0 0.0
    %2413 = vmatprep.subr.mxu0 0.0
    %2414 = vmatpush1.msra.mxu0 0.0
    %2415 = vmatprep.subr.mxu0 0.0
    %2416 = vmatpush1.msra.mxu0 0.0
    %2417 = vmatprep.subr.mxu0 %v2379
    %2418 = vmatpush1.msra.mxu0 %v2376
    %2419 = vmatprep.subr.mxu0 0.0
    %2420 = vmatpush2.msra.mxu0 0.0
    %2421 = vmatprep.subr.mxu0 0.0
    %2422 = vmatpush2.msra.mxu0 0.0
    %2423 = vmatprep.subr.mxu0 0.0
    %2424 = vmatpush2.msra.mxu0 0.0
    %2425 = vmatprep.subr.mxu0 0.0
    %2426 = vmatpush2.msra.mxu0 0.0
    %2427 = vmatprep.subr.mxu0 0.0
    %2428 = vmatpush2.msra.mxu0 0.0
    %2429 = vmatprep.subr.mxu0 0.0
    %2430 = vmatpush2.msra.mxu0 0.0
    %2431 = vmatprep.subr.mxu0 0.0
    %2432 = vmatpush2.msra.mxu0 0.0
    %2433 = vmatprep.subr.mxu0 0.0
    %2434 = vmatpush2.msra.mxu0 0.0
    %2435 = vmatprep.subr.mxu0 0.0
    %2436 = vmatpush2.msra.mxu0 0.0
    %2437 = vmatprep.subr.mxu0 0.0
    %2438 = vmatpush2.msra.mxu0 0.0
    %2439 = vmatprep.subr.mxu0 0.0
    %2440 = vmatpush2.msra.mxu0 0.0
    %2441 = vmatprep.subr.mxu0 0.0
    %2442 = vmatpush2.msra.mxu0 0.0
    %2443 = vmatprep.subr.mxu0 0.0
    %2444 = vmatpush2.msra.mxu0 0.0
    %2445 = vmatprep.subr.mxu0 0.0
    %2446 = vmatpush2.msra.mxu0 0.0
    %2447 = vmatprep.subr.mxu0 0.0
    %2448 = vmatpush2.msra.mxu0 0.0
    %2449 = vmatprep.subr.mxu0 0.0
    %2450 = vmatpush2.msra.mxu0 0.0
    %2451 = vmatprep.mubr.f32.mxu0 0.0
    %2452 = vmatmul.mubr.f32.gmra.mxu0 %v2373
    %v2453 = vpop.f32.mrf.mxu0
    %v2454 = vadd.f32 0.0, %v2453
    %v2455 = vpop.f32.mrf.mxu0
    %v2456 = vadd.f32 0.0, %v2455
    %2457 = vdwg.mxu0
    %2458 = vmatprep.subr.mxu0 0.0
    %2459 = vmatpush1.msra.mxu0 0.0
    %2460 = vmatprep.subr.mxu0 0.0
    %2461 = vmatpush1.msra.mxu0 0.0
    %2462 = vmatprep.subr.mxu0 0.0
    %2463 = vmatpush1.msra.mxu0 0.0
    %2464 = vmatprep.subr.mxu0 0.0
    %2465 = vmatpush1.msra.mxu0 0.0
    %2466 = vmatprep.subr.mxu0 0.0
    %2467 = vmatpush1.msra.mxu0 0.0
    %2468 = vmatprep.subr.mxu0 0.0
    %2469 = vmatpush1.msra.mxu0 0.0
    %2470 = vmatprep.subr.mxu0 0.0
    %2471 = vmatpush1.msra.mxu0 0.0
    %2472 = vmatprep.subr.mxu0 0.0
    %2473 = vmatpush1.msra.mxu0 0.0
    %2474 = vmatprep.subr.mxu0 0.0
    %2475 = vmatpush1.msra.mxu0 0.0
    %2476 = vmatprep.subr.mxu0 0.0
    %2477 = vmatpush1.msra.mxu0 0.0
    %2478 = vmatprep.subr.mxu0 0.0
    %2479 = vmatpush1.msra.mxu0 0.0
    %2480 = vmatprep.subr.mxu0 0.0
    %2481 = vmatpush1.msra.mxu0 0.0
    %2482 = vmatprep.subr.mxu0 0.0
    %2483 = vmatpush1.msra.mxu0 0.0
    %2484 = vmatprep.subr.mxu0 0.0
    %2485 = vmatpush1.msra.mxu0 0.0
    %2486 = vmatprep.subr.mxu0 0.0
    %2487 = vmatpush1.msra.mxu0 0.0
    %2488 = vmatprep.subr.mxu0 %v2385
    %2489 = vmatpush1.msra.mxu0 %v2382
    %2490 = vmatprep.subr.mxu0 0.0
    %2491 = vmatpush2.msra.mxu0 0.0
    %2492 = vmatprep.subr.mxu0 0.0
    %2493 = vmatpush2.msra.mxu0 0.0
    %2494 = vmatprep.subr.mxu0 0.0
    %2495 = vmatpush2.msra.mxu0 0.0
    %2496 = vmatprep.subr.mxu0 0.0
    %2497 = vmatpush2.msra.mxu0 0.0
    %2498 = vmatprep.subr.mxu0 0.0
    %2499 = vmatpush2.msra.mxu0 0.0
    %2500 = vmatprep.subr.mxu0 0.0
    %2501 = vmatpush2.msra.mxu0 0.0
    %2502 = vmatprep.subr.mxu0 0.0
    %2503 = vmatpush2.msra.mxu0 0.0
    %2504 = vmatprep.subr.mxu0 0.0
    %2505 = vmatpush2.msra.mxu0 0.0
    %2506 = vmatprep.subr.mxu0 0.0
    %2507 = vmatpush2.msra.mxu0 0.0
    %2508 = vmatprep.subr.mxu0 0.0
    %2509 = vmatpush2.msra.mxu0 0.0
    %2510 = vmatprep.subr.mxu0 0.0
    %2511 = vmatpush2.msra.mxu0 0.0
    %2512 = vmatprep.subr.mxu0 0.0
    %2513 = vmatpush2.msra.mxu0 0.0
    %2514 = vmatprep.subr.mxu0 0.0
    %2515 = vmatpush2.msra.mxu0 0.0
    %2516 = vmatprep.subr.mxu0 0.0
    %2517 = vmatpush2.msra.mxu0 0.0
    %2518 = vmatprep.subr.mxu0 0.0
    %2519 = vmatpush2.msra.mxu0 0.0
    %2520 = vmatprep.subr.mxu0 0.0
    %2521 = vmatpush2.msra.mxu0 0.0
    %2522 = vmatprep.mubr.f32.mxu0 0.0
    %2523 = vmatmul.mubr.f32.gmra.mxu0 %v2373
    %v2524 = vpop.f32.mrf.mxu0
    %v2525 = vadd.f32 0.0, %v2524
    %v2526 = vpop.f32.mrf.mxu0
    %v2527 = vadd.f32 0.0, %v2526
    %2528 = vdwg.mxu0
    %v2529 = vadd.f32 %v2255, %v2454
    %v2530 = vadd.f32 %v2257, %v2456
    %v2531 = vadd.f32 %v2326, %v2525
    %v2532 = vadd.f32 %v2328, %v2527
    %2533 = vrot.lane.b32.xlu0 %v1857, 1
    %v2534 = vpop.permute.xlu0 %2533
    %2535 = vrot.lane.b32.xlu0 %v1859, 1
    %v2536 = vpop.permute.xlu0 %2535
    %2537 = vrot.lane.b32.xlu0 %v1928, 1
    %v2538 = vpop.permute.xlu0 %2537
    %2539 = vrot.lane.b32.xlu0 %v1930, 1
    %v2540 = vpop.permute.xlu0 %2539
    %vm2541 = vcmp.lt.s32.totalorder %v1941, 1
    %v2542 = vsel %vm2541, %v2538, %v2540
    %v2543 = vsel %vm2541, %v2536, %v2538
    %v2544 = vsel %vm2541, %v2534, %v2536
    %v2545 = vsel %vm2541, %v2540, %v2534
    %s2546 = scalar_lea.vmem %s14, 12
    %v2547 = vld [vmem:[%s2546] sm:$0xf]
    %v2549 = vlaneseq
    %v2550 = vshrl.u32 %v2549, 7
    %v2551 = vsub.s32 0, %v2550
    %v2552 = vrot.slane %v2547, %v2551
    %v2553 = vlaneseq
    %v2554 = vshrl.u32 %v2553, 7
    %v2555 = vsub.s32 1, %v2554
    %v2556 = vrot.slane %v2547, %v2555
    %v2557 = vlaneseq
    %v2558 = vshrl.u32 %v2557, 7
    %v2559 = vsub.s32 2, %v2558
    %v2560 = vrot.slane %v2547, %v2559
    %v2561 = vlaneseq
    %v2562 = vshrl.u32 %v2561, 7
    %v2563 = vsub.s32 3, %v2562
    %v2564 = vrot.slane %v2547, %v2563
    %v2569 = vmul.f32 %v2545, %v2552
    %v2570 = vmul.f32 %v2544, %v2556
    %v2571 = vmul.f32 %v2543, %v2560
    %v2572 = vmul.f32 %v2542, %v2564
    %s2573 = scalar_lea.vmem %s5, 12
    %v2574 = vld [vmem:[%s2573] sm:$0xf]
    %v2576 = vsel %vm200, %v2574, 0
    %v2579 = vsel %vm204, %v2569, 0
    %v2582 = vsel %vm204, %v2570, 0
    %v2585 = vsel %vm204, %v2571, 0
    %v2588 = vsel %vm204, %v2572, 0
    %2590 = vmatprep.subr.mxu0 0.0
    %2591 = vmatpush1.msra.mxu0 0.0
    %2592 = vmatprep.subr.mxu0 0.0
    %2593 = vmatpush1.msra.mxu0 0.0
    %2594 = vmatprep.subr.mxu0 0.0
    %2595 = vmatpush1.msra.mxu0 0.0
    %2596 = vmatprep.subr.mxu0 0.0
    %2597 = vmatpush1.msra.mxu0 0.0
    %2598 = vmatprep.subr.mxu0 0.0
    %2599 = vmatpush1.msra.mxu0 0.0
    %2600 = vmatprep.subr.mxu0 0.0
    %2601 = vmatpush1.msra.mxu0 0.0
    %2602 = vmatprep.subr.mxu0 0.0
    %2603 = vmatpush1.msra.mxu0 0.0
    %2604 = vmatprep.subr.mxu0 0.0
    %2605 = vmatpush1.msra.mxu0 0.0
    %2606 = vmatprep.subr.mxu0 0.0
    %2607 = vmatpush1.msra.mxu0 0.0
    %2608 = vmatprep.subr.mxu0 0.0
    %2609 = vmatpush1.msra.mxu0 0.0
    %2610 = vmatprep.subr.mxu0 0.0
    %2611 = vmatpush1.msra.mxu0 0.0
    %2612 = vmatprep.subr.mxu0 0.0
    %2613 = vmatpush1.msra.mxu0 0.0
    %2614 = vmatprep.subr.mxu0 0.0
    %2615 = vmatpush1.msra.mxu0 0.0
    %2616 = vmatprep.subr.mxu0 0.0
    %2617 = vmatpush1.msra.mxu0 0.0
    %2618 = vmatprep.subr.mxu0 0.0
    %2619 = vmatpush1.msra.mxu0 0.0
    %2620 = vmatprep.subr.mxu0 %v2582
    %2621 = vmatpush1.msra.mxu0 %v2579
    %2622 = vmatprep.subr.mxu0 0.0
    %2623 = vmatpush2.msra.mxu0 0.0
    %2624 = vmatprep.subr.mxu0 0.0
    %2625 = vmatpush2.msra.mxu0 0.0
    %2626 = vmatprep.subr.mxu0 0.0
    %2627 = vmatpush2.msra.mxu0 0.0
    %2628 = vmatprep.subr.mxu0 0.0
    %2629 = vmatpush2.msra.mxu0 0.0
    %2630 = vmatprep.subr.mxu0 0.0
    %2631 = vmatpush2.msra.mxu0 0.0
    %2632 = vmatprep.subr.mxu0 0.0
    %2633 = vmatpush2.msra.mxu0 0.0
    %2634 = vmatprep.subr.mxu0 0.0
    %2635 = vmatpush2.msra.mxu0 0.0
    %2636 = vmatprep.subr.mxu0 0.0
    %2637 = vmatpush2.msra.mxu0 0.0
    %2638 = vmatprep.subr.mxu0 0.0
    %2639 = vmatpush2.msra.mxu0 0.0
    %2640 = vmatprep.subr.mxu0 0.0
    %2641 = vmatpush2.msra.mxu0 0.0
    %2642 = vmatprep.subr.mxu0 0.0
    %2643 = vmatpush2.msra.mxu0 0.0
    %2644 = vmatprep.subr.mxu0 0.0
    %2645 = vmatpush2.msra.mxu0 0.0
    %2646 = vmatprep.subr.mxu0 0.0
    %2647 = vmatpush2.msra.mxu0 0.0
    %2648 = vmatprep.subr.mxu0 0.0
    %2649 = vmatpush2.msra.mxu0 0.0
    %2650 = vmatprep.subr.mxu0 0.0
    %2651 = vmatpush2.msra.mxu0 0.0
    %2652 = vmatprep.subr.mxu0 0.0
    %2653 = vmatpush2.msra.mxu0 0.0
    %2654 = vmatprep.mubr.f32.mxu0 0.0
    %2655 = vmatmul.mubr.f32.gmra.mxu0 %v2576
    %v2656 = vpop.f32.mrf.mxu0
    %v2657 = vadd.f32 0.0, %v2656
    %v2658 = vpop.f32.mrf.mxu0
    %v2659 = vadd.f32 0.0, %v2658
    %2660 = vdwg.mxu0
    %2661 = vmatprep.subr.mxu0 0.0
    %2662 = vmatpush1.msra.mxu0 0.0
    %2663 = vmatprep.subr.mxu0 0.0
    %2664 = vmatpush1.msra.mxu0 0.0
    %2665 = vmatprep.subr.mxu0 0.0
    %2666 = vmatpush1.msra.mxu0 0.0
    %2667 = vmatprep.subr.mxu0 0.0
    %2668 = vmatpush1.msra.mxu0 0.0
    %2669 = vmatprep.subr.mxu0 0.0
    %2670 = vmatpush1.msra.mxu0 0.0
    %2671 = vmatprep.subr.mxu0 0.0
    %2672 = vmatpush1.msra.mxu0 0.0
    %2673 = vmatprep.subr.mxu0 0.0
    %2674 = vmatpush1.msra.mxu0 0.0
    %2675 = vmatprep.subr.mxu0 0.0
    %2676 = vmatpush1.msra.mxu0 0.0
    %2677 = vmatprep.subr.mxu0 0.0
    %2678 = vmatpush1.msra.mxu0 0.0
    %2679 = vmatprep.subr.mxu0 0.0
    %2680 = vmatpush1.msra.mxu0 0.0
    %2681 = vmatprep.subr.mxu0 0.0
    %2682 = vmatpush1.msra.mxu0 0.0
    %2683 = vmatprep.subr.mxu0 0.0
    %2684 = vmatpush1.msra.mxu0 0.0
    %2685 = vmatprep.subr.mxu0 0.0
    %2686 = vmatpush1.msra.mxu0 0.0
    %2687 = vmatprep.subr.mxu0 0.0
    %2688 = vmatpush1.msra.mxu0 0.0
    %2689 = vmatprep.subr.mxu0 0.0
    %2690 = vmatpush1.msra.mxu0 0.0
    %2691 = vmatprep.subr.mxu0 %v2588
    %2692 = vmatpush1.msra.mxu0 %v2585
    %2693 = vmatprep.subr.mxu0 0.0
    %2694 = vmatpush2.msra.mxu0 0.0
    %2695 = vmatprep.subr.mxu0 0.0
    %2696 = vmatpush2.msra.mxu0 0.0
    %2697 = vmatprep.subr.mxu0 0.0
    %2698 = vmatpush2.msra.mxu0 0.0
    %2699 = vmatprep.subr.mxu0 0.0
    %2700 = vmatpush2.msra.mxu0 0.0
    %2701 = vmatprep.subr.mxu0 0.0
    %2702 = vmatpush2.msra.mxu0 0.0
    %2703 = vmatprep.subr.mxu0 0.0
    %2704 = vmatpush2.msra.mxu0 0.0
    %2705 = vmatprep.subr.mxu0 0.0
    %2706 = vmatpush2.msra.mxu0 0.0
    %2707 = vmatprep.subr.mxu0 0.0
    %2708 = vmatpush2.msra.mxu0 0.0
    %2709 = vmatprep.subr.mxu0 0.0
    %2710 = vmatpush2.msra.mxu0 0.0
    %2711 = vmatprep.subr.mxu0 0.0
    %2712 = vmatpush2.msra.mxu0 0.0
    %2713 = vmatprep.subr.mxu0 0.0
    %2714 = vmatpush2.msra.mxu0 0.0
    %2715 = vmatprep.subr.mxu0 0.0
    %2716 = vmatpush2.msra.mxu0 0.0
    %2717 = vmatprep.subr.mxu0 0.0
    %2718 = vmatpush2.msra.mxu0 0.0
    %2719 = vmatprep.subr.mxu0 0.0
    %2720 = vmatpush2.msra.mxu0 0.0
    %2721 = vmatprep.subr.mxu0 0.0
    %2722 = vmatpush2.msra.mxu0 0.0
    %2723 = vmatprep.subr.mxu0 0.0
    %2724 = vmatpush2.msra.mxu0 0.0
    %2725 = vmatprep.mubr.f32.mxu0 0.0
    %2726 = vmatmul.mubr.f32.gmra.mxu0 %v2576
    %v2727 = vpop.f32.mrf.mxu0
    %v2728 = vadd.f32 0.0, %v2727
    %v2729 = vpop.f32.mrf.mxu0
    %v2730 = vadd.f32 0.0, %v2729
    %2731 = vdwg.mxu0
    %v2732 = vadd.f32 %v2529, %v2657
    %v2733 = vadd.f32 %v2530, %v2659
    %v2734 = vadd.f32 %v2531, %v2728
    %v2735 = vadd.f32 %v2532, %v2730
    %s2736 = scalar_lea.vmem %s5, 16
    %v2737 = vld [vmem:[%s2736] sm:$0xf]
    %v2739 = vsel %vm200, %v2737, 0
    %v2742 = vsel %vm204, %v1857, 0
    %v2745 = vsel %vm204, %v1859, 0
    %v2748 = vsel %vm204, %v1928, 0
    %v2751 = vsel %vm204, %v1930, 0
    %2753 = vmatprep.subr.mxu0 0.0
    %2754 = vmatpush1.msra.mxu0 0.0
    %2755 = vmatprep.subr.mxu0 0.0
    %2756 = vmatpush1.msra.mxu0 0.0
    %2757 = vmatprep.subr.mxu0 0.0
    %2758 = vmatpush1.msra.mxu0 0.0
    %2759 = vmatprep.subr.mxu0 0.0
    %2760 = vmatpush1.msra.mxu0 0.0
    %2761 = vmatprep.subr.mxu0 0.0
    %2762 = vmatpush1.msra.mxu0 0.0
    %2763 = vmatprep.subr.mxu0 0.0
    %2764 = vmatpush1.msra.mxu0 0.0
    %2765 = vmatprep.subr.mxu0 0.0
    %2766 = vmatpush1.msra.mxu0 0.0
    %2767 = vmatprep.subr.mxu0 0.0
    %2768 = vmatpush1.msra.mxu0 0.0
    %2769 = vmatprep.subr.mxu0 0.0
    %2770 = vmatpush1.msra.mxu0 0.0
    %2771 = vmatprep.subr.mxu0 0.0
    %2772 = vmatpush1.msra.mxu0 0.0
    %2773 = vmatprep.subr.mxu0 0.0
    %2774 = vmatpush1.msra.mxu0 0.0
    %2775 = vmatprep.subr.mxu0 0.0
    %2776 = vmatpush1.msra.mxu0 0.0
    %2777 = vmatprep.subr.mxu0 0.0
    %2778 = vmatpush1.msra.mxu0 0.0
    %2779 = vmatprep.subr.mxu0 0.0
    %2780 = vmatpush1.msra.mxu0 0.0
    %2781 = vmatprep.subr.mxu0 0.0
    %2782 = vmatpush1.msra.mxu0 0.0
    %2783 = vmatprep.subr.mxu0 %v2745
    %2784 = vmatpush1.msra.mxu0 %v2742
    %2785 = vmatprep.subr.mxu0 0.0
    %2786 = vmatpush2.msra.mxu0 0.0
    %2787 = vmatprep.subr.mxu0 0.0
    %2788 = vmatpush2.msra.mxu0 0.0
    %2789 = vmatprep.subr.mxu0 0.0
    %2790 = vmatpush2.msra.mxu0 0.0
    %2791 = vmatprep.subr.mxu0 0.0
    %2792 = vmatpush2.msra.mxu0 0.0
    %2793 = vmatprep.subr.mxu0 0.0
    %2794 = vmatpush2.msra.mxu0 0.0
    %2795 = vmatprep.subr.mxu0 0.0
    %2796 = vmatpush2.msra.mxu0 0.0
    %2797 = vmatprep.subr.mxu0 0.0
    %2798 = vmatpush2.msra.mxu0 0.0
    %2799 = vmatprep.subr.mxu0 0.0
    %2800 = vmatpush2.msra.mxu0 0.0
    %2801 = vmatprep.subr.mxu0 0.0
    %2802 = vmatpush2.msra.mxu0 0.0
    %2803 = vmatprep.subr.mxu0 0.0
    %2804 = vmatpush2.msra.mxu0 0.0
    %2805 = vmatprep.subr.mxu0 0.0
    %2806 = vmatpush2.msra.mxu0 0.0
    %2807 = vmatprep.subr.mxu0 0.0
    %2808 = vmatpush2.msra.mxu0 0.0
    %2809 = vmatprep.subr.mxu0 0.0
    %2810 = vmatpush2.msra.mxu0 0.0
    %2811 = vmatprep.subr.mxu0 0.0
    %2812 = vmatpush2.msra.mxu0 0.0
    %2813 = vmatprep.subr.mxu0 0.0
    %2814 = vmatpush2.msra.mxu0 0.0
    %2815 = vmatprep.subr.mxu0 0.0
    %2816 = vmatpush2.msra.mxu0 0.0
    %2817 = vmatprep.mubr.f32.mxu0 0.0
    %2818 = vmatmul.mubr.f32.gmra.mxu0 %v2739
    %v2819 = vpop.f32.mrf.mxu0
    %v2820 = vadd.f32 0.0, %v2819
    %v2821 = vpop.f32.mrf.mxu0
    %v2822 = vadd.f32 0.0, %v2821
    %2823 = vdwg.mxu0
    %2824 = vmatprep.subr.mxu0 0.0
    %2825 = vmatpush1.msra.mxu0 0.0
    %2826 = vmatprep.subr.mxu0 0.0
    %2827 = vmatpush1.msra.mxu0 0.0
    %2828 = vmatprep.subr.mxu0 0.0
    %2829 = vmatpush1.msra.mxu0 0.0
    %2830 = vmatprep.subr.mxu0 0.0
    %2831 = vmatpush1.msra.mxu0 0.0
    %2832 = vmatprep.subr.mxu0 0.0
    %2833 = vmatpush1.msra.mxu0 0.0
    %2834 = vmatprep.subr.mxu0 0.0
    %2835 = vmatpush1.msra.mxu0 0.0
    %2836 = vmatprep.subr.mxu0 0.0
    %2837 = vmatpush1.msra.mxu0 0.0
    %2838 = vmatprep.subr.mxu0 0.0
    %2839 = vmatpush1.msra.mxu0 0.0
    %2840 = vmatprep.subr.mxu0 0.0
    %2841 = vmatpush1.msra.mxu0 0.0
    %2842 = vmatprep.subr.mxu0 0.0
    %2843 = vmatpush1.msra.mxu0 0.0
    %2844 = vmatprep.subr.mxu0 0.0
    %2845 = vmatpush1.msra.mxu0 0.0
    %2846 = vmatprep.subr.mxu0 0.0
    %2847 = vmatpush1.msra.mxu0 0.0
    %2848 = vmatprep.subr.mxu0 0.0
    %2849 = vmatpush1.msra.mxu0 0.0
    %2850 = vmatprep.subr.mxu0 0.0
    %2851 = vmatpush1.msra.mxu0 0.0
    %2852 = vmatprep.subr.mxu0 0.0
    %2853 = vmatpush1.msra.mxu0 0.0
    %2854 = vmatprep.subr.mxu0 %v2751
    %2855 = vmatpush1.msra.mxu0 %v2748
    %2856 = vmatprep.subr.mxu0 0.0
    %2857 = vmatpush2.msra.mxu0 0.0
    %2858 = vmatprep.subr.mxu0 0.0
    %2859 = vmatpush2.msra.mxu0 0.0
    %2860 = vmatprep.subr.mxu0 0.0
    %2861 = vmatpush2.msra.mxu0 0.0
    %2862 = vmatprep.subr.mxu0 0.0
    %2863 = vmatpush2.msra.mxu0 0.0
    %2864 = vmatprep.subr.mxu0 0.0
    %2865 = vmatpush2.msra.mxu0 0.0
    %2866 = vmatprep.subr.mxu0 0.0
    %2867 = vmatpush2.msra.mxu0 0.0
    %2868 = vmatprep.subr.mxu0 0.0
    %2869 = vmatpush2.msra.mxu0 0.0
    %2870 = vmatprep.subr.mxu0 0.0
    %2871 = vmatpush2.msra.mxu0 0.0
    %2872 = vmatprep.subr.mxu0 0.0
    %2873 = vmatpush2.msra.mxu0 0.0
    %2874 = vmatprep.subr.mxu0 0.0
    %2875 = vmatpush2.msra.mxu0 0.0
    %2876 = vmatprep.subr.mxu0 0.0
    %2877 = vmatpush2.msra.mxu0 0.0
    %2878 = vmatprep.subr.mxu0 0.0
    %2879 = vmatpush2.msra.mxu0 0.0
    %2880 = vmatprep.subr.mxu0 0.0
    %2881 = vmatpush2.msra.mxu0 0.0
    %2882 = vmatprep.subr.mxu0 0.0
    %2883 = vmatpush2.msra.mxu0 0.0
    %2884 = vmatprep.subr.mxu0 0.0
    %2885 = vmatpush2.msra.mxu0 0.0
    %2886 = vmatprep.subr.mxu0 0.0
    %2887 = vmatpush2.msra.mxu0 0.0
    %2888 = vmatprep.mubr.f32.mxu0 0.0
    %2889 = vmatmul.mubr.f32.gmra.mxu0 %v2739
    %v2890 = vpop.f32.mrf.mxu0
    %v2891 = vadd.f32 0.0, %v2890
    %v2892 = vpop.f32.mrf.mxu0
    %v2893 = vadd.f32 0.0, %v2892
    %2894 = vdwg.mxu0
    %v2895 = vadd.f32 %v2732, %v2820
    %v2896 = vadd.f32 %v2733, %v2822
    %v2897 = vadd.f32 %v2734, %v2891
    %v2898 = vadd.f32 %v2735, %v2893
    %2899 = vrot.lane.b32.xlu0 %v1857, 127
    %v2900 = vpop.permute.xlu0 %2899
    %2901 = vrot.lane.b32.xlu0 %v1859, 127
    %v2902 = vpop.permute.xlu0 %2901
    %2903 = vrot.lane.b32.xlu0 %v1928, 127
    %v2904 = vpop.permute.xlu0 %2903
    %2905 = vrot.lane.b32.xlu0 %v1930, 127
    %v2906 = vpop.permute.xlu0 %2905
    %vm2907 = vcmp.lt.s32.totalorder %v1941, 127
    %v2908 = vsel %vm2907, %v2904, %v2906
    %v2909 = vsel %vm2907, %v2902, %v2904
    %v2910 = vsel %vm2907, %v2900, %v2902
    %v2911 = vsel %vm2907, %v2906, %v2900
    %s2912 = scalar_lea.vmem %s14, 20
    %v2913 = vld [vmem:[%s2912] sm:$0xf]
    %v2915 = vlaneseq
    %v2916 = vshrl.u32 %v2915, 7
    %v2917 = vsub.s32 0, %v2916
    %v2918 = vrot.slane %v2913, %v2917
    %v2919 = vlaneseq
    %v2920 = vshrl.u32 %v2919, 7
    %v2921 = vsub.s32 1, %v2920
    %v2922 = vrot.slane %v2913, %v2921
    %v2923 = vlaneseq
    %v2924 = vshrl.u32 %v2923, 7
    %v2925 = vsub.s32 2, %v2924
    %v2926 = vrot.slane %v2913, %v2925
    %v2927 = vlaneseq
    %v2928 = vshrl.u32 %v2927, 7
    %v2929 = vsub.s32 3, %v2928
    %v2930 = vrot.slane %v2913, %v2929
    %v2935 = vmul.f32 %v2910, %v2918
    %v2936 = vmul.f32 %v2909, %v2922
    %v2937 = vmul.f32 %v2908, %v2926
    %v2938 = vmul.f32 %v2911, %v2930
    %s2939 = scalar_lea.vmem %s5, 20
    %v2940 = vld [vmem:[%s2939] sm:$0xf]
    %v2942 = vsel %vm200, %v2940, 0
    %v2945 = vsel %vm204, %v2935, 0
    %v2948 = vsel %vm204, %v2936, 0
    %v2951 = vsel %vm204, %v2937, 0
    %v2954 = vsel %vm204, %v2938, 0
    %2956 = vmatprep.subr.mxu0 0.0
    %2957 = vmatpush1.msra.mxu0 0.0
    %2958 = vmatprep.subr.mxu0 0.0
    %2959 = vmatpush1.msra.mxu0 0.0
    %2960 = vmatprep.subr.mxu0 0.0
    %2961 = vmatpush1.msra.mxu0 0.0
    %2962 = vmatprep.subr.mxu0 0.0
    %2963 = vmatpush1.msra.mxu0 0.0
    %2964 = vmatprep.subr.mxu0 0.0
    %2965 = vmatpush1.msra.mxu0 0.0
    %2966 = vmatprep.subr.mxu0 0.0
    %2967 = vmatpush1.msra.mxu0 0.0
    %2968 = vmatprep.subr.mxu0 0.0
    %2969 = vmatpush1.msra.mxu0 0.0
    %2970 = vmatprep.subr.mxu0 0.0
    %2971 = vmatpush1.msra.mxu0 0.0
    %2972 = vmatprep.subr.mxu0 0.0
    %2973 = vmatpush1.msra.mxu0 0.0
    %2974 = vmatprep.subr.mxu0 0.0
    %2975 = vmatpush1.msra.mxu0 0.0
    %2976 = vmatprep.subr.mxu0 0.0
    %2977 = vmatpush1.msra.mxu0 0.0
    %2978 = vmatprep.subr.mxu0 0.0
    %2979 = vmatpush1.msra.mxu0 0.0
    %2980 = vmatprep.subr.mxu0 0.0
    %2981 = vmatpush1.msra.mxu0 0.0
    %2982 = vmatprep.subr.mxu0 0.0
    %2983 = vmatpush1.msra.mxu0 0.0
    %2984 = vmatprep.subr.mxu0 0.0
    %2985 = vmatpush1.msra.mxu0 0.0
    %2986 = vmatprep.subr.mxu0 %v2948
    %2987 = vmatpush1.msra.mxu0 %v2945
    %2988 = vmatprep.subr.mxu0 0.0
    %2989 = vmatpush2.msra.mxu0 0.0
    %2990 = vmatprep.subr.mxu0 0.0
    %2991 = vmatpush2.msra.mxu0 0.0
    %2992 = vmatprep.subr.mxu0 0.0
    %2993 = vmatpush2.msra.mxu0 0.0
    %2994 = vmatprep.subr.mxu0 0.0
    %2995 = vmatpush2.msra.mxu0 0.0
    %2996 = vmatprep.subr.mxu0 0.0
    %2997 = vmatpush2.msra.mxu0 0.0
    %2998 = vmatprep.subr.mxu0 0.0
    %2999 = vmatpush2.msra.mxu0 0.0
    %3000 = vmatprep.subr.mxu0 0.0
    %3001 = vmatpush2.msra.mxu0 0.0
    %3002 = vmatprep.subr.mxu0 0.0
    %3003 = vmatpush2.msra.mxu0 0.0
    %3004 = vmatprep.subr.mxu0 0.0
    %3005 = vmatpush2.msra.mxu0 0.0
    %3006 = vmatprep.subr.mxu0 0.0
    %3007 = vmatpush2.msra.mxu0 0.0
    %3008 = vmatprep.subr.mxu0 0.0
    %3009 = vmatpush2.msra.mxu0 0.0
    %3010 = vmatprep.subr.mxu0 0.0
    %3011 = vmatpush2.msra.mxu0 0.0
    %3012 = vmatprep.subr.mxu0 0.0
    %3013 = vmatpush2.msra.mxu0 0.0
    %3014 = vmatprep.subr.mxu0 0.0
    %3015 = vmatpush2.msra.mxu0 0.0
    %3016 = vmatprep.subr.mxu0 0.0
    %3017 = vmatpush2.msra.mxu0 0.0
    %3018 = vmatprep.subr.mxu0 0.0
    %3019 = vmatpush2.msra.mxu0 0.0
    %3020 = vmatprep.mubr.f32.mxu0 0.0
    %3021 = vmatmul.mubr.f32.gmra.mxu0 %v2942
    %v3022 = vpop.f32.mrf.mxu0
    %v3023 = vadd.f32 0.0, %v3022
    %v3024 = vpop.f32.mrf.mxu0
    %v3025 = vadd.f32 0.0, %v3024
    %3026 = vdwg.mxu0
    %3027 = vmatprep.subr.mxu0 0.0
    %3028 = vmatpush1.msra.mxu0 0.0
    %3029 = vmatprep.subr.mxu0 0.0
    %3030 = vmatpush1.msra.mxu0 0.0
    %3031 = vmatprep.subr.mxu0 0.0
    %3032 = vmatpush1.msra.mxu0 0.0
    %3033 = vmatprep.subr.mxu0 0.0
    %3034 = vmatpush1.msra.mxu0 0.0
    %3035 = vmatprep.subr.mxu0 0.0
    %3036 = vmatpush1.msra.mxu0 0.0
    %3037 = vmatprep.subr.mxu0 0.0
    %3038 = vmatpush1.msra.mxu0 0.0
    %3039 = vmatprep.subr.mxu0 0.0
    %3040 = vmatpush1.msra.mxu0 0.0
    %3041 = vmatprep.subr.mxu0 0.0
    %3042 = vmatpush1.msra.mxu0 0.0
    %3043 = vmatprep.subr.mxu0 0.0
    %3044 = vmatpush1.msra.mxu0 0.0
    %3045 = vmatprep.subr.mxu0 0.0
    %3046 = vmatpush1.msra.mxu0 0.0
    %3047 = vmatprep.subr.mxu0 0.0
    %3048 = vmatpush1.msra.mxu0 0.0
    %3049 = vmatprep.subr.mxu0 0.0
    %3050 = vmatpush1.msra.mxu0 0.0
    %3051 = vmatprep.subr.mxu0 0.0
    %3052 = vmatpush1.msra.mxu0 0.0
    %3053 = vmatprep.subr.mxu0 0.0
    %3054 = vmatpush1.msra.mxu0 0.0
    %3055 = vmatprep.subr.mxu0 0.0
    %3056 = vmatpush1.msra.mxu0 0.0
    %3057 = vmatprep.subr.mxu0 %v2954
    %3058 = vmatpush1.msra.mxu0 %v2951
    %3059 = vmatprep.subr.mxu0 0.0
    %3060 = vmatpush2.msra.mxu0 0.0
    %3061 = vmatprep.subr.mxu0 0.0
    %3062 = vmatpush2.msra.mxu0 0.0
    %3063 = vmatprep.subr.mxu0 0.0
    %3064 = vmatpush2.msra.mxu0 0.0
    %3065 = vmatprep.subr.mxu0 0.0
    %3066 = vmatpush2.msra.mxu0 0.0
    %3067 = vmatprep.subr.mxu0 0.0
    %3068 = vmatpush2.msra.mxu0 0.0
    %3069 = vmatprep.subr.mxu0 0.0
    %3070 = vmatpush2.msra.mxu0 0.0
    %3071 = vmatprep.subr.mxu0 0.0
    %3072 = vmatpush2.msra.mxu0 0.0
    %3073 = vmatprep.subr.mxu0 0.0
    %3074 = vmatpush2.msra.mxu0 0.0
    %3075 = vmatprep.subr.mxu0 0.0
    %3076 = vmatpush2.msra.mxu0 0.0
    %3077 = vmatprep.subr.mxu0 0.0
    %3078 = vmatpush2.msra.mxu0 0.0
    %3079 = vmatprep.subr.mxu0 0.0
    %3080 = vmatpush2.msra.mxu0 0.0
    %3081 = vmatprep.subr.mxu0 0.0
    %3082 = vmatpush2.msra.mxu0 0.0
    %3083 = vmatprep.subr.mxu0 0.0
    %3084 = vmatpush2.msra.mxu0 0.0
    %3085 = vmatprep.subr.mxu0 0.0
    %3086 = vmatpush2.msra.mxu0 0.0
    %3087 = vmatprep.subr.mxu0 0.0
    %3088 = vmatpush2.msra.mxu0 0.0
    %3089 = vmatprep.subr.mxu0 0.0
    %3090 = vmatpush2.msra.mxu0 0.0
    %3091 = vmatprep.mubr.f32.mxu0 0.0
    %3092 = vmatmul.mubr.f32.gmra.mxu0 %v2942
    %v3093 = vpop.f32.mrf.mxu0
    %v3094 = vadd.f32 0.0, %v3093
    %v3095 = vpop.f32.mrf.mxu0
    %v3096 = vadd.f32 0.0, %v3095
    %3097 = vdwg.mxu0
    %v3098 = vadd.f32 %v2895, %v3023
    %v3099 = vadd.f32 %v2896, %v3025
    %v3100 = vadd.f32 %v2897, %v3094
    %v3101 = vadd.f32 %v2898, %v3096
    %3102 = vrot.lane.b32.xlu0 %v1857, 113
    %v3103 = vpop.permute.xlu0 %3102
    %3104 = vrot.lane.b32.xlu0 %v1859, 113
    %v3105 = vpop.permute.xlu0 %3104
    %3106 = vrot.lane.b32.xlu0 %v1928, 113
    %v3107 = vpop.permute.xlu0 %3106
    %3108 = vrot.lane.b32.xlu0 %v1930, 113
    %v3109 = vpop.permute.xlu0 %3108
    %vm3110 = vcmp.lt.s32.totalorder %v1941, 113
    %v3111 = vsel %vm3110, %v3107, %v3109
    %v3112 = vsel %vm3110, %v3105, %v3107
    %v3113 = vsel %vm3110, %v3103, %v3105
    %v3114 = vsel %vm3110, %v3109, %v3103
    %s3115 = scalar_lea.vmem %s14, 24
    %v3116 = vld [vmem:[%s3115] sm:$0xf]
    %v3118 = vlaneseq
    %v3119 = vshrl.u32 %v3118, 7
    %v3120 = vsub.s32 0, %v3119
    %v3121 = vrot.slane %v3116, %v3120
    %v3122 = vlaneseq
    %v3123 = vshrl.u32 %v3122, 7
    %v3124 = vsub.s32 1, %v3123
    %v3125 = vrot.slane %v3116, %v3124
    %v3126 = vlaneseq
    %v3127 = vshrl.u32 %v3126, 7
    %v3128 = vsub.s32 2, %v3127
    %v3129 = vrot.slane %v3116, %v3128
    %v3130 = vlaneseq
    %v3131 = vshrl.u32 %v3130, 7
    %v3132 = vsub.s32 3, %v3131
    %v3133 = vrot.slane %v3116, %v3132
    %v3138 = vmul.f32 %v3113, %v3121
    %v3139 = vmul.f32 %v3112, %v3125
    %v3140 = vmul.f32 %v3111, %v3129
    %v3141 = vmul.f32 %v3114, %v3133
    %s3142 = scalar_lea.vmem %s5, 24
    %v3143 = vld [vmem:[%s3142] sm:$0xf]
    %v3145 = vsel %vm200, %v3143, 0
    %v3148 = vsel %vm204, %v3138, 0
    %v3151 = vsel %vm204, %v3139, 0
    %v3154 = vsel %vm204, %v3140, 0
    %v3157 = vsel %vm204, %v3141, 0
    %3159 = vmatprep.subr.mxu0 0.0
    %3160 = vmatpush1.msra.mxu0 0.0
    %3161 = vmatprep.subr.mxu0 0.0
    %3162 = vmatpush1.msra.mxu0 0.0
    %3163 = vmatprep.subr.mxu0 0.0
    %3164 = vmatpush1.msra.mxu0 0.0
    %3165 = vmatprep.subr.mxu0 0.0
    %3166 = vmatpush1.msra.mxu0 0.0
    %3167 = vmatprep.subr.mxu0 0.0
    %3168 = vmatpush1.msra.mxu0 0.0
    %3169 = vmatprep.subr.mxu0 0.0
    %3170 = vmatpush1.msra.mxu0 0.0
    %3171 = vmatprep.subr.mxu0 0.0
    %3172 = vmatpush1.msra.mxu0 0.0
    %3173 = vmatprep.subr.mxu0 0.0
    %3174 = vmatpush1.msra.mxu0 0.0
    %3175 = vmatprep.subr.mxu0 0.0
    %3176 = vmatpush1.msra.mxu0 0.0
    %3177 = vmatprep.subr.mxu0 0.0
    %3178 = vmatpush1.msra.mxu0 0.0
    %3179 = vmatprep.subr.mxu0 0.0
    %3180 = vmatpush1.msra.mxu0 0.0
    %3181 = vmatprep.subr.mxu0 0.0
    %3182 = vmatpush1.msra.mxu0 0.0
    %3183 = vmatprep.subr.mxu0 0.0
    %3184 = vmatpush1.msra.mxu0 0.0
    %3185 = vmatprep.subr.mxu0 0.0
    %3186 = vmatpush1.msra.mxu0 0.0
    %3187 = vmatprep.subr.mxu0 0.0
    %3188 = vmatpush1.msra.mxu0 0.0
    %3189 = vmatprep.subr.mxu0 %v3151
    %3190 = vmatpush1.msra.mxu0 %v3148
    %3191 = vmatprep.subr.mxu0 0.0
    %3192 = vmatpush2.msra.mxu0 0.0
    %3193 = vmatprep.subr.mxu0 0.0
    %3194 = vmatpush2.msra.mxu0 0.0
    %3195 = vmatprep.subr.mxu0 0.0
    %3196 = vmatpush2.msra.mxu0 0.0
    %3197 = vmatprep.subr.mxu0 0.0
    %3198 = vmatpush2.msra.mxu0 0.0
    %3199 = vmatprep.subr.mxu0 0.0
    %3200 = vmatpush2.msra.mxu0 0.0
    %3201 = vmatprep.subr.mxu0 0.0
    %3202 = vmatpush2.msra.mxu0 0.0
    %3203 = vmatprep.subr.mxu0 0.0
    %3204 = vmatpush2.msra.mxu0 0.0
    %3205 = vmatprep.subr.mxu0 0.0
    %3206 = vmatpush2.msra.mxu0 0.0
    %3207 = vmatprep.subr.mxu0 0.0
    %3208 = vmatpush2.msra.mxu0 0.0
    %3209 = vmatprep.subr.mxu0 0.0
    %3210 = vmatpush2.msra.mxu0 0.0
    %3211 = vmatprep.subr.mxu0 0.0
    %3212 = vmatpush2.msra.mxu0 0.0
    %3213 = vmatprep.subr.mxu0 0.0
    %3214 = vmatpush2.msra.mxu0 0.0
    %3215 = vmatprep.subr.mxu0 0.0
    %3216 = vmatpush2.msra.mxu0 0.0
    %3217 = vmatprep.subr.mxu0 0.0
    %3218 = vmatpush2.msra.mxu0 0.0
    %3219 = vmatprep.subr.mxu0 0.0
    %3220 = vmatpush2.msra.mxu0 0.0
    %3221 = vmatprep.subr.mxu0 0.0
    %3222 = vmatpush2.msra.mxu0 0.0
    %3223 = vmatprep.mubr.f32.mxu0 0.0
    %3224 = vmatmul.mubr.f32.gmra.mxu0 %v3145
    %v3225 = vpop.f32.mrf.mxu0
    %v3226 = vadd.f32 0.0, %v3225
    %v3227 = vpop.f32.mrf.mxu0
    %v3228 = vadd.f32 0.0, %v3227
    %3229 = vdwg.mxu0
    %3230 = vmatprep.subr.mxu0 0.0
    %3231 = vmatpush1.msra.mxu0 0.0
    %3232 = vmatprep.subr.mxu0 0.0
    %3233 = vmatpush1.msra.mxu0 0.0
    %3234 = vmatprep.subr.mxu0 0.0
    %3235 = vmatpush1.msra.mxu0 0.0
    %3236 = vmatprep.subr.mxu0 0.0
    %3237 = vmatpush1.msra.mxu0 0.0
    %3238 = vmatprep.subr.mxu0 0.0
    %3239 = vmatpush1.msra.mxu0 0.0
    %3240 = vmatprep.subr.mxu0 0.0
    %3241 = vmatpush1.msra.mxu0 0.0
    %3242 = vmatprep.subr.mxu0 0.0
    %3243 = vmatpush1.msra.mxu0 0.0
    %3244 = vmatprep.subr.mxu0 0.0
    %3245 = vmatpush1.msra.mxu0 0.0
    %3246 = vmatprep.subr.mxu0 0.0
    %3247 = vmatpush1.msra.mxu0 0.0
    %3248 = vmatprep.subr.mxu0 0.0
    %3249 = vmatpush1.msra.mxu0 0.0
    %3250 = vmatprep.subr.mxu0 0.0
    %3251 = vmatpush1.msra.mxu0 0.0
    %3252 = vmatprep.subr.mxu0 0.0
    %3253 = vmatpush1.msra.mxu0 0.0
    %3254 = vmatprep.subr.mxu0 0.0
    %3255 = vmatpush1.msra.mxu0 0.0
    %3256 = vmatprep.subr.mxu0 0.0
    %3257 = vmatpush1.msra.mxu0 0.0
    %3258 = vmatprep.subr.mxu0 0.0
    %3259 = vmatpush1.msra.mxu0 0.0
    %3260 = vmatprep.subr.mxu0 %v3157
    %3261 = vmatpush1.msra.mxu0 %v3154
    %3262 = vmatprep.subr.mxu0 0.0
    %3263 = vmatpush2.msra.mxu0 0.0
    %3264 = vmatprep.subr.mxu0 0.0
    %3265 = vmatpush2.msra.mxu0 0.0
    %3266 = vmatprep.subr.mxu0 0.0
    %3267 = vmatpush2.msra.mxu0 0.0
    %3268 = vmatprep.subr.mxu0 0.0
    %3269 = vmatpush2.msra.mxu0 0.0
    %3270 = vmatprep.subr.mxu0 0.0
    %3271 = vmatpush2.msra.mxu0 0.0
    %3272 = vmatprep.subr.mxu0 0.0
    %3273 = vmatpush2.msra.mxu0 0.0
    %3274 = vmatprep.subr.mxu0 0.0
    %3275 = vmatpush2.msra.mxu0 0.0
    %3276 = vmatprep.subr.mxu0 0.0
    %3277 = vmatpush2.msra.mxu0 0.0
    %3278 = vmatprep.subr.mxu0 0.0
    %3279 = vmatpush2.msra.mxu0 0.0
    %3280 = vmatprep.subr.mxu0 0.0
    %3281 = vmatpush2.msra.mxu0 0.0
    %3282 = vmatprep.subr.mxu0 0.0
    %3283 = vmatpush2.msra.mxu0 0.0
    %3284 = vmatprep.subr.mxu0 0.0
    %3285 = vmatpush2.msra.mxu0 0.0
    %3286 = vmatprep.subr.mxu0 0.0
    %3287 = vmatpush2.msra.mxu0 0.0
    %3288 = vmatprep.subr.mxu0 0.0
    %3289 = vmatpush2.msra.mxu0 0.0
    %3290 = vmatprep.subr.mxu0 0.0
    %3291 = vmatpush2.msra.mxu0 0.0
    %3292 = vmatprep.subr.mxu0 0.0
    %3293 = vmatpush2.msra.mxu0 0.0
    %3294 = vmatprep.mubr.f32.mxu0 0.0
    %3295 = vmatmul.mubr.f32.gmra.mxu0 %v3145
    %v3296 = vpop.f32.mrf.mxu0
    %v3297 = vadd.f32 0.0, %v3296
    %v3298 = vpop.f32.mrf.mxu0
    %v3299 = vadd.f32 0.0, %v3298
    %3300 = vdwg.mxu0
    %v3301 = vadd.f32 %v3098, %v3226
    %v3302 = vadd.f32 %v3099, %v3228
    %v3303 = vadd.f32 %v3100, %v3297
    %v3304 = vadd.f32 %v3101, %v3299
    %3305 = vrot.lane.b32.xlu0 %v1857, 112
    %v3306 = vpop.permute.xlu0 %3305
    %3307 = vrot.lane.b32.xlu0 %v1859, 112
    %v3308 = vpop.permute.xlu0 %3307
    %3309 = vrot.lane.b32.xlu0 %v1928, 112
    %v3310 = vpop.permute.xlu0 %3309
    %3311 = vrot.lane.b32.xlu0 %v1930, 112
    %v3312 = vpop.permute.xlu0 %3311
    %vm3313 = vcmp.lt.s32.totalorder %v1941, 112
    %v3314 = vsel %vm3313, %v3310, %v3312
    %v3315 = vsel %vm3313, %v3308, %v3310
    %v3316 = vsel %vm3313, %v3306, %v3308
    %v3317 = vsel %vm3313, %v3312, %v3306
    %s3318 = scalar_lea.vmem %s14, 28
    %v3319 = vld [vmem:[%s3318] sm:$0xf]
    %v3321 = vlaneseq
    %v3322 = vshrl.u32 %v3321, 7
    %v3323 = vsub.s32 0, %v3322
    %v3324 = vrot.slane %v3319, %v3323
    %v3325 = vlaneseq
    %v3326 = vshrl.u32 %v3325, 7
    %v3327 = vsub.s32 1, %v3326
    %v3328 = vrot.slane %v3319, %v3327
    %v3329 = vlaneseq
    %v3330 = vshrl.u32 %v3329, 7
    %v3331 = vsub.s32 2, %v3330
    %v3332 = vrot.slane %v3319, %v3331
    %v3333 = vlaneseq
    %v3334 = vshrl.u32 %v3333, 7
    %v3335 = vsub.s32 3, %v3334
    %v3336 = vrot.slane %v3319, %v3335
    %v3341 = vmul.f32 %v3316, %v3324
    %v3342 = vmul.f32 %v3315, %v3328
    %v3343 = vmul.f32 %v3314, %v3332
    %v3344 = vmul.f32 %v3317, %v3336
    %s3345 = scalar_lea.vmem %s5, 28
    %v3346 = vld [vmem:[%s3345] sm:$0xf]
    %v3348 = vsel %vm200, %v3346, 0
    %v3351 = vsel %vm204, %v3341, 0
    %v3354 = vsel %vm204, %v3342, 0
    %v3357 = vsel %vm204, %v3343, 0
    %v3360 = vsel %vm204, %v3344, 0
    %3362 = vmatprep.subr.mxu0 0.0
    %3363 = vmatpush1.msra.mxu0 0.0
    %3364 = vmatprep.subr.mxu0 0.0
    %3365 = vmatpush1.msra.mxu0 0.0
    %3366 = vmatprep.subr.mxu0 0.0
    %3367 = vmatpush1.msra.mxu0 0.0
    %3368 = vmatprep.subr.mxu0 0.0
    %3369 = vmatpush1.msra.mxu0 0.0
    %3370 = vmatprep.subr.mxu0 0.0
    %3371 = vmatpush1.msra.mxu0 0.0
    %3372 = vmatprep.subr.mxu0 0.0
    %3373 = vmatpush1.msra.mxu0 0.0
    %3374 = vmatprep.subr.mxu0 0.0
    %3375 = vmatpush1.msra.mxu0 0.0
    %3376 = vmatprep.subr.mxu0 0.0
    %3377 = vmatpush1.msra.mxu0 0.0
    %3378 = vmatprep.subr.mxu0 0.0
    %3379 = vmatpush1.msra.mxu0 0.0
    %3380 = vmatprep.subr.mxu0 0.0
    %3381 = vmatpush1.msra.mxu0 0.0
    %3382 = vmatprep.subr.mxu0 0.0
    %3383 = vmatpush1.msra.mxu0 0.0
    %3384 = vmatprep.subr.mxu0 0.0
    %3385 = vmatpush1.msra.mxu0 0.0
    %3386 = vmatprep.subr.mxu0 0.0
    %3387 = vmatpush1.msra.mxu0 0.0
    %3388 = vmatprep.subr.mxu0 0.0
    %3389 = vmatpush1.msra.mxu0 0.0
    %3390 = vmatprep.subr.mxu0 0.0
    %3391 = vmatpush1.msra.mxu0 0.0
    %3392 = vmatprep.subr.mxu0 %v3354
    %3393 = vmatpush1.msra.mxu0 %v3351
    %3394 = vmatprep.subr.mxu0 0.0
    %3395 = vmatpush2.msra.mxu0 0.0
    %3396 = vmatprep.subr.mxu0 0.0
    %3397 = vmatpush2.msra.mxu0 0.0
    %3398 = vmatprep.subr.mxu0 0.0
    %3399 = vmatpush2.msra.mxu0 0.0
    %3400 = vmatprep.subr.mxu0 0.0
    %3401 = vmatpush2.msra.mxu0 0.0
    %3402 = vmatprep.subr.mxu0 0.0
    %3403 = vmatpush2.msra.mxu0 0.0
    %3404 = vmatprep.subr.mxu0 0.0
    %3405 = vmatpush2.msra.mxu0 0.0
    %3406 = vmatprep.subr.mxu0 0.0
    %3407 = vmatpush2.msra.mxu0 0.0
    %3408 = vmatprep.subr.mxu0 0.0
    %3409 = vmatpush2.msra.mxu0 0.0
    %3410 = vmatprep.subr.mxu0 0.0
    %3411 = vmatpush2.msra.mxu0 0.0
    %3412 = vmatprep.subr.mxu0 0.0
    %3413 = vmatpush2.msra.mxu0 0.0
    %3414 = vmatprep.subr.mxu0 0.0
    %3415 = vmatpush2.msra.mxu0 0.0
    %3416 = vmatprep.subr.mxu0 0.0
    %3417 = vmatpush2.msra.mxu0 0.0
    %3418 = vmatprep.subr.mxu0 0.0
    %3419 = vmatpush2.msra.mxu0 0.0
    %3420 = vmatprep.subr.mxu0 0.0
    %3421 = vmatpush2.msra.mxu0 0.0
    %3422 = vmatprep.subr.mxu0 0.0
    %3423 = vmatpush2.msra.mxu0 0.0
    %3424 = vmatprep.subr.mxu0 0.0
    %3425 = vmatpush2.msra.mxu0 0.0
    %3426 = vmatprep.mubr.f32.mxu0 0.0
    %3427 = vmatmul.mubr.f32.gmra.mxu0 %v3348
    %v3428 = vpop.f32.mrf.mxu0
    %v3429 = vadd.f32 0.0, %v3428
    %v3430 = vpop.f32.mrf.mxu0
    %v3431 = vadd.f32 0.0, %v3430
    %3432 = vdwg.mxu0
    %3433 = vmatprep.subr.mxu0 0.0
    %3434 = vmatpush1.msra.mxu0 0.0
    %3435 = vmatprep.subr.mxu0 0.0
    %3436 = vmatpush1.msra.mxu0 0.0
    %3437 = vmatprep.subr.mxu0 0.0
    %3438 = vmatpush1.msra.mxu0 0.0
    %3439 = vmatprep.subr.mxu0 0.0
    %3440 = vmatpush1.msra.mxu0 0.0
    %3441 = vmatprep.subr.mxu0 0.0
    %3442 = vmatpush1.msra.mxu0 0.0
    %3443 = vmatprep.subr.mxu0 0.0
    %3444 = vmatpush1.msra.mxu0 0.0
    %3445 = vmatprep.subr.mxu0 0.0
    %3446 = vmatpush1.msra.mxu0 0.0
    %3447 = vmatprep.subr.mxu0 0.0
    %3448 = vmatpush1.msra.mxu0 0.0
    %3449 = vmatprep.subr.mxu0 0.0
    %3450 = vmatpush1.msra.mxu0 0.0
    %3451 = vmatprep.subr.mxu0 0.0
    %3452 = vmatpush1.msra.mxu0 0.0
    %3453 = vmatprep.subr.mxu0 0.0
    %3454 = vmatpush1.msra.mxu0 0.0
    %3455 = vmatprep.subr.mxu0 0.0
    %3456 = vmatpush1.msra.mxu0 0.0
    %3457 = vmatprep.subr.mxu0 0.0
    %3458 = vmatpush1.msra.mxu0 0.0
    %3459 = vmatprep.subr.mxu0 0.0
    %3460 = vmatpush1.msra.mxu0 0.0
    %3461 = vmatprep.subr.mxu0 0.0
    %3462 = vmatpush1.msra.mxu0 0.0
    %3463 = vmatprep.subr.mxu0 %v3360
    %3464 = vmatpush1.msra.mxu0 %v3357
    %3465 = vmatprep.subr.mxu0 0.0
    %3466 = vmatpush2.msra.mxu0 0.0
    %3467 = vmatprep.subr.mxu0 0.0
    %3468 = vmatpush2.msra.mxu0 0.0
    %3469 = vmatprep.subr.mxu0 0.0
    %3470 = vmatpush2.msra.mxu0 0.0
    %3471 = vmatprep.subr.mxu0 0.0
    %3472 = vmatpush2.msra.mxu0 0.0
    %3473 = vmatprep.subr.mxu0 0.0
    %3474 = vmatpush2.msra.mxu0 0.0
    %3475 = vmatprep.subr.mxu0 0.0
    %3476 = vmatpush2.msra.mxu0 0.0
    %3477 = vmatprep.subr.mxu0 0.0
    %3478 = vmatpush2.msra.mxu0 0.0
    %3479 = vmatprep.subr.mxu0 0.0
    %3480 = vmatpush2.msra.mxu0 0.0
    %3481 = vmatprep.subr.mxu0 0.0
    %3482 = vmatpush2.msra.mxu0 0.0
    %3483 = vmatprep.subr.mxu0 0.0
    %3484 = vmatpush2.msra.mxu0 0.0
    %3485 = vmatprep.subr.mxu0 0.0
    %3486 = vmatpush2.msra.mxu0 0.0
    %3487 = vmatprep.subr.mxu0 0.0
    %3488 = vmatpush2.msra.mxu0 0.0
    %3489 = vmatprep.subr.mxu0 0.0
    %3490 = vmatpush2.msra.mxu0 0.0
    %3491 = vmatprep.subr.mxu0 0.0
    %3492 = vmatpush2.msra.mxu0 0.0
    %3493 = vmatprep.subr.mxu0 0.0
    %3494 = vmatpush2.msra.mxu0 0.0
    %3495 = vmatprep.subr.mxu0 0.0
    %3496 = vmatpush2.msra.mxu0 0.0
    %3497 = vmatprep.mubr.f32.mxu0 0.0
    %3498 = vmatmul.mubr.f32.gmra.mxu0 %v3348
    %v3499 = vpop.f32.mrf.mxu0
    %v3500 = vadd.f32 0.0, %v3499
    %v3501 = vpop.f32.mrf.mxu0
    %v3502 = vadd.f32 0.0, %v3501
    %3503 = vdwg.mxu0
    %v3504 = vadd.f32 %v3301, %v3429
    %v3505 = vadd.f32 %v3302, %v3431
    %v3506 = vadd.f32 %v3303, %v3500
    %v3507 = vadd.f32 %v3304, %v3502
    %3508 = vrot.lane.b32.xlu0 %v1857, 111
    %v3509 = vpop.permute.xlu0 %3508
    %3510 = vrot.lane.b32.xlu0 %v1859, 111
    %v3511 = vpop.permute.xlu0 %3510
    %3512 = vrot.lane.b32.xlu0 %v1928, 111
    %v3513 = vpop.permute.xlu0 %3512
    %3514 = vrot.lane.b32.xlu0 %v1930, 111
    %v3515 = vpop.permute.xlu0 %3514
    %vm3516 = vcmp.lt.s32.totalorder %v1941, 111
    %v3517 = vsel %vm3516, %v3513, %v3515
    %v3518 = vsel %vm3516, %v3511, %v3513
    %v3519 = vsel %vm3516, %v3509, %v3511
    %v3520 = vsel %vm3516, %v3515, %v3509
    %s3521 = scalar_lea.vmem %s14, 32
    %v3522 = vld [vmem:[%s3521] sm:$0xf]
    %v3524 = vlaneseq
    %v3525 = vshrl.u32 %v3524, 7
    %v3526 = vsub.s32 0, %v3525
    %v3527 = vrot.slane %v3522, %v3526
    %v3528 = vlaneseq
    %v3529 = vshrl.u32 %v3528, 7
    %v3530 = vsub.s32 1, %v3529
    %v3531 = vrot.slane %v3522, %v3530
    %v3532 = vlaneseq
    %v3533 = vshrl.u32 %v3532, 7
    %v3534 = vsub.s32 2, %v3533
    %v3535 = vrot.slane %v3522, %v3534
    %v3536 = vlaneseq
    %v3537 = vshrl.u32 %v3536, 7
    %v3538 = vsub.s32 3, %v3537
    %v3539 = vrot.slane %v3522, %v3538
    %v3544 = vmul.f32 %v3519, %v3527
    %v3545 = vmul.f32 %v3518, %v3531
    %v3546 = vmul.f32 %v3517, %v3535
    %v3547 = vmul.f32 %v3520, %v3539
    %s3548 = scalar_lea.vmem %s5, 32
    %v3549 = vld [vmem:[%s3548] sm:$0xf]
    %v3551 = vsel %vm200, %v3549, 0
    %v3554 = vsel %vm204, %v3544, 0
    %v3557 = vsel %vm204, %v3545, 0
    %v3560 = vsel %vm204, %v3546, 0
    %v3563 = vsel %vm204, %v3547, 0
    %3565 = vmatprep.subr.mxu0 0.0
    %3566 = vmatpush1.msra.mxu0 0.0
    %3567 = vmatprep.subr.mxu0 0.0
    %3568 = vmatpush1.msra.mxu0 0.0
    %3569 = vmatprep.subr.mxu0 0.0
    %3570 = vmatpush1.msra.mxu0 0.0
    %3571 = vmatprep.subr.mxu0 0.0
    %3572 = vmatpush1.msra.mxu0 0.0
    %3573 = vmatprep.subr.mxu0 0.0
    %3574 = vmatpush1.msra.mxu0 0.0
    %3575 = vmatprep.subr.mxu0 0.0
    %3576 = vmatpush1.msra.mxu0 0.0
    %3577 = vmatprep.subr.mxu0 0.0
    %3578 = vmatpush1.msra.mxu0 0.0
    %3579 = vmatprep.subr.mxu0 0.0
    %3580 = vmatpush1.msra.mxu0 0.0
    %3581 = vmatprep.subr.mxu0 0.0
    %3582 = vmatpush1.msra.mxu0 0.0
    %3583 = vmatprep.subr.mxu0 0.0
    %3584 = vmatpush1.msra.mxu0 0.0
    %3585 = vmatprep.subr.mxu0 0.0
    %3586 = vmatpush1.msra.mxu0 0.0
    %3587 = vmatprep.subr.mxu0 0.0
    %3588 = vmatpush1.msra.mxu0 0.0
    %3589 = vmatprep.subr.mxu0 0.0
    %3590 = vmatpush1.msra.mxu0 0.0
    %3591 = vmatprep.subr.mxu0 0.0
    %3592 = vmatpush1.msra.mxu0 0.0
    %3593 = vmatprep.subr.mxu0 0.0
    %3594 = vmatpush1.msra.mxu0 0.0
    %3595 = vmatprep.subr.mxu0 %v3557
    %3596 = vmatpush1.msra.mxu0 %v3554
    %3597 = vmatprep.subr.mxu0 0.0
    %3598 = vmatpush2.msra.mxu0 0.0
    %3599 = vmatprep.subr.mxu0 0.0
    %3600 = vmatpush2.msra.mxu0 0.0
    %3601 = vmatprep.subr.mxu0 0.0
    %3602 = vmatpush2.msra.mxu0 0.0
    %3603 = vmatprep.subr.mxu0 0.0
    %3604 = vmatpush2.msra.mxu0 0.0
    %3605 = vmatprep.subr.mxu0 0.0
    %3606 = vmatpush2.msra.mxu0 0.0
    %3607 = vmatprep.subr.mxu0 0.0
    %3608 = vmatpush2.msra.mxu0 0.0
    %3609 = vmatprep.subr.mxu0 0.0
    %3610 = vmatpush2.msra.mxu0 0.0
    %3611 = vmatprep.subr.mxu0 0.0
    %3612 = vmatpush2.msra.mxu0 0.0
    %3613 = vmatprep.subr.mxu0 0.0
    %3614 = vmatpush2.msra.mxu0 0.0
    %3615 = vmatprep.subr.mxu0 0.0
    %3616 = vmatpush2.msra.mxu0 0.0
    %3617 = vmatprep.subr.mxu0 0.0
    %3618 = vmatpush2.msra.mxu0 0.0
    %3619 = vmatprep.subr.mxu0 0.0
    %3620 = vmatpush2.msra.mxu0 0.0
    %3621 = vmatprep.subr.mxu0 0.0
    %3622 = vmatpush2.msra.mxu0 0.0
    %3623 = vmatprep.subr.mxu0 0.0
    %3624 = vmatpush2.msra.mxu0 0.0
    %3625 = vmatprep.subr.mxu0 0.0
    %3626 = vmatpush2.msra.mxu0 0.0
    %3627 = vmatprep.subr.mxu0 0.0
    %3628 = vmatpush2.msra.mxu0 0.0
    %3629 = vmatprep.mubr.f32.mxu0 0.0
    %3630 = vmatmul.mubr.f32.gmra.mxu0 %v3551
    %v3631 = vpop.f32.mrf.mxu0
    %v3632 = vadd.f32 0.0, %v3631
    %v3633 = vpop.f32.mrf.mxu0
    %v3634 = vadd.f32 0.0, %v3633
    %3635 = vdwg.mxu0
    %3636 = vmatprep.subr.mxu0 0.0
    %3637 = vmatpush1.msra.mxu0 0.0
    %3638 = vmatprep.subr.mxu0 0.0
    %3639 = vmatpush1.msra.mxu0 0.0
    %3640 = vmatprep.subr.mxu0 0.0
    %3641 = vmatpush1.msra.mxu0 0.0
    %3642 = vmatprep.subr.mxu0 0.0
    %3643 = vmatpush1.msra.mxu0 0.0
    %3644 = vmatprep.subr.mxu0 0.0
    %3645 = vmatpush1.msra.mxu0 0.0
    %3646 = vmatprep.subr.mxu0 0.0
    %3647 = vmatpush1.msra.mxu0 0.0
    %3648 = vmatprep.subr.mxu0 0.0
    %3649 = vmatpush1.msra.mxu0 0.0
    %3650 = vmatprep.subr.mxu0 0.0
    %3651 = vmatpush1.msra.mxu0 0.0
    %3652 = vmatprep.subr.mxu0 0.0
    %3653 = vmatpush1.msra.mxu0 0.0
    %3654 = vmatprep.subr.mxu0 0.0
    %3655 = vmatpush1.msra.mxu0 0.0
    %3656 = vmatprep.subr.mxu0 0.0
    %3657 = vmatpush1.msra.mxu0 0.0
    %3658 = vmatprep.subr.mxu0 0.0
    %3659 = vmatpush1.msra.mxu0 0.0
    %3660 = vmatprep.subr.mxu0 0.0
    %3661 = vmatpush1.msra.mxu0 0.0
    %3662 = vmatprep.subr.mxu0 0.0
    %3663 = vmatpush1.msra.mxu0 0.0
    %3664 = vmatprep.subr.mxu0 0.0
    %3665 = vmatpush1.msra.mxu0 0.0
    %3666 = vmatprep.subr.mxu0 %v3563
    %3667 = vmatpush1.msra.mxu0 %v3560
    %3668 = vmatprep.subr.mxu0 0.0
    %3669 = vmatpush2.msra.mxu0 0.0
    %3670 = vmatprep.subr.mxu0 0.0
    %3671 = vmatpush2.msra.mxu0 0.0
    %3672 = vmatprep.subr.mxu0 0.0
    %3673 = vmatpush2.msra.mxu0 0.0
    %3674 = vmatprep.subr.mxu0 0.0
    %3675 = vmatpush2.msra.mxu0 0.0
    %3676 = vmatprep.subr.mxu0 0.0
    %3677 = vmatpush2.msra.mxu0 0.0
    %3678 = vmatprep.subr.mxu0 0.0
    %3679 = vmatpush2.msra.mxu0 0.0
    %3680 = vmatprep.subr.mxu0 0.0
    %3681 = vmatpush2.msra.mxu0 0.0
    %3682 = vmatprep.subr.mxu0 0.0
    %3683 = vmatpush2.msra.mxu0 0.0
    %3684 = vmatprep.subr.mxu0 0.0
    %3685 = vmatpush2.msra.mxu0 0.0
    %3686 = vmatprep.subr.mxu0 0.0
    %3687 = vmatpush2.msra.mxu0 0.0
    %3688 = vmatprep.subr.mxu0 0.0
    %3689 = vmatpush2.msra.mxu0 0.0
    %3690 = vmatprep.subr.mxu0 0.0
    %3691 = vmatpush2.msra.mxu0 0.0
    %3692 = vmatprep.subr.mxu0 0.0
    %3693 = vmatpush2.msra.mxu0 0.0
    %3694 = vmatprep.subr.mxu0 0.0
    %3695 = vmatpush2.msra.mxu0 0.0
    %3696 = vmatprep.subr.mxu0 0.0
    %3697 = vmatpush2.msra.mxu0 0.0
    %3698 = vmatprep.subr.mxu0 0.0
    %3699 = vmatpush2.msra.mxu0 0.0
    %3700 = vmatprep.mubr.f32.mxu0 0.0
    %3701 = vmatmul.mubr.f32.gmra.mxu0 %v3551
    %v3702 = vpop.f32.mrf.mxu0
    %v3703 = vadd.f32 0.0, %v3702
    %v3704 = vpop.f32.mrf.mxu0
    %v3705 = vadd.f32 0.0, %v3704
    %3706 = vdwg.mxu0
    %v3707 = vadd.f32 %v3504, %v3632
    %v3708 = vadd.f32 %v3505, %v3634
    %v3709 = vadd.f32 %v3506, %v3703
    %v3710 = vadd.f32 %v3507, %v3705
    %v3711 = vld [vmem:[%s10] sm:$0xf]
    %3713 = vset.pattern.permute.xlu0 0
    %3714 = vperm.xlu0 %3713, %v3711
    %v3715 = vpop.permute.xlu0 %3714
    %v3717 = vadd.f32 %v3707, %v3715
    %v3718 = vadd.f32 %v3708, %v3715
    %v3719 = vadd.f32 %v3709, %v3715
    %v3720 = vadd.f32 %v3710, %v3715
    %vm3721 = vcmp.ge.f32.partialorder %v3717, 0.0
    %vm3722 = vcmp.ge.f32.partialorder %v3718, 0.0
    %vm3723 = vcmp.ge.f32.partialorder %v3719, 0.0
    %vm3724 = vcmp.ge.f32.partialorder %v3720, 0.0
    %v3725 = vmul.f32 %v3717, 0.2
    %v3726 = vmul.f32 %v3718, 0.2
    %v3727 = vmul.f32 %v3719, 0.2
    %v3728 = vmul.f32 %v3720, 0.2
    %v3729 = vsel %vm3721, %v3717, %v3725
    %v3730 = vsel %vm3722, %v3718, %v3726
    %v3731 = vsel %vm3723, %v3719, %v3727
    %v3732 = vsel %vm3724, %v3720, %v3728
    %3733 = vrot.lane.b32.xlu0 %v3729, 17
    %v3734 = vpop.permute.xlu0 %3733
    %3735 = vrot.lane.b32.xlu0 %v3730, 17
    %v3736 = vpop.permute.xlu0 %3735
    %3737 = vrot.lane.b32.xlu0 %v3731, 17
    %v3738 = vpop.permute.xlu0 %3737
    %3739 = vrot.lane.b32.xlu0 %v3732, 17
    %v3740 = vpop.permute.xlu0 %3739
    %v3741 = vsel %vm1942, %v3738, %v3740
    %v3742 = vsel %vm1942, %v3736, %v3738
    %v3743 = vsel %vm1942, %v3734, %v3736
    %v3744 = vsel %vm1942, %v3740, %v3734
    %v3745 = vmul.f32 %v3744, %v1952
    %v3746 = vmul.f32 %v3743, %v1956
    %v3747 = vmul.f32 %v3742, %v1960
    %v3748 = vmul.f32 %v3741, %v1964
    %v3749 = vld [vmem:[%s6] sm:$0xf]
    %3750 = vrot.lane.b32.xlu0 %v3729, 16
    %v3751 = vpop.permute.xlu0 %3750
    %3752 = vrot.lane.b32.xlu0 %v3730, 16
    %v3753 = vpop.permute.xlu0 %3752
    %3754 = vrot.lane.b32.xlu0 %v3731, 16
    %v3755 = vpop.permute.xlu0 %3754
    %3756 = vrot.lane.b32.xlu0 %v3732, 16
    %v3757 = vpop.permute.xlu0 %3756
    %v3758 = vsel %vm1982, %v3755, %v3757
    %v3759 = vsel %vm1982, %v3753, %v3755
    %v3760 = vsel %vm1982, %v3751, %v3753
    %v3761 = vsel %vm1982, %v3757, %v3751
    %v3762 = vmul.f32 %v3761, %v1993
    %v3763 = vmul.f32 %v3760, %v1997
    %v3764 = vmul.f32 %v3759, %v2001
    %v3765 = vmul.f32 %v3758, %v2005
    %s3766 = scalar_lea.vmem %s6, 4
    %v3767 = vld [vmem:[%s3766] sm:$0xf]
    %v3769 = vsel %vm200, %v3767, 0
    %v3772 = vsel %vm204, %v3762, 0
    %v3775 = vsel %vm204, %v3763, 0
    %v3778 = vsel %vm204, %v3764, 0
    %v3781 = vsel %vm204, %v3765, 0
    %3783 = vmatprep.subr.mxu0 0.0
    %3784 = vmatpush1.msra.mxu0 0.0
    %3785 = vmatprep.subr.mxu0 0.0
    %3786 = vmatpush1.msra.mxu0 0.0
    %3787 = vmatprep.subr.mxu0 0.0
    %3788 = vmatpush1.msra.mxu0 0.0
    %3789 = vmatprep.subr.mxu0 0.0
    %3790 = vmatpush1.msra.mxu0 0.0
    %3791 = vmatprep.subr.mxu0 0.0
    %3792 = vmatpush1.msra.mxu0 0.0
    %3793 = vmatprep.subr.mxu0 0.0
    %3794 = vmatpush1.msra.mxu0 0.0
    %3795 = vmatprep.subr.mxu0 0.0
    %3796 = vmatpush1.msra.mxu0 0.0
    %3797 = vmatprep.subr.mxu0 0.0
    %3798 = vmatpush1.msra.mxu0 0.0
    %3799 = vmatprep.subr.mxu0 0.0
    %3800 = vmatpush1.msra.mxu0 0.0
    %3801 = vmatprep.subr.mxu0 0.0
    %3802 = vmatpush1.msra.mxu0 0.0
    %3803 = vmatprep.subr.mxu0 0.0
    %3804 = vmatpush1.msra.mxu0 0.0
    %3805 = vmatprep.subr.mxu0 0.0
    %3806 = vmatpush1.msra.mxu0 0.0
    %3807 = vmatprep.subr.mxu0 0.0
    %3808 = vmatpush1.msra.mxu0 0.0
    %3809 = vmatprep.subr.mxu0 0.0
    %3810 = vmatpush1.msra.mxu0 0.0
    %3811 = vmatprep.subr.mxu0 0.0
    %3812 = vmatpush1.msra.mxu0 0.0
    %3813 = vmatprep.subr.mxu0 %v3775
    %3814 = vmatpush1.msra.mxu0 %v3772
    %3815 = vmatprep.subr.mxu0 0.0
    %3816 = vmatpush2.msra.mxu0 0.0
    %3817 = vmatprep.subr.mxu0 0.0
    %3818 = vmatpush2.msra.mxu0 0.0
    %3819 = vmatprep.subr.mxu0 0.0
    %3820 = vmatpush2.msra.mxu0 0.0
    %3821 = vmatprep.subr.mxu0 0.0
    %3822 = vmatpush2.msra.mxu0 0.0
    %3823 = vmatprep.subr.mxu0 0.0
    %3824 = vmatpush2.msra.mxu0 0.0
    %3825 = vmatprep.subr.mxu0 0.0
    %3826 = vmatpush2.msra.mxu0 0.0
    %3827 = vmatprep.subr.mxu0 0.0
    %3828 = vmatpush2.msra.mxu0 0.0
    %3829 = vmatprep.subr.mxu0 0.0
    %3830 = vmatpush2.msra.mxu0 0.0
    %3831 = vmatprep.subr.mxu0 0.0
    %3832 = vmatpush2.msra.mxu0 0.0
    %3833 = vmatprep.subr.mxu0 0.0
    %3834 = vmatpush2.msra.mxu0 0.0
    %3835 = vmatprep.subr.mxu0 0.0
    %3836 = vmatpush2.msra.mxu0 0.0
    %3837 = vmatprep.subr.mxu0 0.0
    %3838 = vmatpush2.msra.mxu0 0.0
    %3839 = vmatprep.subr.mxu0 0.0
    %3840 = vmatpush2.msra.mxu0 0.0
    %3841 = vmatprep.subr.mxu0 0.0
    %3842 = vmatpush2.msra.mxu0 0.0
    %3843 = vmatprep.subr.mxu0 0.0
    %3844 = vmatpush2.msra.mxu0 0.0
    %3845 = vmatprep.subr.mxu0 0.0
    %3846 = vmatpush2.msra.mxu0 0.0
    %3847 = vmatprep.mubr.f32.mxu0 0.0
    %3848 = vmatmul.mubr.f32.gmra.mxu0 %v3769
    %v3849 = vpop.f32.mrf.mxu0
    %v3850 = vadd.f32 0.0, %v3849
    %v3851 = vpop.f32.mrf.mxu0
    %v3852 = vadd.f32 0.0, %v3851
    %3853 = vdwg.mxu0
    %3854 = vmatprep.subr.mxu0 0.0
    %3855 = vmatpush1.msra.mxu0 0.0
    %3856 = vmatprep.subr.mxu0 0.0
    %3857 = vmatpush1.msra.mxu0 0.0
    %3858 = vmatprep.subr.mxu0 0.0
    %3859 = vmatpush1.msra.mxu0 0.0
    %3860 = vmatprep.subr.mxu0 0.0
    %3861 = vmatpush1.msra.mxu0 0.0
    %3862 = vmatprep.subr.mxu0 0.0
    %3863 = vmatpush1.msra.mxu0 0.0
    %3864 = vmatprep.subr.mxu0 0.0
    %3865 = vmatpush1.msra.mxu0 0.0
    %3866 = vmatprep.subr.mxu0 0.0
    %3867 = vmatpush1.msra.mxu0 0.0
    %3868 = vmatprep.subr.mxu0 0.0
    %3869 = vmatpush1.msra.mxu0 0.0
    %3870 = vmatprep.subr.mxu0 0.0
    %3871 = vmatpush1.msra.mxu0 0.0
    %3872 = vmatprep.subr.mxu0 0.0
    %3873 = vmatpush1.msra.mxu0 0.0
    %3874 = vmatprep.subr.mxu0 0.0
    %3875 = vmatpush1.msra.mxu0 0.0
    %3876 = vmatprep.subr.mxu0 0.0
    %3877 = vmatpush1.msra.mxu0 0.0
    %3878 = vmatprep.subr.mxu0 0.0
    %3879 = vmatpush1.msra.mxu0 0.0
    %3880 = vmatprep.subr.mxu0 0.0
    %3881 = vmatpush1.msra.mxu0 0.0
    %3882 = vmatprep.subr.mxu0 0.0
    %3883 = vmatpush1.msra.mxu0 0.0
    %3884 = vmatprep.subr.mxu0 %v3781
    %3885 = vmatpush1.msra.mxu0 %v3778
    %3886 = vmatprep.subr.mxu0 0.0
    %3887 = vmatpush2.msra.mxu0 0.0
    %3888 = vmatprep.subr.mxu0 0.0
    %3889 = vmatpush2.msra.mxu0 0.0
    %3890 = vmatprep.subr.mxu0 0.0
    %3891 = vmatpush2.msra.mxu0 0.0
    %3892 = vmatprep.subr.mxu0 0.0
    %3893 = vmatpush2.msra.mxu0 0.0
    %3894 = vmatprep.subr.mxu0 0.0
    %3895 = vmatpush2.msra.mxu0 0.0
    %3896 = vmatprep.subr.mxu0 0.0
    %3897 = vmatpush2.msra.mxu0 0.0
    %3898 = vmatprep.subr.mxu0 0.0
    %3899 = vmatpush2.msra.mxu0 0.0
    %3900 = vmatprep.subr.mxu0 0.0
    %3901 = vmatpush2.msra.mxu0 0.0
    %3902 = vmatprep.subr.mxu0 0.0
    %3903 = vmatpush2.msra.mxu0 0.0
    %3904 = vmatprep.subr.mxu0 0.0
    %3905 = vmatpush2.msra.mxu0 0.0
    %3906 = vmatprep.subr.mxu0 0.0
    %3907 = vmatpush2.msra.mxu0 0.0
    %3908 = vmatprep.subr.mxu0 0.0
    %3909 = vmatpush2.msra.mxu0 0.0
    %3910 = vmatprep.subr.mxu0 0.0
    %3911 = vmatpush2.msra.mxu0 0.0
    %3912 = vmatprep.subr.mxu0 0.0
    %3913 = vmatpush2.msra.mxu0 0.0
    %3914 = vmatprep.subr.mxu0 0.0
    %3915 = vmatpush2.msra.mxu0 0.0
    %3916 = vmatprep.subr.mxu0 0.0
    %3917 = vmatpush2.msra.mxu0 0.0
    %3918 = vmatprep.mubr.f32.mxu0 0.0
    %3919 = vmatmul.mubr.f32.gmra.mxu0 %v3769
    %v3920 = vpop.f32.mrf.mxu0
    %v3921 = vadd.f32 0.0, %v3920
    %v3922 = vpop.f32.mrf.mxu0
    %v3923 = vadd.f32 0.0, %v3922
    %3924 = vdwg.mxu0
    %v3926 = vsel %vm200, %v3749, 0
    %v3929 = vsel %vm204, %v3745, 0
    %v3932 = vsel %vm204, %v3746, 0
    %v3935 = vsel %vm204, %v3747, 0
    %v3938 = vsel %vm204, %v3748, 0
    %3940 = vmatprep.subr.mxu0 0.0
    %3941 = vmatpush1.msra.mxu0 0.0
    %3942 = vmatprep.subr.mxu0 0.0
    %3943 = vmatpush1.msra.mxu0 0.0
    %3944 = vmatprep.subr.mxu0 0.0
    %3945 = vmatpush1.msra.mxu0 0.0
    %3946 = vmatprep.subr.mxu0 0.0
    %3947 = vmatpush1.msra.mxu0 0.0
    %3948 = vmatprep.subr.mxu0 0.0
    %3949 = vmatpush1.msra.mxu0 0.0
    %3950 = vmatprep.subr.mxu0 0.0
    %3951 = vmatpush1.msra.mxu0 0.0
    %3952 = vmatprep.subr.mxu0 0.0
    %3953 = vmatpush1.msra.mxu0 0.0
    %3954 = vmatprep.subr.mxu0 0.0
    %3955 = vmatpush1.msra.mxu0 0.0
    %3956 = vmatprep.subr.mxu0 0.0
    %3957 = vmatpush1.msra.mxu0 0.0
    %3958 = vmatprep.subr.mxu0 0.0
    %3959 = vmatpush1.msra.mxu0 0.0
    %3960 = vmatprep.subr.mxu0 0.0
    %3961 = vmatpush1.msra.mxu0 0.0
    %3962 = vmatprep.subr.mxu0 0.0
    %3963 = vmatpush1.msra.mxu0 0.0
    %3964 = vmatprep.subr.mxu0 0.0
    %3965 = vmatpush1.msra.mxu0 0.0
    %3966 = vmatprep.subr.mxu0 0.0
    %3967 = vmatpush1.msra.mxu0 0.0
    %3968 = vmatprep.subr.mxu0 0.0
    %3969 = vmatpush1.msra.mxu0 0.0
    %3970 = vmatprep.subr.mxu0 %v3932
    %3971 = vmatpush1.msra.mxu0 %v3929
    %3972 = vmatprep.subr.mxu0 0.0
    %3973 = vmatpush2.msra.mxu0 0.0
    %3974 = vmatprep.subr.mxu0 0.0
    %3975 = vmatpush2.msra.mxu0 0.0
    %3976 = vmatprep.subr.mxu0 0.0
    %3977 = vmatpush2.msra.mxu0 0.0
    %3978 = vmatprep.subr.mxu0 0.0
    %3979 = vmatpush2.msra.mxu0 0.0
    %3980 = vmatprep.subr.mxu0 0.0
    %3981 = vmatpush2.msra.mxu0 0.0
    %3982 = vmatprep.subr.mxu0 0.0
    %3983 = vmatpush2.msra.mxu0 0.0
    %3984 = vmatprep.subr.mxu0 0.0
    %3985 = vmatpush2.msra.mxu0 0.0
    %3986 = vmatprep.subr.mxu0 0.0
    %3987 = vmatpush2.msra.mxu0 0.0
    %3988 = vmatprep.subr.mxu0 0.0
    %3989 = vmatpush2.msra.mxu0 0.0
    %3990 = vmatprep.subr.mxu0 0.0
    %3991 = vmatpush2.msra.mxu0 0.0
    %3992 = vmatprep.subr.mxu0 0.0
    %3993 = vmatpush2.msra.mxu0 0.0
    %3994 = vmatprep.subr.mxu0 0.0
    %3995 = vmatpush2.msra.mxu0 0.0
    %3996 = vmatprep.subr.mxu0 0.0
    %3997 = vmatpush2.msra.mxu0 0.0
    %3998 = vmatprep.subr.mxu0 0.0
    %3999 = vmatpush2.msra.mxu0 0.0
    %4000 = vmatprep.subr.mxu0 0.0
    %4001 = vmatpush2.msra.mxu0 0.0
    %4002 = vmatprep.subr.mxu0 0.0
    %4003 = vmatpush2.msra.mxu0 0.0
    %4004 = vmatprep.mubr.f32.mxu0 0.0
    %4005 = vmatmul.mubr.f32.gmra.mxu0 %v3926
    %v4006 = vpop.f32.mrf.mxu0
    %v4007 = vadd.f32 %v3850, %v4006
    %v4008 = vpop.f32.mrf.mxu0
    %v4009 = vadd.f32 %v3852, %v4008
    %4010 = vdwg.mxu0
    %4011 = vmatprep.subr.mxu0 0.0
    %4012 = vmatpush1.msra.mxu0 0.0
    %4013 = vmatprep.subr.mxu0 0.0
    %4014 = vmatpush1.msra.mxu0 0.0
    %4015 = vmatprep.subr.mxu0 0.0
    %4016 = vmatpush1.msra.mxu0 0.0
    %4017 = vmatprep.subr.mxu0 0.0
    %4018 = vmatpush1.msra.mxu0 0.0
    %4019 = vmatprep.subr.mxu0 0.0
    %4020 = vmatpush1.msra.mxu0 0.0
    %4021 = vmatprep.subr.mxu0 0.0
    %4022 = vmatpush1.msra.mxu0 0.0
    %4023 = vmatprep.subr.mxu0 0.0
    %4024 = vmatpush1.msra.mxu0 0.0
    %4025 = vmatprep.subr.mxu0 0.0
    %4026 = vmatpush1.msra.mxu0 0.0
    %4027 = vmatprep.subr.mxu0 0.0
    %4028 = vmatpush1.msra.mxu0 0.0
    %4029 = vmatprep.subr.mxu0 0.0
    %4030 = vmatpush1.msra.mxu0 0.0
    %4031 = vmatprep.subr.mxu0 0.0
    %4032 = vmatpush1.msra.mxu0 0.0
    %4033 = vmatprep.subr.mxu0 0.0
    %4034 = vmatpush1.msra.mxu0 0.0
    %4035 = vmatprep.subr.mxu0 0.0
    %4036 = vmatpush1.msra.mxu0 0.0
    %4037 = vmatprep.subr.mxu0 0.0
    %4038 = vmatpush1.msra.mxu0 0.0
    %4039 = vmatprep.subr.mxu0 0.0
    %4040 = vmatpush1.msra.mxu0 0.0
    %4041 = vmatprep.subr.mxu0 %v3938
    %4042 = vmatpush1.msra.mxu0 %v3935
    %4043 = vmatprep.subr.mxu0 0.0
    %4044 = vmatpush2.msra.mxu0 0.0
    %4045 = vmatprep.subr.mxu0 0.0
    %4046 = vmatpush2.msra.mxu0 0.0
    %4047 = vmatprep.subr.mxu0 0.0
    %4048 = vmatpush2.msra.mxu0 0.0
    %4049 = vmatprep.subr.mxu0 0.0
    %4050 = vmatpush2.msra.mxu0 0.0
    %4051 = vmatprep.subr.mxu0 0.0
    %4052 = vmatpush2.msra.mxu0 0.0
    %4053 = vmatprep.subr.mxu0 0.0
    %4054 = vmatpush2.msra.mxu0 0.0
    %4055 = vmatprep.subr.mxu0 0.0
    %4056 = vmatpush2.msra.mxu0 0.0
    %4057 = vmatprep.subr.mxu0 0.0
    %4058 = vmatpush2.msra.mxu0 0.0
    %4059 = vmatprep.subr.mxu0 0.0
    %4060 = vmatpush2.msra.mxu0 0.0
    %4061 = vmatprep.subr.mxu0 0.0
    %4062 = vmatpush2.msra.mxu0 0.0
    %4063 = vmatprep.subr.mxu0 0.0
    %4064 = vmatpush2.msra.mxu0 0.0
    %4065 = vmatprep.subr.mxu0 0.0
    %4066 = vmatpush2.msra.mxu0 0.0
    %4067 = vmatprep.subr.mxu0 0.0
    %4068 = vmatpush2.msra.mxu0 0.0
    %4069 = vmatprep.subr.mxu0 0.0
    %4070 = vmatpush2.msra.mxu0 0.0
    %4071 = vmatprep.subr.mxu0 0.0
    %4072 = vmatpush2.msra.mxu0 0.0
    %4073 = vmatprep.subr.mxu0 0.0
    %4074 = vmatpush2.msra.mxu0 0.0
    %4075 = vmatprep.mubr.f32.mxu0 0.0
    %4076 = vmatmul.mubr.f32.gmra.mxu0 %v3926
    %v4077 = vpop.f32.mrf.mxu0
    %v4078 = vadd.f32 %v3921, %v4077
    %v4079 = vpop.f32.mrf.mxu0
    %v4080 = vadd.f32 %v3923, %v4079
    %4081 = vdwg.mxu0
    %4082 = vrot.lane.b32.xlu0 %v3729, 15
    %v4083 = vpop.permute.xlu0 %4082
    %4084 = vrot.lane.b32.xlu0 %v3730, 15
    %v4085 = vpop.permute.xlu0 %4084
    %4086 = vrot.lane.b32.xlu0 %v3731, 15
    %v4087 = vpop.permute.xlu0 %4086
    %4088 = vrot.lane.b32.xlu0 %v3732, 15
    %v4089 = vpop.permute.xlu0 %4088
    %v4090 = vsel %vm2338, %v4087, %v4089
    %v4091 = vsel %vm2338, %v4085, %v4087
    %v4092 = vsel %vm2338, %v4083, %v4085
    %v4093 = vsel %vm2338, %v4089, %v4083
    %v4094 = vmul.f32 %v4093, %v2349
    %v4095 = vmul.f32 %v4092, %v2353
    %v4096 = vmul.f32 %v4091, %v2357
    %v4097 = vmul.f32 %v4090, %v2361
    %s4098 = scalar_lea.vmem %s6, 8
    %v4099 = vld [vmem:[%s4098] sm:$0xf]
    %v4101 = vsel %vm200, %v4099, 0
    %v4104 = vsel %vm204, %v4094, 0
    %v4107 = vsel %vm204, %v4095, 0
    %v4110 = vsel %vm204, %v4096, 0
    %v4113 = vsel %vm204, %v4097, 0
    %4115 = vmatprep.subr.mxu0 0.0
    %4116 = vmatpush1.msra.mxu0 0.0
    %4117 = vmatprep.subr.mxu0 0.0
    %4118 = vmatpush1.msra.mxu0 0.0
    %4119 = vmatprep.subr.mxu0 0.0
    %4120 = vmatpush1.msra.mxu0 0.0
    %4121 = vmatprep.subr.mxu0 0.0
    %4122 = vmatpush1.msra.mxu0 0.0
    %4123 = vmatprep.subr.mxu0 0.0
    %4124 = vmatpush1.msra.mxu0 0.0
    %4125 = vmatprep.subr.mxu0 0.0
    %4126 = vmatpush1.msra.mxu0 0.0
    %4127 = vmatprep.subr.mxu0 0.0
    %4128 = vmatpush1.msra.mxu0 0.0
    %4129 = vmatprep.subr.mxu0 0.0
    %4130 = vmatpush1.msra.mxu0 0.0
    %4131 = vmatprep.subr.mxu0 0.0
    %4132 = vmatpush1.msra.mxu0 0.0
    %4133 = vmatprep.subr.mxu0 0.0
    %4134 = vmatpush1.msra.mxu0 0.0
    %4135 = vmatprep.subr.mxu0 0.0
    %4136 = vmatpush1.msra.mxu0 0.0
    %4137 = vmatprep.subr.mxu0 0.0
    %4138 = vmatpush1.msra.mxu0 0.0
    %4139 = vmatprep.subr.mxu0 0.0
    %4140 = vmatpush1.msra.mxu0 0.0
    %4141 = vmatprep.subr.mxu0 0.0
    %4142 = vmatpush1.msra.mxu0 0.0
    %4143 = vmatprep.subr.mxu0 0.0
    %4144 = vmatpush1.msra.mxu0 0.0
    %4145 = vmatprep.subr.mxu0 %v4107
    %4146 = vmatpush1.msra.mxu0 %v4104
    %4147 = vmatprep.subr.mxu0 0.0
    %4148 = vmatpush2.msra.mxu0 0.0
    %4149 = vmatprep.subr.mxu0 0.0
    %4150 = vmatpush2.msra.mxu0 0.0
    %4151 = vmatprep.subr.mxu0 0.0
    %4152 = vmatpush2.msra.mxu0 0.0
    %4153 = vmatprep.subr.mxu0 0.0
    %4154 = vmatpush2.msra.mxu0 0.0
    %4155 = vmatprep.subr.mxu0 0.0
    %4156 = vmatpush2.msra.mxu0 0.0
    %4157 = vmatprep.subr.mxu0 0.0
    %4158 = vmatpush2.msra.mxu0 0.0
    %4159 = vmatprep.subr.mxu0 0.0
    %4160 = vmatpush2.msra.mxu0 0.0
    %4161 = vmatprep.subr.mxu0 0.0
    %4162 = vmatpush2.msra.mxu0 0.0
    %4163 = vmatprep.subr.mxu0 0.0
    %4164 = vmatpush2.msra.mxu0 0.0
    %4165 = vmatprep.subr.mxu0 0.0
    %4166 = vmatpush2.msra.mxu0 0.0
    %4167 = vmatprep.subr.mxu0 0.0
    %4168 = vmatpush2.msra.mxu0 0.0
    %4169 = vmatprep.subr.mxu0 0.0
    %4170 = vmatpush2.msra.mxu0 0.0
    %4171 = vmatprep.subr.mxu0 0.0
    %4172 = vmatpush2.msra.mxu0 0.0
    %4173 = vmatprep.subr.mxu0 0.0
    %4174 = vmatpush2.msra.mxu0 0.0
    %4175 = vmatprep.subr.mxu0 0.0
    %4176 = vmatpush2.msra.mxu0 0.0
    %4177 = vmatprep.subr.mxu0 0.0
    %4178 = vmatpush2.msra.mxu0 0.0
    %4179 = vmatprep.mubr.f32.mxu0 0.0
    %4180 = vmatmul.mubr.f32.gmra.mxu0 %v4101
    %v4181 = vpop.f32.mrf.mxu0
    %v4182 = vadd.f32 0.0, %v4181
    %v4183 = vpop.f32.mrf.mxu0
    %v4184 = vadd.f32 0.0, %v4183
    %4185 = vdwg.mxu0
    %4186 = vmatprep.subr.mxu0 0.0
    %4187 = vmatpush1.msra.mxu0 0.0
    %4188 = vmatprep.subr.mxu0 0.0
    %4189 = vmatpush1.msra.mxu0 0.0
    %4190 = vmatprep.subr.mxu0 0.0
    %4191 = vmatpush1.msra.mxu0 0.0
    %4192 = vmatprep.subr.mxu0 0.0
    %4193 = vmatpush1.msra.mxu0 0.0
    %4194 = vmatprep.subr.mxu0 0.0
    %4195 = vmatpush1.msra.mxu0 0.0
    %4196 = vmatprep.subr.mxu0 0.0
    %4197 = vmatpush1.msra.mxu0 0.0
    %4198 = vmatprep.subr.mxu0 0.0
    %4199 = vmatpush1.msra.mxu0 0.0
    %4200 = vmatprep.subr.mxu0 0.0
    %4201 = vmatpush1.msra.mxu0 0.0
    %4202 = vmatprep.subr.mxu0 0.0
    %4203 = vmatpush1.msra.mxu0 0.0
    %4204 = vmatprep.subr.mxu0 0.0
    %4205 = vmatpush1.msra.mxu0 0.0
    %4206 = vmatprep.subr.mxu0 0.0
    %4207 = vmatpush1.msra.mxu0 0.0
    %4208 = vmatprep.subr.mxu0 0.0
    %4209 = vmatpush1.msra.mxu0 0.0
    %4210 = vmatprep.subr.mxu0 0.0
    %4211 = vmatpush1.msra.mxu0 0.0
    %4212 = vmatprep.subr.mxu0 0.0
    %4213 = vmatpush1.msra.mxu0 0.0
    %4214 = vmatprep.subr.mxu0 0.0
    %4215 = vmatpush1.msra.mxu0 0.0
    %4216 = vmatprep.subr.mxu0 %v4113
    %4217 = vmatpush1.msra.mxu0 %v4110
    %4218 = vmatprep.subr.mxu0 0.0
    %4219 = vmatpush2.msra.mxu0 0.0
    %4220 = vmatprep.subr.mxu0 0.0
    %4221 = vmatpush2.msra.mxu0 0.0
    %4222 = vmatprep.subr.mxu0 0.0
    %4223 = vmatpush2.msra.mxu0 0.0
    %4224 = vmatprep.subr.mxu0 0.0
    %4225 = vmatpush2.msra.mxu0 0.0
    %4226 = vmatprep.subr.mxu0 0.0
    %4227 = vmatpush2.msra.mxu0 0.0
    %4228 = vmatprep.subr.mxu0 0.0
    %4229 = vmatpush2.msra.mxu0 0.0
    %4230 = vmatprep.subr.mxu0 0.0
    %4231 = vmatpush2.msra.mxu0 0.0
    %4232 = vmatprep.subr.mxu0 0.0
    %4233 = vmatpush2.msra.mxu0 0.0
    %4234 = vmatprep.subr.mxu0 0.0
    %4235 = vmatpush2.msra.mxu0 0.0
    %4236 = vmatprep.subr.mxu0 0.0
    %4237 = vmatpush2.msra.mxu0 0.0
    %4238 = vmatprep.subr.mxu0 0.0
    %4239 = vmatpush2.msra.mxu0 0.0
    %4240 = vmatprep.subr.mxu0 0.0
    %4241 = vmatpush2.msra.mxu0 0.0
    %4242 = vmatprep.subr.mxu0 0.0
    %4243 = vmatpush2.msra.mxu0 0.0
    %4244 = vmatprep.subr.mxu0 0.0
    %4245 = vmatpush2.msra.mxu0 0.0
    %4246 = vmatprep.subr.mxu0 0.0
    %4247 = vmatpush2.msra.mxu0 0.0
    %4248 = vmatprep.subr.mxu0 0.0
    %4249 = vmatpush2.msra.mxu0 0.0
    %4250 = vmatprep.mubr.f32.mxu0 0.0
    %4251 = vmatmul.mubr.f32.gmra.mxu0 %v4101
    %v4252 = vpop.f32.mrf.mxu0
    %v4253 = vadd.f32 0.0, %v4252
    %v4254 = vpop.f32.mrf.mxu0
    %v4255 = vadd.f32 0.0, %v4254
    %4256 = vdwg.mxu0
    %v4257 = vadd.f32 %v4007, %v4182
    %v4258 = vadd.f32 %v4009, %v4184
    %v4259 = vadd.f32 %v4078, %v4253
    %v4260 = vadd.f32 %v4080, %v4255
    %4261 = vrot.lane.b32.xlu0 %v3729, 1
    %v4262 = vpop.permute.xlu0 %4261
    %4263 = vrot.lane.b32.xlu0 %v3730, 1
    %v4264 = vpop.permute.xlu0 %4263
    %4265 = vrot.lane.b32.xlu0 %v3731, 1
    %v4266 = vpop.permute.xlu0 %4265
    %4267 = vrot.lane.b32.xlu0 %v3732, 1
    %v4268 = vpop.permute.xlu0 %4267
    %v4269 = vsel %vm2541, %v4266, %v4268
    %v4270 = vsel %vm2541, %v4264, %v4266
    %v4271 = vsel %vm2541, %v4262, %v4264
    %v4272 = vsel %vm2541, %v4268, %v4262
    %v4273 = vmul.f32 %v4272, %v2552
    %v4274 = vmul.f32 %v4271, %v2556
    %v4275 = vmul.f32 %v4270, %v2560
    %v4276 = vmul.f32 %v4269, %v2564
    %s4277 = scalar_lea.vmem %s6, 12
    %v4278 = vld [vmem:[%s4277] sm:$0xf]
    %v4280 = vsel %vm200, %v4278, 0
    %v4283 = vsel %vm204, %v4273, 0
    %v4286 = vsel %vm204, %v4274, 0
    %v4289 = vsel %vm204, %v4275, 0
    %v4292 = vsel %vm204, %v4276, 0
    %4294 = vmatprep.subr.mxu0 0.0
    %4295 = vmatpush1.msra.mxu0 0.0
    %4296 = vmatprep.subr.mxu0 0.0
    %4297 = vmatpush1.msra.mxu0 0.0
    %4298 = vmatprep.subr.mxu0 0.0
    %4299 = vmatpush1.msra.mxu0 0.0
    %4300 = vmatprep.subr.mxu0 0.0
    %4301 = vmatpush1.msra.mxu0 0.0
    %4302 = vmatprep.subr.mxu0 0.0
    %4303 = vmatpush1.msra.mxu0 0.0
    %4304 = vmatprep.subr.mxu0 0.0
    %4305 = vmatpush1.msra.mxu0 0.0
    %4306 = vmatprep.subr.mxu0 0.0
    %4307 = vmatpush1.msra.mxu0 0.0
    %4308 = vmatprep.subr.mxu0 0.0
    %4309 = vmatpush1.msra.mxu0 0.0
    %4310 = vmatprep.subr.mxu0 0.0
    %4311 = vmatpush1.msra.mxu0 0.0
    %4312 = vmatprep.subr.mxu0 0.0
    %4313 = vmatpush1.msra.mxu0 0.0
    %4314 = vmatprep.subr.mxu0 0.0
    %4315 = vmatpush1.msra.mxu0 0.0
    %4316 = vmatprep.subr.mxu0 0.0
    %4317 = vmatpush1.msra.mxu0 0.0
    %4318 = vmatprep.subr.mxu0 0.0
    %4319 = vmatpush1.msra.mxu0 0.0
    %4320 = vmatprep.subr.mxu0 0.0
    %4321 = vmatpush1.msra.mxu0 0.0
    %4322 = vmatprep.subr.mxu0 0.0
    %4323 = vmatpush1.msra.mxu0 0.0
    %4324 = vmatprep.subr.mxu0 %v4286
    %4325 = vmatpush1.msra.mxu0 %v4283
    %4326 = vmatprep.subr.mxu0 0.0
    %4327 = vmatpush2.msra.mxu0 0.0
    %4328 = vmatprep.subr.mxu0 0.0
    %4329 = vmatpush2.msra.mxu0 0.0
    %4330 = vmatprep.subr.mxu0 0.0
    %4331 = vmatpush2.msra.mxu0 0.0
    %4332 = vmatprep.subr.mxu0 0.0
    %4333 = vmatpush2.msra.mxu0 0.0
    %4334 = vmatprep.subr.mxu0 0.0
    %4335 = vmatpush2.msra.mxu0 0.0
    %4336 = vmatprep.subr.mxu0 0.0
    %4337 = vmatpush2.msra.mxu0 0.0
    %4338 = vmatprep.subr.mxu0 0.0
    %4339 = vmatpush2.msra.mxu0 0.0
    %4340 = vmatprep.subr.mxu0 0.0
    %4341 = vmatpush2.msra.mxu0 0.0
    %4342 = vmatprep.subr.mxu0 0.0
    %4343 = vmatpush2.msra.mxu0 0.0
    %4344 = vmatprep.subr.mxu0 0.0
    %4345 = vmatpush2.msra.mxu0 0.0
    %4346 = vmatprep.subr.mxu0 0.0
    %4347 = vmatpush2.msra.mxu0 0.0
    %4348 = vmatprep.subr.mxu0 0.0
    %4349 = vmatpush2.msra.mxu0 0.0
    %4350 = vmatprep.subr.mxu0 0.0
    %4351 = vmatpush2.msra.mxu0 0.0
    %4352 = vmatprep.subr.mxu0 0.0
    %4353 = vmatpush2.msra.mxu0 0.0
    %4354 = vmatprep.subr.mxu0 0.0
    %4355 = vmatpush2.msra.mxu0 0.0
    %4356 = vmatprep.subr.mxu0 0.0
    %4357 = vmatpush2.msra.mxu0 0.0
    %4358 = vmatprep.mubr.f32.mxu0 0.0
    %4359 = vmatmul.mubr.f32.gmra.mxu0 %v4280
    %v4360 = vpop.f32.mrf.mxu0
    %v4361 = vadd.f32 0.0, %v4360
    %v4362 = vpop.f32.mrf.mxu0
    %v4363 = vadd.f32 0.0, %v4362
    %4364 = vdwg.mxu0
    %4365 = vmatprep.subr.mxu0 0.0
    %4366 = vmatpush1.msra.mxu0 0.0
    %4367 = vmatprep.subr.mxu0 0.0
    %4368 = vmatpush1.msra.mxu0 0.0
    %4369 = vmatprep.subr.mxu0 0.0
    %4370 = vmatpush1.msra.mxu0 0.0
    %4371 = vmatprep.subr.mxu0 0.0
    %4372 = vmatpush1.msra.mxu0 0.0
    %4373 = vmatprep.subr.mxu0 0.0
    %4374 = vmatpush1.msra.mxu0 0.0
    %4375 = vmatprep.subr.mxu0 0.0
    %4376 = vmatpush1.msra.mxu0 0.0
    %4377 = vmatprep.subr.mxu0 0.0
    %4378 = vmatpush1.msra.mxu0 0.0
    %4379 = vmatprep.subr.mxu0 0.0
    %4380 = vmatpush1.msra.mxu0 0.0
    %4381 = vmatprep.subr.mxu0 0.0
    %4382 = vmatpush1.msra.mxu0 0.0
    %4383 = vmatprep.subr.mxu0 0.0
    %4384 = vmatpush1.msra.mxu0 0.0
    %4385 = vmatprep.subr.mxu0 0.0
    %4386 = vmatpush1.msra.mxu0 0.0
    %4387 = vmatprep.subr.mxu0 0.0
    %4388 = vmatpush1.msra.mxu0 0.0
    %4389 = vmatprep.subr.mxu0 0.0
    %4390 = vmatpush1.msra.mxu0 0.0
    %4391 = vmatprep.subr.mxu0 0.0
    %4392 = vmatpush1.msra.mxu0 0.0
    %4393 = vmatprep.subr.mxu0 0.0
    %4394 = vmatpush1.msra.mxu0 0.0
    %4395 = vmatprep.subr.mxu0 %v4292
    %4396 = vmatpush1.msra.mxu0 %v4289
    %4397 = vmatprep.subr.mxu0 0.0
    %4398 = vmatpush2.msra.mxu0 0.0
    %4399 = vmatprep.subr.mxu0 0.0
    %4400 = vmatpush2.msra.mxu0 0.0
    %4401 = vmatprep.subr.mxu0 0.0
    %4402 = vmatpush2.msra.mxu0 0.0
    %4403 = vmatprep.subr.mxu0 0.0
    %4404 = vmatpush2.msra.mxu0 0.0
    %4405 = vmatprep.subr.mxu0 0.0
    %4406 = vmatpush2.msra.mxu0 0.0
    %4407 = vmatprep.subr.mxu0 0.0
    %4408 = vmatpush2.msra.mxu0 0.0
    %4409 = vmatprep.subr.mxu0 0.0
    %4410 = vmatpush2.msra.mxu0 0.0
    %4411 = vmatprep.subr.mxu0 0.0
    %4412 = vmatpush2.msra.mxu0 0.0
    %4413 = vmatprep.subr.mxu0 0.0
    %4414 = vmatpush2.msra.mxu0 0.0
    %4415 = vmatprep.subr.mxu0 0.0
    %4416 = vmatpush2.msra.mxu0 0.0
    %4417 = vmatprep.subr.mxu0 0.0
    %4418 = vmatpush2.msra.mxu0 0.0
    %4419 = vmatprep.subr.mxu0 0.0
    %4420 = vmatpush2.msra.mxu0 0.0
    %4421 = vmatprep.subr.mxu0 0.0
    %4422 = vmatpush2.msra.mxu0 0.0
    %4423 = vmatprep.subr.mxu0 0.0
    %4424 = vmatpush2.msra.mxu0 0.0
    %4425 = vmatprep.subr.mxu0 0.0
    %4426 = vmatpush2.msra.mxu0 0.0
    %4427 = vmatprep.subr.mxu0 0.0
    %4428 = vmatpush2.msra.mxu0 0.0
    %4429 = vmatprep.mubr.f32.mxu0 0.0
    %4430 = vmatmul.mubr.f32.gmra.mxu0 %v4280
    %v4431 = vpop.f32.mrf.mxu0
    %v4432 = vadd.f32 0.0, %v4431
    %v4433 = vpop.f32.mrf.mxu0
    %v4434 = vadd.f32 0.0, %v4433
    %4435 = vdwg.mxu0
    %v4436 = vadd.f32 %v4257, %v4361
    %v4437 = vadd.f32 %v4258, %v4363
    %v4438 = vadd.f32 %v4259, %v4432
    %v4439 = vadd.f32 %v4260, %v4434
    %s4440 = scalar_lea.vmem %s6, 16
    %v4441 = vld [vmem:[%s4440] sm:$0xf]
    %v4443 = vsel %vm200, %v4441, 0
    %v4446 = vsel %vm204, %v3729, 0
    %v4449 = vsel %vm204, %v3730, 0
    %v4452 = vsel %vm204, %v3731, 0
    %v4455 = vsel %vm204, %v3732, 0
    %4457 = vmatprep.subr.mxu0 0.0
    %4458 = vmatpush1.msra.mxu0 0.0
    %4459 = vmatprep.subr.mxu0 0.0
    %4460 = vmatpush1.msra.mxu0 0.0
    %4461 = vmatprep.subr.mxu0 0.0
    %4462 = vmatpush1.msra.mxu0 0.0
    %4463 = vmatprep.subr.mxu0 0.0
    %4464 = vmatpush1.msra.mxu0 0.0
    %4465 = vmatprep.subr.mxu0 0.0
    %4466 = vmatpush1.msra.mxu0 0.0
    %4467 = vmatprep.subr.mxu0 0.0
    %4468 = vmatpush1.msra.mxu0 0.0
    %4469 = vmatprep.subr.mxu0 0.0
    %4470 = vmatpush1.msra.mxu0 0.0
    %4471 = vmatprep.subr.mxu0 0.0
    %4472 = vmatpush1.msra.mxu0 0.0
    %4473 = vmatprep.subr.mxu0 0.0
    %4474 = vmatpush1.msra.mxu0 0.0
    %4475 = vmatprep.subr.mxu0 0.0
    %4476 = vmatpush1.msra.mxu0 0.0
    %4477 = vmatprep.subr.mxu0 0.0
    %4478 = vmatpush1.msra.mxu0 0.0
    %4479 = vmatprep.subr.mxu0 0.0
    %4480 = vmatpush1.msra.mxu0 0.0
    %4481 = vmatprep.subr.mxu0 0.0
    %4482 = vmatpush1.msra.mxu0 0.0
    %4483 = vmatprep.subr.mxu0 0.0
    %4484 = vmatpush1.msra.mxu0 0.0
    %4485 = vmatprep.subr.mxu0 0.0
    %4486 = vmatpush1.msra.mxu0 0.0
    %4487 = vmatprep.subr.mxu0 %v4449
    %4488 = vmatpush1.msra.mxu0 %v4446
    %4489 = vmatprep.subr.mxu0 0.0
    %4490 = vmatpush2.msra.mxu0 0.0
    %4491 = vmatprep.subr.mxu0 0.0
    %4492 = vmatpush2.msra.mxu0 0.0
    %4493 = vmatprep.subr.mxu0 0.0
    %4494 = vmatpush2.msra.mxu0 0.0
    %4495 = vmatprep.subr.mxu0 0.0
    %4496 = vmatpush2.msra.mxu0 0.0
    %4497 = vmatprep.subr.mxu0 0.0
    %4498 = vmatpush2.msra.mxu0 0.0
    %4499 = vmatprep.subr.mxu0 0.0
    %4500 = vmatpush2.msra.mxu0 0.0
    %4501 = vmatprep.subr.mxu0 0.0
    %4502 = vmatpush2.msra.mxu0 0.0
    %4503 = vmatprep.subr.mxu0 0.0
    %4504 = vmatpush2.msra.mxu0 0.0
    %4505 = vmatprep.subr.mxu0 0.0
    %4506 = vmatpush2.msra.mxu0 0.0
    %4507 = vmatprep.subr.mxu0 0.0
    %4508 = vmatpush2.msra.mxu0 0.0
    %4509 = vmatprep.subr.mxu0 0.0
    %4510 = vmatpush2.msra.mxu0 0.0
    %4511 = vmatprep.subr.mxu0 0.0
    %4512 = vmatpush2.msra.mxu0 0.0
    %4513 = vmatprep.subr.mxu0 0.0
    %4514 = vmatpush2.msra.mxu0 0.0
    %4515 = vmatprep.subr.mxu0 0.0
    %4516 = vmatpush2.msra.mxu0 0.0
    %4517 = vmatprep.subr.mxu0 0.0
    %4518 = vmatpush2.msra.mxu0 0.0
    %4519 = vmatprep.subr.mxu0 0.0
    %4520 = vmatpush2.msra.mxu0 0.0
    %4521 = vmatprep.mubr.f32.mxu0 0.0
    %4522 = vmatmul.mubr.f32.gmra.mxu0 %v4443
    %v4523 = vpop.f32.mrf.mxu0
    %v4524 = vadd.f32 0.0, %v4523
    %v4525 = vpop.f32.mrf.mxu0
    %v4526 = vadd.f32 0.0, %v4525
    %4527 = vdwg.mxu0
    %4528 = vmatprep.subr.mxu0 0.0
    %4529 = vmatpush1.msra.mxu0 0.0
    %4530 = vmatprep.subr.mxu0 0.0
    %4531 = vmatpush1.msra.mxu0 0.0
    %4532 = vmatprep.subr.mxu0 0.0
    %4533 = vmatpush1.msra.mxu0 0.0
    %4534 = vmatprep.subr.mxu0 0.0
    %4535 = vmatpush1.msra.mxu0 0.0
    %4536 = vmatprep.subr.mxu0 0.0
    %4537 = vmatpush1.msra.mxu0 0.0
    %4538 = vmatprep.subr.mxu0 0.0
    %4539 = vmatpush1.msra.mxu0 0.0
    %4540 = vmatprep.subr.mxu0 0.0
    %4541 = vmatpush1.msra.mxu0 0.0
    %4542 = vmatprep.subr.mxu0 0.0
    %4543 = vmatpush1.msra.mxu0 0.0
    %4544 = vmatprep.subr.mxu0 0.0
    %4545 = vmatpush1.msra.mxu0 0.0
    %4546 = vmatprep.subr.mxu0 0.0
    %4547 = vmatpush1.msra.mxu0 0.0
    %4548 = vmatprep.subr.mxu0 0.0
    %4549 = vmatpush1.msra.mxu0 0.0
    %4550 = vmatprep.subr.mxu0 0.0
    %4551 = vmatpush1.msra.mxu0 0.0
    %4552 = vmatprep.subr.mxu0 0.0
    %4553 = vmatpush1.msra.mxu0 0.0
    %4554 = vmatprep.subr.mxu0 0.0
    %4555 = vmatpush1.msra.mxu0 0.0
    %4556 = vmatprep.subr.mxu0 0.0
    %4557 = vmatpush1.msra.mxu0 0.0
    %4558 = vmatprep.subr.mxu0 %v4455
    %4559 = vmatpush1.msra.mxu0 %v4452
    %4560 = vmatprep.subr.mxu0 0.0
    %4561 = vmatpush2.msra.mxu0 0.0
    %4562 = vmatprep.subr.mxu0 0.0
    %4563 = vmatpush2.msra.mxu0 0.0
    %4564 = vmatprep.subr.mxu0 0.0
    %4565 = vmatpush2.msra.mxu0 0.0
    %4566 = vmatprep.subr.mxu0 0.0
    %4567 = vmatpush2.msra.mxu0 0.0
    %4568 = vmatprep.subr.mxu0 0.0
    %4569 = vmatpush2.msra.mxu0 0.0
    %4570 = vmatprep.subr.mxu0 0.0
    %4571 = vmatpush2.msra.mxu0 0.0
    %4572 = vmatprep.subr.mxu0 0.0
    %4573 = vmatpush2.msra.mxu0 0.0
    %4574 = vmatprep.subr.mxu0 0.0
    %4575 = vmatpush2.msra.mxu0 0.0
    %4576 = vmatprep.subr.mxu0 0.0
    %4577 = vmatpush2.msra.mxu0 0.0
    %4578 = vmatprep.subr.mxu0 0.0
    %4579 = vmatpush2.msra.mxu0 0.0
    %4580 = vmatprep.subr.mxu0 0.0
    %4581 = vmatpush2.msra.mxu0 0.0
    %4582 = vmatprep.subr.mxu0 0.0
    %4583 = vmatpush2.msra.mxu0 0.0
    %4584 = vmatprep.subr.mxu0 0.0
    %4585 = vmatpush2.msra.mxu0 0.0
    %4586 = vmatprep.subr.mxu0 0.0
    %4587 = vmatpush2.msra.mxu0 0.0
    %4588 = vmatprep.subr.mxu0 0.0
    %4589 = vmatpush2.msra.mxu0 0.0
    %4590 = vmatprep.subr.mxu0 0.0
    %4591 = vmatpush2.msra.mxu0 0.0
    %4592 = vmatprep.mubr.f32.mxu0 0.0
    %4593 = vmatmul.mubr.f32.gmra.mxu0 %v4443
    %v4594 = vpop.f32.mrf.mxu0
    %v4595 = vadd.f32 0.0, %v4594
    %v4596 = vpop.f32.mrf.mxu0
    %v4597 = vadd.f32 0.0, %v4596
    %4598 = vdwg.mxu0
    %v4599 = vadd.f32 %v4436, %v4524
    %v4600 = vadd.f32 %v4437, %v4526
    %v4601 = vadd.f32 %v4438, %v4595
    %v4602 = vadd.f32 %v4439, %v4597
    %4603 = vrot.lane.b32.xlu0 %v3729, 127
    %v4604 = vpop.permute.xlu0 %4603
    %4605 = vrot.lane.b32.xlu0 %v3730, 127
    %v4606 = vpop.permute.xlu0 %4605
    %4607 = vrot.lane.b32.xlu0 %v3731, 127
    %v4608 = vpop.permute.xlu0 %4607
    %4609 = vrot.lane.b32.xlu0 %v3732, 127
    %v4610 = vpop.permute.xlu0 %4609
    %v4611 = vsel %vm2907, %v4608, %v4610
    %v4612 = vsel %vm2907, %v4606, %v4608
    %v4613 = vsel %vm2907, %v4604, %v4606
    %v4614 = vsel %vm2907, %v4610, %v4604
    %v4615 = vmul.f32 %v4613, %v2918
    %v4616 = vmul.f32 %v4612, %v2922
    %v4617 = vmul.f32 %v4611, %v2926
    %v4618 = vmul.f32 %v4614, %v2930
    %s4619 = scalar_lea.vmem %s6, 20
    %v4620 = vld [vmem:[%s4619] sm:$0xf]
    %v4622 = vsel %vm200, %v4620, 0
    %v4625 = vsel %vm204, %v4615, 0
    %v4628 = vsel %vm204, %v4616, 0
    %v4631 = vsel %vm204, %v4617, 0
    %v4634 = vsel %vm204, %v4618, 0
    %4636 = vmatprep.subr.mxu0 0.0
    %4637 = vmatpush1.msra.mxu0 0.0
    %4638 = vmatprep.subr.mxu0 0.0
    %4639 = vmatpush1.msra.mxu0 0.0
    %4640 = vmatprep.subr.mxu0 0.0
    %4641 = vmatpush1.msra.mxu0 0.0
    %4642 = vmatprep.subr.mxu0 0.0
    %4643 = vmatpush1.msra.mxu0 0.0
    %4644 = vmatprep.subr.mxu0 0.0
    %4645 = vmatpush1.msra.mxu0 0.0
    %4646 = vmatprep.subr.mxu0 0.0
    %4647 = vmatpush1.msra.mxu0 0.0
    %4648 = vmatprep.subr.mxu0 0.0
    %4649 = vmatpush1.msra.mxu0 0.0
    %4650 = vmatprep.subr.mxu0 0.0
    %4651 = vmatpush1.msra.mxu0 0.0
    %4652 = vmatprep.subr.mxu0 0.0
    %4653 = vmatpush1.msra.mxu0 0.0
    %4654 = vmatprep.subr.mxu0 0.0
    %4655 = vmatpush1.msra.mxu0 0.0
    %4656 = vmatprep.subr.mxu0 0.0
    %4657 = vmatpush1.msra.mxu0 0.0
    %4658 = vmatprep.subr.mxu0 0.0
    %4659 = vmatpush1.msra.mxu0 0.0
    %4660 = vmatprep.subr.mxu0 0.0
    %4661 = vmatpush1.msra.mxu0 0.0
    %4662 = vmatprep.subr.mxu0 0.0
    %4663 = vmatpush1.msra.mxu0 0.0
    %4664 = vmatprep.subr.mxu0 0.0
    %4665 = vmatpush1.msra.mxu0 0.0
    %4666 = vmatprep.subr.mxu0 %v4628
    %4667 = vmatpush1.msra.mxu0 %v4625
    %4668 = vmatprep.subr.mxu0 0.0
    %4669 = vmatpush2.msra.mxu0 0.0
    %4670 = vmatprep.subr.mxu0 0.0
    %4671 = vmatpush2.msra.mxu0 0.0
    %4672 = vmatprep.subr.mxu0 0.0
    %4673 = vmatpush2.msra.mxu0 0.0
    %4674 = vmatprep.subr.mxu0 0.0
    %4675 = vmatpush2.msra.mxu0 0.0
    %4676 = vmatprep.subr.mxu0 0.0
    %4677 = vmatpush2.msra.mxu0 0.0
    %4678 = vmatprep.subr.mxu0 0.0
    %4679 = vmatpush2.msra.mxu0 0.0
    %4680 = vmatprep.subr.mxu0 0.0
    %4681 = vmatpush2.msra.mxu0 0.0
    %4682 = vmatprep.subr.mxu0 0.0
    %4683 = vmatpush2.msra.mxu0 0.0
    %4684 = vmatprep.subr.mxu0 0.0
    %4685 = vmatpush2.msra.mxu0 0.0
    %4686 = vmatprep.subr.mxu0 0.0
    %4687 = vmatpush2.msra.mxu0 0.0
    %4688 = vmatprep.subr.mxu0 0.0
    %4689 = vmatpush2.msra.mxu0 0.0
    %4690 = vmatprep.subr.mxu0 0.0
    %4691 = vmatpush2.msra.mxu0 0.0
    %4692 = vmatprep.subr.mxu0 0.0
    %4693 = vmatpush2.msra.mxu0 0.0
    %4694 = vmatprep.subr.mxu0 0.0
    %4695 = vmatpush2.msra.mxu0 0.0
    %4696 = vmatprep.subr.mxu0 0.0
    %4697 = vmatpush2.msra.mxu0 0.0
    %4698 = vmatprep.subr.mxu0 0.0
    %4699 = vmatpush2.msra.mxu0 0.0
    %4700 = vmatprep.mubr.f32.mxu0 0.0
    %4701 = vmatmul.mubr.f32.gmra.mxu0 %v4622
    %v4702 = vpop.f32.mrf.mxu0
    %v4703 = vadd.f32 0.0, %v4702
    %v4704 = vpop.f32.mrf.mxu0
    %v4705 = vadd.f32 0.0, %v4704
    %4706 = vdwg.mxu0
    %4707 = vmatprep.subr.mxu0 0.0
    %4708 = vmatpush1.msra.mxu0 0.0
    %4709 = vmatprep.subr.mxu0 0.0
    %4710 = vmatpush1.msra.mxu0 0.0
    %4711 = vmatprep.subr.mxu0 0.0
    %4712 = vmatpush1.msra.mxu0 0.0
    %4713 = vmatprep.subr.mxu0 0.0
    %4714 = vmatpush1.msra.mxu0 0.0
    %4715 = vmatprep.subr.mxu0 0.0
    %4716 = vmatpush1.msra.mxu0 0.0
    %4717 = vmatprep.subr.mxu0 0.0
    %4718 = vmatpush1.msra.mxu0 0.0
    %4719 = vmatprep.subr.mxu0 0.0
    %4720 = vmatpush1.msra.mxu0 0.0
    %4721 = vmatprep.subr.mxu0 0.0
    %4722 = vmatpush1.msra.mxu0 0.0
    %4723 = vmatprep.subr.mxu0 0.0
    %4724 = vmatpush1.msra.mxu0 0.0
    %4725 = vmatprep.subr.mxu0 0.0
    %4726 = vmatpush1.msra.mxu0 0.0
    %4727 = vmatprep.subr.mxu0 0.0
    %4728 = vmatpush1.msra.mxu0 0.0
    %4729 = vmatprep.subr.mxu0 0.0
    %4730 = vmatpush1.msra.mxu0 0.0
    %4731 = vmatprep.subr.mxu0 0.0
    %4732 = vmatpush1.msra.mxu0 0.0
    %4733 = vmatprep.subr.mxu0 0.0
    %4734 = vmatpush1.msra.mxu0 0.0
    %4735 = vmatprep.subr.mxu0 0.0
    %4736 = vmatpush1.msra.mxu0 0.0
    %4737 = vmatprep.subr.mxu0 %v4634
    %4738 = vmatpush1.msra.mxu0 %v4631
    %4739 = vmatprep.subr.mxu0 0.0
    %4740 = vmatpush2.msra.mxu0 0.0
    %4741 = vmatprep.subr.mxu0 0.0
    %4742 = vmatpush2.msra.mxu0 0.0
    %4743 = vmatprep.subr.mxu0 0.0
    %4744 = vmatpush2.msra.mxu0 0.0
    %4745 = vmatprep.subr.mxu0 0.0
    %4746 = vmatpush2.msra.mxu0 0.0
    %4747 = vmatprep.subr.mxu0 0.0
    %4748 = vmatpush2.msra.mxu0 0.0
    %4749 = vmatprep.subr.mxu0 0.0
    %4750 = vmatpush2.msra.mxu0 0.0
    %4751 = vmatprep.subr.mxu0 0.0
    %4752 = vmatpush2.msra.mxu0 0.0
    %4753 = vmatprep.subr.mxu0 0.0
    %4754 = vmatpush2.msra.mxu0 0.0
    %4755 = vmatprep.subr.mxu0 0.0
    %4756 = vmatpush2.msra.mxu0 0.0
    %4757 = vmatprep.subr.mxu0 0.0
    %4758 = vmatpush2.msra.mxu0 0.0
    %4759 = vmatprep.subr.mxu0 0.0
    %4760 = vmatpush2.msra.mxu0 0.0
    %4761 = vmatprep.subr.mxu0 0.0
    %4762 = vmatpush2.msra.mxu0 0.0
    %4763 = vmatprep.subr.mxu0 0.0
    %4764 = vmatpush2.msra.mxu0 0.0
    %4765 = vmatprep.subr.mxu0 0.0
    %4766 = vmatpush2.msra.mxu0 0.0
    %4767 = vmatprep.subr.mxu0 0.0
    %4768 = vmatpush2.msra.mxu0 0.0
    %4769 = vmatprep.subr.mxu0 0.0
    %4770 = vmatpush2.msra.mxu0 0.0
    %4771 = vmatprep.mubr.f32.mxu0 0.0
    %4772 = vmatmul.mubr.f32.gmra.mxu0 %v4622
    %v4773 = vpop.f32.mrf.mxu0
    %v4774 = vadd.f32 0.0, %v4773
    %v4775 = vpop.f32.mrf.mxu0
    %v4776 = vadd.f32 0.0, %v4775
    %4777 = vdwg.mxu0
    %v4778 = vadd.f32 %v4599, %v4703
    %v4779 = vadd.f32 %v4600, %v4705
    %v4780 = vadd.f32 %v4601, %v4774
    %v4781 = vadd.f32 %v4602, %v4776
    %4782 = vrot.lane.b32.xlu0 %v3729, 113
    %v4783 = vpop.permute.xlu0 %4782
    %4784 = vrot.lane.b32.xlu0 %v3730, 113
    %v4785 = vpop.permute.xlu0 %4784
    %4786 = vrot.lane.b32.xlu0 %v3731, 113
    %v4787 = vpop.permute.xlu0 %4786
    %4788 = vrot.lane.b32.xlu0 %v3732, 113
    %v4789 = vpop.permute.xlu0 %4788
    %v4790 = vsel %vm3110, %v4787, %v4789
    %v4791 = vsel %vm3110, %v4785, %v4787
    %v4792 = vsel %vm3110, %v4783, %v4785
    %v4793 = vsel %vm3110, %v4789, %v4783
    %v4794 = vmul.f32 %v4792, %v3121
    %v4795 = vmul.f32 %v4791, %v3125
    %v4796 = vmul.f32 %v4790, %v3129
    %v4797 = vmul.f32 %v4793, %v3133
    %s4798 = scalar_lea.vmem %s6, 24
    %v4799 = vld [vmem:[%s4798] sm:$0xf]
    %v4801 = vsel %vm200, %v4799, 0
    %v4804 = vsel %vm204, %v4794, 0
    %v4807 = vsel %vm204, %v4795, 0
    %v4810 = vsel %vm204, %v4796, 0
    %v4813 = vsel %vm204, %v4797, 0
    %4815 = vmatprep.subr.mxu0 0.0
    %4816 = vmatpush1.msra.mxu0 0.0
    %4817 = vmatprep.subr.mxu0 0.0
    %4818 = vmatpush1.msra.mxu0 0.0
    %4819 = vmatprep.subr.mxu0 0.0
    %4820 = vmatpush1.msra.mxu0 0.0
    %4821 = vmatprep.subr.mxu0 0.0
    %4822 = vmatpush1.msra.mxu0 0.0
    %4823 = vmatprep.subr.mxu0 0.0
    %4824 = vmatpush1.msra.mxu0 0.0
    %4825 = vmatprep.subr.mxu0 0.0
    %4826 = vmatpush1.msra.mxu0 0.0
    %4827 = vmatprep.subr.mxu0 0.0
    %4828 = vmatpush1.msra.mxu0 0.0
    %4829 = vmatprep.subr.mxu0 0.0
    %4830 = vmatpush1.msra.mxu0 0.0
    %4831 = vmatprep.subr.mxu0 0.0
    %4832 = vmatpush1.msra.mxu0 0.0
    %4833 = vmatprep.subr.mxu0 0.0
    %4834 = vmatpush1.msra.mxu0 0.0
    %4835 = vmatprep.subr.mxu0 0.0
    %4836 = vmatpush1.msra.mxu0 0.0
    %4837 = vmatprep.subr.mxu0 0.0
    %4838 = vmatpush1.msra.mxu0 0.0
    %4839 = vmatprep.subr.mxu0 0.0
    %4840 = vmatpush1.msra.mxu0 0.0
    %4841 = vmatprep.subr.mxu0 0.0
    %4842 = vmatpush1.msra.mxu0 0.0
    %4843 = vmatprep.subr.mxu0 0.0
    %4844 = vmatpush1.msra.mxu0 0.0
    %4845 = vmatprep.subr.mxu0 %v4807
    %4846 = vmatpush1.msra.mxu0 %v4804
    %4847 = vmatprep.subr.mxu0 0.0
    %4848 = vmatpush2.msra.mxu0 0.0
    %4849 = vmatprep.subr.mxu0 0.0
    %4850 = vmatpush2.msra.mxu0 0.0
    %4851 = vmatprep.subr.mxu0 0.0
    %4852 = vmatpush2.msra.mxu0 0.0
    %4853 = vmatprep.subr.mxu0 0.0
    %4854 = vmatpush2.msra.mxu0 0.0
    %4855 = vmatprep.subr.mxu0 0.0
    %4856 = vmatpush2.msra.mxu0 0.0
    %4857 = vmatprep.subr.mxu0 0.0
    %4858 = vmatpush2.msra.mxu0 0.0
    %4859 = vmatprep.subr.mxu0 0.0
    %4860 = vmatpush2.msra.mxu0 0.0
    %4861 = vmatprep.subr.mxu0 0.0
    %4862 = vmatpush2.msra.mxu0 0.0
    %4863 = vmatprep.subr.mxu0 0.0
    %4864 = vmatpush2.msra.mxu0 0.0
    %4865 = vmatprep.subr.mxu0 0.0
    %4866 = vmatpush2.msra.mxu0 0.0
    %4867 = vmatprep.subr.mxu0 0.0
    %4868 = vmatpush2.msra.mxu0 0.0
    %4869 = vmatprep.subr.mxu0 0.0
    %4870 = vmatpush2.msra.mxu0 0.0
    %4871 = vmatprep.subr.mxu0 0.0
    %4872 = vmatpush2.msra.mxu0 0.0
    %4873 = vmatprep.subr.mxu0 0.0
    %4874 = vmatpush2.msra.mxu0 0.0
    %4875 = vmatprep.subr.mxu0 0.0
    %4876 = vmatpush2.msra.mxu0 0.0
    %4877 = vmatprep.subr.mxu0 0.0
    %4878 = vmatpush2.msra.mxu0 0.0
    %4879 = vmatprep.mubr.f32.mxu0 0.0
    %4880 = vmatmul.mubr.f32.gmra.mxu0 %v4801
    %v4881 = vpop.f32.mrf.mxu0
    %v4882 = vadd.f32 0.0, %v4881
    %v4883 = vpop.f32.mrf.mxu0
    %v4884 = vadd.f32 0.0, %v4883
    %4885 = vdwg.mxu0
    %4886 = vmatprep.subr.mxu0 0.0
    %4887 = vmatpush1.msra.mxu0 0.0
    %4888 = vmatprep.subr.mxu0 0.0
    %4889 = vmatpush1.msra.mxu0 0.0
    %4890 = vmatprep.subr.mxu0 0.0
    %4891 = vmatpush1.msra.mxu0 0.0
    %4892 = vmatprep.subr.mxu0 0.0
    %4893 = vmatpush1.msra.mxu0 0.0
    %4894 = vmatprep.subr.mxu0 0.0
    %4895 = vmatpush1.msra.mxu0 0.0
    %4896 = vmatprep.subr.mxu0 0.0
    %4897 = vmatpush1.msra.mxu0 0.0
    %4898 = vmatprep.subr.mxu0 0.0
    %4899 = vmatpush1.msra.mxu0 0.0
    %4900 = vmatprep.subr.mxu0 0.0
    %4901 = vmatpush1.msra.mxu0 0.0
    %4902 = vmatprep.subr.mxu0 0.0
    %4903 = vmatpush1.msra.mxu0 0.0
    %4904 = vmatprep.subr.mxu0 0.0
    %4905 = vmatpush1.msra.mxu0 0.0
    %4906 = vmatprep.subr.mxu0 0.0
    %4907 = vmatpush1.msra.mxu0 0.0
    %4908 = vmatprep.subr.mxu0 0.0
    %4909 = vmatpush1.msra.mxu0 0.0
    %4910 = vmatprep.subr.mxu0 0.0
    %4911 = vmatpush1.msra.mxu0 0.0
    %4912 = vmatprep.subr.mxu0 0.0
    %4913 = vmatpush1.msra.mxu0 0.0
    %4914 = vmatprep.subr.mxu0 0.0
    %4915 = vmatpush1.msra.mxu0 0.0
    %4916 = vmatprep.subr.mxu0 %v4813
    %4917 = vmatpush1.msra.mxu0 %v4810
    %4918 = vmatprep.subr.mxu0 0.0
    %4919 = vmatpush2.msra.mxu0 0.0
    %4920 = vmatprep.subr.mxu0 0.0
    %4921 = vmatpush2.msra.mxu0 0.0
    %4922 = vmatprep.subr.mxu0 0.0
    %4923 = vmatpush2.msra.mxu0 0.0
    %4924 = vmatprep.subr.mxu0 0.0
    %4925 = vmatpush2.msra.mxu0 0.0
    %4926 = vmatprep.subr.mxu0 0.0
    %4927 = vmatpush2.msra.mxu0 0.0
    %4928 = vmatprep.subr.mxu0 0.0
    %4929 = vmatpush2.msra.mxu0 0.0
    %4930 = vmatprep.subr.mxu0 0.0
    %4931 = vmatpush2.msra.mxu0 0.0
    %4932 = vmatprep.subr.mxu0 0.0
    %4933 = vmatpush2.msra.mxu0 0.0
    %4934 = vmatprep.subr.mxu0 0.0
    %4935 = vmatpush2.msra.mxu0 0.0
    %4936 = vmatprep.subr.mxu0 0.0
    %4937 = vmatpush2.msra.mxu0 0.0
    %4938 = vmatprep.subr.mxu0 0.0
    %4939 = vmatpush2.msra.mxu0 0.0
    %4940 = vmatprep.subr.mxu0 0.0
    %4941 = vmatpush2.msra.mxu0 0.0
    %4942 = vmatprep.subr.mxu0 0.0
    %4943 = vmatpush2.msra.mxu0 0.0
    %4944 = vmatprep.subr.mxu0 0.0
    %4945 = vmatpush2.msra.mxu0 0.0
    %4946 = vmatprep.subr.mxu0 0.0
    %4947 = vmatpush2.msra.mxu0 0.0
    %4948 = vmatprep.subr.mxu0 0.0
    %4949 = vmatpush2.msra.mxu0 0.0
    %4950 = vmatprep.mubr.f32.mxu0 0.0
    %4951 = vmatmul.mubr.f32.gmra.mxu0 %v4801
    %v4952 = vpop.f32.mrf.mxu0
    %v4953 = vadd.f32 0.0, %v4952
    %v4954 = vpop.f32.mrf.mxu0
    %v4955 = vadd.f32 0.0, %v4954
    %4956 = vdwg.mxu0
    %v4957 = vadd.f32 %v4778, %v4882
    %v4958 = vadd.f32 %v4779, %v4884
    %v4959 = vadd.f32 %v4780, %v4953
    %v4960 = vadd.f32 %v4781, %v4955
    %4961 = vrot.lane.b32.xlu0 %v3729, 112
    %v4962 = vpop.permute.xlu0 %4961
    %4963 = vrot.lane.b32.xlu0 %v3730, 112
    %v4964 = vpop.permute.xlu0 %4963
    %4965 = vrot.lane.b32.xlu0 %v3731, 112
    %v4966 = vpop.permute.xlu0 %4965
    %4967 = vrot.lane.b32.xlu0 %v3732, 112
    %v4968 = vpop.permute.xlu0 %4967
    %v4969 = vsel %vm3313, %v4966, %v4968
    %v4970 = vsel %vm3313, %v4964, %v4966
    %v4971 = vsel %vm3313, %v4962, %v4964
    %v4972 = vsel %vm3313, %v4968, %v4962
    %v4973 = vmul.f32 %v4971, %v3324
    %v4974 = vmul.f32 %v4970, %v3328
    %v4975 = vmul.f32 %v4969, %v3332
    %v4976 = vmul.f32 %v4972, %v3336
    %s4977 = scalar_lea.vmem %s6, 28
    %v4978 = vld [vmem:[%s4977] sm:$0xf]
    %v4980 = vsel %vm200, %v4978, 0
    %v4983 = vsel %vm204, %v4973, 0
    %v4986 = vsel %vm204, %v4974, 0
    %v4989 = vsel %vm204, %v4975, 0
    %v4992 = vsel %vm204, %v4976, 0
    %4994 = vmatprep.subr.mxu0 0.0
    %4995 = vmatpush1.msra.mxu0 0.0
    %4996 = vmatprep.subr.mxu0 0.0
    %4997 = vmatpush1.msra.mxu0 0.0
    %4998 = vmatprep.subr.mxu0 0.0
    %4999 = vmatpush1.msra.mxu0 0.0
    %5000 = vmatprep.subr.mxu0 0.0
    %5001 = vmatpush1.msra.mxu0 0.0
    %5002 = vmatprep.subr.mxu0 0.0
    %5003 = vmatpush1.msra.mxu0 0.0
    %5004 = vmatprep.subr.mxu0 0.0
    %5005 = vmatpush1.msra.mxu0 0.0
    %5006 = vmatprep.subr.mxu0 0.0
    %5007 = vmatpush1.msra.mxu0 0.0
    %5008 = vmatprep.subr.mxu0 0.0
    %5009 = vmatpush1.msra.mxu0 0.0
    %5010 = vmatprep.subr.mxu0 0.0
    %5011 = vmatpush1.msra.mxu0 0.0
    %5012 = vmatprep.subr.mxu0 0.0
    %5013 = vmatpush1.msra.mxu0 0.0
    %5014 = vmatprep.subr.mxu0 0.0
    %5015 = vmatpush1.msra.mxu0 0.0
    %5016 = vmatprep.subr.mxu0 0.0
    %5017 = vmatpush1.msra.mxu0 0.0
    %5018 = vmatprep.subr.mxu0 0.0
    %5019 = vmatpush1.msra.mxu0 0.0
    %5020 = vmatprep.subr.mxu0 0.0
    %5021 = vmatpush1.msra.mxu0 0.0
    %5022 = vmatprep.subr.mxu0 0.0
    %5023 = vmatpush1.msra.mxu0 0.0
    %5024 = vmatprep.subr.mxu0 %v4986
    %5025 = vmatpush1.msra.mxu0 %v4983
    %5026 = vmatprep.subr.mxu0 0.0
    %5027 = vmatpush2.msra.mxu0 0.0
    %5028 = vmatprep.subr.mxu0 0.0
    %5029 = vmatpush2.msra.mxu0 0.0
    %5030 = vmatprep.subr.mxu0 0.0
    %5031 = vmatpush2.msra.mxu0 0.0
    %5032 = vmatprep.subr.mxu0 0.0
    %5033 = vmatpush2.msra.mxu0 0.0
    %5034 = vmatprep.subr.mxu0 0.0
    %5035 = vmatpush2.msra.mxu0 0.0
    %5036 = vmatprep.subr.mxu0 0.0
    %5037 = vmatpush2.msra.mxu0 0.0
    %5038 = vmatprep.subr.mxu0 0.0
    %5039 = vmatpush2.msra.mxu0 0.0
    %5040 = vmatprep.subr.mxu0 0.0
    %5041 = vmatpush2.msra.mxu0 0.0
    %5042 = vmatprep.subr.mxu0 0.0
    %5043 = vmatpush2.msra.mxu0 0.0
    %5044 = vmatprep.subr.mxu0 0.0
    %5045 = vmatpush2.msra.mxu0 0.0
    %5046 = vmatprep.subr.mxu0 0.0
    %5047 = vmatpush2.msra.mxu0 0.0
    %5048 = vmatprep.subr.mxu0 0.0
    %5049 = vmatpush2.msra.mxu0 0.0
    %5050 = vmatprep.subr.mxu0 0.0
    %5051 = vmatpush2.msra.mxu0 0.0
    %5052 = vmatprep.subr.mxu0 0.0
    %5053 = vmatpush2.msra.mxu0 0.0
    %5054 = vmatprep.subr.mxu0 0.0
    %5055 = vmatpush2.msra.mxu0 0.0
    %5056 = vmatprep.subr.mxu0 0.0
    %5057 = vmatpush2.msra.mxu0 0.0
    %5058 = vmatprep.mubr.f32.mxu0 0.0
    %5059 = vmatmul.mubr.f32.gmra.mxu0 %v4980
    %v5060 = vpop.f32.mrf.mxu0
    %v5061 = vadd.f32 0.0, %v5060
    %v5062 = vpop.f32.mrf.mxu0
    %v5063 = vadd.f32 0.0, %v5062
    %5064 = vdwg.mxu0
    %5065 = vmatprep.subr.mxu0 0.0
    %5066 = vmatpush1.msra.mxu0 0.0
    %5067 = vmatprep.subr.mxu0 0.0
    %5068 = vmatpush1.msra.mxu0 0.0
    %5069 = vmatprep.subr.mxu0 0.0
    %5070 = vmatpush1.msra.mxu0 0.0
    %5071 = vmatprep.subr.mxu0 0.0
    %5072 = vmatpush1.msra.mxu0 0.0
    %5073 = vmatprep.subr.mxu0 0.0
    %5074 = vmatpush1.msra.mxu0 0.0
    %5075 = vmatprep.subr.mxu0 0.0
    %5076 = vmatpush1.msra.mxu0 0.0
    %5077 = vmatprep.subr.mxu0 0.0
    %5078 = vmatpush1.msra.mxu0 0.0
    %5079 = vmatprep.subr.mxu0 0.0
    %5080 = vmatpush1.msra.mxu0 0.0
    %5081 = vmatprep.subr.mxu0 0.0
    %5082 = vmatpush1.msra.mxu0 0.0
    %5083 = vmatprep.subr.mxu0 0.0
    %5084 = vmatpush1.msra.mxu0 0.0
    %5085 = vmatprep.subr.mxu0 0.0
    %5086 = vmatpush1.msra.mxu0 0.0
    %5087 = vmatprep.subr.mxu0 0.0
    %5088 = vmatpush1.msra.mxu0 0.0
    %5089 = vmatprep.subr.mxu0 0.0
    %5090 = vmatpush1.msra.mxu0 0.0
    %5091 = vmatprep.subr.mxu0 0.0
    %5092 = vmatpush1.msra.mxu0 0.0
    %5093 = vmatprep.subr.mxu0 0.0
    %5094 = vmatpush1.msra.mxu0 0.0
    %5095 = vmatprep.subr.mxu0 %v4992
    %5096 = vmatpush1.msra.mxu0 %v4989
    %5097 = vmatprep.subr.mxu0 0.0
    %5098 = vmatpush2.msra.mxu0 0.0
    %5099 = vmatprep.subr.mxu0 0.0
    %5100 = vmatpush2.msra.mxu0 0.0
    %5101 = vmatprep.subr.mxu0 0.0
    %5102 = vmatpush2.msra.mxu0 0.0
    %5103 = vmatprep.subr.mxu0 0.0
    %5104 = vmatpush2.msra.mxu0 0.0
    %5105 = vmatprep.subr.mxu0 0.0
    %5106 = vmatpush2.msra.mxu0 0.0
    %5107 = vmatprep.subr.mxu0 0.0
    %5108 = vmatpush2.msra.mxu0 0.0
    %5109 = vmatprep.subr.mxu0 0.0
    %5110 = vmatpush2.msra.mxu0 0.0
    %5111 = vmatprep.subr.mxu0 0.0
    %5112 = vmatpush2.msra.mxu0 0.0
    %5113 = vmatprep.subr.mxu0 0.0
    %5114 = vmatpush2.msra.mxu0 0.0
    %5115 = vmatprep.subr.mxu0 0.0
    %5116 = vmatpush2.msra.mxu0 0.0
    %5117 = vmatprep.subr.mxu0 0.0
    %5118 = vmatpush2.msra.mxu0 0.0
    %5119 = vmatprep.subr.mxu0 0.0
    %5120 = vmatpush2.msra.mxu0 0.0
    %5121 = vmatprep.subr.mxu0 0.0
    %5122 = vmatpush2.msra.mxu0 0.0
    %5123 = vmatprep.subr.mxu0 0.0
    %5124 = vmatpush2.msra.mxu0 0.0
    %5125 = vmatprep.subr.mxu0 0.0
    %5126 = vmatpush2.msra.mxu0 0.0
    %5127 = vmatprep.subr.mxu0 0.0
    %5128 = vmatpush2.msra.mxu0 0.0
    %5129 = vmatprep.mubr.f32.mxu0 0.0
    %5130 = vmatmul.mubr.f32.gmra.mxu0 %v4980
    %v5131 = vpop.f32.mrf.mxu0
    %v5132 = vadd.f32 0.0, %v5131
    %v5133 = vpop.f32.mrf.mxu0
    %v5134 = vadd.f32 0.0, %v5133
    %5135 = vdwg.mxu0
    %v5136 = vadd.f32 %v4957, %v5061
    %v5137 = vadd.f32 %v4958, %v5063
    %v5138 = vadd.f32 %v4959, %v5132
    %v5139 = vadd.f32 %v4960, %v5134
    %5140 = vrot.lane.b32.xlu0 %v3729, 111
    %v5141 = vpop.permute.xlu0 %5140
    %5142 = vrot.lane.b32.xlu0 %v3730, 111
    %v5143 = vpop.permute.xlu0 %5142
    %5144 = vrot.lane.b32.xlu0 %v3731, 111
    %v5145 = vpop.permute.xlu0 %5144
    %5146 = vrot.lane.b32.xlu0 %v3732, 111
    %v5147 = vpop.permute.xlu0 %5146
    %v5148 = vsel %vm3516, %v5145, %v5147
    %v5149 = vsel %vm3516, %v5143, %v5145
    %v5150 = vsel %vm3516, %v5141, %v5143
    %v5151 = vsel %vm3516, %v5147, %v5141
    %v5152 = vmul.f32 %v5150, %v3527
    %v5153 = vmul.f32 %v5149, %v3531
    %v5154 = vmul.f32 %v5148, %v3535
    %v5155 = vmul.f32 %v5151, %v3539
    %s5156 = scalar_lea.vmem %s6, 32
    %v5157 = vld [vmem:[%s5156] sm:$0xf]
    %v5159 = vsel %vm200, %v5157, 0
    %v5162 = vsel %vm204, %v5152, 0
    %v5165 = vsel %vm204, %v5153, 0
    %v5168 = vsel %vm204, %v5154, 0
    %v5171 = vsel %vm204, %v5155, 0
    %5173 = vmatprep.subr.mxu0 0.0
    %5174 = vmatpush1.msra.mxu0 0.0
    %5175 = vmatprep.subr.mxu0 0.0
    %5176 = vmatpush1.msra.mxu0 0.0
    %5177 = vmatprep.subr.mxu0 0.0
    %5178 = vmatpush1.msra.mxu0 0.0
    %5179 = vmatprep.subr.mxu0 0.0
    %5180 = vmatpush1.msra.mxu0 0.0
    %5181 = vmatprep.subr.mxu0 0.0
    %5182 = vmatpush1.msra.mxu0 0.0
    %5183 = vmatprep.subr.mxu0 0.0
    %5184 = vmatpush1.msra.mxu0 0.0
    %5185 = vmatprep.subr.mxu0 0.0
    %5186 = vmatpush1.msra.mxu0 0.0
    %5187 = vmatprep.subr.mxu0 0.0
    %5188 = vmatpush1.msra.mxu0 0.0
    %5189 = vmatprep.subr.mxu0 0.0
    %5190 = vmatpush1.msra.mxu0 0.0
    %5191 = vmatprep.subr.mxu0 0.0
    %5192 = vmatpush1.msra.mxu0 0.0
    %5193 = vmatprep.subr.mxu0 0.0
    %5194 = vmatpush1.msra.mxu0 0.0
    %5195 = vmatprep.subr.mxu0 0.0
    %5196 = vmatpush1.msra.mxu0 0.0
    %5197 = vmatprep.subr.mxu0 0.0
    %5198 = vmatpush1.msra.mxu0 0.0
    %5199 = vmatprep.subr.mxu0 0.0
    %5200 = vmatpush1.msra.mxu0 0.0
    %5201 = vmatprep.subr.mxu0 0.0
    %5202 = vmatpush1.msra.mxu0 0.0
    %5203 = vmatprep.subr.mxu0 %v5165
    %5204 = vmatpush1.msra.mxu0 %v5162
    %5205 = vmatprep.subr.mxu0 0.0
    %5206 = vmatpush2.msra.mxu0 0.0
    %5207 = vmatprep.subr.mxu0 0.0
    %5208 = vmatpush2.msra.mxu0 0.0
    %5209 = vmatprep.subr.mxu0 0.0
    %5210 = vmatpush2.msra.mxu0 0.0
    %5211 = vmatprep.subr.mxu0 0.0
    %5212 = vmatpush2.msra.mxu0 0.0
    %5213 = vmatprep.subr.mxu0 0.0
    %5214 = vmatpush2.msra.mxu0 0.0
    %5215 = vmatprep.subr.mxu0 0.0
    %5216 = vmatpush2.msra.mxu0 0.0
    %5217 = vmatprep.subr.mxu0 0.0
    %5218 = vmatpush2.msra.mxu0 0.0
    %5219 = vmatprep.subr.mxu0 0.0
    %5220 = vmatpush2.msra.mxu0 0.0
    %5221 = vmatprep.subr.mxu0 0.0
    %5222 = vmatpush2.msra.mxu0 0.0
    %5223 = vmatprep.subr.mxu0 0.0
    %5224 = vmatpush2.msra.mxu0 0.0
    %5225 = vmatprep.subr.mxu0 0.0
    %5226 = vmatpush2.msra.mxu0 0.0
    %5227 = vmatprep.subr.mxu0 0.0
    %5228 = vmatpush2.msra.mxu0 0.0
    %5229 = vmatprep.subr.mxu0 0.0
    %5230 = vmatpush2.msra.mxu0 0.0
    %5231 = vmatprep.subr.mxu0 0.0
    %5232 = vmatpush2.msra.mxu0 0.0
    %5233 = vmatprep.subr.mxu0 0.0
    %5234 = vmatpush2.msra.mxu0 0.0
    %5235 = vmatprep.subr.mxu0 0.0
    %5236 = vmatpush2.msra.mxu0 0.0
    %5237 = vmatprep.mubr.f32.mxu0 0.0
    %5238 = vmatmul.mubr.f32.gmra.mxu0 %v5159
    %v5239 = vpop.f32.mrf.mxu0
    %v5240 = vadd.f32 0.0, %v5239
    %v5241 = vpop.f32.mrf.mxu0
    %v5242 = vadd.f32 0.0, %v5241
    %5243 = vdwg.mxu0
    %5244 = vmatprep.subr.mxu0 0.0
    %5245 = vmatpush1.msra.mxu0 0.0
    %5246 = vmatprep.subr.mxu0 0.0
    %5247 = vmatpush1.msra.mxu0 0.0
    %5248 = vmatprep.subr.mxu0 0.0
    %5249 = vmatpush1.msra.mxu0 0.0
    %5250 = vmatprep.subr.mxu0 0.0
    %5251 = vmatpush1.msra.mxu0 0.0
    %5252 = vmatprep.subr.mxu0 0.0
    %5253 = vmatpush1.msra.mxu0 0.0
    %5254 = vmatprep.subr.mxu0 0.0
    %5255 = vmatpush1.msra.mxu0 0.0
    %5256 = vmatprep.subr.mxu0 0.0
    %5257 = vmatpush1.msra.mxu0 0.0
    %5258 = vmatprep.subr.mxu0 0.0
    %5259 = vmatpush1.msra.mxu0 0.0
    %5260 = vmatprep.subr.mxu0 0.0
    %5261 = vmatpush1.msra.mxu0 0.0
    %5262 = vmatprep.subr.mxu0 0.0
    %5263 = vmatpush1.msra.mxu0 0.0
    %5264 = vmatprep.subr.mxu0 0.0
    %5265 = vmatpush1.msra.mxu0 0.0
    %5266 = vmatprep.subr.mxu0 0.0
    %5267 = vmatpush1.msra.mxu0 0.0
    %5268 = vmatprep.subr.mxu0 0.0
    %5269 = vmatpush1.msra.mxu0 0.0
    %5270 = vmatprep.subr.mxu0 0.0
    %5271 = vmatpush1.msra.mxu0 0.0
    %5272 = vmatprep.subr.mxu0 0.0
    %5273 = vmatpush1.msra.mxu0 0.0
    %5274 = vmatprep.subr.mxu0 %v5171
    %5275 = vmatpush1.msra.mxu0 %v5168
    %5276 = vmatprep.subr.mxu0 0.0
    %5277 = vmatpush2.msra.mxu0 0.0
    %5278 = vmatprep.subr.mxu0 0.0
    %5279 = vmatpush2.msra.mxu0 0.0
    %5280 = vmatprep.subr.mxu0 0.0
    %5281 = vmatpush2.msra.mxu0 0.0
    %5282 = vmatprep.subr.mxu0 0.0
    %5283 = vmatpush2.msra.mxu0 0.0
    %5284 = vmatprep.subr.mxu0 0.0
    %5285 = vmatpush2.msra.mxu0 0.0
    %5286 = vmatprep.subr.mxu0 0.0
    %5287 = vmatpush2.msra.mxu0 0.0
    %5288 = vmatprep.subr.mxu0 0.0
    %5289 = vmatpush2.msra.mxu0 0.0
    %5290 = vmatprep.subr.mxu0 0.0
    %5291 = vmatpush2.msra.mxu0 0.0
    %5292 = vmatprep.subr.mxu0 0.0
    %5293 = vmatpush2.msra.mxu0 0.0
    %5294 = vmatprep.subr.mxu0 0.0
    %5295 = vmatpush2.msra.mxu0 0.0
    %5296 = vmatprep.subr.mxu0 0.0
    %5297 = vmatpush2.msra.mxu0 0.0
    %5298 = vmatprep.subr.mxu0 0.0
    %5299 = vmatpush2.msra.mxu0 0.0
    %5300 = vmatprep.subr.mxu0 0.0
    %5301 = vmatpush2.msra.mxu0 0.0
    %5302 = vmatprep.subr.mxu0 0.0
    %5303 = vmatpush2.msra.mxu0 0.0
    %5304 = vmatprep.subr.mxu0 0.0
    %5305 = vmatpush2.msra.mxu0 0.0
    %5306 = vmatprep.subr.mxu0 0.0
    %5307 = vmatpush2.msra.mxu0 0.0
    %5308 = vmatprep.mubr.f32.mxu0 0.0
    %5309 = vmatmul.mubr.f32.gmra.mxu0 %v5159
    %v5310 = vpop.f32.mrf.mxu0
    %v5311 = vadd.f32 0.0, %v5310
    %v5312 = vpop.f32.mrf.mxu0
    %v5313 = vadd.f32 0.0, %v5312
    %5314 = vdwg.mxu0
    %v5315 = vadd.f32 %v5136, %v5240
    %v5316 = vadd.f32 %v5137, %v5242
    %v5317 = vadd.f32 %v5138, %v5311
    %v5318 = vadd.f32 %v5139, %v5313
    %v5319 = vld [vmem:[%s11] sm:$0xf]
    %5321 = vset.pattern.permute.xlu0 0
    %5322 = vperm.xlu0 %5321, %v5319
    %v5323 = vpop.permute.xlu0 %5322
    %v5325 = vadd.f32 %v5315, %v5323
    %v5326 = vadd.f32 %v5316, %v5323
    %v5327 = vadd.f32 %v5317, %v5323
    %v5328 = vadd.f32 %v5318, %v5323
    %vm5329 = vcmp.ge.f32.partialorder %v5325, 0.0
    %vm5330 = vcmp.ge.f32.partialorder %v5326, 0.0
    %vm5331 = vcmp.ge.f32.partialorder %v5327, 0.0
    %vm5332 = vcmp.ge.f32.partialorder %v5328, 0.0
    %v5333 = vmul.f32 %v5325, 0.2
    %v5334 = vmul.f32 %v5326, 0.2
    %v5335 = vmul.f32 %v5327, 0.2
    %v5336 = vmul.f32 %v5328, 0.2
    %v5337 = vsel %vm5329, %v5325, %v5333
    %v5338 = vsel %vm5330, %v5326, %v5334
    %v5339 = vsel %vm5331, %v5327, %v5335
    %v5340 = vsel %vm5332, %v5328, %v5336
    %v5341 = vadd.f32 %v5337, %v1857
    %v5342 = vadd.f32 %v5338, %v1859
    %v5343 = vadd.f32 %v5339, %v1928
    %v5344 = vadd.f32 %v5340, %v1930
    %5345 = vrot.lane.b32.xlu0 %v5341, 17
    %v5346 = vpop.permute.xlu0 %5345
    %5347 = vrot.lane.b32.xlu0 %v5342, 17
    %v5348 = vpop.permute.xlu0 %5347
    %5349 = vrot.lane.b32.xlu0 %v5343, 17
    %v5350 = vpop.permute.xlu0 %5349
    %5351 = vrot.lane.b32.xlu0 %v5344, 17
    %v5352 = vpop.permute.xlu0 %5351
    %v5353 = vsel %vm1942, %v5350, %v5352
    %v5354 = vsel %vm1942, %v5348, %v5350
    %v5355 = vsel %vm1942, %v5346, %v5348
    %v5356 = vsel %vm1942, %v5352, %v5346
    %v5357 = vmul.f32 %v5356, %v1952
    %v5358 = vmul.f32 %v5355, %v1956
    %v5359 = vmul.f32 %v5354, %v1960
    %v5360 = vmul.f32 %v5353, %v1964
    %v5361 = vld [vmem:[%s7] sm:$0x7]
    %5362 = vrot.lane.b32.xlu0 %v5341, 16
    %v5363 = vpop.permute.xlu0 %5362
    %5364 = vrot.lane.b32.xlu0 %v5342, 16
    %v5365 = vpop.permute.xlu0 %5364
    %5366 = vrot.lane.b32.xlu0 %v5343, 16
    %v5367 = vpop.permute.xlu0 %5366
    %5368 = vrot.lane.b32.xlu0 %v5344, 16
    %v5369 = vpop.permute.xlu0 %5368
    %v5370 = vsel %vm1982, %v5367, %v5369
    %v5371 = vsel %vm1982, %v5365, %v5367
    %v5372 = vsel %vm1982, %v5363, %v5365
    %v5373 = vsel %vm1982, %v5369, %v5363
    %v5374 = vmul.f32 %v5373, %v1993
    %v5375 = vmul.f32 %v5372, %v1997
    %v5376 = vmul.f32 %v5371, %v2001
    %v5377 = vmul.f32 %v5370, %v2005
    %s5378 = scalar_lea.vmem %s7, 4
    %v5379 = vld [vmem:[%s5378] sm:$0x7]
    %v5381 = vsel %vm200, %v5379, 0
    %v5384 = vsel %vm204, %v5374, 0
    %v5387 = vsel %vm204, %v5375, 0
    %v5390 = vsel %vm204, %v5376, 0
    %v5393 = vsel %vm204, %v5377, 0
    %5395 = vmatprep.subr.mxu0 0.0
    %5396 = vmatpush1.msra.mxu0 0.0
    %5397 = vmatprep.subr.mxu0 0.0
    %5398 = vmatpush1.msra.mxu0 0.0
    %5399 = vmatprep.subr.mxu0 0.0
    %5400 = vmatpush1.msra.mxu0 0.0
    %5401 = vmatprep.subr.mxu0 0.0
    %5402 = vmatpush1.msra.mxu0 0.0
    %5403 = vmatprep.subr.mxu0 0.0
    %5404 = vmatpush1.msra.mxu0 0.0
    %5405 = vmatprep.subr.mxu0 0.0
    %5406 = vmatpush1.msra.mxu0 0.0
    %5407 = vmatprep.subr.mxu0 0.0
    %5408 = vmatpush1.msra.mxu0 0.0
    %5409 = vmatprep.subr.mxu0 0.0
    %5410 = vmatpush1.msra.mxu0 0.0
    %5411 = vmatprep.subr.mxu0 0.0
    %5412 = vmatpush1.msra.mxu0 0.0
    %5413 = vmatprep.subr.mxu0 0.0
    %5414 = vmatpush1.msra.mxu0 0.0
    %5415 = vmatprep.subr.mxu0 0.0
    %5416 = vmatpush1.msra.mxu0 0.0
    %5417 = vmatprep.subr.mxu0 0.0
    %5418 = vmatpush1.msra.mxu0 0.0
    %5419 = vmatprep.subr.mxu0 0.0
    %5420 = vmatpush1.msra.mxu0 0.0
    %5421 = vmatprep.subr.mxu0 0.0
    %5422 = vmatpush1.msra.mxu0 0.0
    %5423 = vmatprep.subr.mxu0 0.0
    %5424 = vmatpush1.msra.mxu0 0.0
    %5425 = vmatprep.subr.mxu0 %v5387
    %5426 = vmatpush1.msra.mxu0 %v5384
    %5427 = vmatprep.subr.mxu0 0.0
    %5428 = vmatpush2.msra.mxu0 0.0
    %5429 = vmatprep.subr.mxu0 0.0
    %5430 = vmatpush2.msra.mxu0 0.0
    %5431 = vmatprep.subr.mxu0 0.0
    %5432 = vmatpush2.msra.mxu0 0.0
    %5433 = vmatprep.subr.mxu0 0.0
    %5434 = vmatpush2.msra.mxu0 0.0
    %5435 = vmatprep.subr.mxu0 0.0
    %5436 = vmatpush2.msra.mxu0 0.0
    %5437 = vmatprep.subr.mxu0 0.0
    %5438 = vmatpush2.msra.mxu0 0.0
    %5439 = vmatprep.subr.mxu0 0.0
    %5440 = vmatpush2.msra.mxu0 0.0
    %5441 = vmatprep.subr.mxu0 0.0
    %5442 = vmatpush2.msra.mxu0 0.0
    %5443 = vmatprep.subr.mxu0 0.0
    %5444 = vmatpush2.msra.mxu0 0.0
    %5445 = vmatprep.subr.mxu0 0.0
    %5446 = vmatpush2.msra.mxu0 0.0
    %5447 = vmatprep.subr.mxu0 0.0
    %5448 = vmatpush2.msra.mxu0 0.0
    %5449 = vmatprep.subr.mxu0 0.0
    %5450 = vmatpush2.msra.mxu0 0.0
    %5451 = vmatprep.subr.mxu0 0.0
    %5452 = vmatpush2.msra.mxu0 0.0
    %5453 = vmatprep.subr.mxu0 0.0
    %5454 = vmatpush2.msra.mxu0 0.0
    %5455 = vmatprep.subr.mxu0 0.0
    %5456 = vmatpush2.msra.mxu0 0.0
    %5457 = vmatprep.subr.mxu0 0.0
    %5458 = vmatpush2.msra.mxu0 0.0
    %5459 = vmatprep.mubr.f32.mxu0 0.0
    %5460 = vmatmul.mubr.f32.gmra.mxu0 %v5381
    %v5461 = vpop.f32.mrf.mxu0
    %v5462 = vadd.f32 0.0, %v5461
    %v5463 = vpop.f32.mrf.mxu0
    %v5464 = vadd.f32 0.0, %v5463
    %5465 = vdwg.mxu0
    %5466 = vmatprep.subr.mxu0 0.0
    %5467 = vmatpush1.msra.mxu0 0.0
    %5468 = vmatprep.subr.mxu0 0.0
    %5469 = vmatpush1.msra.mxu0 0.0
    %5470 = vmatprep.subr.mxu0 0.0
    %5471 = vmatpush1.msra.mxu0 0.0
    %5472 = vmatprep.subr.mxu0 0.0
    %5473 = vmatpush1.msra.mxu0 0.0
    %5474 = vmatprep.subr.mxu0 0.0
    %5475 = vmatpush1.msra.mxu0 0.0
    %5476 = vmatprep.subr.mxu0 0.0
    %5477 = vmatpush1.msra.mxu0 0.0
    %5478 = vmatprep.subr.mxu0 0.0
    %5479 = vmatpush1.msra.mxu0 0.0
    %5480 = vmatprep.subr.mxu0 0.0
    %5481 = vmatpush1.msra.mxu0 0.0
    %5482 = vmatprep.subr.mxu0 0.0
    %5483 = vmatpush1.msra.mxu0 0.0
    %5484 = vmatprep.subr.mxu0 0.0
    %5485 = vmatpush1.msra.mxu0 0.0
    %5486 = vmatprep.subr.mxu0 0.0
    %5487 = vmatpush1.msra.mxu0 0.0
    %5488 = vmatprep.subr.mxu0 0.0
    %5489 = vmatpush1.msra.mxu0 0.0
    %5490 = vmatprep.subr.mxu0 0.0
    %5491 = vmatpush1.msra.mxu0 0.0
    %5492 = vmatprep.subr.mxu0 0.0
    %5493 = vmatpush1.msra.mxu0 0.0
    %5494 = vmatprep.subr.mxu0 0.0
    %5495 = vmatpush1.msra.mxu0 0.0
    %5496 = vmatprep.subr.mxu0 %v5393
    %5497 = vmatpush1.msra.mxu0 %v5390
    %5498 = vmatprep.subr.mxu0 0.0
    %5499 = vmatpush2.msra.mxu0 0.0
    %5500 = vmatprep.subr.mxu0 0.0
    %5501 = vmatpush2.msra.mxu0 0.0
    %5502 = vmatprep.subr.mxu0 0.0
    %5503 = vmatpush2.msra.mxu0 0.0
    %5504 = vmatprep.subr.mxu0 0.0
    %5505 = vmatpush2.msra.mxu0 0.0
    %5506 = vmatprep.subr.mxu0 0.0
    %5507 = vmatpush2.msra.mxu0 0.0
    %5508 = vmatprep.subr.mxu0 0.0
    %5509 = vmatpush2.msra.mxu0 0.0
    %5510 = vmatprep.subr.mxu0 0.0
    %5511 = vmatpush2.msra.mxu0 0.0
    %5512 = vmatprep.subr.mxu0 0.0
    %5513 = vmatpush2.msra.mxu0 0.0
    %5514 = vmatprep.subr.mxu0 0.0
    %5515 = vmatpush2.msra.mxu0 0.0
    %5516 = vmatprep.subr.mxu0 0.0
    %5517 = vmatpush2.msra.mxu0 0.0
    %5518 = vmatprep.subr.mxu0 0.0
    %5519 = vmatpush2.msra.mxu0 0.0
    %5520 = vmatprep.subr.mxu0 0.0
    %5521 = vmatpush2.msra.mxu0 0.0
    %5522 = vmatprep.subr.mxu0 0.0
    %5523 = vmatpush2.msra.mxu0 0.0
    %5524 = vmatprep.subr.mxu0 0.0
    %5525 = vmatpush2.msra.mxu0 0.0
    %5526 = vmatprep.subr.mxu0 0.0
    %5527 = vmatpush2.msra.mxu0 0.0
    %5528 = vmatprep.subr.mxu0 0.0
    %5529 = vmatpush2.msra.mxu0 0.0
    %5530 = vmatprep.mubr.f32.mxu0 0.0
    %5531 = vmatmul.mubr.f32.gmra.mxu0 %v5381
    %v5532 = vpop.f32.mrf.mxu0
    %v5533 = vadd.f32 0.0, %v5532
    %v5534 = vpop.f32.mrf.mxu0
    %v5535 = vadd.f32 0.0, %v5534
    %5536 = vdwg.mxu0
    %v5538 = vsel %vm200, %v5361, 0
    %v5541 = vsel %vm204, %v5357, 0
    %v5544 = vsel %vm204, %v5358, 0
    %v5547 = vsel %vm204, %v5359, 0
    %v5550 = vsel %vm204, %v5360, 0
    %5552 = vmatprep.subr.mxu0 0.0
    %5553 = vmatpush1.msra.mxu0 0.0
    %5554 = vmatprep.subr.mxu0 0.0
    %5555 = vmatpush1.msra.mxu0 0.0
    %5556 = vmatprep.subr.mxu0 0.0
    %5557 = vmatpush1.msra.mxu0 0.0
    %5558 = vmatprep.subr.mxu0 0.0
    %5559 = vmatpush1.msra.mxu0 0.0
    %5560 = vmatprep.subr.mxu0 0.0
    %5561 = vmatpush1.msra.mxu0 0.0
    %5562 = vmatprep.subr.mxu0 0.0
    %5563 = vmatpush1.msra.mxu0 0.0
    %5564 = vmatprep.subr.mxu0 0.0
    %5565 = vmatpush1.msra.mxu0 0.0
    %5566 = vmatprep.subr.mxu0 0.0
    %5567 = vmatpush1.msra.mxu0 0.0
    %5568 = vmatprep.subr.mxu0 0.0
    %5569 = vmatpush1.msra.mxu0 0.0
    %5570 = vmatprep.subr.mxu0 0.0
    %5571 = vmatpush1.msra.mxu0 0.0
    %5572 = vmatprep.subr.mxu0 0.0
    %5573 = vmatpush1.msra.mxu0 0.0
    %5574 = vmatprep.subr.mxu0 0.0
    %5575 = vmatpush1.msra.mxu0 0.0
    %5576 = vmatprep.subr.mxu0 0.0
    %5577 = vmatpush1.msra.mxu0 0.0
    %5578 = vmatprep.subr.mxu0 0.0
    %5579 = vmatpush1.msra.mxu0 0.0
    %5580 = vmatprep.subr.mxu0 0.0
    %5581 = vmatpush1.msra.mxu0 0.0
    %5582 = vmatprep.subr.mxu0 %v5544
    %5583 = vmatpush1.msra.mxu0 %v5541
    %5584 = vmatprep.subr.mxu0 0.0
    %5585 = vmatpush2.msra.mxu0 0.0
    %5586 = vmatprep.subr.mxu0 0.0
    %5587 = vmatpush2.msra.mxu0 0.0
    %5588 = vmatprep.subr.mxu0 0.0
    %5589 = vmatpush2.msra.mxu0 0.0
    %5590 = vmatprep.subr.mxu0 0.0
    %5591 = vmatpush2.msra.mxu0 0.0
    %5592 = vmatprep.subr.mxu0 0.0
    %5593 = vmatpush2.msra.mxu0 0.0
    %5594 = vmatprep.subr.mxu0 0.0
    %5595 = vmatpush2.msra.mxu0 0.0
    %5596 = vmatprep.subr.mxu0 0.0
    %5597 = vmatpush2.msra.mxu0 0.0
    %5598 = vmatprep.subr.mxu0 0.0
    %5599 = vmatpush2.msra.mxu0 0.0
    %5600 = vmatprep.subr.mxu0 0.0
    %5601 = vmatpush2.msra.mxu0 0.0
    %5602 = vmatprep.subr.mxu0 0.0
    %5603 = vmatpush2.msra.mxu0 0.0
    %5604 = vmatprep.subr.mxu0 0.0
    %5605 = vmatpush2.msra.mxu0 0.0
    %5606 = vmatprep.subr.mxu0 0.0
    %5607 = vmatpush2.msra.mxu0 0.0
    %5608 = vmatprep.subr.mxu0 0.0
    %5609 = vmatpush2.msra.mxu0 0.0
    %5610 = vmatprep.subr.mxu0 0.0
    %5611 = vmatpush2.msra.mxu0 0.0
    %5612 = vmatprep.subr.mxu0 0.0
    %5613 = vmatpush2.msra.mxu0 0.0
    %5614 = vmatprep.subr.mxu0 0.0
    %5615 = vmatpush2.msra.mxu0 0.0
    %5616 = vmatprep.mubr.f32.mxu0 0.0
    %5617 = vmatmul.mubr.f32.gmra.mxu0 %v5538
    %v5618 = vpop.f32.mrf.mxu0
    %v5619 = vadd.f32 %v5462, %v5618
    %v5620 = vpop.f32.mrf.mxu0
    %v5621 = vadd.f32 %v5464, %v5620
    %5622 = vdwg.mxu0
    %5623 = vmatprep.subr.mxu0 0.0
    %5624 = vmatpush1.msra.mxu0 0.0
    %5625 = vmatprep.subr.mxu0 0.0
    %5626 = vmatpush1.msra.mxu0 0.0
    %5627 = vmatprep.subr.mxu0 0.0
    %5628 = vmatpush1.msra.mxu0 0.0
    %5629 = vmatprep.subr.mxu0 0.0
    %5630 = vmatpush1.msra.mxu0 0.0
    %5631 = vmatprep.subr.mxu0 0.0
    %5632 = vmatpush1.msra.mxu0 0.0
    %5633 = vmatprep.subr.mxu0 0.0
    %5634 = vmatpush1.msra.mxu0 0.0
    %5635 = vmatprep.subr.mxu0 0.0
    %5636 = vmatpush1.msra.mxu0 0.0
    %5637 = vmatprep.subr.mxu0 0.0
    %5638 = vmatpush1.msra.mxu0 0.0
    %5639 = vmatprep.subr.mxu0 0.0
    %5640 = vmatpush1.msra.mxu0 0.0
    %5641 = vmatprep.subr.mxu0 0.0
    %5642 = vmatpush1.msra.mxu0 0.0
    %5643 = vmatprep.subr.mxu0 0.0
    %5644 = vmatpush1.msra.mxu0 0.0
    %5645 = vmatprep.subr.mxu0 0.0
    %5646 = vmatpush1.msra.mxu0 0.0
    %5647 = vmatprep.subr.mxu0 0.0
    %5648 = vmatpush1.msra.mxu0 0.0
    %5649 = vmatprep.subr.mxu0 0.0
    %5650 = vmatpush1.msra.mxu0 0.0
    %5651 = vmatprep.subr.mxu0 0.0
    %5652 = vmatpush1.msra.mxu0 0.0
    %5653 = vmatprep.subr.mxu0 %v5550
    %5654 = vmatpush1.msra.mxu0 %v5547
    %5655 = vmatprep.subr.mxu0 0.0
    %5656 = vmatpush2.msra.mxu0 0.0
    %5657 = vmatprep.subr.mxu0 0.0
    %5658 = vmatpush2.msra.mxu0 0.0
    %5659 = vmatprep.subr.mxu0 0.0
    %5660 = vmatpush2.msra.mxu0 0.0
    %5661 = vmatprep.subr.mxu0 0.0
    %5662 = vmatpush2.msra.mxu0 0.0
    %5663 = vmatprep.subr.mxu0 0.0
    %5664 = vmatpush2.msra.mxu0 0.0
    %5665 = vmatprep.subr.mxu0 0.0
    %5666 = vmatpush2.msra.mxu0 0.0
    %5667 = vmatprep.subr.mxu0 0.0
    %5668 = vmatpush2.msra.mxu0 0.0
    %5669 = vmatprep.subr.mxu0 0.0
    %5670 = vmatpush2.msra.mxu0 0.0
    %5671 = vmatprep.subr.mxu0 0.0
    %5672 = vmatpush2.msra.mxu0 0.0
    %5673 = vmatprep.subr.mxu0 0.0
    %5674 = vmatpush2.msra.mxu0 0.0
    %5675 = vmatprep.subr.mxu0 0.0
    %5676 = vmatpush2.msra.mxu0 0.0
    %5677 = vmatprep.subr.mxu0 0.0
    %5678 = vmatpush2.msra.mxu0 0.0
    %5679 = vmatprep.subr.mxu0 0.0
    %5680 = vmatpush2.msra.mxu0 0.0
    %5681 = vmatprep.subr.mxu0 0.0
    %5682 = vmatpush2.msra.mxu0 0.0
    %5683 = vmatprep.subr.mxu0 0.0
    %5684 = vmatpush2.msra.mxu0 0.0
    %5685 = vmatprep.subr.mxu0 0.0
    %5686 = vmatpush2.msra.mxu0 0.0
    %5687 = vmatprep.mubr.f32.mxu0 0.0
    %5688 = vmatmul.mubr.f32.gmra.mxu0 %v5538
    %v5689 = vpop.f32.mrf.mxu0
    %v5690 = vadd.f32 %v5533, %v5689
    %v5691 = vpop.f32.mrf.mxu0
    %v5692 = vadd.f32 %v5535, %v5691
    %5693 = vdwg.mxu0
    %5694 = vrot.lane.b32.xlu0 %v5341, 15
    %v5695 = vpop.permute.xlu0 %5694
    %5696 = vrot.lane.b32.xlu0 %v5342, 15
    %v5697 = vpop.permute.xlu0 %5696
    %5698 = vrot.lane.b32.xlu0 %v5343, 15
    %v5699 = vpop.permute.xlu0 %5698
    %5700 = vrot.lane.b32.xlu0 %v5344, 15
    %v5701 = vpop.permute.xlu0 %5700
    %v5702 = vsel %vm2338, %v5699, %v5701
    %v5703 = vsel %vm2338, %v5697, %v5699
    %v5704 = vsel %vm2338, %v5695, %v5697
    %v5705 = vsel %vm2338, %v5701, %v5695
    %v5706 = vmul.f32 %v5705, %v2349
    %v5707 = vmul.f32 %v5704, %v2353
    %v5708 = vmul.f32 %v5703, %v2357
    %v5709 = vmul.f32 %v5702, %v2361
    %s5710 = scalar_lea.vmem %s7, 8
    %v5711 = vld [vmem:[%s5710] sm:$0x7]
    %v5713 = vsel %vm200, %v5711, 0
    %v5716 = vsel %vm204, %v5706, 0
    %v5719 = vsel %vm204, %v5707, 0
    %v5722 = vsel %vm204, %v5708, 0
    %v5725 = vsel %vm204, %v5709, 0
    %5727 = vmatprep.subr.mxu0 0.0
    %5728 = vmatpush1.msra.mxu0 0.0
    %5729 = vmatprep.subr.mxu0 0.0
    %5730 = vmatpush1.msra.mxu0 0.0
    %5731 = vmatprep.subr.mxu0 0.0
    %5732 = vmatpush1.msra.mxu0 0.0
    %5733 = vmatprep.subr.mxu0 0.0
    %5734 = vmatpush1.msra.mxu0 0.0
    %5735 = vmatprep.subr.mxu0 0.0
    %5736 = vmatpush1.msra.mxu0 0.0
    %5737 = vmatprep.subr.mxu0 0.0
    %5738 = vmatpush1.msra.mxu0 0.0
    %5739 = vmatprep.subr.mxu0 0.0
    %5740 = vmatpush1.msra.mxu0 0.0
    %5741 = vmatprep.subr.mxu0 0.0
    %5742 = vmatpush1.msra.mxu0 0.0
    %5743 = vmatprep.subr.mxu0 0.0
    %5744 = vmatpush1.msra.mxu0 0.0
    %5745 = vmatprep.subr.mxu0 0.0
    %5746 = vmatpush1.msra.mxu0 0.0
    %5747 = vmatprep.subr.mxu0 0.0
    %5748 = vmatpush1.msra.mxu0 0.0
    %5749 = vmatprep.subr.mxu0 0.0
    %5750 = vmatpush1.msra.mxu0 0.0
    %5751 = vmatprep.subr.mxu0 0.0
    %5752 = vmatpush1.msra.mxu0 0.0
    %5753 = vmatprep.subr.mxu0 0.0
    %5754 = vmatpush1.msra.mxu0 0.0
    %5755 = vmatprep.subr.mxu0 0.0
    %5756 = vmatpush1.msra.mxu0 0.0
    %5757 = vmatprep.subr.mxu0 %v5719
    %5758 = vmatpush1.msra.mxu0 %v5716
    %5759 = vmatprep.subr.mxu0 0.0
    %5760 = vmatpush2.msra.mxu0 0.0
    %5761 = vmatprep.subr.mxu0 0.0
    %5762 = vmatpush2.msra.mxu0 0.0
    %5763 = vmatprep.subr.mxu0 0.0
    %5764 = vmatpush2.msra.mxu0 0.0
    %5765 = vmatprep.subr.mxu0 0.0
    %5766 = vmatpush2.msra.mxu0 0.0
    %5767 = vmatprep.subr.mxu0 0.0
    %5768 = vmatpush2.msra.mxu0 0.0
    %5769 = vmatprep.subr.mxu0 0.0
    %5770 = vmatpush2.msra.mxu0 0.0
    %5771 = vmatprep.subr.mxu0 0.0
    %5772 = vmatpush2.msra.mxu0 0.0
    %5773 = vmatprep.subr.mxu0 0.0
    %5774 = vmatpush2.msra.mxu0 0.0
    %5775 = vmatprep.subr.mxu0 0.0
    %5776 = vmatpush2.msra.mxu0 0.0
    %5777 = vmatprep.subr.mxu0 0.0
    %5778 = vmatpush2.msra.mxu0 0.0
    %5779 = vmatprep.subr.mxu0 0.0
    %5780 = vmatpush2.msra.mxu0 0.0
    %5781 = vmatprep.subr.mxu0 0.0
    %5782 = vmatpush2.msra.mxu0 0.0
    %5783 = vmatprep.subr.mxu0 0.0
    %5784 = vmatpush2.msra.mxu0 0.0
    %5785 = vmatprep.subr.mxu0 0.0
    %5786 = vmatpush2.msra.mxu0 0.0
    %5787 = vmatprep.subr.mxu0 0.0
    %5788 = vmatpush2.msra.mxu0 0.0
    %5789 = vmatprep.subr.mxu0 0.0
    %5790 = vmatpush2.msra.mxu0 0.0
    %5791 = vmatprep.mubr.f32.mxu0 0.0
    %5792 = vmatmul.mubr.f32.gmra.mxu0 %v5713
    %v5793 = vpop.f32.mrf.mxu0
    %v5794 = vadd.f32 0.0, %v5793
    %v5795 = vpop.f32.mrf.mxu0
    %v5796 = vadd.f32 0.0, %v5795
    %5797 = vdwg.mxu0
    %5798 = vmatprep.subr.mxu0 0.0
    %5799 = vmatpush1.msra.mxu0 0.0
    %5800 = vmatprep.subr.mxu0 0.0
    %5801 = vmatpush1.msra.mxu0 0.0
    %5802 = vmatprep.subr.mxu0 0.0
    %5803 = vmatpush1.msra.mxu0 0.0
    %5804 = vmatprep.subr.mxu0 0.0
    %5805 = vmatpush1.msra.mxu0 0.0
    %5806 = vmatprep.subr.mxu0 0.0
    %5807 = vmatpush1.msra.mxu0 0.0
    %5808 = vmatprep.subr.mxu0 0.0
    %5809 = vmatpush1.msra.mxu0 0.0
    %5810 = vmatprep.subr.mxu0 0.0
    %5811 = vmatpush1.msra.mxu0 0.0
    %5812 = vmatprep.subr.mxu0 0.0
    %5813 = vmatpush1.msra.mxu0 0.0
    %5814 = vmatprep.subr.mxu0 0.0
    %5815 = vmatpush1.msra.mxu0 0.0
    %5816 = vmatprep.subr.mxu0 0.0
    %5817 = vmatpush1.msra.mxu0 0.0
    %5818 = vmatprep.subr.mxu0 0.0
    %5819 = vmatpush1.msra.mxu0 0.0
    %5820 = vmatprep.subr.mxu0 0.0
    %5821 = vmatpush1.msra.mxu0 0.0
    %5822 = vmatprep.subr.mxu0 0.0
    %5823 = vmatpush1.msra.mxu0 0.0
    %5824 = vmatprep.subr.mxu0 0.0
    %5825 = vmatpush1.msra.mxu0 0.0
    %5826 = vmatprep.subr.mxu0 0.0
    %5827 = vmatpush1.msra.mxu0 0.0
    %5828 = vmatprep.subr.mxu0 %v5725
    %5829 = vmatpush1.msra.mxu0 %v5722
    %5830 = vmatprep.subr.mxu0 0.0
    %5831 = vmatpush2.msra.mxu0 0.0
    %5832 = vmatprep.subr.mxu0 0.0
    %5833 = vmatpush2.msra.mxu0 0.0
    %5834 = vmatprep.subr.mxu0 0.0
    %5835 = vmatpush2.msra.mxu0 0.0
    %5836 = vmatprep.subr.mxu0 0.0
    %5837 = vmatpush2.msra.mxu0 0.0
    %5838 = vmatprep.subr.mxu0 0.0
    %5839 = vmatpush2.msra.mxu0 0.0
    %5840 = vmatprep.subr.mxu0 0.0
    %5841 = vmatpush2.msra.mxu0 0.0
    %5842 = vmatprep.subr.mxu0 0.0
    %5843 = vmatpush2.msra.mxu0 0.0
    %5844 = vmatprep.subr.mxu0 0.0
    %5845 = vmatpush2.msra.mxu0 0.0
    %5846 = vmatprep.subr.mxu0 0.0
    %5847 = vmatpush2.msra.mxu0 0.0
    %5848 = vmatprep.subr.mxu0 0.0
    %5849 = vmatpush2.msra.mxu0 0.0
    %5850 = vmatprep.subr.mxu0 0.0
    %5851 = vmatpush2.msra.mxu0 0.0
    %5852 = vmatprep.subr.mxu0 0.0
    %5853 = vmatpush2.msra.mxu0 0.0
    %5854 = vmatprep.subr.mxu0 0.0
    %5855 = vmatpush2.msra.mxu0 0.0
    %5856 = vmatprep.subr.mxu0 0.0
    %5857 = vmatpush2.msra.mxu0 0.0
    %5858 = vmatprep.subr.mxu0 0.0
    %5859 = vmatpush2.msra.mxu0 0.0
    %5860 = vmatprep.subr.mxu0 0.0
    %5861 = vmatpush2.msra.mxu0 0.0
    %5862 = vmatprep.mubr.f32.mxu0 0.0
    %5863 = vmatmul.mubr.f32.gmra.mxu0 %v5713
    %v5864 = vpop.f32.mrf.mxu0
    %v5865 = vadd.f32 0.0, %v5864
    %v5866 = vpop.f32.mrf.mxu0
    %v5867 = vadd.f32 0.0, %v5866
    %5868 = vdwg.mxu0
    %v5869 = vadd.f32 %v5619, %v5794
    %v5870 = vadd.f32 %v5621, %v5796
    %v5871 = vadd.f32 %v5690, %v5865
    %v5872 = vadd.f32 %v5692, %v5867
    %5873 = vrot.lane.b32.xlu0 %v5341, 1
    %v5874 = vpop.permute.xlu0 %5873
    %5875 = vrot.lane.b32.xlu0 %v5342, 1
    %v5876 = vpop.permute.xlu0 %5875
    %5877 = vrot.lane.b32.xlu0 %v5343, 1
    %v5878 = vpop.permute.xlu0 %5877
    %5879 = vrot.lane.b32.xlu0 %v5344, 1
    %v5880 = vpop.permute.xlu0 %5879
    %v5881 = vsel %vm2541, %v5878, %v5880
    %v5882 = vsel %vm2541, %v5876, %v5878
    %v5883 = vsel %vm2541, %v5874, %v5876
    %v5884 = vsel %vm2541, %v5880, %v5874
    %v5885 = vmul.f32 %v5884, %v2552
    %v5886 = vmul.f32 %v5883, %v2556
    %v5887 = vmul.f32 %v5882, %v2560
    %v5888 = vmul.f32 %v5881, %v2564
    %s5889 = scalar_lea.vmem %s7, 12
    %v5890 = vld [vmem:[%s5889] sm:$0x7]
    %v5892 = vsel %vm200, %v5890, 0
    %v5895 = vsel %vm204, %v5885, 0
    %v5898 = vsel %vm204, %v5886, 0
    %v5901 = vsel %vm204, %v5887, 0
    %v5904 = vsel %vm204, %v5888, 0
    %5906 = vmatprep.subr.mxu0 0.0
    %5907 = vmatpush1.msra.mxu0 0.0
    %5908 = vmatprep.subr.mxu0 0.0
    %5909 = vmatpush1.msra.mxu0 0.0
    %5910 = vmatprep.subr.mxu0 0.0
    %5911 = vmatpush1.msra.mxu0 0.0
    %5912 = vmatprep.subr.mxu0 0.0
    %5913 = vmatpush1.msra.mxu0 0.0
    %5914 = vmatprep.subr.mxu0 0.0
    %5915 = vmatpush1.msra.mxu0 0.0
    %5916 = vmatprep.subr.mxu0 0.0
    %5917 = vmatpush1.msra.mxu0 0.0
    %5918 = vmatprep.subr.mxu0 0.0
    %5919 = vmatpush1.msra.mxu0 0.0
    %5920 = vmatprep.subr.mxu0 0.0
    %5921 = vmatpush1.msra.mxu0 0.0
    %5922 = vmatprep.subr.mxu0 0.0
    %5923 = vmatpush1.msra.mxu0 0.0
    %5924 = vmatprep.subr.mxu0 0.0
    %5925 = vmatpush1.msra.mxu0 0.0
    %5926 = vmatprep.subr.mxu0 0.0
    %5927 = vmatpush1.msra.mxu0 0.0
    %5928 = vmatprep.subr.mxu0 0.0
    %5929 = vmatpush1.msra.mxu0 0.0
    %5930 = vmatprep.subr.mxu0 0.0
    %5931 = vmatpush1.msra.mxu0 0.0
    %5932 = vmatprep.subr.mxu0 0.0
    %5933 = vmatpush1.msra.mxu0 0.0
    %5934 = vmatprep.subr.mxu0 0.0
    %5935 = vmatpush1.msra.mxu0 0.0
    %5936 = vmatprep.subr.mxu0 %v5898
    %5937 = vmatpush1.msra.mxu0 %v5895
    %5938 = vmatprep.subr.mxu0 0.0
    %5939 = vmatpush2.msra.mxu0 0.0
    %5940 = vmatprep.subr.mxu0 0.0
    %5941 = vmatpush2.msra.mxu0 0.0
    %5942 = vmatprep.subr.mxu0 0.0
    %5943 = vmatpush2.msra.mxu0 0.0
    %5944 = vmatprep.subr.mxu0 0.0
    %5945 = vmatpush2.msra.mxu0 0.0
    %5946 = vmatprep.subr.mxu0 0.0
    %5947 = vmatpush2.msra.mxu0 0.0
    %5948 = vmatprep.subr.mxu0 0.0
    %5949 = vmatpush2.msra.mxu0 0.0
    %5950 = vmatprep.subr.mxu0 0.0
    %5951 = vmatpush2.msra.mxu0 0.0
    %5952 = vmatprep.subr.mxu0 0.0
    %5953 = vmatpush2.msra.mxu0 0.0
    %5954 = vmatprep.subr.mxu0 0.0
    %5955 = vmatpush2.msra.mxu0 0.0
    %5956 = vmatprep.subr.mxu0 0.0
    %5957 = vmatpush2.msra.mxu0 0.0
    %5958 = vmatprep.subr.mxu0 0.0
    %5959 = vmatpush2.msra.mxu0 0.0
    %5960 = vmatprep.subr.mxu0 0.0
    %5961 = vmatpush2.msra.mxu0 0.0
    %5962 = vmatprep.subr.mxu0 0.0
    %5963 = vmatpush2.msra.mxu0 0.0
    %5964 = vmatprep.subr.mxu0 0.0
    %5965 = vmatpush2.msra.mxu0 0.0
    %5966 = vmatprep.subr.mxu0 0.0
    %5967 = vmatpush2.msra.mxu0 0.0
    %5968 = vmatprep.subr.mxu0 0.0
    %5969 = vmatpush2.msra.mxu0 0.0
    %5970 = vmatprep.mubr.f32.mxu0 0.0
    %5971 = vmatmul.mubr.f32.gmra.mxu0 %v5892
    %v5972 = vpop.f32.mrf.mxu0
    %v5973 = vadd.f32 0.0, %v5972
    %v5974 = vpop.f32.mrf.mxu0
    %v5975 = vadd.f32 0.0, %v5974
    %5976 = vdwg.mxu0
    %5977 = vmatprep.subr.mxu0 0.0
    %5978 = vmatpush1.msra.mxu0 0.0
    %5979 = vmatprep.subr.mxu0 0.0
    %5980 = vmatpush1.msra.mxu0 0.0
    %5981 = vmatprep.subr.mxu0 0.0
    %5982 = vmatpush1.msra.mxu0 0.0
    %5983 = vmatprep.subr.mxu0 0.0
    %5984 = vmatpush1.msra.mxu0 0.0
    %5985 = vmatprep.subr.mxu0 0.0
    %5986 = vmatpush1.msra.mxu0 0.0
    %5987 = vmatprep.subr.mxu0 0.0
    %5988 = vmatpush1.msra.mxu0 0.0
    %5989 = vmatprep.subr.mxu0 0.0
    %5990 = vmatpush1.msra.mxu0 0.0
    %5991 = vmatprep.subr.mxu0 0.0
    %5992 = vmatpush1.msra.mxu0 0.0
    %5993 = vmatprep.subr.mxu0 0.0
    %5994 = vmatpush1.msra.mxu0 0.0
    %5995 = vmatprep.subr.mxu0 0.0
    %5996 = vmatpush1.msra.mxu0 0.0
    %5997 = vmatprep.subr.mxu0 0.0
    %5998 = vmatpush1.msra.mxu0 0.0
    %5999 = vmatprep.subr.mxu0 0.0
    %6000 = vmatpush1.msra.mxu0 0.0
    %6001 = vmatprep.subr.mxu0 0.0
    %6002 = vmatpush1.msra.mxu0 0.0
    %6003 = vmatprep.subr.mxu0 0.0
    %6004 = vmatpush1.msra.mxu0 0.0
    %6005 = vmatprep.subr.mxu0 0.0
    %6006 = vmatpush1.msra.mxu0 0.0
    %6007 = vmatprep.subr.mxu0 %v5904
    %6008 = vmatpush1.msra.mxu0 %v5901
    %6009 = vmatprep.subr.mxu0 0.0
    %6010 = vmatpush2.msra.mxu0 0.0
    %6011 = vmatprep.subr.mxu0 0.0
    %6012 = vmatpush2.msra.mxu0 0.0
    %6013 = vmatprep.subr.mxu0 0.0
    %6014 = vmatpush2.msra.mxu0 0.0
    %6015 = vmatprep.subr.mxu0 0.0
    %6016 = vmatpush2.msra.mxu0 0.0
    %6017 = vmatprep.subr.mxu0 0.0
    %6018 = vmatpush2.msra.mxu0 0.0
    %6019 = vmatprep.subr.mxu0 0.0
    %6020 = vmatpush2.msra.mxu0 0.0
    %6021 = vmatprep.subr.mxu0 0.0
    %6022 = vmatpush2.msra.mxu0 0.0
    %6023 = vmatprep.subr.mxu0 0.0
    %6024 = vmatpush2.msra.mxu0 0.0
    %6025 = vmatprep.subr.mxu0 0.0
    %6026 = vmatpush2.msra.mxu0 0.0
    %6027 = vmatprep.subr.mxu0 0.0
    %6028 = vmatpush2.msra.mxu0 0.0
    %6029 = vmatprep.subr.mxu0 0.0
    %6030 = vmatpush2.msra.mxu0 0.0
    %6031 = vmatprep.subr.mxu0 0.0
    %6032 = vmatpush2.msra.mxu0 0.0
    %6033 = vmatprep.subr.mxu0 0.0
    %6034 = vmatpush2.msra.mxu0 0.0
    %6035 = vmatprep.subr.mxu0 0.0
    %6036 = vmatpush2.msra.mxu0 0.0
    %6037 = vmatprep.subr.mxu0 0.0
    %6038 = vmatpush2.msra.mxu0 0.0
    %6039 = vmatprep.subr.mxu0 0.0
    %6040 = vmatpush2.msra.mxu0 0.0
    %6041 = vmatprep.mubr.f32.mxu0 0.0
    %6042 = vmatmul.mubr.f32.gmra.mxu0 %v5892
    %v6043 = vpop.f32.mrf.mxu0
    %v6044 = vadd.f32 0.0, %v6043
    %v6045 = vpop.f32.mrf.mxu0
    %v6046 = vadd.f32 0.0, %v6045
    %6047 = vdwg.mxu0
    %v6048 = vadd.f32 %v5869, %v5973
    %v6049 = vadd.f32 %v5870, %v5975
    %v6050 = vadd.f32 %v5871, %v6044
    %v6051 = vadd.f32 %v5872, %v6046
    %s6052 = scalar_lea.vmem %s7, 16
    %v6053 = vld [vmem:[%s6052] sm:$0x7]
    %v6055 = vsel %vm200, %v6053, 0
    %v6058 = vsel %vm204, %v5341, 0
    %v6061 = vsel %vm204, %v5342, 0
    %v6064 = vsel %vm204, %v5343, 0
    %v6067 = vsel %vm204, %v5344, 0
    %6069 = vmatprep.subr.mxu0 0.0
    %6070 = vmatpush1.msra.mxu0 0.0
    %6071 = vmatprep.subr.mxu0 0.0
    %6072 = vmatpush1.msra.mxu0 0.0
    %6073 = vmatprep.subr.mxu0 0.0
    %6074 = vmatpush1.msra.mxu0 0.0
    %6075 = vmatprep.subr.mxu0 0.0
    %6076 = vmatpush1.msra.mxu0 0.0
    %6077 = vmatprep.subr.mxu0 0.0
    %6078 = vmatpush1.msra.mxu0 0.0
    %6079 = vmatprep.subr.mxu0 0.0
    %6080 = vmatpush1.msra.mxu0 0.0
    %6081 = vmatprep.subr.mxu0 0.0
    %6082 = vmatpush1.msra.mxu0 0.0
    %6083 = vmatprep.subr.mxu0 0.0
    %6084 = vmatpush1.msra.mxu0 0.0
    %6085 = vmatprep.subr.mxu0 0.0
    %6086 = vmatpush1.msra.mxu0 0.0
    %6087 = vmatprep.subr.mxu0 0.0
    %6088 = vmatpush1.msra.mxu0 0.0
    %6089 = vmatprep.subr.mxu0 0.0
    %6090 = vmatpush1.msra.mxu0 0.0
    %6091 = vmatprep.subr.mxu0 0.0
    %6092 = vmatpush1.msra.mxu0 0.0
    %6093 = vmatprep.subr.mxu0 0.0
    %6094 = vmatpush1.msra.mxu0 0.0
    %6095 = vmatprep.subr.mxu0 0.0
    %6096 = vmatpush1.msra.mxu0 0.0
    %6097 = vmatprep.subr.mxu0 0.0
    %6098 = vmatpush1.msra.mxu0 0.0
    %6099 = vmatprep.subr.mxu0 %v6061
    %6100 = vmatpush1.msra.mxu0 %v6058
    %6101 = vmatprep.subr.mxu0 0.0
    %6102 = vmatpush2.msra.mxu0 0.0
    %6103 = vmatprep.subr.mxu0 0.0
    %6104 = vmatpush2.msra.mxu0 0.0
    %6105 = vmatprep.subr.mxu0 0.0
    %6106 = vmatpush2.msra.mxu0 0.0
    %6107 = vmatprep.subr.mxu0 0.0
    %6108 = vmatpush2.msra.mxu0 0.0
    %6109 = vmatprep.subr.mxu0 0.0
    %6110 = vmatpush2.msra.mxu0 0.0
    %6111 = vmatprep.subr.mxu0 0.0
    %6112 = vmatpush2.msra.mxu0 0.0
    %6113 = vmatprep.subr.mxu0 0.0
    %6114 = vmatpush2.msra.mxu0 0.0
    %6115 = vmatprep.subr.mxu0 0.0
    %6116 = vmatpush2.msra.mxu0 0.0
    %6117 = vmatprep.subr.mxu0 0.0
    %6118 = vmatpush2.msra.mxu0 0.0
    %6119 = vmatprep.subr.mxu0 0.0
    %6120 = vmatpush2.msra.mxu0 0.0
    %6121 = vmatprep.subr.mxu0 0.0
    %6122 = vmatpush2.msra.mxu0 0.0
    %6123 = vmatprep.subr.mxu0 0.0
    %6124 = vmatpush2.msra.mxu0 0.0
    %6125 = vmatprep.subr.mxu0 0.0
    %6126 = vmatpush2.msra.mxu0 0.0
    %6127 = vmatprep.subr.mxu0 0.0
    %6128 = vmatpush2.msra.mxu0 0.0
    %6129 = vmatprep.subr.mxu0 0.0
    %6130 = vmatpush2.msra.mxu0 0.0
    %6131 = vmatprep.subr.mxu0 0.0
    %6132 = vmatpush2.msra.mxu0 0.0
    %6133 = vmatprep.mubr.f32.mxu0 0.0
    %6134 = vmatmul.mubr.f32.gmra.mxu0 %v6055
    %v6135 = vpop.f32.mrf.mxu0
    %v6136 = vadd.f32 0.0, %v6135
    %v6137 = vpop.f32.mrf.mxu0
    %v6138 = vadd.f32 0.0, %v6137
    %6139 = vdwg.mxu0
    %6140 = vmatprep.subr.mxu0 0.0
    %6141 = vmatpush1.msra.mxu0 0.0
    %6142 = vmatprep.subr.mxu0 0.0
    %6143 = vmatpush1.msra.mxu0 0.0
    %6144 = vmatprep.subr.mxu0 0.0
    %6145 = vmatpush1.msra.mxu0 0.0
    %6146 = vmatprep.subr.mxu0 0.0
    %6147 = vmatpush1.msra.mxu0 0.0
    %6148 = vmatprep.subr.mxu0 0.0
    %6149 = vmatpush1.msra.mxu0 0.0
    %6150 = vmatprep.subr.mxu0 0.0
    %6151 = vmatpush1.msra.mxu0 0.0
    %6152 = vmatprep.subr.mxu0 0.0
    %6153 = vmatpush1.msra.mxu0 0.0
    %6154 = vmatprep.subr.mxu0 0.0
    %6155 = vmatpush1.msra.mxu0 0.0
    %6156 = vmatprep.subr.mxu0 0.0
    %6157 = vmatpush1.msra.mxu0 0.0
    %6158 = vmatprep.subr.mxu0 0.0
    %6159 = vmatpush1.msra.mxu0 0.0
    %6160 = vmatprep.subr.mxu0 0.0
    %6161 = vmatpush1.msra.mxu0 0.0
    %6162 = vmatprep.subr.mxu0 0.0
    %6163 = vmatpush1.msra.mxu0 0.0
    %6164 = vmatprep.subr.mxu0 0.0
    %6165 = vmatpush1.msra.mxu0 0.0
    %6166 = vmatprep.subr.mxu0 0.0
    %6167 = vmatpush1.msra.mxu0 0.0
    %6168 = vmatprep.subr.mxu0 0.0
    %6169 = vmatpush1.msra.mxu0 0.0
    %6170 = vmatprep.subr.mxu0 %v6067
    %6171 = vmatpush1.msra.mxu0 %v6064
    %6172 = vmatprep.subr.mxu0 0.0
    %6173 = vmatpush2.msra.mxu0 0.0
    %6174 = vmatprep.subr.mxu0 0.0
    %6175 = vmatpush2.msra.mxu0 0.0
    %6176 = vmatprep.subr.mxu0 0.0
    %6177 = vmatpush2.msra.mxu0 0.0
    %6178 = vmatprep.subr.mxu0 0.0
    %6179 = vmatpush2.msra.mxu0 0.0
    %6180 = vmatprep.subr.mxu0 0.0
    %6181 = vmatpush2.msra.mxu0 0.0
    %6182 = vmatprep.subr.mxu0 0.0
    %6183 = vmatpush2.msra.mxu0 0.0
    %6184 = vmatprep.subr.mxu0 0.0
    %6185 = vmatpush2.msra.mxu0 0.0
    %6186 = vmatprep.subr.mxu0 0.0
    %6187 = vmatpush2.msra.mxu0 0.0
    %6188 = vmatprep.subr.mxu0 0.0
    %6189 = vmatpush2.msra.mxu0 0.0
    %6190 = vmatprep.subr.mxu0 0.0
    %6191 = vmatpush2.msra.mxu0 0.0
    %6192 = vmatprep.subr.mxu0 0.0
    %6193 = vmatpush2.msra.mxu0 0.0
    %6194 = vmatprep.subr.mxu0 0.0
    %6195 = vmatpush2.msra.mxu0 0.0
    %6196 = vmatprep.subr.mxu0 0.0
    %6197 = vmatpush2.msra.mxu0 0.0
    %6198 = vmatprep.subr.mxu0 0.0
    %6199 = vmatpush2.msra.mxu0 0.0
    %6200 = vmatprep.subr.mxu0 0.0
    %6201 = vmatpush2.msra.mxu0 0.0
    %6202 = vmatprep.subr.mxu0 0.0
    %6203 = vmatpush2.msra.mxu0 0.0
    %6204 = vmatprep.mubr.f32.mxu0 0.0
    %6205 = vmatmul.mubr.f32.gmra.mxu0 %v6055
    %v6206 = vpop.f32.mrf.mxu0
    %v6207 = vadd.f32 0.0, %v6206
    %v6208 = vpop.f32.mrf.mxu0
    %v6209 = vadd.f32 0.0, %v6208
    %6210 = vdwg.mxu0
    %v6211 = vadd.f32 %v6048, %v6136
    %v6212 = vadd.f32 %v6049, %v6138
    %v6213 = vadd.f32 %v6050, %v6207
    %v6214 = vadd.f32 %v6051, %v6209
    %6215 = vrot.lane.b32.xlu0 %v5341, 127
    %v6216 = vpop.permute.xlu0 %6215
    %6217 = vrot.lane.b32.xlu0 %v5342, 127
    %v6218 = vpop.permute.xlu0 %6217
    %6219 = vrot.lane.b32.xlu0 %v5343, 127
    %v6220 = vpop.permute.xlu0 %6219
    %6221 = vrot.lane.b32.xlu0 %v5344, 127
    %v6222 = vpop.permute.xlu0 %6221
    %v6223 = vsel %vm2907, %v6220, %v6222
    %v6224 = vsel %vm2907, %v6218, %v6220
    %v6225 = vsel %vm2907, %v6216, %v6218
    %v6226 = vsel %vm2907, %v6222, %v6216
    %v6227 = vmul.f32 %v6225, %v2918
    %v6228 = vmul.f32 %v6224, %v2922
    %v6229 = vmul.f32 %v6223, %v2926
    %v6230 = vmul.f32 %v6226, %v2930
    %s6231 = scalar_lea.vmem %s7, 20
    %v6232 = vld [vmem:[%s6231] sm:$0x7]
    %v6234 = vsel %vm200, %v6232, 0
    %v6237 = vsel %vm204, %v6227, 0
    %v6240 = vsel %vm204, %v6228, 0
    %v6243 = vsel %vm204, %v6229, 0
    %v6246 = vsel %vm204, %v6230, 0
    %6248 = vmatprep.subr.mxu0 0.0
    %6249 = vmatpush1.msra.mxu0 0.0
    %6250 = vmatprep.subr.mxu0 0.0
    %6251 = vmatpush1.msra.mxu0 0.0
    %6252 = vmatprep.subr.mxu0 0.0
    %6253 = vmatpush1.msra.mxu0 0.0
    %6254 = vmatprep.subr.mxu0 0.0
    %6255 = vmatpush1.msra.mxu0 0.0
    %6256 = vmatprep.subr.mxu0 0.0
    %6257 = vmatpush1.msra.mxu0 0.0
    %6258 = vmatprep.subr.mxu0 0.0
    %6259 = vmatpush1.msra.mxu0 0.0
    %6260 = vmatprep.subr.mxu0 0.0
    %6261 = vmatpush1.msra.mxu0 0.0
    %6262 = vmatprep.subr.mxu0 0.0
    %6263 = vmatpush1.msra.mxu0 0.0
    %6264 = vmatprep.subr.mxu0 0.0
    %6265 = vmatpush1.msra.mxu0 0.0
    %6266 = vmatprep.subr.mxu0 0.0
    %6267 = vmatpush1.msra.mxu0 0.0
    %6268 = vmatprep.subr.mxu0 0.0
    %6269 = vmatpush1.msra.mxu0 0.0
    %6270 = vmatprep.subr.mxu0 0.0
    %6271 = vmatpush1.msra.mxu0 0.0
    %6272 = vmatprep.subr.mxu0 0.0
    %6273 = vmatpush1.msra.mxu0 0.0
    %6274 = vmatprep.subr.mxu0 0.0
    %6275 = vmatpush1.msra.mxu0 0.0
    %6276 = vmatprep.subr.mxu0 0.0
    %6277 = vmatpush1.msra.mxu0 0.0
    %6278 = vmatprep.subr.mxu0 %v6240
    %6279 = vmatpush1.msra.mxu0 %v6237
    %6280 = vmatprep.subr.mxu0 0.0
    %6281 = vmatpush2.msra.mxu0 0.0
    %6282 = vmatprep.subr.mxu0 0.0
    %6283 = vmatpush2.msra.mxu0 0.0
    %6284 = vmatprep.subr.mxu0 0.0
    %6285 = vmatpush2.msra.mxu0 0.0
    %6286 = vmatprep.subr.mxu0 0.0
    %6287 = vmatpush2.msra.mxu0 0.0
    %6288 = vmatprep.subr.mxu0 0.0
    %6289 = vmatpush2.msra.mxu0 0.0
    %6290 = vmatprep.subr.mxu0 0.0
    %6291 = vmatpush2.msra.mxu0 0.0
    %6292 = vmatprep.subr.mxu0 0.0
    %6293 = vmatpush2.msra.mxu0 0.0
    %6294 = vmatprep.subr.mxu0 0.0
    %6295 = vmatpush2.msra.mxu0 0.0
    %6296 = vmatprep.subr.mxu0 0.0
    %6297 = vmatpush2.msra.mxu0 0.0
    %6298 = vmatprep.subr.mxu0 0.0
    %6299 = vmatpush2.msra.mxu0 0.0
    %6300 = vmatprep.subr.mxu0 0.0
    %6301 = vmatpush2.msra.mxu0 0.0
    %6302 = vmatprep.subr.mxu0 0.0
    %6303 = vmatpush2.msra.mxu0 0.0
    %6304 = vmatprep.subr.mxu0 0.0
    %6305 = vmatpush2.msra.mxu0 0.0
    %6306 = vmatprep.subr.mxu0 0.0
    %6307 = vmatpush2.msra.mxu0 0.0
    %6308 = vmatprep.subr.mxu0 0.0
    %6309 = vmatpush2.msra.mxu0 0.0
    %6310 = vmatprep.subr.mxu0 0.0
    %6311 = vmatpush2.msra.mxu0 0.0
    %6312 = vmatprep.mubr.f32.mxu0 0.0
    %6313 = vmatmul.mubr.f32.gmra.mxu0 %v6234
    %v6314 = vpop.f32.mrf.mxu0
    %v6315 = vadd.f32 0.0, %v6314
    %v6316 = vpop.f32.mrf.mxu0
    %v6317 = vadd.f32 0.0, %v6316
    %6318 = vdwg.mxu0
    %6319 = vmatprep.subr.mxu0 0.0
    %6320 = vmatpush1.msra.mxu0 0.0
    %6321 = vmatprep.subr.mxu0 0.0
    %6322 = vmatpush1.msra.mxu0 0.0
    %6323 = vmatprep.subr.mxu0 0.0
    %6324 = vmatpush1.msra.mxu0 0.0
    %6325 = vmatprep.subr.mxu0 0.0
    %6326 = vmatpush1.msra.mxu0 0.0
    %6327 = vmatprep.subr.mxu0 0.0
    %6328 = vmatpush1.msra.mxu0 0.0
    %6329 = vmatprep.subr.mxu0 0.0
    %6330 = vmatpush1.msra.mxu0 0.0
    %6331 = vmatprep.subr.mxu0 0.0
    %6332 = vmatpush1.msra.mxu0 0.0
    %6333 = vmatprep.subr.mxu0 0.0
    %6334 = vmatpush1.msra.mxu0 0.0
    %6335 = vmatprep.subr.mxu0 0.0
    %6336 = vmatpush1.msra.mxu0 0.0
    %6337 = vmatprep.subr.mxu0 0.0
    %6338 = vmatpush1.msra.mxu0 0.0
    %6339 = vmatprep.subr.mxu0 0.0
    %6340 = vmatpush1.msra.mxu0 0.0
    %6341 = vmatprep.subr.mxu0 0.0
    %6342 = vmatpush1.msra.mxu0 0.0
    %6343 = vmatprep.subr.mxu0 0.0
    %6344 = vmatpush1.msra.mxu0 0.0
    %6345 = vmatprep.subr.mxu0 0.0
    %6346 = vmatpush1.msra.mxu0 0.0
    %6347 = vmatprep.subr.mxu0 0.0
    %6348 = vmatpush1.msra.mxu0 0.0
    %6349 = vmatprep.subr.mxu0 %v6246
    %6350 = vmatpush1.msra.mxu0 %v6243
    %6351 = vmatprep.subr.mxu0 0.0
    %6352 = vmatpush2.msra.mxu0 0.0
    %6353 = vmatprep.subr.mxu0 0.0
    %6354 = vmatpush2.msra.mxu0 0.0
    %6355 = vmatprep.subr.mxu0 0.0
    %6356 = vmatpush2.msra.mxu0 0.0
    %6357 = vmatprep.subr.mxu0 0.0
    %6358 = vmatpush2.msra.mxu0 0.0
    %6359 = vmatprep.subr.mxu0 0.0
    %6360 = vmatpush2.msra.mxu0 0.0
    %6361 = vmatprep.subr.mxu0 0.0
    %6362 = vmatpush2.msra.mxu0 0.0
    %6363 = vmatprep.subr.mxu0 0.0
    %6364 = vmatpush2.msra.mxu0 0.0
    %6365 = vmatprep.subr.mxu0 0.0
    %6366 = vmatpush2.msra.mxu0 0.0
    %6367 = vmatprep.subr.mxu0 0.0
    %6368 = vmatpush2.msra.mxu0 0.0
    %6369 = vmatprep.subr.mxu0 0.0
    %6370 = vmatpush2.msra.mxu0 0.0
    %6371 = vmatprep.subr.mxu0 0.0
    %6372 = vmatpush2.msra.mxu0 0.0
    %6373 = vmatprep.subr.mxu0 0.0
    %6374 = vmatpush2.msra.mxu0 0.0
    %6375 = vmatprep.subr.mxu0 0.0
    %6376 = vmatpush2.msra.mxu0 0.0
    %6377 = vmatprep.subr.mxu0 0.0
    %6378 = vmatpush2.msra.mxu0 0.0
    %6379 = vmatprep.subr.mxu0 0.0
    %6380 = vmatpush2.msra.mxu0 0.0
    %6381 = vmatprep.subr.mxu0 0.0
    %6382 = vmatpush2.msra.mxu0 0.0
    %6383 = vmatprep.mubr.f32.mxu0 0.0
    %6384 = vmatmul.mubr.f32.gmra.mxu0 %v6234
    %v6385 = vpop.f32.mrf.mxu0
    %v6386 = vadd.f32 0.0, %v6385
    %v6387 = vpop.f32.mrf.mxu0
    %v6388 = vadd.f32 0.0, %v6387
    %6389 = vdwg.mxu0
    %v6390 = vadd.f32 %v6211, %v6315
    %v6391 = vadd.f32 %v6212, %v6317
    %v6392 = vadd.f32 %v6213, %v6386
    %v6393 = vadd.f32 %v6214, %v6388
    %6394 = vrot.lane.b32.xlu0 %v5341, 113
    %v6395 = vpop.permute.xlu0 %6394
    %6396 = vrot.lane.b32.xlu0 %v5342, 113
    %v6397 = vpop.permute.xlu0 %6396
    %6398 = vrot.lane.b32.xlu0 %v5343, 113
    %v6399 = vpop.permute.xlu0 %6398
    %6400 = vrot.lane.b32.xlu0 %v5344, 113
    %v6401 = vpop.permute.xlu0 %6400
    %v6402 = vsel %vm3110, %v6399, %v6401
    %v6403 = vsel %vm3110, %v6397, %v6399
    %v6404 = vsel %vm3110, %v6395, %v6397
    %v6405 = vsel %vm3110, %v6401, %v6395
    %v6406 = vmul.f32 %v6404, %v3121
    %v6407 = vmul.f32 %v6403, %v3125
    %v6408 = vmul.f32 %v6402, %v3129
    %v6409 = vmul.f32 %v6405, %v3133
    %s6410 = scalar_lea.vmem %s7, 24
    %v6411 = vld [vmem:[%s6410] sm:$0x7]
    %v6413 = vsel %vm200, %v6411, 0
    %v6416 = vsel %vm204, %v6406, 0
    %v6419 = vsel %vm204, %v6407, 0
    %v6422 = vsel %vm204, %v6408, 0
    %v6425 = vsel %vm204, %v6409, 0
    %6427 = vmatprep.subr.mxu0 0.0
    %6428 = vmatpush1.msra.mxu0 0.0
    %6429 = vmatprep.subr.mxu0 0.0
    %6430 = vmatpush1.msra.mxu0 0.0
    %6431 = vmatprep.subr.mxu0 0.0
    %6432 = vmatpush1.msra.mxu0 0.0
    %6433 = vmatprep.subr.mxu0 0.0
    %6434 = vmatpush1.msra.mxu0 0.0
    %6435 = vmatprep.subr.mxu0 0.0
    %6436 = vmatpush1.msra.mxu0 0.0
    %6437 = vmatprep.subr.mxu0 0.0
    %6438 = vmatpush1.msra.mxu0 0.0
    %6439 = vmatprep.subr.mxu0 0.0
    %6440 = vmatpush1.msra.mxu0 0.0
    %6441 = vmatprep.subr.mxu0 0.0
    %6442 = vmatpush1.msra.mxu0 0.0
    %6443 = vmatprep.subr.mxu0 0.0
    %6444 = vmatpush1.msra.mxu0 0.0
    %6445 = vmatprep.subr.mxu0 0.0
    %6446 = vmatpush1.msra.mxu0 0.0
    %6447 = vmatprep.subr.mxu0 0.0
    %6448 = vmatpush1.msra.mxu0 0.0
    %6449 = vmatprep.subr.mxu0 0.0
    %6450 = vmatpush1.msra.mxu0 0.0
    %6451 = vmatprep.subr.mxu0 0.0
    %6452 = vmatpush1.msra.mxu0 0.0
    %6453 = vmatprep.subr.mxu0 0.0
    %6454 = vmatpush1.msra.mxu0 0.0
    %6455 = vmatprep.subr.mxu0 0.0
    %6456 = vmatpush1.msra.mxu0 0.0
    %6457 = vmatprep.subr.mxu0 %v6419
    %6458 = vmatpush1.msra.mxu0 %v6416
    %6459 = vmatprep.subr.mxu0 0.0
    %6460 = vmatpush2.msra.mxu0 0.0
    %6461 = vmatprep.subr.mxu0 0.0
    %6462 = vmatpush2.msra.mxu0 0.0
    %6463 = vmatprep.subr.mxu0 0.0
    %6464 = vmatpush2.msra.mxu0 0.0
    %6465 = vmatprep.subr.mxu0 0.0
    %6466 = vmatpush2.msra.mxu0 0.0
    %6467 = vmatprep.subr.mxu0 0.0
    %6468 = vmatpush2.msra.mxu0 0.0
    %6469 = vmatprep.subr.mxu0 0.0
    %6470 = vmatpush2.msra.mxu0 0.0
    %6471 = vmatprep.subr.mxu0 0.0
    %6472 = vmatpush2.msra.mxu0 0.0
    %6473 = vmatprep.subr.mxu0 0.0
    %6474 = vmatpush2.msra.mxu0 0.0
    %6475 = vmatprep.subr.mxu0 0.0
    %6476 = vmatpush2.msra.mxu0 0.0
    %6477 = vmatprep.subr.mxu0 0.0
    %6478 = vmatpush2.msra.mxu0 0.0
    %6479 = vmatprep.subr.mxu0 0.0
    %6480 = vmatpush2.msra.mxu0 0.0
    %6481 = vmatprep.subr.mxu0 0.0
    %6482 = vmatpush2.msra.mxu0 0.0
    %6483 = vmatprep.subr.mxu0 0.0
    %6484 = vmatpush2.msra.mxu0 0.0
    %6485 = vmatprep.subr.mxu0 0.0
    %6486 = vmatpush2.msra.mxu0 0.0
    %6487 = vmatprep.subr.mxu0 0.0
    %6488 = vmatpush2.msra.mxu0 0.0
    %6489 = vmatprep.subr.mxu0 0.0
    %6490 = vmatpush2.msra.mxu0 0.0
    %6491 = vmatprep.mubr.f32.mxu0 0.0
    %6492 = vmatmul.mubr.f32.gmra.mxu0 %v6413
    %v6493 = vpop.f32.mrf.mxu0
    %v6494 = vadd.f32 0.0, %v6493
    %v6495 = vpop.f32.mrf.mxu0
    %v6496 = vadd.f32 0.0, %v6495
    %6497 = vdwg.mxu0
    %6498 = vmatprep.subr.mxu0 0.0
    %6499 = vmatpush1.msra.mxu0 0.0
    %6500 = vmatprep.subr.mxu0 0.0
    %6501 = vmatpush1.msra.mxu0 0.0
    %6502 = vmatprep.subr.mxu0 0.0
    %6503 = vmatpush1.msra.mxu0 0.0
    %6504 = vmatprep.subr.mxu0 0.0
    %6505 = vmatpush1.msra.mxu0 0.0
    %6506 = vmatprep.subr.mxu0 0.0
    %6507 = vmatpush1.msra.mxu0 0.0
    %6508 = vmatprep.subr.mxu0 0.0
    %6509 = vmatpush1.msra.mxu0 0.0
    %6510 = vmatprep.subr.mxu0 0.0
    %6511 = vmatpush1.msra.mxu0 0.0
    %6512 = vmatprep.subr.mxu0 0.0
    %6513 = vmatpush1.msra.mxu0 0.0
    %6514 = vmatprep.subr.mxu0 0.0
    %6515 = vmatpush1.msra.mxu0 0.0
    %6516 = vmatprep.subr.mxu0 0.0
    %6517 = vmatpush1.msra.mxu0 0.0
    %6518 = vmatprep.subr.mxu0 0.0
    %6519 = vmatpush1.msra.mxu0 0.0
    %6520 = vmatprep.subr.mxu0 0.0
    %6521 = vmatpush1.msra.mxu0 0.0
    %6522 = vmatprep.subr.mxu0 0.0
    %6523 = vmatpush1.msra.mxu0 0.0
    %6524 = vmatprep.subr.mxu0 0.0
    %6525 = vmatpush1.msra.mxu0 0.0
    %6526 = vmatprep.subr.mxu0 0.0
    %6527 = vmatpush1.msra.mxu0 0.0
    %6528 = vmatprep.subr.mxu0 %v6425
    %6529 = vmatpush1.msra.mxu0 %v6422
    %6530 = vmatprep.subr.mxu0 0.0
    %6531 = vmatpush2.msra.mxu0 0.0
    %6532 = vmatprep.subr.mxu0 0.0
    %6533 = vmatpush2.msra.mxu0 0.0
    %6534 = vmatprep.subr.mxu0 0.0
    %6535 = vmatpush2.msra.mxu0 0.0
    %6536 = vmatprep.subr.mxu0 0.0
    %6537 = vmatpush2.msra.mxu0 0.0
    %6538 = vmatprep.subr.mxu0 0.0
    %6539 = vmatpush2.msra.mxu0 0.0
    %6540 = vmatprep.subr.mxu0 0.0
    %6541 = vmatpush2.msra.mxu0 0.0
    %6542 = vmatprep.subr.mxu0 0.0
    %6543 = vmatpush2.msra.mxu0 0.0
    %6544 = vmatprep.subr.mxu0 0.0
    %6545 = vmatpush2.msra.mxu0 0.0
    %6546 = vmatprep.subr.mxu0 0.0
    %6547 = vmatpush2.msra.mxu0 0.0
    %6548 = vmatprep.subr.mxu0 0.0
    %6549 = vmatpush2.msra.mxu0 0.0
    %6550 = vmatprep.subr.mxu0 0.0
    %6551 = vmatpush2.msra.mxu0 0.0
    %6552 = vmatprep.subr.mxu0 0.0
    %6553 = vmatpush2.msra.mxu0 0.0
    %6554 = vmatprep.subr.mxu0 0.0
    %6555 = vmatpush2.msra.mxu0 0.0
    %6556 = vmatprep.subr.mxu0 0.0
    %6557 = vmatpush2.msra.mxu0 0.0
    %6558 = vmatprep.subr.mxu0 0.0
    %6559 = vmatpush2.msra.mxu0 0.0
    %6560 = vmatprep.subr.mxu0 0.0
    %6561 = vmatpush2.msra.mxu0 0.0
    %6562 = vmatprep.mubr.f32.mxu0 0.0
    %6563 = vmatmul.mubr.f32.gmra.mxu0 %v6413
    %v6564 = vpop.f32.mrf.mxu0
    %v6565 = vadd.f32 0.0, %v6564
    %v6566 = vpop.f32.mrf.mxu0
    %v6567 = vadd.f32 0.0, %v6566
    %6568 = vdwg.mxu0
    %v6569 = vadd.f32 %v6390, %v6494
    %v6570 = vadd.f32 %v6391, %v6496
    %v6571 = vadd.f32 %v6392, %v6565
    %v6572 = vadd.f32 %v6393, %v6567
    %6573 = vrot.lane.b32.xlu0 %v5341, 112
    %v6574 = vpop.permute.xlu0 %6573
    %6575 = vrot.lane.b32.xlu0 %v5342, 112
    %v6576 = vpop.permute.xlu0 %6575
    %6577 = vrot.lane.b32.xlu0 %v5343, 112
    %v6578 = vpop.permute.xlu0 %6577
    %6579 = vrot.lane.b32.xlu0 %v5344, 112
    %v6580 = vpop.permute.xlu0 %6579
    %v6581 = vsel %vm3313, %v6578, %v6580
    %v6582 = vsel %vm3313, %v6576, %v6578
    %v6583 = vsel %vm3313, %v6574, %v6576
    %v6584 = vsel %vm3313, %v6580, %v6574
    %v6585 = vmul.f32 %v6583, %v3324
    %v6586 = vmul.f32 %v6582, %v3328
    %v6587 = vmul.f32 %v6581, %v3332
    %v6588 = vmul.f32 %v6584, %v3336
    %s6589 = scalar_lea.vmem %s7, 28
    %v6590 = vld [vmem:[%s6589] sm:$0x7]
    %v6592 = vsel %vm200, %v6590, 0
    %v6595 = vsel %vm204, %v6585, 0
    %v6598 = vsel %vm204, %v6586, 0
    %v6601 = vsel %vm204, %v6587, 0
    %v6604 = vsel %vm204, %v6588, 0
    %6606 = vmatprep.subr.mxu0 0.0
    %6607 = vmatpush1.msra.mxu0 0.0
    %6608 = vmatprep.subr.mxu0 0.0
    %6609 = vmatpush1.msra.mxu0 0.0
    %6610 = vmatprep.subr.mxu0 0.0
    %6611 = vmatpush1.msra.mxu0 0.0
    %6612 = vmatprep.subr.mxu0 0.0
    %6613 = vmatpush1.msra.mxu0 0.0
    %6614 = vmatprep.subr.mxu0 0.0
    %6615 = vmatpush1.msra.mxu0 0.0
    %6616 = vmatprep.subr.mxu0 0.0
    %6617 = vmatpush1.msra.mxu0 0.0
    %6618 = vmatprep.subr.mxu0 0.0
    %6619 = vmatpush1.msra.mxu0 0.0
    %6620 = vmatprep.subr.mxu0 0.0
    %6621 = vmatpush1.msra.mxu0 0.0
    %6622 = vmatprep.subr.mxu0 0.0
    %6623 = vmatpush1.msra.mxu0 0.0
    %6624 = vmatprep.subr.mxu0 0.0
    %6625 = vmatpush1.msra.mxu0 0.0
    %6626 = vmatprep.subr.mxu0 0.0
    %6627 = vmatpush1.msra.mxu0 0.0
    %6628 = vmatprep.subr.mxu0 0.0
    %6629 = vmatpush1.msra.mxu0 0.0
    %6630 = vmatprep.subr.mxu0 0.0
    %6631 = vmatpush1.msra.mxu0 0.0
    %6632 = vmatprep.subr.mxu0 0.0
    %6633 = vmatpush1.msra.mxu0 0.0
    %6634 = vmatprep.subr.mxu0 0.0
    %6635 = vmatpush1.msra.mxu0 0.0
    %6636 = vmatprep.subr.mxu0 %v6598
    %6637 = vmatpush1.msra.mxu0 %v6595
    %6638 = vmatprep.subr.mxu0 0.0
    %6639 = vmatpush2.msra.mxu0 0.0
    %6640 = vmatprep.subr.mxu0 0.0
    %6641 = vmatpush2.msra.mxu0 0.0
    %6642 = vmatprep.subr.mxu0 0.0
    %6643 = vmatpush2.msra.mxu0 0.0
    %6644 = vmatprep.subr.mxu0 0.0
    %6645 = vmatpush2.msra.mxu0 0.0
    %6646 = vmatprep.subr.mxu0 0.0
    %6647 = vmatpush2.msra.mxu0 0.0
    %6648 = vmatprep.subr.mxu0 0.0
    %6649 = vmatpush2.msra.mxu0 0.0
    %6650 = vmatprep.subr.mxu0 0.0
    %6651 = vmatpush2.msra.mxu0 0.0
    %6652 = vmatprep.subr.mxu0 0.0
    %6653 = vmatpush2.msra.mxu0 0.0
    %6654 = vmatprep.subr.mxu0 0.0
    %6655 = vmatpush2.msra.mxu0 0.0
    %6656 = vmatprep.subr.mxu0 0.0
    %6657 = vmatpush2.msra.mxu0 0.0
    %6658 = vmatprep.subr.mxu0 0.0
    %6659 = vmatpush2.msra.mxu0 0.0
    %6660 = vmatprep.subr.mxu0 0.0
    %6661 = vmatpush2.msra.mxu0 0.0
    %6662 = vmatprep.subr.mxu0 0.0
    %6663 = vmatpush2.msra.mxu0 0.0
    %6664 = vmatprep.subr.mxu0 0.0
    %6665 = vmatpush2.msra.mxu0 0.0
    %6666 = vmatprep.subr.mxu0 0.0
    %6667 = vmatpush2.msra.mxu0 0.0
    %6668 = vmatprep.subr.mxu0 0.0
    %6669 = vmatpush2.msra.mxu0 0.0
    %6670 = vmatprep.mubr.f32.mxu0 0.0
    %6671 = vmatmul.mubr.f32.gmra.mxu0 %v6592
    %v6672 = vpop.f32.mrf.mxu0
    %v6673 = vadd.f32 0.0, %v6672
    %v6674 = vpop.f32.mrf.mxu0
    %v6675 = vadd.f32 0.0, %v6674
    %6676 = vdwg.mxu0
    %6677 = vmatprep.subr.mxu0 0.0
    %6678 = vmatpush1.msra.mxu0 0.0
    %6679 = vmatprep.subr.mxu0 0.0
    %6680 = vmatpush1.msra.mxu0 0.0
    %6681 = vmatprep.subr.mxu0 0.0
    %6682 = vmatpush1.msra.mxu0 0.0
    %6683 = vmatprep.subr.mxu0 0.0
    %6684 = vmatpush1.msra.mxu0 0.0
    %6685 = vmatprep.subr.mxu0 0.0
    %6686 = vmatpush1.msra.mxu0 0.0
    %6687 = vmatprep.subr.mxu0 0.0
    %6688 = vmatpush1.msra.mxu0 0.0
    %6689 = vmatprep.subr.mxu0 0.0
    %6690 = vmatpush1.msra.mxu0 0.0
    %6691 = vmatprep.subr.mxu0 0.0
    %6692 = vmatpush1.msra.mxu0 0.0
    %6693 = vmatprep.subr.mxu0 0.0
    %6694 = vmatpush1.msra.mxu0 0.0
    %6695 = vmatprep.subr.mxu0 0.0
    %6696 = vmatpush1.msra.mxu0 0.0
    %6697 = vmatprep.subr.mxu0 0.0
    %6698 = vmatpush1.msra.mxu0 0.0
    %6699 = vmatprep.subr.mxu0 0.0
    %6700 = vmatpush1.msra.mxu0 0.0
    %6701 = vmatprep.subr.mxu0 0.0
    %6702 = vmatpush1.msra.mxu0 0.0
    %6703 = vmatprep.subr.mxu0 0.0
    %6704 = vmatpush1.msra.mxu0 0.0
    %6705 = vmatprep.subr.mxu0 0.0
    %6706 = vmatpush1.msra.mxu0 0.0
    %6707 = vmatprep.subr.mxu0 %v6604
    %6708 = vmatpush1.msra.mxu0 %v6601
    %6709 = vmatprep.subr.mxu0 0.0
    %6710 = vmatpush2.msra.mxu0 0.0
    %6711 = vmatprep.subr.mxu0 0.0
    %6712 = vmatpush2.msra.mxu0 0.0
    %6713 = vmatprep.subr.mxu0 0.0
    %6714 = vmatpush2.msra.mxu0 0.0
    %6715 = vmatprep.subr.mxu0 0.0
    %6716 = vmatpush2.msra.mxu0 0.0
    %6717 = vmatprep.subr.mxu0 0.0
    %6718 = vmatpush2.msra.mxu0 0.0
    %6719 = vmatprep.subr.mxu0 0.0
    %6720 = vmatpush2.msra.mxu0 0.0
    %6721 = vmatprep.subr.mxu0 0.0
    %6722 = vmatpush2.msra.mxu0 0.0
    %6723 = vmatprep.subr.mxu0 0.0
    %6724 = vmatpush2.msra.mxu0 0.0
    %6725 = vmatprep.subr.mxu0 0.0
    %6726 = vmatpush2.msra.mxu0 0.0
    %6727 = vmatprep.subr.mxu0 0.0
    %6728 = vmatpush2.msra.mxu0 0.0
    %6729 = vmatprep.subr.mxu0 0.0
    %6730 = vmatpush2.msra.mxu0 0.0
    %6731 = vmatprep.subr.mxu0 0.0
    %6732 = vmatpush2.msra.mxu0 0.0
    %6733 = vmatprep.subr.mxu0 0.0
    %6734 = vmatpush2.msra.mxu0 0.0
    %6735 = vmatprep.subr.mxu0 0.0
    %6736 = vmatpush2.msra.mxu0 0.0
    %6737 = vmatprep.subr.mxu0 0.0
    %6738 = vmatpush2.msra.mxu0 0.0
    %6739 = vmatprep.subr.mxu0 0.0
    %6740 = vmatpush2.msra.mxu0 0.0
    %6741 = vmatprep.mubr.f32.mxu0 0.0
    %6742 = vmatmul.mubr.f32.gmra.mxu0 %v6592
    %v6743 = vpop.f32.mrf.mxu0
    %v6744 = vadd.f32 0.0, %v6743
    %v6745 = vpop.f32.mrf.mxu0
    %v6746 = vadd.f32 0.0, %v6745
    %6747 = vdwg.mxu0
    %v6748 = vadd.f32 %v6569, %v6673
    %v6749 = vadd.f32 %v6570, %v6675
    %v6750 = vadd.f32 %v6571, %v6744
    %v6751 = vadd.f32 %v6572, %v6746
    %6752 = vrot.lane.b32.xlu0 %v5341, 111
    %v6753 = vpop.permute.xlu0 %6752
    %6754 = vrot.lane.b32.xlu0 %v5342, 111
    %v6755 = vpop.permute.xlu0 %6754
    %6756 = vrot.lane.b32.xlu0 %v5343, 111
    %v6757 = vpop.permute.xlu0 %6756
    %6758 = vrot.lane.b32.xlu0 %v5344, 111
    %v6759 = vpop.permute.xlu0 %6758
    %v6760 = vsel %vm3516, %v6757, %v6759
    %v6761 = vsel %vm3516, %v6755, %v6757
    %v6762 = vsel %vm3516, %v6753, %v6755
    %v6763 = vsel %vm3516, %v6759, %v6753
    %v6764 = vmul.f32 %v6762, %v3527
    %v6765 = vmul.f32 %v6761, %v3531
    %v6766 = vmul.f32 %v6760, %v3535
    %v6767 = vmul.f32 %v6763, %v3539
    %s6768 = scalar_lea.vmem %s7, 32
    %v6769 = vld [vmem:[%s6768] sm:$0x7]
    %v6771 = vsel %vm200, %v6769, 0
    %v6774 = vsel %vm204, %v6764, 0
    %v6777 = vsel %vm204, %v6765, 0
    %v6780 = vsel %vm204, %v6766, 0
    %v6783 = vsel %vm204, %v6767, 0
    %6785 = vmatprep.subr.mxu0 0.0
    %6786 = vmatpush1.msra.mxu0 0.0
    %6787 = vmatprep.subr.mxu0 0.0
    %6788 = vmatpush1.msra.mxu0 0.0
    %6789 = vmatprep.subr.mxu0 0.0
    %6790 = vmatpush1.msra.mxu0 0.0
    %6791 = vmatprep.subr.mxu0 0.0
    %6792 = vmatpush1.msra.mxu0 0.0
    %6793 = vmatprep.subr.mxu0 0.0
    %6794 = vmatpush1.msra.mxu0 0.0
    %6795 = vmatprep.subr.mxu0 0.0
    %6796 = vmatpush1.msra.mxu0 0.0
    %6797 = vmatprep.subr.mxu0 0.0
    %6798 = vmatpush1.msra.mxu0 0.0
    %6799 = vmatprep.subr.mxu0 0.0
    %6800 = vmatpush1.msra.mxu0 0.0
    %6801 = vmatprep.subr.mxu0 0.0
    %6802 = vmatpush1.msra.mxu0 0.0
    %6803 = vmatprep.subr.mxu0 0.0
    %6804 = vmatpush1.msra.mxu0 0.0
    %6805 = vmatprep.subr.mxu0 0.0
    %6806 = vmatpush1.msra.mxu0 0.0
    %6807 = vmatprep.subr.mxu0 0.0
    %6808 = vmatpush1.msra.mxu0 0.0
    %6809 = vmatprep.subr.mxu0 0.0
    %6810 = vmatpush1.msra.mxu0 0.0
    %6811 = vmatprep.subr.mxu0 0.0
    %6812 = vmatpush1.msra.mxu0 0.0
    %6813 = vmatprep.subr.mxu0 0.0
    %6814 = vmatpush1.msra.mxu0 0.0
    %6815 = vmatprep.subr.mxu0 %v6777
    %6816 = vmatpush1.msra.mxu0 %v6774
    %6817 = vmatprep.subr.mxu0 0.0
    %6818 = vmatpush2.msra.mxu0 0.0
    %6819 = vmatprep.subr.mxu0 0.0
    %6820 = vmatpush2.msra.mxu0 0.0
    %6821 = vmatprep.subr.mxu0 0.0
    %6822 = vmatpush2.msra.mxu0 0.0
    %6823 = vmatprep.subr.mxu0 0.0
    %6824 = vmatpush2.msra.mxu0 0.0
    %6825 = vmatprep.subr.mxu0 0.0
    %6826 = vmatpush2.msra.mxu0 0.0
    %6827 = vmatprep.subr.mxu0 0.0
    %6828 = vmatpush2.msra.mxu0 0.0
    %6829 = vmatprep.subr.mxu0 0.0
    %6830 = vmatpush2.msra.mxu0 0.0
    %6831 = vmatprep.subr.mxu0 0.0
    %6832 = vmatpush2.msra.mxu0 0.0
    %6833 = vmatprep.subr.mxu0 0.0
    %6834 = vmatpush2.msra.mxu0 0.0
    %6835 = vmatprep.subr.mxu0 0.0
    %6836 = vmatpush2.msra.mxu0 0.0
    %6837 = vmatprep.subr.mxu0 0.0
    %6838 = vmatpush2.msra.mxu0 0.0
    %6839 = vmatprep.subr.mxu0 0.0
    %6840 = vmatpush2.msra.mxu0 0.0
    %6841 = vmatprep.subr.mxu0 0.0
    %6842 = vmatpush2.msra.mxu0 0.0
    %6843 = vmatprep.subr.mxu0 0.0
    %6844 = vmatpush2.msra.mxu0 0.0
    %6845 = vmatprep.subr.mxu0 0.0
    %6846 = vmatpush2.msra.mxu0 0.0
    %6847 = vmatprep.subr.mxu0 0.0
    %6848 = vmatpush2.msra.mxu0 0.0
    %6849 = vmatprep.mubr.f32.mxu0 0.0
    %6850 = vmatmul.mubr.f32.gmra.mxu0 %v6771
    %v6851 = vpop.f32.mrf.mxu0
    %v6852 = vadd.f32 0.0, %v6851
    %v6853 = vpop.f32.mrf.mxu0
    %v6854 = vadd.f32 0.0, %v6853
    %6855 = vdwg.mxu0
    %6856 = vmatprep.subr.mxu0 0.0
    %6857 = vmatpush1.msra.mxu0 0.0
    %6858 = vmatprep.subr.mxu0 0.0
    %6859 = vmatpush1.msra.mxu0 0.0
    %6860 = vmatprep.subr.mxu0 0.0
    %6861 = vmatpush1.msra.mxu0 0.0
    %6862 = vmatprep.subr.mxu0 0.0
    %6863 = vmatpush1.msra.mxu0 0.0
    %6864 = vmatprep.subr.mxu0 0.0
    %6865 = vmatpush1.msra.mxu0 0.0
    %6866 = vmatprep.subr.mxu0 0.0
    %6867 = vmatpush1.msra.mxu0 0.0
    %6868 = vmatprep.subr.mxu0 0.0
    %6869 = vmatpush1.msra.mxu0 0.0
    %6870 = vmatprep.subr.mxu0 0.0
    %6871 = vmatpush1.msra.mxu0 0.0
    %6872 = vmatprep.subr.mxu0 0.0
    %6873 = vmatpush1.msra.mxu0 0.0
    %6874 = vmatprep.subr.mxu0 0.0
    %6875 = vmatpush1.msra.mxu0 0.0
    %6876 = vmatprep.subr.mxu0 0.0
    %6877 = vmatpush1.msra.mxu0 0.0
    %6878 = vmatprep.subr.mxu0 0.0
    %6879 = vmatpush1.msra.mxu0 0.0
    %6880 = vmatprep.subr.mxu0 0.0
    %6881 = vmatpush1.msra.mxu0 0.0
    %6882 = vmatprep.subr.mxu0 0.0
    %6883 = vmatpush1.msra.mxu0 0.0
    %6884 = vmatprep.subr.mxu0 0.0
    %6885 = vmatpush1.msra.mxu0 0.0
    %6886 = vmatprep.subr.mxu0 %v6783
    %6887 = vmatpush1.msra.mxu0 %v6780
    %6888 = vmatprep.subr.mxu0 0.0
    %6889 = vmatpush2.msra.mxu0 0.0
    %6890 = vmatprep.subr.mxu0 0.0
    %6891 = vmatpush2.msra.mxu0 0.0
    %6892 = vmatprep.subr.mxu0 0.0
    %6893 = vmatpush2.msra.mxu0 0.0
    %6894 = vmatprep.subr.mxu0 0.0
    %6895 = vmatpush2.msra.mxu0 0.0
    %6896 = vmatprep.subr.mxu0 0.0
    %6897 = vmatpush2.msra.mxu0 0.0
    %6898 = vmatprep.subr.mxu0 0.0
    %6899 = vmatpush2.msra.mxu0 0.0
    %6900 = vmatprep.subr.mxu0 0.0
    %6901 = vmatpush2.msra.mxu0 0.0
    %6902 = vmatprep.subr.mxu0 0.0
    %6903 = vmatpush2.msra.mxu0 0.0
    %6904 = vmatprep.subr.mxu0 0.0
    %6905 = vmatpush2.msra.mxu0 0.0
    %6906 = vmatprep.subr.mxu0 0.0
    %6907 = vmatpush2.msra.mxu0 0.0
    %6908 = vmatprep.subr.mxu0 0.0
    %6909 = vmatpush2.msra.mxu0 0.0
    %6910 = vmatprep.subr.mxu0 0.0
    %6911 = vmatpush2.msra.mxu0 0.0
    %6912 = vmatprep.subr.mxu0 0.0
    %6913 = vmatpush2.msra.mxu0 0.0
    %6914 = vmatprep.subr.mxu0 0.0
    %6915 = vmatpush2.msra.mxu0 0.0
    %6916 = vmatprep.subr.mxu0 0.0
    %6917 = vmatpush2.msra.mxu0 0.0
    %6918 = vmatprep.subr.mxu0 0.0
    %6919 = vmatpush2.msra.mxu0 0.0
    %6920 = vmatprep.mubr.f32.mxu0 0.0
    %6921 = vmatmul.mubr.f32.gmra.mxu0 %v6771
    %v6922 = vpop.f32.mrf.mxu0
    %v6923 = vadd.f32 0.0, %v6922
    %v6924 = vpop.f32.mrf.mxu0
    %v6925 = vadd.f32 0.0, %v6924
    %6926 = vdwg.mxu0
    %v6927 = vadd.f32 %v6748, %v6852
    %v6928 = vadd.f32 %v6749, %v6854
    %v6929 = vadd.f32 %v6750, %v6923
    %v6930 = vadd.f32 %v6751, %v6925
    %v6931 = vld [vmem:[%s12] sm:$0x7]
    %6933 = vset.pattern.permute.xlu0 0
    %6934 = vperm.xlu0 %6933, %v6931
    %v6935 = vpop.permute.xlu0 %6934
    %v6937 = vadd.f32 %v6927, %v6935
    %v6938 = vadd.f32 %v6928, %v6935
    %v6939 = vadd.f32 %v6929, %v6935
    %v6940 = vadd.f32 %v6930, %v6935
    %v6943 = vcombine.low %v6937, %v6938
    %6945 = vst [vmem:[%s16] sm:$0x77] %v6943
    %v6948 = vcombine.low %v6939, %v6940
    %s6950 = scalar_lea.vmem %s16, 8
    %6951 = vst [vmem:[%s6950] sm:$0x77] %v6948
    // Predicated region
    $region70: #{tpu_custom_call.1} parent=1 // pred_check
      _
    $region71: #{tpu_custom_call.1} parent=1 // pred_check_branch
      %6953 = sbr.rel (0) target = $region73
    $region72: #{tpu_custom_call.1} parent=1 // pred_region
      _
    $region73: #{tpu_custom_call.1} parent=1 // pred_fallthru
      _
    // Predicated region
    $region74: #{tpu_custom_call.1} parent=1 // pred_check
      _
    $region75: #{tpu_custom_call.1} parent=1 // pred_check_branch
      %6955 = sbr.rel (0) target = $region77
    $region76: #{tpu_custom_call.1} parent=1 // pred_region
      _
    $region77: #{tpu_custom_call.1} parent=1 // pred_fallthru
      _
    %6956 = vsyncpa [#allocation4], 1

</llo_original>
